<compile_context>
chip_gen: v7x
topology: tpu7x:2x2x1
jax: 0.10.0
libtpu: 0.0.40
codegen_flags: <defaults>
</compile_context>

<pallas_src>
import numpy as np
import jax
import jax.numpy as jnp
from jax.experimental import pallas as pl
from jax.experimental.pallas import tpu as pltpu

MXU_DTYPE = jnp.bfloat16   # MXU operand dtype (accumulation stays f32)


# ----------------------------------------------------------------------------
# Host-side constant 0/1 matrices for the batch-major flattened lane layout.
# Flat position of (batch b, position l) at per-batch length `seg` is b*seg + l.
# ----------------------------------------------------------------------------
def _pool_matrix(bt, seg):
    """x (C, bt*seg) @ S -> (C, bt*seg); left half = even taps, right half = odd taps."""
    lv, lh = seg, seg // 2
    ltot, htot = bt * lv, bt * lh
    S = np.zeros((ltot, 2 * htot), np.float32)
    j = np.arange(htot)
    b, m = j // lh, j % lh
    S[b * lv + 2 * m, j] = 1.0
    S[b * lv + 2 * m + 1, htot + j] = 1.0
    return S


def _shift_matrices(bt, seg):
    """y @ Sp -> y shifted right by one within each batch segment (zero at l==0);
       y @ Sn -> y shifted left by one within each segment (zero at l==seg-1)."""
    n = bt * seg
    Sp = np.zeros((n, n), np.float32)
    Sn = np.zeros((n, n), np.float32)
    i = np.arange(n)
    kp = (i % seg) != (seg - 1)
    Sp[i[kp], i[kp] + 1] = 1.0
    kn = (i % seg) != 0
    Sn[i[kn], i[kn] - 1] = 1.0
    return Sp, Sn


def _up_place_matrices(bt, lh):
    """nearest-upsample(2) + k=2 'same' conv placement:  r = (w0@u)@A + (w1@u)@B.
    PyTorch pads (left=0, right=1) for k=2 'same':
      r[2l]   = w0@u[l] + w1@u[l]
      r[2l+1] = w0@u[l] + w1@u[l+1]   (u[lh] := 0)
    """
    lo = 2 * lh
    htot, ltot = bt * lh, bt * lo
    A = np.zeros((htot, ltot), np.float32)
    B = np.zeros((htot, ltot), np.float32)
    j = np.arange(htot)
    b, l = j // lh, j % lh
    A[j, b * lo + 2 * l] = 1.0
    A[j, b * lo + 2 * l + 1] = 1.0
    B[j, b * lo + 2 * l] = 1.0
    sel = l >= 1
    B[j[sel], b[sel] * lo + 2 * l[sel] - 1] = 1.0
    return A, B


# ----------------------------------------------------------------------------
# Host-side folding/packing of raw params into two blobs (weights bf16, aux f32).
# Every entry is row-padded to a multiple of 8 so in-kernel slices stay aligned.
# ----------------------------------------------------------------------------
def _pack(entries, width, dtype):
    plan, rows, off = {}, [], 0
    for name, arr in entries:
        arr = jnp.asarray(arr, jnp.float32)
        r, c = arr.shape
        assert c <= width, (name, c, width)
        rp = r + (-r) % 8
        buf = jnp.zeros((rp, width), jnp.float32).at[:r, :c].set(arr)
        plan[name] = (off, r, c)
        rows.append(buf)
        off += rp
    return jnp.concatenate(rows, axis=0).astype(dtype), plan


def pack_params(P, C, L, bt):
    wents, aents = [], []

    def addw(name, arr):
        wents.append((name, arr))

    def adda(name, arr):
        aents.append((name, arr))

    # shift matrices per distinct per-batch segment length
    for seg in sorted({L, L // 2, L // 4, L // 8, L // 16}):
        Sp, Sn = _shift_matrices(bt, seg)
        addw(f"Sprev/{seg}", Sp)
        addw(f"Snext/{seg}", Sn)
    # pool selection matrices (pool0 acts on seg=L, ..., pool3 on seg=L/8)
    for k, seg in enumerate((L, L // 2, L // 4, L // 8)):
        addw(f"pool{k}", _pool_matrix(bt, seg))

    def add_resblock(name, raw, piece_channels):
        s1, t1 = raw["bn1"]
        s2, t2 = raw["bn2"]
        s3, t3 = raw["bn3"]
        w1, b1 = raw["conv1"]
        w2, b2 = raw["conv2"]
        w3, b3 = raw["conv3"]
        ws, bs = raw["skip"]
        off = 0
        for i, pc in enumerate(piece_channels):       # split per input piece (no in-kernel concat)
            adda(f"{name}/st1/{i}", jnp.stack([s1[off:off + pc], t1[off:off + pc]], axis=1))
            addw(f"{name}/w1/{i}", w1[:, off:off + pc, 0])
            addw(f"{name}/wsk/{i}", ws[:, off:off + pc, 0])
            off += pc
        adda(f"{name}/st2", jnp.stack([s2, t2 + s2 * b1], axis=1))   # conv1 bias folded into bn2
        addw(f"{name}/w2p", w2[:, :, 0])
        addw(f"{name}/w2c", w2[:, :, 1])
        addw(f"{name}/w2n", w2[:, :, 2])
        adda(f"{name}/st3", jnp.stack([s3, t3 + s3 * b2], axis=1))   # conv2 bias folded into bn3
        addw(f"{name}/w3", w3[:, :, 0])
        adda(f"{name}/b3s", jnp.stack([b3 + bs, jnp.zeros_like(b3)], axis=1))

    add_resblock("contr1", P["contr1"], [C])
    add_resblock("contr2", P["contr2"], [2 * C])
    add_resblock("contr3", P["contr3"], [4 * C])
    add_resblock("contr5", P["contr5"], [8 * C])
    for name, lh in (("up3", L // 16), ("up2", L // 8), ("up1", L // 4), ("up0", L // 2)):
        wc, bc = P[name]
        addw(f"{name}/w0", wc[:, :, 0])
        addw(f"{name}/w1", wc[:, :, 1])
        A, B = _up_place_matrices(bt, lh)
        addw(f"{name}/A", A)
        addw(f"{name}/B", B)
        adda(f"{name}/bias", jnp.stack([bc, jnp.zeros_like(bc)], axis=1))
    add_resblock("exp3", P["exp3"], [8 * C, 8 * C])
    add_resblock("exp2", P["exp2"], [4 * C, 4 * C])
    add_resblock("exp1", P["exp1"], [2 * C, 2 * C])
    add_resblock("exp0", P["exp0"], [C, C])

    maxc = max(arr.shape[1] for _, arr in wents)
    wpad = ((maxc + 127) // 128) * 128
    w_blob, wplan = _pack(wents, wpad, MXU_DTYPE)
    a_blob, aplan = _pack(aents, 2, jnp.float32)
    return w_blob, a_blob, wplan, aplan


# ----------------------------------------------------------------------------
# The fused whole-network kernel (one batch tile per grid step).
# ----------------------------------------------------------------------------
def make_kernel(wplan, aplan, L):
    f32 = jnp.float32

    def wget(ref, name):                      # static slice of the bf16 weight blob
        off, r, c = wplan[name]
        return ref[off:off + r, 0:c]

    def aget(ref, name):                      # static slice of the f32 scale/shift/bias blob
        off, r, _ = aplan[name]
        return ref[off:off + r, 0:2]

    def dot_w(wm, x):
        return jnp.dot(wm, x.astype(wm.dtype), preferred_element_type=f32)

    def affine_relu(x, st):                   # folded inference BatchNorm + ReLU
        return jnp.maximum(x * st[:, 0:1] + st[:, 1:2], 0.0)

    def maxpool(wref, pname, x):              # MaxPool1d(2): one selection dot + lane-half max
        S = wget(wref, pname)
        pair = jnp.dot(x.astype(S.dtype), S, preferred_element_type=f32)
        h = pair.shape[1] // 2
        return jnp.maximum(pair[:, :h], pair[:, h:])

    def resblock(wref, aref, name, xs, seg):
        y = None
        for i, xp in enumerate(xs):
            act = affine_relu(xp, aget(aref, f"{name}/st1/{i}"))
            d = dot_w(wget(wref, f"{name}/w1/{i}"), act)
            y = d if y is None else y + d
        y = affine_relu(y, aget(aref, f"{name}/st2"))
        # k=3 'same' conv: shifted copies via 0/1 shift matrices on the idle MXU
        yb = y.astype(MXU_DTYPE)
        ypb = jnp.dot(yb, wget(wref, f"Sprev/{seg}"),
                      preferred_element_type=f32).astype(MXU_DTYPE)
        ynb = jnp.dot(yb, wget(wref, f"Snext/{seg}"),
                      preferred_element_type=f32).astype(MXU_DTYPE)
        y = (jnp.dot(wget(wref, f"{name}/w2c"), yb, preferred_element_type=f32)
             + jnp.dot(wget(wref, f"{name}/w2p"), ypb, preferred_element_type=f32)
             + jnp.dot(wget(wref, f"{name}/w2n"), ynb, preferred_element_type=f32))
        y = affine_relu(y, aget(aref, f"{name}/st3"))
        out = dot_w(wget(wref, f"{name}/w3"), y)
        for i, xp in enumerate(xs):
            out = out + dot_w(wget(wref, f"{name}/wsk/{i}"), xp)
        return out + aget(aref, f"{name}/b3s")[:, 0:1]

    def upsample(wref, aref, name, u):
        ub = u.astype(MXU_DTYPE)
        p0 = jnp.dot(wget(wref, f"{name}/w0"), ub,
                     preferred_element_type=f32).astype(MXU_DTYPE)
        p1 = jnp.dot(wget(wref, f"{name}/w1"), ub,
                     preferred_element_type=f32).astype(MXU_DTYPE)
        r = (jnp.dot(p0, wget(wref, f"{name}/A"), preferred_element_type=f32)
             + jnp.dot(p1, wget(wref, f"{name}/B"), preferred_element_type=f32))
        return r + aget(aref, f"{name}/bias")[:, 0:1]

    def kernel(x_ref, w_ref, a_ref, o_ref):
        l0 = x_ref[...]                                   # (C, B_tile*L), f32
        l1 = resblock(w_ref, a_ref, "contr1", [maxpool(w_ref, "pool0", l0)], L // 2)
        l2 = resblock(w_ref, a_ref, "contr2", [maxpool(w_ref, "pool1", l1)], L // 4)
        l3 = resblock(w_ref, a_ref, "contr3", [maxpool(w_ref, "pool2", l2)], L // 8)
        l5 = resblock(w_ref, a_ref, "contr5", [maxpool(w_ref, "pool3", l3)], L // 16)
        t = l5
        for up_name, ex_name, skip, seg_out in (("up3", "exp3", l3, L // 8),
                                                ("up2", "exp2", l2, L // 4),
                                                ("up1", "exp1", l1, L // 2),
                                                ("up0", "exp0", l0, L)):
            r = upsample(w_ref, a_ref, up_name, t)
            t = resblock(w_ref, a_ref, ex_name, [skip, r], seg_out)
        o_ref[...] = t.astype(o_ref.dtype)

    return kernel


def _pick_b_tile(N, C, L):
    """Batch elements per grid step, bounded by a rough VMEM activation budget."""
    per_elem = 64 * C * L                       # generous bytes of resident activations / sample
    cap = max(1, (24 * 1024 * 1024) // per_elem)
    if N <= cap:
        return N                                # whole batch in one step (block = full dims)
    best = 0
    for d in range(1, min(N, cap) + 1):
        if N % d == 0 and (d * L) % 128 == 0:   # keep lane-dim a multiple of 128
            best = d
    if best == 0:
        # TODO(synk): no lane-aligned sub-batch tile divides N; fall back to full batch.
        return N
    return best


def unet1d_forward(x, raw_params):
    N, C, L = x.shape
    assert L % 16 == 0 and L >= 16, "length must be divisible by 16 (4 pool levels)"
    bt = _pick_b_tile(N, C, L)
    w_blob, a_blob, wplan, aplan = pack_params(raw_params, C, L, bt)
    kernel = make_kernel(wplan, aplan, L)

    # lane-dense, batch-major layout: (N, C, L) -> (C, N*L); wrapper-side layout plumbing only
    xt = jnp.transpose(x, (1, 0, 2)).reshape(C, N * L)
    BL = bt * L
    out_t = pl.pallas_call(
        kernel,
        out_shape=jax.ShapeDtypeStruct((C, N * L), jnp.float32),
        grid=(N // bt,),
        in_specs=[
            pl.BlockSpec((C, BL), lambda i: (0, i)),
            pl.BlockSpec(w_blob.shape, lambda i: (0, 0)),   # loaded once, revisited
            pl.BlockSpec(a_blob.shape, lambda i: (0, 0)),
        ],
        out_specs=pl.BlockSpec((C, BL), lambda i: (0, i)),
        compiler_params=pltpu.CompilerParams(
            dimension_semantics=("parallel",),              # batch tiles across cores
            vmem_limit_bytes=32 * 1024 * 1024,
        ),
    )(xt, w_blob, a_blob)
    return jnp.transpose(out_t.reshape(C, N, L), (1, 0, 2))


# ----------------------------------------------------------------------------
# Deterministic synthetic parameters (PyTorch-like raw form).
# ----------------------------------------------------------------------------
def init_conv(key, cout, cin, k):
    kw, kb = jax.random.split(key)
    bound = 1.0 / (cin * k) ** 0.5
    w = jax.random.uniform(kw, (cout, cin, k), jnp.float32, -bound, bound)
    b = jax.random.uniform(kb, (cout,), jnp.float32, -bound, bound)
    return w, b


def init_bn(key, c, eps=1e-5):
    k1, k2, k3, k4 = jax.random.split(key, 4)
    gamma = 1.0 + 0.1 * jax.random.normal(k1, (c,), jnp.float32)
    beta = 0.1 * jax.random.normal(k2, (c,), jnp.float32)
    rmean = 0.1 * jax.random.normal(k3, (c,), jnp.float32)
    rvar = 1.0 + 0.1 * jax.random.uniform(k4, (c,), jnp.float32)
    scale = gamma / jnp.sqrt(rvar + eps)
    shift = beta - rmean * scale
    return scale, shift


def init_resblock_raw(key, cin, cmid, cout):
    ks = jax.random.split(key, 7)
    return {
        "bn1": init_bn(ks[0], cin),
        "conv1": init_conv(ks[1], cmid, cin, 1),
        "bn2": init_bn(ks[2], cmid),
        "conv2": init_conv(ks[3], cmid, cmid, 3),
        "bn3": init_bn(ks[4], cmid),
        "conv3": init_conv(ks[5], cout, cmid, 1),
        "skip": init_conv(ks[6], cout, cin, 1),
    }


def init_up_raw(key, cin):
    return init_conv(key, cin // 2, cin, 2)


def init_unet_params(key, C):
    ks = jax.random.split(key, 12)
    return {
        "contr1": init_resblock_raw(ks[0], C, C, 2 * C),
        "contr2": init_resblock_raw(ks[1], 2 * C, 2 * C, 4 * C),
        "contr3": init_resblock_raw(ks[2], 4 * C, 4 * C, 8 * C),
        "contr5": init_resblock_raw(ks[3], 8 * C, 8 * C, 16 * C),
        "up3": init_up_raw(ks[4], 16 * C),
        "exp3": init_resblock_raw(ks[5], 16 * C, 8 * C, 8 * C),
        "up2": init_up_raw(ks[6], 8 * C),
        "exp2": init_resblock_raw(ks[7], 8 * C, 4 * C, 4 * C),
        "up1": init_up_raw(ks[8], 4 * C),
        "exp1": init_resblock_raw(ks[9], 4 * C, 2 * C, 2 * C),
        "up0": init_up_raw(ks[10], 2 * C),
        "exp0": init_resblock_raw(ks[11], 2 * C, C, C),
    }


# ----------------------------------------------------------------------------
# Pure-JAX f32 reference of the PyTorch module (for in-script verification).
# ----------------------------------------------------------------------------
def _ref_conv1d(x, w, b):
    K = w.shape[2]
    total = K - 1
    left = total // 2                                   # PyTorch 'same' convention
    right = total - left
    xp = jnp.pad(x, ((0, 0), (0, 0), (left, right)))
    L = x.shape[2]
    acc = jnp.zeros((x.shape[0], w.shape[0], L), jnp.float32)
    for j in range(K):
        acc = acc + jnp.einsum("oc,ncl->nol", w[:, :, j], xp[:, :, j:j + L],
                               precision="highest")
    return acc + b[None, :, None]


def _ref_bn_relu(x, bn):
    s, t = bn
    return jnp.maximum(x * s[None, :, None] + t[None, :, None], 0.0)


def _ref_resblock(x, p):
    y = _ref_bn_relu(x, p["bn1"])
    y = _ref_conv1d(y, *p["conv1"])
    y = _ref_bn_relu(y, p["bn2"])
    y = _ref_conv1d(y, *p["conv2"])
    y = _ref_bn_relu(y, p["bn3"])
    y = _ref_conv1d(y, *p["conv3"])
    z = _ref_conv1d(x, *p["skip"])
    return y + z


def _ref_maxpool2(x):
    n, c, L = x.shape
    return jnp.max(x.reshape(n, c, L // 2, 2), axis=3)


def _ref_upblock(x, p):
    return _ref_conv1d(jnp.repeat(x, 2, axis=2), *p)


def unet1d_reference(x, P):
    l0 = x
    l1 = _ref_resblock(_ref_maxpool2(l0), P["contr1"])
    l2 = _ref_resblock(_ref_maxpool2(l1), P["contr2"])
    l3 = _ref_resblock(_ref_maxpool2(l2), P["contr3"])
    l5 = _ref_resblock(_ref_maxpool2(l3), P["contr5"])
    t = l5
    for up_name, ex_name, skip in (("up3", "exp3", l3), ("up2", "exp2", l2),
                                   ("up1", "exp1", l1), ("up0", "exp0", l0)):
        r = _ref_upblock(t, P[up_name])
        t = _ref_resblock(jnp.concatenate([skip, r], axis=1), P[ex_name])
    return t


if __name__ == "__main__":
    key = jax.random.PRNGKey(0)
    N, C, L = 2, 4, 64                       # small shapes; L divisible by 16
    kx, kp = jax.random.split(key)
    x = jax.random.normal(kx, (N, C, L), jnp.float32)

    raw = init_unet_params(kp, C)

    out = unet1d_forward(x, raw)
    jax.block_until_ready(out)
    assert out.shape == (N, C, L), out.shape

    ref = unet1d_reference(x, raw)
    err = float(jnp.max(jnp.abs(out - ref)) / (jnp.max(jnp.abs(ref)) + 1e-6))
    # bf16 MXU operands bound the error; tolerance matches the previous verified version.
    assert err < 5e-2, f"kernel/reference mismatch: normalized max err = {err:.3e}"
    print("KERNEL_OK")
</pallas_src>

<mosaic_0001>
module attributes {stable_mosaic.version = 11 : i64} {
  func.func @kernel(%arg0: i32, %arg1: memref<4x128xf32, #tpu.memory_space<vmem>>, %arg2: memref<2112x128xbf16, #tpu.memory_space<vmem>>, %arg3: memref<696x2xf32, #tpu.memory_space<vmem>>, %arg4: memref<4x128xf32, #tpu.memory_space<vmem>>) attributes {dimension_semantics = [#tpu.dimension_semantics<parallel>], iteration_bounds = array<i64: 1>, scalar_prefetch = 0 : i64, scratch_operands = 0 : i64, tpu.core_type = #tpu.core_type<tc>, window_params = [{transform_indices = @transform_0, window_bounds = array<i64: 4, 128>}, {pipeline_mode = #tpu.pipeline_mode<synchronous>, transform_indices = @transform_1, window_bounds = array<i64: 2112, 128>}, {pipeline_mode = #tpu.pipeline_mode<synchronous>, transform_indices = @transform_2, window_bounds = array<i64: 696, 2>}, {transform_indices = @transform_3, window_bounds = array<i64: 4, 128>}]} {
    %c0 = arith.constant 0 : index
    %c0_0 = arith.constant 0 : index
    %0 = vector.load %arg1[%c0, %c0_0] : memref<4x128xf32, #tpu.memory_space<vmem>>, vector<4x128xf32>
    %c496 = arith.constant 496 : index
    %c0_1 = arith.constant 0 : index
    %1 = vector.load %arg2[%c496, %c0_1] : memref<2112x128xbf16, #tpu.memory_space<vmem>>, vector<128x128xbf16>
    %2 = arith.truncf %0 : vector<4x128xf32> to vector<4x128xbf16>
    %cst = arith.constant dense<0.000000e+00> : vector<4x128xf32>
    %3 = tpu.matmul %2, %1, %cst {dimension_numbers = #tpu.dot_dimension_numbers<[1], [0], [0], [1], [0, 0, 1, 1], [], []>} : vector<4x128xbf16>, vector<128x128xbf16>, vector<4x128xf32> -> vector<4x128xf32>
    %4 = vector.extract_strided_slice %3 {offsets = [0, 0], sizes = [4, 64], strides = [1, 1]} : vector<4x128xf32> to vector<4x64xf32>
    %5 = vector.extract_strided_slice %3 {offsets = [0, 64], sizes = [4, 64], strides = [1, 1]} : vector<4x128xf32> to vector<4x64xf32>
    %6 = arith.maximumf %4, %5 : vector<4x64xf32>
    %c0_2 = arith.constant 0 : index
    %c0_3 = arith.constant 0 : index
    %7 = vector.load %arg3[%c0_2, %c0_3] : memref<696x2xf32, #tpu.memory_space<vmem>>, vector<4x2xf32>
    %8 = vector.extract_strided_slice %7 {offsets = [0, 0], sizes = [4, 1], strides = [1, 1]} : vector<4x2xf32> to vector<4x1xf32>
    %9 = vector.broadcast %8 : vector<4x1xf32> to vector<4x64xf32>
    %10 = arith.mulf %6, %9 : vector<4x64xf32>
    %11 = vector.extract_strided_slice %7 {offsets = [0, 1], sizes = [4, 1], strides = [1, 1]} : vector<4x2xf32> to vector<4x1xf32>
    %12 = vector.broadcast %11 : vector<4x1xf32> to vector<4x64xf32>
    %13 = arith.addf %10, %12 : vector<4x64xf32>
    %cst_4 = arith.constant 0.000000e+00 : f32
    %14 = vector.broadcast %cst_4 : f32 to vector<4x64xf32>
    %15 = arith.maximumf %13, %14 : vector<4x64xf32>
    %c736 = arith.constant 736 : index
    %c0_5 = arith.constant 0 : index
    %16 = vector.load %arg2[%c736, %c0_5] : memref<2112x128xbf16, #tpu.memory_space<vmem>>, vector<4x4xbf16>
    %17 = arith.truncf %15 : vector<4x64xf32> to vector<4x64xbf16>
    %cst_6 = arith.constant dense<0.000000e+00> : vector<4x64xf32>
    %18 = tpu.matmul %16, %17, %cst_6 {dimension_numbers = #tpu.dot_dimension_numbers<[1], [0], [0], [1], [0, 0, 1, 1], [], []>} : vector<4x4xbf16>, vector<4x64xbf16>, vector<4x64xf32> -> vector<4x64xf32>
    %c8 = arith.constant 8 : index
    %c0_7 = arith.constant 0 : index
    %19 = vector.load %arg3[%c8, %c0_7] : memref<696x2xf32, #tpu.memory_space<vmem>>, vector<4x2xf32>
    %20 = vector.extract_strided_slice %19 {offsets = [0, 0], sizes = [4, 1], strides = [1, 1]} : vector<4x2xf32> to vector<4x1xf32>
    %21 = vector.broadcast %20 : vector<4x1xf32> to vector<4x64xf32>
    %22 = arith.mulf %18, %21 : vector<4x64xf32>
    %23 = vector.extract_strided_slice %19 {offsets = [0, 1], sizes = [4, 1], strides = [1, 1]} : vector<4x2xf32> to vector<4x1xf32>
    %24 = vector.broadcast %23 : vector<4x1xf32> to vector<4x64xf32>
    %25 = arith.addf %22, %24 : vector<4x64xf32>
    %cst_8 = arith.constant 0.000000e+00 : f32
    %26 = vector.broadcast %cst_8 : f32 to vector<4x64xf32>
    %27 = arith.maximumf %25, %26 : vector<4x64xf32>
    %28 = arith.truncf %27 : vector<4x64xf32> to vector<4x64xbf16>
    %c112 = arith.constant 112 : index
    %c0_9 = arith.constant 0 : index
    %29 = vector.load %arg2[%c112, %c0_9] : memref<2112x128xbf16, #tpu.memory_space<vmem>>, vector<64x64xbf16>
    %cst_10 = arith.constant dense<0.000000e+00> : vector<4x64xf32>
    %30 = tpu.matmul %28, %29, %cst_10 {dimension_numbers = #tpu.dot_dimension_numbers<[1], [0], [0], [1], [0, 0, 1, 1], [], []>} : vector<4x64xbf16>, vector<64x64xbf16>, vector<4x64xf32> -> vector<4x64xf32>
    %31 = arith.truncf %30 : vector<4x64xf32> to vector<4x64xbf16>
    %c176 = arith.constant 176 : index
    %c0_11 = arith.constant 0 : index
    %32 = vector.load %arg2[%c176, %c0_11] : memref<2112x128xbf16, #tpu.memory_space<vmem>>, vector<64x64xbf16>
    %cst_12 = arith.constant dense<0.000000e+00> : vector<4x64xf32>
    %33 = tpu.matmul %28, %32, %cst_12 {dimension_numbers = #tpu.dot_dimension_numbers<[1], [0], [0], [1], [0, 0, 1, 1], [], []>} : vector<4x64xbf16>, vector<64x64xbf16>, vector<4x64xf32> -> vector<4x64xf32>
    %34 = arith.truncf %33 : vector<4x64xf32> to vector<4x64xbf16>
    %c760 = arith.constant 760 : index
    %c0_13 = arith.constant 0 : index
    %35 = vector.load %arg2[%c760, %c0_13] : memref<2112x128xbf16, #tpu.memory_space<vmem>>, vector<4x4xbf16>
    %cst_14 = arith.constant dense<0.000000e+00> : vector<4x64xf32>
    %36 = tpu.matmul %35, %28, %cst_14 {dimension_numbers = #tpu.dot_dimension_numbers<[1], [0], [0], [1], [0, 0, 1, 1], [], []>} : vector<4x4xbf16>, vector<4x64xbf16>, vector<4x64xf32> -> vector<4x64xf32>
    %c752 = arith.constant 752 : index
    %c0_15 = arith.constant 0 : index
    %37 = vector.load %arg2[%c752, %c0_15] : memref<2112x128xbf16, #tpu.memory_space<vmem>>, vector<4x4xbf16>
    %cst_16 = arith.constant dense<0.000000e+00> : vector<4x64xf32>
    %38 = tpu.matmul %37, %31, %cst_16 {dimension_numbers = #tpu.dot_dimension_numbers<[1], [0], [0], [1], [0, 0, 1, 1], [], []>} : vector<4x4xbf16>, vector<4x64xbf16>, vector<4x64xf32> -> vector<4x64xf32>
    %39 = arith.addf %36, %38 : vector<4x64xf32>
    %c768 = arith.constant 768 : index
    %c0_17 = arith.constant 0 : index
    %40 = vector.load %arg2[%c768, %c0_17] : memref<2112x128xbf16, #tpu.memory_space<vmem>>, vector<4x4xbf16>
    %cst_18 = arith.constant dense<0.000000e+00> : vector<4x64xf32>
    %41 = tpu.matmul %40, %34, %cst_18 {dimension_numbers = #tpu.dot_dimension_numbers<[1], [0], [0], [1], [0, 0, 1, 1], [], []>} : vector<4x4xbf16>, vector<4x64xbf16>, vector<4x64xf32> -> vector<4x64xf32>
    %42 = arith.addf %39, %41 : vector<4x64xf32>
    %c16 = arith.constant 16 : index
    %c0_19 = arith.constant 0 : index
    %43 = vector.load %arg3[%c16, %c0_19] : memref<696x2xf32, #tpu.memory_space<vmem>>, vector<4x2xf32>
    %44 = vector.extract_strided_slice %43 {offsets = [0, 0], sizes = [4, 1], strides = [1, 1]} : vector<4x2xf32> to vector<4x1xf32>
    %45 = vector.broadcast %44 : vector<4x1xf32> to vector<4x64xf32>
    %46 = arith.mulf %42, %45 : vector<4x64xf32>
    %47 = vector.extract_strided_slice %43 {offsets = [0, 1], sizes = [4, 1], strides = [1, 1]} : vector<4x2xf32> to vector<4x1xf32>
    %48 = vector.broadcast %47 : vector<4x1xf32> to vector<4x64xf32>
    %49 = arith.addf %46, %48 : vector<4x64xf32>
    %cst_20 = arith.constant 0.000000e+00 : f32
    %50 = vector.broadcast %cst_20 : f32 to vector<4x64xf32>
    %51 = arith.maximumf %49, %50 : vector<4x64xf32>
    %c776 = arith.constant 776 : index
    %c0_21 = arith.constant 0 : index
    %52 = vector.load %arg2[%c776, %c0_21] : memref<2112x128xbf16, #tpu.memory_space<vmem>>, vector<8x4xbf16>
    %53 = arith.truncf %51 : vector<4x64xf32> to vector<4x64xbf16>
    %cst_22 = arith.constant dense<0.000000e+00> : vector<8x64xf32>
    %54 = tpu.matmul %52, %53, %cst_22 {dimension_numbers = #tpu.dot_dimension_numbers<[1], [0], [0], [1], [0, 0, 1, 1], [], []>} : vector<8x4xbf16>, vector<4x64xbf16>, vector<8x64xf32> -> vector<8x64xf32>
    %c744 = arith.constant 744 : index
    %c0_23 = arith.constant 0 : index
    %55 = vector.load %arg2[%c744, %c0_23] : memref<2112x128xbf16, #tpu.memory_space<vmem>>, vector<8x4xbf16>
    %56 = arith.truncf %6 : vector<4x64xf32> to vector<4x64xbf16>
    %cst_24 = arith.constant dense<0.000000e+00> : vector<8x64xf32>
    %57 = tpu.matmul %55, %56, %cst_24 {dimension_numbers = #tpu.dot_dimension_numbers<[1], [0], [0], [1], [0, 0, 1, 1], [], []>} : vector<8x4xbf16>, vector<4x64xbf16>, vector<8x64xf32> -> vector<8x64xf32>
    %58 = arith.addf %54, %57 : vector<8x64xf32>
    %c24 = arith.constant 24 : index
    %c0_25 = arith.constant 0 : index
    %59 = vector.load %arg3[%c24, %c0_25] : memref<696x2xf32, #tpu.memory_space<vmem>>, vector<8x2xf32>
    %60 = vector.extract_strided_slice %59 {offsets = [0, 0], sizes = [8, 1], strides = [1, 1]} : vector<8x2xf32> to vector<8x1xf32>
    %61 = vector.broadcast %60 : vector<8x1xf32> to vector<8x64xf32>
    %62 = arith.addf %58, %61 : vector<8x64xf32>
    %c624 = arith.constant 624 : index
    %c0_26 = arith.constant 0 : index
    %63 = vector.load %arg2[%c624, %c0_26] : memref<2112x128xbf16, #tpu.memory_space<vmem>>, vector<64x64xbf16>
    %64 = arith.truncf %62 : vector<8x64xf32> to vector<8x64xbf16>
    %cst_27 = arith.constant dense<0.000000e+00> : vector<8x64xf32>
    %65 = tpu.matmul %64, %63, %cst_27 {dimension_numbers = #tpu.dot_dimension_numbers<[1], [0], [0], [1], [0, 0, 1, 1], [], []>} : vector<8x64xbf16>, vector<64x64xbf16>, vector<8x64xf32> -> vector<8x64xf32>
    %66 = vector.extract_strided_slice %65 {offsets = [0, 0], sizes = [8, 32], strides = [1, 1]} : vector<8x64xf32> to vector<8x32xf32>
    %67 = vector.extract_strided_slice %65 {offsets = [0, 32], sizes = [8, 32], strides = [1, 1]} : vector<8x64xf32> to vector<8x32xf32>
    %68 = arith.maximumf %66, %67 : vector<8x32xf32>
    %c32 = arith.constant 32 : index
    %c0_28 = arith.constant 0 : index
    %69 = vector.load %arg3[%c32, %c0_28] : memref<696x2xf32, #tpu.memory_space<vmem>>, vector<8x2xf32>
    %70 = vector.extract_strided_slice %69 {offsets = [0, 0], sizes = [8, 1], strides = [1, 1]} : vector<8x2xf32> to vector<8x1xf32>
    %71 = vector.broadcast %70 : vector<8x1xf32> to vector<8x32xf32>
    %72 = arith.mulf %68, %71 : vector<8x32xf32>
    %73 = vector.extract_strided_slice %69 {offsets = [0, 1], sizes = [8, 1], strides = [1, 1]} : vector<8x2xf32> to vector<8x1xf32>
    %74 = vector.broadcast %73 : vector<8x1xf32> to vector<8x32xf32>
    %75 = arith.addf %72, %74 : vector<8x32xf32>
    %cst_29 = arith.constant 0.000000e+00 : f32
    %76 = vector.broadcast %cst_29 : f32 to vector<8x32xf32>
    %77 = arith.maximumf %75, %76 : vector<8x32xf32>
    %c784 = arith.constant 784 : index
    %c0_30 = arith.constant 0 : index
    %78 = vector.load %arg2[%c784, %c0_30] : memref<2112x128xbf16, #tpu.memory_space<vmem>>, vector<8x8xbf16>
    %79 = arith.truncf %77 : vector<8x32xf32> to vector<8x32xbf16>
    %cst_31 = arith.constant dense<0.000000e+00> : vector<8x32xf32>
    %80 = tpu.matmul %78, %79, %cst_31 {dimension_numbers = #tpu.dot_dimension_numbers<[1], [0], [0], [1], [0, 0, 1, 1], [], []>} : vector<8x8xbf16>, vector<8x32xbf16>, vector<8x32xf32> -> vector<8x32xf32>
    %c40 = arith.constant 40 : index
    %c0_32 = arith.constant 0 : index
    %81 = vector.load %arg3[%c40, %c0_32] : memref<696x2xf32, #tpu.memory_space<vmem>>, vector<8x2xf32>
    %82 = vector.extract_strided_slice %81 {offsets = [0, 0], sizes = [8, 1], strides = [1, 1]} : vector<8x2xf32> to vector<8x1xf32>
    %83 = vector.broadcast %82 : vector<8x1xf32> to vector<8x32xf32>
    %84 = arith.mulf %80, %83 : vector<8x32xf32>
    %85 = vector.extract_strided_slice %81 {offsets = [0, 1], sizes = [8, 1], strides = [1, 1]} : vector<8x2xf32> to vector<8x1xf32>
    %86 = vector.broadcast %85 : vector<8x1xf32> to vector<8x32xf32>
    %87 = arith.addf %84, %86 : vector<8x32xf32>
    %cst_33 = arith.constant 0.000000e+00 : f32
    %88 = vector.broadcast %cst_33 : f32 to vector<8x32xf32>
    %89 = arith.maximumf %87, %88 : vector<8x32xf32>
    %90 = arith.truncf %89 : vector<8x32xf32> to vector<8x32xbf16>
    %c48 = arith.constant 48 : index
    %c0_34 = arith.constant 0 : index
    %91 = vector.load %arg2[%c48, %c0_34] : memref<2112x128xbf16, #tpu.memory_space<vmem>>, vector<32x32xbf16>
    %cst_35 = arith.constant dense<0.000000e+00> : vector<8x32xf32>
    %92 = tpu.matmul %90, %91, %cst_35 {dimension_numbers = #tpu.dot_dimension_numbers<[1], [0], [0], [1], [0, 0, 1, 1], [], []>} : vector<8x32xbf16>, vector<32x32xbf16>, vector<8x32xf32> -> vector<8x32xf32>
    %93 = arith.truncf %92 : vector<8x32xf32> to vector<8x32xbf16>
    %c80 = arith.constant 80 : index
    %c0_36 = arith.constant 0 : index
    %94 = vector.load %arg2[%c80, %c0_36] : memref<2112x128xbf16, #tpu.memory_space<vmem>>, vector<32x32xbf16>
    %cst_37 = arith.constant dense<0.000000e+00> : vector<8x32xf32>
    %95 = tpu.matmul %90, %94, %cst_37 {dimension_numbers = #tpu.dot_dimension_numbers<[1], [0], [0], [1], [0, 0, 1, 1], [], []>} : vector<8x32xbf16>, vector<32x32xbf16>, vector<8x32xf32> -> vector<8x32xf32>
    %96 = arith.truncf %95 : vector<8x32xf32> to vector<8x32xbf16>
    %c816 = arith.constant 816 : index
    %c0_38 = arith.constant 0 : index
    %97 = vector.load %arg2[%c816, %c0_38] : memref<2112x128xbf16, #tpu.memory_space<vmem>>, vector<8x8xbf16>
    %cst_39 = arith.constant dense<0.000000e+00> : vector<8x32xf32>
    %98 = tpu.matmul %97, %90, %cst_39 {dimension_numbers = #tpu.dot_dimension_numbers<[1], [0], [0], [1], [0, 0, 1, 1], [], []>} : vector<8x8xbf16>, vector<8x32xbf16>, vector<8x32xf32> -> vector<8x32xf32>
    %c808 = arith.constant 808 : index
    %c0_40 = arith.constant 0 : index
    %99 = vector.load %arg2[%c808, %c0_40] : memref<2112x128xbf16, #tpu.memory_space<vmem>>, vector<8x8xbf16>
    %cst_41 = arith.constant dense<0.000000e+00> : vector<8x32xf32>
    %100 = tpu.matmul %99, %93, %cst_41 {dimension_numbers = #tpu.dot_dimension_numbers<[1], [0], [0], [1], [0, 0, 1, 1], [], []>} : vector<8x8xbf16>, vector<8x32xbf16>, vector<8x32xf32> -> vector<8x32xf32>
    %101 = arith.addf %98, %100 : vector<8x32xf32>
    %c824 = arith.constant 824 : index
    %c0_42 = arith.constant 0 : index
    %102 = vector.load %arg2[%c824, %c0_42] : memref<2112x128xbf16, #tpu.memory_space<vmem>>, vector<8x8xbf16>
    %cst_43 = arith.constant dense<0.000000e+00> : vector<8x32xf32>
    %103 = tpu.matmul %102, %96, %cst_43 {dimension_numbers = #tpu.dot_dimension_numbers<[1], [0], [0], [1], [0, 0, 1, 1], [], []>} : vector<8x8xbf16>, vector<8x32xbf16>, vector<8x32xf32> -> vector<8x32xf32>
    %104 = arith.addf %101, %103 : vector<8x32xf32>
    %c48_44 = arith.constant 48 : index
    %c0_45 = arith.constant 0 : index
    %105 = vector.load %arg3[%c48_44, %c0_45] : memref<696x2xf32, #tpu.memory_space<vmem>>, vector<8x2xf32>
    %106 = vector.extract_strided_slice %105 {offsets = [0, 0], sizes = [8, 1], strides = [1, 1]} : vector<8x2xf32> to vector<8x1xf32>
    %107 = vector.broadcast %106 : vector<8x1xf32> to vector<8x32xf32>
    %108 = arith.mulf %104, %107 : vector<8x32xf32>
    %109 = vector.extract_strided_slice %105 {offsets = [0, 1], sizes = [8, 1], strides = [1, 1]} : vector<8x2xf32> to vector<8x1xf32>
    %110 = vector.broadcast %109 : vector<8x1xf32> to vector<8x32xf32>
    %111 = arith.addf %108, %110 : vector<8x32xf32>
    %cst_46 = arith.constant 0.000000e+00 : f32
    %112 = vector.broadcast %cst_46 : f32 to vector<8x32xf32>
    %113 = arith.maximumf %111, %112 : vector<8x32xf32>
    %c832 = arith.constant 832 : index
    %c0_47 = arith.constant 0 : index
    %114 = vector.load %arg2[%c832, %c0_47] : memref<2112x128xbf16, #tpu.memory_space<vmem>>, vector<16x8xbf16>
    %115 = arith.truncf %113 : vector<8x32xf32> to vector<8x32xbf16>
    %cst_48 = arith.constant dense<0.000000e+00> : vector<16x32xf32>
    %116 = tpu.matmul %114, %115, %cst_48 {dimension_numbers = #tpu.dot_dimension_numbers<[1], [0], [0], [1], [0, 0, 1, 1], [], []>} : vector<16x8xbf16>, vector<8x32xbf16>, vector<16x32xf32> -> vector<16x32xf32>
    %c792 = arith.constant 792 : index
    %c0_49 = arith.constant 0 : index
    %117 = vector.load %arg2[%c792, %c0_49] : memref<2112x128xbf16, #tpu.memory_space<vmem>>, vector<16x8xbf16>
    %118 = arith.truncf %68 : vector<8x32xf32> to vector<8x32xbf16>
    %cst_50 = arith.constant dense<0.000000e+00> : vector<16x32xf32>
    %119 = tpu.matmul %117, %118, %cst_50 {dimension_numbers = #tpu.dot_dimension_numbers<[1], [0], [0], [1], [0, 0, 1, 1], [], []>} : vector<16x8xbf16>, vector<8x32xbf16>, vector<16x32xf32> -> vector<16x32xf32>
    %120 = arith.addf %116, %119 : vector<16x32xf32>
    %c56 = arith.constant 56 : index
    %c0_51 = arith.constant 0 : index
    %121 = vector.load %arg3[%c56, %c0_51] : memref<696x2xf32, #tpu.memory_space<vmem>>, vector<16x2xf32>
    %122 = vector.extract_strided_slice %121 {offsets = [0, 0], sizes = [16, 1], strides = [1, 1]} : vector<16x2xf32> to vector<16x1xf32>
    %123 = vector.broadcast %122 : vector<16x1xf32> to vector<16x32xf32>
    %124 = arith.addf %120, %123 : vector<16x32xf32>
    %c688 = arith.constant 688 : index
    %c0_52 = arith.constant 0 : index
    %125 = vector.load %arg2[%c688, %c0_52] : memref<2112x128xbf16, #tpu.memory_space<vmem>>, vector<32x32xbf16>
    %126 = arith.truncf %124 : vector<16x32xf32> to vector<16x32xbf16>
    %cst_53 = arith.constant dense<0.000000e+00> : vector<16x32xf32>
    %127 = tpu.matmul %126, %125, %cst_53 {dimension_numbers = #tpu.dot_dimension_numbers<[1], [0], [0], [1], [0, 0, 1, 1], [], []>} : vector<16x32xbf16>, vector<32x32xbf16>, vector<16x32xf32> -> vector<16x32xf32>
    %128 = vector.extract_strided_slice %127 {offsets = [0, 0], sizes = [16, 16], strides = [1, 1]} : vector<16x32xf32> to vector<16x16xf32>
    %129 = vector.extract_strided_slice %127 {offsets = [0, 16], sizes = [16, 16], strides = [1, 1]} : vector<16x32xf32> to vector<16x16xf32>
    %130 = arith.maximumf %128, %129 : vector<16x16xf32>
    %c72 = arith.constant 72 : index
    %c0_54 = arith.constant 0 : index
    %131 = vector.load %arg3[%c72, %c0_54] : memref<696x2xf32, #tpu.memory_space<vmem>>, vector<16x2xf32>
    %132 = vector.extract_strided_slice %131 {offsets = [0, 0], sizes = [16, 1], strides = [1, 1]} : vector<16x2xf32> to vector<16x1xf32>
    %133 = vector.broadcast %132 : vector<16x1xf32> to vector<16x16xf32>
    %134 = arith.mulf %130, %133 : vector<16x16xf32>
    %135 = vector.extract_strided_slice %131 {offsets = [0, 1], sizes = [16, 1], strides = [1, 1]} : vector<16x2xf32> to vector<16x1xf32>
    %136 = vector.broadcast %135 : vector<16x1xf32> to vector<16x16xf32>
    %137 = arith.addf %134, %136 : vector<16x16xf32>
    %cst_55 = arith.constant 0.000000e+00 : f32
    %138 = vector.broadcast %cst_55 : f32 to vector<16x16xf32>
    %139 = arith.maximumf %137, %138 : vector<16x16xf32>
    %c848 = arith.constant 848 : index
    %c0_56 = arith.constant 0 : index
    %140 = vector.load %arg2[%c848, %c0_56] : memref<2112x128xbf16, #tpu.memory_space<vmem>>, vector<16x16xbf16>
    %141 = arith.truncf %139 : vector<16x16xf32> to vector<16x16xbf16>
    %cst_57 = arith.constant dense<0.000000e+00> : vector<16x16xf32>
    %142 = tpu.matmul %140, %141, %cst_57 {dimension_numbers = #tpu.dot_dimension_numbers<[1], [0], [0], [1], [0, 0, 1, 1], [], []>} : vector<16x16xbf16>, vector<16x16xbf16>, vector<16x16xf32> -> vector<16x16xf32>
    %c88 = arith.constant 88 : index
    %c0_58 = arith.constant 0 : index
    %143 = vector.load %arg3[%c88, %c0_58] : memref<696x2xf32, #tpu.memory_space<vmem>>, vector<16x2xf32>
    %144 = vector.extract_strided_slice %143 {offsets = [0, 0], sizes = [16, 1], strides = [1, 1]} : vector<16x2xf32> to vector<16x1xf32>
    %145 = vector.broadcast %144 : vector<16x1xf32> to vector<16x16xf32>
    %146 = arith.mulf %142, %145 : vector<16x16xf32>
    %147 = vector.extract_strided_slice %143 {offsets = [0, 1], sizes = [16, 1], strides = [1, 1]} : vector<16x2xf32> to vector<16x1xf32>
    %148 = vector.broadcast %147 : vector<16x1xf32> to vector<16x16xf32>
    %149 = arith.addf %146, %148 : vector<16x16xf32>
    %cst_59 = arith.constant 0.000000e+00 : f32
    %150 = vector.broadcast %cst_59 : f32 to vector<16x16xf32>
    %151 = arith.maximumf %149, %150 : vector<16x16xf32>
    %152 = arith.truncf %151 : vector<16x16xf32> to vector<16x16xbf16>
    %c16_60 = arith.constant 16 : index
    %c0_61 = arith.constant 0 : index
    %153 = vector.load %arg2[%c16_60, %c0_61] : memref<2112x128xbf16, #tpu.memory_space<vmem>>, vector<16x16xbf16>
    %cst_62 = arith.constant dense<0.000000e+00> : vector<16x16xf32>
    %154 = tpu.matmul %152, %153, %cst_62 {dimension_numbers = #tpu.dot_dimension_numbers<[1], [0], [0], [1], [0, 0, 1, 1], [], []>} : vector<16x16xbf16>, vector<16x16xbf16>, vector<16x16xf32> -> vector<16x16xf32>
    %155 = arith.truncf %154 : vector<16x16xf32> to vector<16x16xbf16>
    %c32_63 = arith.constant 32 : index
    %c0_64 = arith.constant 0 : index
    %156 = vector.load %arg2[%c32_63, %c0_64] : memref<2112x128xbf16, #tpu.memory_space<vmem>>, vector<16x16xbf16>
    %cst_65 = arith.constant dense<0.000000e+00> : vector<16x16xf32>
    %157 = tpu.matmul %152, %156, %cst_65 {dimension_numbers = #tpu.dot_dimension_numbers<[1], [0], [0], [1], [0, 0, 1, 1], [], []>} : vector<16x16xbf16>, vector<16x16xbf16>, vector<16x16xf32> -> vector<16x16xf32>
    %158 = arith.truncf %157 : vector<16x16xf32> to vector<16x16xbf16>
    %c912 = arith.constant 912 : index
    %c0_66 = arith.constant 0 : index
    %159 = vector.load %arg2[%c912, %c0_66] : memref<2112x128xbf16, #tpu.memory_space<vmem>>, vector<16x16xbf16>
    %cst_67 = arith.constant dense<0.000000e+00> : vector<16x16xf32>
    %160 = tpu.matmul %159, %152, %cst_67 {dimension_numbers = #tpu.dot_dimension_numbers<[1], [0], [0], [1], [0, 0, 1, 1], [], []>} : vector<16x16xbf16>, vector<16x16xbf16>, vector<16x16xf32> -> vector<16x16xf32>
    %c896 = arith.constant 896 : index
    %c0_68 = arith.constant 0 : index
    %161 = vector.load %arg2[%c896, %c0_68] : memref<2112x128xbf16, #tpu.memory_space<vmem>>, vector<16x16xbf16>
    %cst_69 = arith.constant dense<0.000000e+00> : vector<16x16xf32>
    %162 = tpu.matmul %161, %155, %cst_69 {dimension_numbers = #tpu.dot_dimension_numbers<[1], [0], [0], [1], [0, 0, 1, 1], [], []>} : vector<16x16xbf16>, vector<16x16xbf16>, vector<16x16xf32> -> vector<16x16xf32>
    %163 = arith.addf %160, %162 : vector<16x16xf32>
    %c928 = arith.constant 928 : index
    %c0_70 = arith.constant 0 : index
    %164 = vector.load %arg2[%c928, %c0_70] : memref<2112x128xbf16, #tpu.memory_space<vmem>>, vector<16x16xbf16>
    %cst_71 = arith.constant dense<0.000000e+00> : vector<16x16xf32>
    %165 = tpu.matmul %164, %158, %cst_71 {dimension_numbers = #tpu.dot_dimension_numbers<[1], [0], [0], [1], [0, 0, 1, 1], [], []>} : vector<16x16xbf16>, vector<16x16xbf16>, vector<16x16xf32> -> vector<16x16xf32>
    %166 = arith.addf %163, %165 : vector<16x16xf32>
    %c104 = arith.constant 104 : index
    %c0_72 = arith.constant 0 : index
    %167 = vector.load %arg3[%c104, %c0_72] : memref<696x2xf32, #tpu.memory_space<vmem>>, vector<16x2xf32>
    %168 = vector.extract_strided_slice %167 {offsets = [0, 0], sizes = [16, 1], strides = [1, 1]} : vector<16x2xf32> to vector<16x1xf32>
    %169 = vector.broadcast %168 : vector<16x1xf32> to vector<16x16xf32>
    %170 = arith.mulf %166, %169 : vector<16x16xf32>
    %171 = vector.extract_strided_slice %167 {offsets = [0, 1], sizes = [16, 1], strides = [1, 1]} : vector<16x2xf32> to vector<16x1xf32>
    %172 = vector.broadcast %171 : vector<16x1xf32> to vector<16x16xf32>
    %173 = arith.addf %170, %172 : vector<16x16xf32>
    %cst_73 = arith.constant 0.000000e+00 : f32
    %174 = vector.broadcast %cst_73 : f32 to vector<16x16xf32>
    %175 = arith.maximumf %173, %174 : vector<16x16xf32>
    %c944 = arith.constant 944 : index
    %c0_74 = arith.constant 0 : index
    %176 = vector.load %arg2[%c944, %c0_74] : memref<2112x128xbf16, #tpu.memory_space<vmem>>, vector<32x16xbf16>
    %177 = arith.truncf %175 : vector<16x16xf32> to vector<16x16xbf16>
    %cst_75 = arith.constant dense<0.000000e+00> : vector<32x16xf32>
    %178 = tpu.matmul %176, %177, %cst_75 {dimension_numbers = #tpu.dot_dimension_numbers<[1], [0], [0], [1], [0, 0, 1, 1], [], []>} : vector<32x16xbf16>, vector<16x16xbf16>, vector<32x16xf32> -> vector<32x16xf32>
    %c864 = arith.constant 864 : index
    %c0_76 = arith.constant 0 : index
    %179 = vector.load %arg2[%c864, %c0_76] : memref<2112x128xbf16, #tpu.memory_space<vmem>>, vector<32x16xbf16>
    %180 = arith.truncf %130 : vector<16x16xf32> to vector<16x16xbf16>
    %cst_77 = arith.constant dense<0.000000e+00> : vector<32x16xf32>
    %181 = tpu.matmul %179, %180, %cst_77 {dimension_numbers = #tpu.dot_dimension_numbers<[1], [0], [0], [1], [0, 0, 1, 1], [], []>} : vector<32x16xbf16>, vector<16x16xbf16>, vector<32x16xf32> -> vector<32x16xf32>
    %182 = arith.addf %178, %181 : vector<32x16xf32>
    %c120 = arith.constant 120 : index
    %c0_78 = arith.constant 0 : index
    %183 = vector.load %arg3[%c120, %c0_78] : memref<696x2xf32, #tpu.memory_space<vmem>>, vector<32x2xf32>
    %184 = vector.extract_strided_slice %183 {offsets = [0, 0], sizes = [32, 1], strides = [1, 1]} : vector<32x2xf32> to vector<32x1xf32>
    %185 = vector.broadcast %184 : vector<32x1xf32> to vector<32x16xf32>
    %186 = arith.addf %182, %185 : vector<32x16xf32>
    %c720 = arith.constant 720 : index
    %c0_79 = arith.constant 0 : index
    %187 = vector.load %arg2[%c720, %c0_79] : memref<2112x128xbf16, #tpu.memory_space<vmem>>, vector<16x16xbf16>
    %188 = arith.truncf %186 : vector<32x16xf32> to vector<32x16xbf16>
    %cst_80 = arith.constant dense<0.000000e+00> : vector<32x16xf32>
    %189 = tpu.matmul %188, %187, %cst_80 {dimension_numbers = #tpu.dot_dimension_numbers<[1], [0], [0], [1], [0, 0, 1, 1], [], []>} : vector<32x16xbf16>, vector<16x16xbf16>, vector<32x16xf32> -> vector<32x16xf32>
    %190 = vector.extract_strided_slice %189 {offsets = [0, 0], sizes = [32, 8], strides = [1, 1]} : vector<32x16xf32> to vector<32x8xf32>
    %191 = vector.extract_strided_slice %189 {offsets = [0, 8], sizes = [32, 8], strides = [1, 1]} : vector<32x16xf32> to vector<32x8xf32>
    %192 = arith.maximumf %190, %191 : vector<32x8xf32>
    %c152 = arith.constant 152 : index
    %c0_81 = arith.constant 0 : index
    %193 = vector.load %arg3[%c152, %c0_81] : memref<696x2xf32, #tpu.memory_space<vmem>>, vector<32x2xf32>
    %194 = vector.extract_strided_slice %193 {offsets = [0, 0], sizes = [32, 1], strides = [1, 1]} : vector<32x2xf32> to vector<32x1xf32>
    %195 = vector.broadcast %194 : vector<32x1xf32> to vector<32x8xf32>
    %196 = arith.mulf %192, %195 : vector<32x8xf32>
    %197 = vector.extract_strided_slice %193 {offsets = [0, 1], sizes = [32, 1], strides = [1, 1]} : vector<32x2xf32> to vector<32x1xf32>
    %198 = vector.broadcast %197 : vector<32x1xf32> to vector<32x8xf32>
    %199 = arith.addf %196, %198 : vector<32x8xf32>
    %cst_82 = arith.constant 0.000000e+00 : f32
    %200 = vector.broadcast %cst_82 : f32 to vector<32x8xf32>
    %201 = arith.maximumf %199, %200 : vector<32x8xf32>
    %c976 = arith.constant 976 : index
    %c0_83 = arith.constant 0 : index
    %202 = vector.load %arg2[%c976, %c0_83] : memref<2112x128xbf16, #tpu.memory_space<vmem>>, vector<32x32xbf16>
    %203 = arith.truncf %201 : vector<32x8xf32> to vector<32x8xbf16>
    %cst_84 = arith.constant dense<0.000000e+00> : vector<32x8xf32>
    %204 = tpu.matmul %202, %203, %cst_84 {dimension_numbers = #tpu.dot_dimension_numbers<[1], [0], [0], [1], [0, 0, 1, 1], [], []>} : vector<32x32xbf16>, vector<32x8xbf16>, vector<32x8xf32> -> vector<32x8xf32>
    %c184 = arith.constant 184 : index
    %c0_85 = arith.constant 0 : index
    %205 = vector.load %arg3[%c184, %c0_85] : memref<696x2xf32, #tpu.memory_space<vmem>>, vector<32x2xf32>
    %206 = vector.extract_strided_slice %205 {offsets = [0, 0], sizes = [32, 1], strides = [1, 1]} : vector<32x2xf32> to vector<32x1xf32>
    %207 = vector.broadcast %206 : vector<32x1xf32> to vector<32x8xf32>
    %208 = arith.mulf %204, %207 : vector<32x8xf32>
    %209 = vector.extract_strided_slice %205 {offsets = [0, 1], sizes = [32, 1], strides = [1, 1]} : vector<32x2xf32> to vector<32x1xf32>
    %210 = vector.broadcast %209 : vector<32x1xf32> to vector<32x8xf32>
    %211 = arith.addf %208, %210 : vector<32x8xf32>
    %cst_86 = arith.constant 0.000000e+00 : f32
    %212 = vector.broadcast %cst_86 : f32 to vector<32x8xf32>
    %213 = arith.maximumf %211, %212 : vector<32x8xf32>
    %214 = arith.truncf %213 : vector<32x8xf32> to vector<32x8xbf16>
    %c0_87 = arith.constant 0 : index
    %c0_88 = arith.constant 0 : index
    %215 = vector.load %arg2[%c0_87, %c0_88] : memref<2112x128xbf16, #tpu.memory_space<vmem>>, vector<8x8xbf16>
    %cst_89 = arith.constant dense<0.000000e+00> : vector<32x8xf32>
    %216 = tpu.matmul %214, %215, %cst_89 {dimension_numbers = #tpu.dot_dimension_numbers<[1], [0], [0], [1], [0, 0, 1, 1], [], []>} : vector<32x8xbf16>, vector<8x8xbf16>, vector<32x8xf32> -> vector<32x8xf32>
    %217 = arith.truncf %216 : vector<32x8xf32> to vector<32x8xbf16>
    %c8_90 = arith.constant 8 : index
    %c0_91 = arith.constant 0 : index
    %218 = vector.load %arg2[%c8_90, %c0_91] : memref<2112x128xbf16, #tpu.memory_space<vmem>>, vector<8x8xbf16>
    %cst_92 = arith.constant dense<0.000000e+00> : vector<32x8xf32>
    %219 = tpu.matmul %214, %218, %cst_92 {dimension_numbers = #tpu.dot_dimension_numbers<[1], [0], [0], [1], [0, 0, 1, 1], [], []>} : vector<32x8xbf16>, vector<8x8xbf16>, vector<32x8xf32> -> vector<32x8xf32>
    %220 = arith.truncf %219 : vector<32x8xf32> to vector<32x8xbf16>
    %c1104 = arith.constant 1104 : index
    %c0_93 = arith.constant 0 : index
    %221 = vector.load %arg2[%c1104, %c0_93] : memref<2112x128xbf16, #tpu.memory_space<vmem>>, vector<32x32xbf16>
    %cst_94 = arith.constant dense<0.000000e+00> : vector<32x8xf32>
    %222 = tpu.matmul %221, %214, %cst_94 {dimension_numbers = #tpu.dot_dimension_numbers<[1], [0], [0], [1], [0, 0, 1, 1], [], []>} : vector<32x32xbf16>, vector<32x8xbf16>, vector<32x8xf32> -> vector<32x8xf32>
    %c1072 = arith.constant 1072 : index
    %c0_95 = arith.constant 0 : index
    %223 = vector.load %arg2[%c1072, %c0_95] : memref<2112x128xbf16, #tpu.memory_space<vmem>>, vector<32x32xbf16>
    %cst_96 = arith.constant dense<0.000000e+00> : vector<32x8xf32>
    %224 = tpu.matmul %223, %217, %cst_96 {dimension_numbers = #tpu.dot_dimension_numbers<[1], [0], [0], [1], [0, 0, 1, 1], [], []>} : vector<32x32xbf16>, vector<32x8xbf16>, vector<32x8xf32> -> vector<32x8xf32>
    %225 = arith.addf %222, %224 : vector<32x8xf32>
    %c1136 = arith.constant 1136 : index
    %c0_97 = arith.constant 0 : index
    %226 = vector.load %arg2[%c1136, %c0_97] : memref<2112x128xbf16, #tpu.memory_space<vmem>>, vector<32x32xbf16>
    %cst_98 = arith.constant dense<0.000000e+00> : vector<32x8xf32>
    %227 = tpu.matmul %226, %220, %cst_98 {dimension_numbers = #tpu.dot_dimension_numbers<[1], [0], [0], [1], [0, 0, 1, 1], [], []>} : vector<32x32xbf16>, vector<32x8xbf16>, vector<32x8xf32> -> vector<32x8xf32>
    %228 = arith.addf %225, %227 : vector<32x8xf32>
    %c216 = arith.constant 216 : index
    %c0_99 = arith.constant 0 : index
    %229 = vector.load %arg3[%c216, %c0_99] : memref<696x2xf32, #tpu.memory_space<vmem>>, vector<32x2xf32>
    %230 = vector.extract_strided_slice %229 {offsets = [0, 0], sizes = [32, 1], strides = [1, 1]} : vector<32x2xf32> to vector<32x1xf32>
    %231 = vector.broadcast %230 : vector<32x1xf32> to vector<32x8xf32>
    %232 = arith.mulf %228, %231 : vector<32x8xf32>
    %233 = vector.extract_strided_slice %229 {offsets = [0, 1], sizes = [32, 1], strides = [1, 1]} : vector<32x2xf32> to vector<32x1xf32>
    %234 = vector.broadcast %233 : vector<32x1xf32> to vector<32x8xf32>
    %235 = arith.addf %232, %234 : vector<32x8xf32>
    %cst_100 = arith.constant 0.000000e+00 : f32
    %236 = vector.broadcast %cst_100 : f32 to vector<32x8xf32>
    %237 = arith.maximumf %235, %236 : vector<32x8xf32>
    %c1168 = arith.constant 1168 : index
    %c0_101 = arith.constant 0 : index
    %238 = vector.load %arg2[%c1168, %c0_101] : memref<2112x128xbf16, #tpu.memory_space<vmem>>, vector<64x32xbf16>
    %239 = arith.truncf %237 : vector<32x8xf32> to vector<32x8xbf16>
    %cst_102 = arith.constant dense<0.000000e+00> : vector<64x8xf32>
    %240 = tpu.matmul %238, %239, %cst_102 {dimension_numbers = #tpu.dot_dimension_numbers<[1], [0], [0], [1], [0, 0, 1, 1], [], []>} : vector<64x32xbf16>, vector<32x8xbf16>, vector<64x8xf32> -> vector<64x8xf32>
    %c1008 = arith.constant 1008 : index
    %c0_103 = arith.constant 0 : index
    %241 = vector.load %arg2[%c1008, %c0_103] : memref<2112x128xbf16, #tpu.memory_space<vmem>>, vector<64x32xbf16>
    %242 = arith.truncf %192 : vector<32x8xf32> to vector<32x8xbf16>
    %cst_104 = arith.constant dense<0.000000e+00> : vector<64x8xf32>
    %243 = tpu.matmul %241, %242, %cst_104 {dimension_numbers = #tpu.dot_dimension_numbers<[1], [0], [0], [1], [0, 0, 1, 1], [], []>} : vector<64x32xbf16>, vector<32x8xbf16>, vector<64x8xf32> -> vector<64x8xf32>
    %244 = arith.addf %240, %243 : vector<64x8xf32>
    %c248 = arith.constant 248 : index
    %c0_105 = arith.constant 0 : index
    %245 = vector.load %arg3[%c248, %c0_105] : memref<696x2xf32, #tpu.memory_space<vmem>>, vector<64x2xf32>
    %246 = vector.extract_strided_slice %245 {offsets = [0, 0], sizes = [64, 1], strides = [1, 1]} : vector<64x2xf32> to vector<64x1xf32>
    %247 = vector.broadcast %246 : vector<64x1xf32> to vector<64x8xf32>
    %248 = arith.addf %244, %247 : vector<64x8xf32>
    %249 = arith.truncf %248 : vector<64x8xf32> to vector<64x8xbf16>
    %c1232 = arith.constant 1232 : index
    %c0_106 = arith.constant 0 : index
    %250 = vector.load %arg2[%c1232, %c0_106] : memref<2112x128xbf16, #tpu.memory_space<vmem>>, vector<32x64xbf16>
    %cst_107 = arith.constant dense<0.000000e+00> : vector<32x8xf32>
    %251 = tpu.matmul %250, %249, %cst_107 {dimension_numbers = #tpu.dot_dimension_numbers<[1], [0], [0], [1], [0, 0, 1, 1], [], []>} : vector<32x64xbf16>, vector<64x8xbf16>, vector<32x8xf32> -> vector<32x8xf32>
    %252 = arith.truncf %251 : vector<32x8xf32> to vector<32x8xbf16>
    %c1264 = arith.constant 1264 : index
    %c0_108 = arith.constant 0 : index
    %253 = vector.load %arg2[%c1264, %c0_108] : memref<2112x128xbf16, #tpu.memory_space<vmem>>, vector<32x64xbf16>
    %cst_109 = arith.constant dense<0.000000e+00> : vector<32x8xf32>
    %254 = tpu.matmul %253, %249, %cst_109 {dimension_numbers = #tpu.dot_dimension_numbers<[1], [0], [0], [1], [0, 0, 1, 1], [], []>} : vector<32x64xbf16>, vector<64x8xbf16>, vector<32x8xf32> -> vector<32x8xf32>
    %255 = arith.truncf %254 : vector<32x8xf32> to vector<32x8xbf16>
    %c1296 = arith.constant 1296 : index
    %c0_110 = arith.constant 0 : index
    %256 = vector.load %arg2[%c1296, %c0_110] : memref<2112x128xbf16, #tpu.memory_space<vmem>>, vector<8x16xbf16>
    %cst_111 = arith.constant dense<0.000000e+00> : vector<32x16xf32>
    %257 = tpu.matmul %252, %256, %cst_111 {dimension_numbers = #tpu.dot_dimension_numbers<[1], [0], [0], [1], [0, 0, 1, 1], [], []>} : vector<32x8xbf16>, vector<8x16xbf16>, vector<32x16xf32> -> vector<32x16xf32>
    %c1304 = arith.constant 1304 : index
    %c0_112 = arith.constant 0 : index
    %258 = vector.load %arg2[%c1304, %c0_112] : memref<2112x128xbf16, #tpu.memory_space<vmem>>, vector<8x16xbf16>
    %cst_113 = arith.constant dense<0.000000e+00> : vector<32x16xf32>
    %259 = tpu.matmul %255, %258, %cst_113 {dimension_numbers = #tpu.dot_dimension_numbers<[1], [0], [0], [1], [0, 0, 1, 1], [], []>} : vector<32x8xbf16>, vector<8x16xbf16>, vector<32x16xf32> -> vector<32x16xf32>
    %260 = arith.addf %257, %259 : vector<32x16xf32>
    %c312 = arith.constant 312 : index
    %c0_114 = arith.constant 0 : index
    %261 = vector.load %arg3[%c312, %c0_114] : memref<696x2xf32, #tpu.memory_space<vmem>>, vector<32x2xf32>
    %262 = vector.extract_strided_slice %261 {offsets = [0, 0], sizes = [32, 1], strides = [1, 1]} : vector<32x2xf32> to vector<32x1xf32>
    %263 = vector.broadcast %262 : vector<32x1xf32> to vector<32x16xf32>
    %264 = arith.addf %260, %263 : vector<32x16xf32>
    %c376 = arith.constant 376 : index
    %c0_115 = arith.constant 0 : index
    %265 = vector.load %arg3[%c376, %c0_115] : memref<696x2xf32, #tpu.memory_space<vmem>>, vector<32x2xf32>
    %266 = vector.extract_strided_slice %265 {offsets = [0, 0], sizes = [32, 1], strides = [1, 1]} : vector<32x2xf32> to vector<32x1xf32>
    %267 = vector.broadcast %266 : vector<32x1xf32> to vector<32x16xf32>
    %268 = arith.mulf %186, %267 : vector<32x16xf32>
    %269 = vector.extract_strided_slice %265 {offsets = [0, 1], sizes = [32, 1], strides = [1, 1]} : vector<32x2xf32> to vector<32x1xf32>
    %270 = vector.broadcast %269 : vector<32x1xf32> to vector<32x16xf32>
    %271 = arith.addf %268, %270 : vector<32x16xf32>
    %cst_116 = arith.constant 0.000000e+00 : f32
    %272 = vector.broadcast %cst_116 : f32 to vector<32x16xf32>
    %273 = arith.maximumf %271, %272 : vector<32x16xf32>
    %c1600 = arith.constant 1600 : index
    %c0_117 = arith.constant 0 : index
    %274 = vector.load %arg2[%c1600, %c0_117] : memref<2112x128xbf16, #tpu.memory_space<vmem>>, vector<32x32xbf16>
    %275 = arith.truncf %273 : vector<32x16xf32> to vector<32x16xbf16>
    %cst_118 = arith.constant dense<0.000000e+00> : vector<32x16xf32>
    %276 = tpu.matmul %274, %275, %cst_118 {dimension_numbers = #tpu.dot_dimension_numbers<[1], [0], [0], [1], [0, 0, 1, 1], [], []>} : vector<32x32xbf16>, vector<32x16xbf16>, vector<32x16xf32> -> vector<32x16xf32>
    %c408 = arith.constant 408 : index
    %c0_119 = arith.constant 0 : index
    %277 = vector.load %arg3[%c408, %c0_119] : memref<696x2xf32, #tpu.memory_space<vmem>>, vector<32x2xf32>
    %278 = vector.extract_strided_slice %277 {offsets = [0, 0], sizes = [32, 1], strides = [1, 1]} : vector<32x2xf32> to vector<32x1xf32>
    %279 = vector.broadcast %278 : vector<32x1xf32> to vector<32x16xf32>
    %280 = arith.mulf %264, %279 : vector<32x16xf32>
    %281 = vector.extract_strided_slice %277 {offsets = [0, 1], sizes = [32, 1], strides = [1, 1]} : vector<32x2xf32> to vector<32x1xf32>
    %282 = vector.broadcast %281 : vector<32x1xf32> to vector<32x16xf32>
    %283 = arith.addf %280, %282 : vector<32x16xf32>
    %cst_120 = arith.constant 0.000000e+00 : f32
    %284 = vector.broadcast %cst_120 : f32 to vector<32x16xf32>
    %285 = arith.maximumf %283, %284 : vector<32x16xf32>
    %c1664 = arith.constant 1664 : index
    %c0_121 = arith.constant 0 : index
    %286 = vector.load %arg2[%c1664, %c0_121] : memref<2112x128xbf16, #tpu.memory_space<vmem>>, vector<32x32xbf16>
    %287 = arith.truncf %285 : vector<32x16xf32> to vector<32x16xbf16>
    %cst_122 = arith.constant dense<0.000000e+00> : vector<32x16xf32>
    %288 = tpu.matmul %286, %287, %cst_122 {dimension_numbers = #tpu.dot_dimension_numbers<[1], [0], [0], [1], [0, 0, 1, 1], [], []>} : vector<32x32xbf16>, vector<32x16xbf16>, vector<32x16xf32> -> vector<32x16xf32>
    %289 = arith.addf %276, %288 : vector<32x16xf32>
    %c440 = arith.constant 440 : index
    %c0_123 = arith.constant 0 : index
    %290 = vector.load %arg3[%c440, %c0_123] : memref<696x2xf32, #tpu.memory_space<vmem>>, vector<32x2xf32>
    %291 = vector.extract_strided_slice %290 {offsets = [0, 0], sizes = [32, 1], strides = [1, 1]} : vector<32x2xf32> to vector<32x1xf32>
    %292 = vector.broadcast %291 : vector<32x1xf32> to vector<32x16xf32>
    %293 = arith.mulf %289, %292 : vector<32x16xf32>
    %294 = vector.extract_strided_slice %290 {offsets = [0, 1], sizes = [32, 1], strides = [1, 1]} : vector<32x2xf32> to vector<32x1xf32>
    %295 = vector.broadcast %294 : vector<32x1xf32> to vector<32x16xf32>
    %296 = arith.addf %293, %295 : vector<32x16xf32>
    %cst_124 = arith.constant 0.000000e+00 : f32
    %297 = vector.broadcast %cst_124 : f32 to vector<32x16xf32>
    %298 = arith.maximumf %296, %297 : vector<32x16xf32>
    %299 = arith.truncf %298 : vector<32x16xf32> to vector<32x16xbf16>
    %c16_125 = arith.constant 16 : index
    %c0_126 = arith.constant 0 : index
    %300 = vector.load %arg2[%c16_125, %c0_126] : memref<2112x128xbf16, #tpu.memory_space<vmem>>, vector<16x16xbf16>
    %cst_127 = arith.constant dense<0.000000e+00> : vector<32x16xf32>
    %301 = tpu.matmul %299, %300, %cst_127 {dimension_numbers = #tpu.dot_dimension_numbers<[1], [0], [0], [1], [0, 0, 1, 1], [], []>} : vector<32x16xbf16>, vector<16x16xbf16>, vector<32x16xf32> -> vector<32x16xf32>
    %302 = arith.truncf %301 : vector<32x16xf32> to vector<32x16xbf16>
    %c32_128 = arith.constant 32 : index
    %c0_129 = arith.constant 0 : index
    %303 = vector.load %arg2[%c32_128, %c0_129] : memref<2112x128xbf16, #tpu.memory_space<vmem>>, vector<16x16xbf16>
    %cst_130 = arith.constant dense<0.000000e+00> : vector<32x16xf32>
    %304 = tpu.matmul %299, %303, %cst_130 {dimension_numbers = #tpu.dot_dimension_numbers<[1], [0], [0], [1], [0, 0, 1, 1], [], []>} : vector<32x16xbf16>, vector<16x16xbf16>, vector<32x16xf32> -> vector<32x16xf32>
    %305 = arith.truncf %304 : vector<32x16xf32> to vector<32x16xbf16>
    %c1760 = arith.constant 1760 : index
    %c0_131 = arith.constant 0 : index
    %306 = vector.load %arg2[%c1760, %c0_131] : memref<2112x128xbf16, #tpu.memory_space<vmem>>, vector<32x32xbf16>
    %cst_132 = arith.constant dense<0.000000e+00> : vector<32x16xf32>
    %307 = tpu.matmul %306, %299, %cst_132 {dimension_numbers = #tpu.dot_dimension_numbers<[1], [0], [0], [1], [0, 0, 1, 1], [], []>} : vector<32x32xbf16>, vector<32x16xbf16>, vector<32x16xf32> -> vector<32x16xf32>
    %c1728 = arith.constant 1728 : index
    %c0_133 = arith.constant 0 : index
    %308 = vector.load %arg2[%c1728, %c0_133] : memref<2112x128xbf16, #tpu.memory_space<vmem>>, vector<32x32xbf16>
    %cst_134 = arith.constant dense<0.000000e+00> : vector<32x16xf32>
    %309 = tpu.matmul %308, %302, %cst_134 {dimension_numbers = #tpu.dot_dimension_numbers<[1], [0], [0], [1], [0, 0, 1, 1], [], []>} : vector<32x32xbf16>, vector<32x16xbf16>, vector<32x16xf32> -> vector<32x16xf32>
    %310 = arith.addf %307, %309 : vector<32x16xf32>
    %c1792 = arith.constant 1792 : index
    %c0_135 = arith.constant 0 : index
    %311 = vector.load %arg2[%c1792, %c0_135] : memref<2112x128xbf16, #tpu.memory_space<vmem>>, vector<32x32xbf16>
    %cst_136 = arith.constant dense<0.000000e+00> : vector<32x16xf32>
    %312 = tpu.matmul %311, %305, %cst_136 {dimension_numbers = #tpu.dot_dimension_numbers<[1], [0], [0], [1], [0, 0, 1, 1], [], []>} : vector<32x32xbf16>, vector<32x16xbf16>, vector<32x16xf32> -> vector<32x16xf32>
    %313 = arith.addf %310, %312 : vector<32x16xf32>
    %c472 = arith.constant 472 : index
    %c0_137 = arith.constant 0 : index
    %314 = vector.load %arg3[%c472, %c0_137] : memref<696x2xf32, #tpu.memory_space<vmem>>, vector<32x2xf32>
    %315 = vector.extract_strided_slice %314 {offsets = [0, 0], sizes = [32, 1], strides = [1, 1]} : vector<32x2xf32> to vector<32x1xf32>
    %316 = vector.broadcast %315 : vector<32x1xf32> to vector<32x16xf32>
    %317 = arith.mulf %313, %316 : vector<32x16xf32>
    %318 = vector.extract_strided_slice %314 {offsets = [0, 1], sizes = [32, 1], strides = [1, 1]} : vector<32x2xf32> to vector<32x1xf32>
    %319 = vector.broadcast %318 : vector<32x1xf32> to vector<32x16xf32>
    %320 = arith.addf %317, %319 : vector<32x16xf32>
    %cst_138 = arith.constant 0.000000e+00 : f32
    %321 = vector.broadcast %cst_138 : f32 to vector<32x16xf32>
    %322 = arith.maximumf %320, %321 : vector<32x16xf32>
    %c1824 = arith.constant 1824 : index
    %c0_139 = arith.constant 0 : index
    %323 = vector.load %arg2[%c1824, %c0_139] : memref<2112x128xbf16, #tpu.memory_space<vmem>>, vector<32x32xbf16>
    %324 = arith.truncf %322 : vector<32x16xf32> to vector<32x16xbf16>
    %cst_140 = arith.constant dense<0.000000e+00> : vector<32x16xf32>
    %325 = tpu.matmul %323, %324, %cst_140 {dimension_numbers = #tpu.dot_dimension_numbers<[1], [0], [0], [1], [0, 0, 1, 1], [], []>} : vector<32x32xbf16>, vector<32x16xbf16>, vector<32x16xf32> -> vector<32x16xf32>
    %c1632 = arith.constant 1632 : index
    %c0_141 = arith.constant 0 : index
    %326 = vector.load %arg2[%c1632, %c0_141] : memref<2112x128xbf16, #tpu.memory_space<vmem>>, vector<32x32xbf16>
    %327 = arith.truncf %186 : vector<32x16xf32> to vector<32x16xbf16>
    %cst_142 = arith.constant dense<0.000000e+00> : vector<32x16xf32>
    %328 = tpu.matmul %326, %327, %cst_142 {dimension_numbers = #tpu.dot_dimension_numbers<[1], [0], [0], [1], [0, 0, 1, 1], [], []>} : vector<32x32xbf16>, vector<32x16xbf16>, vector<32x16xf32> -> vector<32x16xf32>
    %329 = arith.addf %325, %328 : vector<32x16xf32>
    %c1696 = arith.constant 1696 : index
    %c0_143 = arith.constant 0 : index
    %330 = vector.load %arg2[%c1696, %c0_143] : memref<2112x128xbf16, #tpu.memory_space<vmem>>, vector<32x32xbf16>
    %331 = arith.truncf %264 : vector<32x16xf32> to vector<32x16xbf16>
    %cst_144 = arith.constant dense<0.000000e+00> : vector<32x16xf32>
    %332 = tpu.matmul %330, %331, %cst_144 {dimension_numbers = #tpu.dot_dimension_numbers<[1], [0], [0], [1], [0, 0, 1, 1], [], []>} : vector<32x32xbf16>, vector<32x16xbf16>, vector<32x16xf32> -> vector<32x16xf32>
    %333 = arith.addf %329, %332 : vector<32x16xf32>
    %c504 = arith.constant 504 : index
    %c0_145 = arith.constant 0 : index
    %334 = vector.load %arg3[%c504, %c0_145] : memref<696x2xf32, #tpu.memory_space<vmem>>, vector<32x2xf32>
    %335 = vector.extract_strided_slice %334 {offsets = [0, 0], sizes = [32, 1], strides = [1, 1]} : vector<32x2xf32> to vector<32x1xf32>
    %336 = vector.broadcast %335 : vector<32x1xf32> to vector<32x16xf32>
    %337 = arith.addf %333, %336 : vector<32x16xf32>
    %338 = arith.truncf %337 : vector<32x16xf32> to vector<32x16xbf16>
    %c1312 = arith.constant 1312 : index
    %c0_146 = arith.constant 0 : index
    %339 = vector.load %arg2[%c1312, %c0_146] : memref<2112x128xbf16, #tpu.memory_space<vmem>>, vector<16x32xbf16>
    %cst_147 = arith.constant dense<0.000000e+00> : vector<16x16xf32>
    %340 = tpu.matmul %339, %338, %cst_147 {dimension_numbers = #tpu.dot_dimension_numbers<[1], [0], [0], [1], [0, 0, 1, 1], [], []>} : vector<16x32xbf16>, vector<32x16xbf16>, vector<16x16xf32> -> vector<16x16xf32>
    %341 = arith.truncf %340 : vector<16x16xf32> to vector<16x16xbf16>
    %c1328 = arith.constant 1328 : index
    %c0_148 = arith.constant 0 : index
    %342 = vector.load %arg2[%c1328, %c0_148] : memref<2112x128xbf16, #tpu.memory_space<vmem>>, vector<16x32xbf16>
    %cst_149 = arith.constant dense<0.000000e+00> : vector<16x16xf32>
    %343 = tpu.matmul %342, %338, %cst_149 {dimension_numbers = #tpu.dot_dimension_numbers<[1], [0], [0], [1], [0, 0, 1, 1], [], []>} : vector<16x32xbf16>, vector<32x16xbf16>, vector<16x16xf32> -> vector<16x16xf32>
    %344 = arith.truncf %343 : vector<16x16xf32> to vector<16x16xbf16>
    %c1344 = arith.constant 1344 : index
    %c0_150 = arith.constant 0 : index
    %345 = vector.load %arg2[%c1344, %c0_150] : memref<2112x128xbf16, #tpu.memory_space<vmem>>, vector<16x32xbf16>
    %cst_151 = arith.constant dense<0.000000e+00> : vector<16x32xf32>
    %346 = tpu.matmul %341, %345, %cst_151 {dimension_numbers = #tpu.dot_dimension_numbers<[1], [0], [0], [1], [0, 0, 1, 1], [], []>} : vector<16x16xbf16>, vector<16x32xbf16>, vector<16x32xf32> -> vector<16x32xf32>
    %c1360 = arith.constant 1360 : index
    %c0_152 = arith.constant 0 : index
    %347 = vector.load %arg2[%c1360, %c0_152] : memref<2112x128xbf16, #tpu.memory_space<vmem>>, vector<16x32xbf16>
    %cst_153 = arith.constant dense<0.000000e+00> : vector<16x32xf32>
    %348 = tpu.matmul %344, %347, %cst_153 {dimension_numbers = #tpu.dot_dimension_numbers<[1], [0], [0], [1], [0, 0, 1, 1], [], []>} : vector<16x16xbf16>, vector<16x32xbf16>, vector<16x32xf32> -> vector<16x32xf32>
    %349 = arith.addf %346, %348 : vector<16x32xf32>
    %c344 = arith.constant 344 : index
    %c0_154 = arith.constant 0 : index
    %350 = vector.load %arg3[%c344, %c0_154] : memref<696x2xf32, #tpu.memory_space<vmem>>, vector<16x2xf32>
    %351 = vector.extract_strided_slice %350 {offsets = [0, 0], sizes = [16, 1], strides = [1, 1]} : vector<16x2xf32> to vector<16x1xf32>
    %352 = vector.broadcast %351 : vector<16x1xf32> to vector<16x32xf32>
    %353 = arith.addf %349, %352 : vector<16x32xf32>
    %c536 = arith.constant 536 : index
    %c0_155 = arith.constant 0 : index
    %354 = vector.load %arg3[%c536, %c0_155] : memref<696x2xf32, #tpu.memory_space<vmem>>, vector<16x2xf32>
    %355 = vector.extract_strided_slice %354 {offsets = [0, 0], sizes = [16, 1], strides = [1, 1]} : vector<16x2xf32> to vector<16x1xf32>
    %356 = vector.broadcast %355 : vector<16x1xf32> to vector<16x32xf32>
    %357 = arith.mulf %124, %356 : vector<16x32xf32>
    %358 = vector.extract_strided_slice %354 {offsets = [0, 1], sizes = [16, 1], strides = [1, 1]} : vector<16x2xf32> to vector<16x1xf32>
    %359 = vector.broadcast %358 : vector<16x1xf32> to vector<16x32xf32>
    %360 = arith.addf %357, %359 : vector<16x32xf32>
    %cst_156 = arith.constant 0.000000e+00 : f32
    %361 = vector.broadcast %cst_156 : f32 to vector<16x32xf32>
    %362 = arith.maximumf %360, %361 : vector<16x32xf32>
    %c1856 = arith.constant 1856 : index
    %c0_157 = arith.constant 0 : index
    %363 = vector.load %arg2[%c1856, %c0_157] : memref<2112x128xbf16, #tpu.memory_space<vmem>>, vector<16x16xbf16>
    %364 = arith.truncf %362 : vector<16x32xf32> to vector<16x32xbf16>
    %cst_158 = arith.constant dense<0.000000e+00> : vector<16x32xf32>
    %365 = tpu.matmul %363, %364, %cst_158 {dimension_numbers = #tpu.dot_dimension_numbers<[1], [0], [0], [1], [0, 0, 1, 1], [], []>} : vector<16x16xbf16>, vector<16x32xbf16>, vector<16x32xf32> -> vector<16x32xf32>
    %c552 = arith.constant 552 : index
    %c0_159 = arith.constant 0 : index
    %366 = vector.load %arg3[%c552, %c0_159] : memref<696x2xf32, #tpu.memory_space<vmem>>, vector<16x2xf32>
    %367 = vector.extract_strided_slice %366 {offsets = [0, 0], sizes = [16, 1], strides = [1, 1]} : vector<16x2xf32> to vector<16x1xf32>
    %368 = vector.broadcast %367 : vector<16x1xf32> to vector<16x32xf32>
    %369 = arith.mulf %353, %368 : vector<16x32xf32>
    %370 = vector.extract_strided_slice %366 {offsets = [0, 1], sizes = [16, 1], strides = [1, 1]} : vector<16x2xf32> to vector<16x1xf32>
    %371 = vector.broadcast %370 : vector<16x1xf32> to vector<16x32xf32>
    %372 = arith.addf %369, %371 : vector<16x32xf32>
    %cst_160 = arith.constant 0.000000e+00 : f32
    %373 = vector.broadcast %cst_160 : f32 to vector<16x32xf32>
    %374 = arith.maximumf %372, %373 : vector<16x32xf32>
    %c1888 = arith.constant 1888 : index
    %c0_161 = arith.constant 0 : index
    %375 = vector.load %arg2[%c1888, %c0_161] : memref<2112x128xbf16, #tpu.memory_space<vmem>>, vector<16x16xbf16>
    %376 = arith.truncf %374 : vector<16x32xf32> to vector<16x32xbf16>
    %cst_162 = arith.constant dense<0.000000e+00> : vector<16x32xf32>
    %377 = tpu.matmul %375, %376, %cst_162 {dimension_numbers = #tpu.dot_dimension_numbers<[1], [0], [0], [1], [0, 0, 1, 1], [], []>} : vector<16x16xbf16>, vector<16x32xbf16>, vector<16x32xf32> -> vector<16x32xf32>
    %378 = arith.addf %365, %377 : vector<16x32xf32>
    %c568 = arith.constant 568 : index
    %c0_163 = arith.constant 0 : index
    %379 = vector.load %arg3[%c568, %c0_163] : memref<696x2xf32, #tpu.memory_space<vmem>>, vector<16x2xf32>
    %380 = vector.extract_strided_slice %379 {offsets = [0, 0], sizes = [16, 1], strides = [1, 1]} : vector<16x2xf32> to vector<16x1xf32>
    %381 = vector.broadcast %380 : vector<16x1xf32> to vector<16x32xf32>
    %382 = arith.mulf %378, %381 : vector<16x32xf32>
    %383 = vector.extract_strided_slice %379 {offsets = [0, 1], sizes = [16, 1], strides = [1, 1]} : vector<16x2xf32> to vector<16x1xf32>
    %384 = vector.broadcast %383 : vector<16x1xf32> to vector<16x32xf32>
    %385 = arith.addf %382, %384 : vector<16x32xf32>
    %cst_164 = arith.constant 0.000000e+00 : f32
    %386 = vector.broadcast %cst_164 : f32 to vector<16x32xf32>
    %387 = arith.maximumf %385, %386 : vector<16x32xf32>
    %388 = arith.truncf %387 : vector<16x32xf32> to vector<16x32xbf16>
    %c48_165 = arith.constant 48 : index
    %c0_166 = arith.constant 0 : index
    %389 = vector.load %arg2[%c48_165, %c0_166] : memref<2112x128xbf16, #tpu.memory_space<vmem>>, vector<32x32xbf16>
    %cst_167 = arith.constant dense<0.000000e+00> : vector<16x32xf32>
    %390 = tpu.matmul %388, %389, %cst_167 {dimension_numbers = #tpu.dot_dimension_numbers<[1], [0], [0], [1], [0, 0, 1, 1], [], []>} : vector<16x32xbf16>, vector<32x32xbf16>, vector<16x32xf32> -> vector<16x32xf32>
    %391 = arith.truncf %390 : vector<16x32xf32> to vector<16x32xbf16>
    %c80_168 = arith.constant 80 : index
    %c0_169 = arith.constant 0 : index
    %392 = vector.load %arg2[%c80_168, %c0_169] : memref<2112x128xbf16, #tpu.memory_space<vmem>>, vector<32x32xbf16>
    %cst_170 = arith.constant dense<0.000000e+00> : vector<16x32xf32>
    %393 = tpu.matmul %388, %392, %cst_170 {dimension_numbers = #tpu.dot_dimension_numbers<[1], [0], [0], [1], [0, 0, 1, 1], [], []>} : vector<16x32xbf16>, vector<32x32xbf16>, vector<16x32xf32> -> vector<16x32xf32>
    %394 = arith.truncf %393 : vector<16x32xf32> to vector<16x32xbf16>
    %c1936 = arith.constant 1936 : index
    %c0_171 = arith.constant 0 : index
    %395 = vector.load %arg2[%c1936, %c0_171] : memref<2112x128xbf16, #tpu.memory_space<vmem>>, vector<16x16xbf16>
    %cst_172 = arith.constant dense<0.000000e+00> : vector<16x32xf32>
    %396 = tpu.matmul %395, %388, %cst_172 {dimension_numbers = #tpu.dot_dimension_numbers<[1], [0], [0], [1], [0, 0, 1, 1], [], []>} : vector<16x16xbf16>, vector<16x32xbf16>, vector<16x32xf32> -> vector<16x32xf32>
    %c1920 = arith.constant 1920 : index
    %c0_173 = arith.constant 0 : index
    %397 = vector.load %arg2[%c1920, %c0_173] : memref<2112x128xbf16, #tpu.memory_space<vmem>>, vector<16x16xbf16>
    %cst_174 = arith.constant dense<0.000000e+00> : vector<16x32xf32>
    %398 = tpu.matmul %397, %391, %cst_174 {dimension_numbers = #tpu.dot_dimension_numbers<[1], [0], [0], [1], [0, 0, 1, 1], [], []>} : vector<16x16xbf16>, vector<16x32xbf16>, vector<16x32xf32> -> vector<16x32xf32>
    %399 = arith.addf %396, %398 : vector<16x32xf32>
    %c1952 = arith.constant 1952 : index
    %c0_175 = arith.constant 0 : index
    %400 = vector.load %arg2[%c1952, %c0_175] : memref<2112x128xbf16, #tpu.memory_space<vmem>>, vector<16x16xbf16>
    %cst_176 = arith.constant dense<0.000000e+00> : vector<16x32xf32>
    %401 = tpu.matmul %400, %394, %cst_176 {dimension_numbers = #tpu.dot_dimension_numbers<[1], [0], [0], [1], [0, 0, 1, 1], [], []>} : vector<16x16xbf16>, vector<16x32xbf16>, vector<16x32xf32> -> vector<16x32xf32>
    %402 = arith.addf %399, %401 : vector<16x32xf32>
    %c584 = arith.constant 584 : index
    %c0_177 = arith.constant 0 : index
    %403 = vector.load %arg3[%c584, %c0_177] : memref<696x2xf32, #tpu.memory_space<vmem>>, vector<16x2xf32>
    %404 = vector.extract_strided_slice %403 {offsets = [0, 0], sizes = [16, 1], strides = [1, 1]} : vector<16x2xf32> to vector<16x1xf32>
    %405 = vector.broadcast %404 : vector<16x1xf32> to vector<16x32xf32>
    %406 = arith.mulf %402, %405 : vector<16x32xf32>
    %407 = vector.extract_strided_slice %403 {offsets = [0, 1], sizes = [16, 1], strides = [1, 1]} : vector<16x2xf32> to vector<16x1xf32>
    %408 = vector.broadcast %407 : vector<16x1xf32> to vector<16x32xf32>
    %409 = arith.addf %406, %408 : vector<16x32xf32>
    %cst_178 = arith.constant 0.000000e+00 : f32
    %410 = vector.broadcast %cst_178 : f32 to vector<16x32xf32>
    %411 = arith.maximumf %409, %410 : vector<16x32xf32>
    %c1968 = arith.constant 1968 : index
    %c0_179 = arith.constant 0 : index
    %412 = vector.load %arg2[%c1968, %c0_179] : memref<2112x128xbf16, #tpu.memory_space<vmem>>, vector<16x16xbf16>
    %413 = arith.truncf %411 : vector<16x32xf32> to vector<16x32xbf16>
    %cst_180 = arith.constant dense<0.000000e+00> : vector<16x32xf32>
    %414 = tpu.matmul %412, %413, %cst_180 {dimension_numbers = #tpu.dot_dimension_numbers<[1], [0], [0], [1], [0, 0, 1, 1], [], []>} : vector<16x16xbf16>, vector<16x32xbf16>, vector<16x32xf32> -> vector<16x32xf32>
    %c1872 = arith.constant 1872 : index
    %c0_181 = arith.constant 0 : index
    %415 = vector.load %arg2[%c1872, %c0_181] : memref<2112x128xbf16, #tpu.memory_space<vmem>>, vector<16x16xbf16>
    %416 = arith.truncf %124 : vector<16x32xf32> to vector<16x32xbf16>
    %cst_182 = arith.constant dense<0.000000e+00> : vector<16x32xf32>
    %417 = tpu.matmul %415, %416, %cst_182 {dimension_numbers = #tpu.dot_dimension_numbers<[1], [0], [0], [1], [0, 0, 1, 1], [], []>} : vector<16x16xbf16>, vector<16x32xbf16>, vector<16x32xf32> -> vector<16x32xf32>
    %418 = arith.addf %414, %417 : vector<16x32xf32>
    %c1904 = arith.constant 1904 : index
    %c0_183 = arith.constant 0 : index
    %419 = vector.load %arg2[%c1904, %c0_183] : memref<2112x128xbf16, #tpu.memory_space<vmem>>, vector<16x16xbf16>
    %420 = arith.truncf %353 : vector<16x32xf32> to vector<16x32xbf16>
    %cst_184 = arith.constant dense<0.000000e+00> : vector<16x32xf32>
    %421 = tpu.matmul %419, %420, %cst_184 {dimension_numbers = #tpu.dot_dimension_numbers<[1], [0], [0], [1], [0, 0, 1, 1], [], []>} : vector<16x16xbf16>, vector<16x32xbf16>, vector<16x32xf32> -> vector<16x32xf32>
    %422 = arith.addf %418, %421 : vector<16x32xf32>
    %c600 = arith.constant 600 : index
    %c0_185 = arith.constant 0 : index
    %423 = vector.load %arg3[%c600, %c0_185] : memref<696x2xf32, #tpu.memory_space<vmem>>, vector<16x2xf32>
    %424 = vector.extract_strided_slice %423 {offsets = [0, 0], sizes = [16, 1], strides = [1, 1]} : vector<16x2xf32> to vector<16x1xf32>
    %425 = vector.broadcast %424 : vector<16x1xf32> to vector<16x32xf32>
    %426 = arith.addf %422, %425 : vector<16x32xf32>
    %427 = arith.truncf %426 : vector<16x32xf32> to vector<16x32xbf16>
    %c1376 = arith.constant 1376 : index
    %c0_186 = arith.constant 0 : index
    %428 = vector.load %arg2[%c1376, %c0_186] : memref<2112x128xbf16, #tpu.memory_space<vmem>>, vector<8x16xbf16>
    %cst_187 = arith.constant dense<0.000000e+00> : vector<8x32xf32>
    %429 = tpu.matmul %428, %427, %cst_187 {dimension_numbers = #tpu.dot_dimension_numbers<[1], [0], [0], [1], [0, 0, 1, 1], [], []>} : vector<8x16xbf16>, vector<16x32xbf16>, vector<8x32xf32> -> vector<8x32xf32>
    %430 = arith.truncf %429 : vector<8x32xf32> to vector<8x32xbf16>
    %c1384 = arith.constant 1384 : index
    %c0_188 = arith.constant 0 : index
    %431 = vector.load %arg2[%c1384, %c0_188] : memref<2112x128xbf16, #tpu.memory_space<vmem>>, vector<8x16xbf16>
    %cst_189 = arith.constant dense<0.000000e+00> : vector<8x32xf32>
    %432 = tpu.matmul %431, %427, %cst_189 {dimension_numbers = #tpu.dot_dimension_numbers<[1], [0], [0], [1], [0, 0, 1, 1], [], []>} : vector<8x16xbf16>, vector<16x32xbf16>, vector<8x32xf32> -> vector<8x32xf32>
    %433 = arith.truncf %432 : vector<8x32xf32> to vector<8x32xbf16>
    %c1392 = arith.constant 1392 : index
    %c0_190 = arith.constant 0 : index
    %434 = vector.load %arg2[%c1392, %c0_190] : memref<2112x128xbf16, #tpu.memory_space<vmem>>, vector<32x64xbf16>
    %cst_191 = arith.constant dense<0.000000e+00> : vector<8x64xf32>
    %435 = tpu.matmul %430, %434, %cst_191 {dimension_numbers = #tpu.dot_dimension_numbers<[1], [0], [0], [1], [0, 0, 1, 1], [], []>} : vector<8x32xbf16>, vector<32x64xbf16>, vector<8x64xf32> -> vector<8x64xf32>
    %c1424 = arith.constant 1424 : index
    %c0_192 = arith.constant 0 : index
    %436 = vector.load %arg2[%c1424, %c0_192] : memref<2112x128xbf16, #tpu.memory_space<vmem>>, vector<32x64xbf16>
    %cst_193 = arith.constant dense<0.000000e+00> : vector<8x64xf32>
    %437 = tpu.matmul %433, %436, %cst_193 {dimension_numbers = #tpu.dot_dimension_numbers<[1], [0], [0], [1], [0, 0, 1, 1], [], []>} : vector<8x32xbf16>, vector<32x64xbf16>, vector<8x64xf32> -> vector<8x64xf32>
    %438 = arith.addf %435, %437 : vector<8x64xf32>
    %c360 = arith.constant 360 : index
    %c0_194 = arith.constant 0 : index
    %439 = vector.load %arg3[%c360, %c0_194] : memref<696x2xf32, #tpu.memory_space<vmem>>, vector<8x2xf32>
    %440 = vector.extract_strided_slice %439 {offsets = [0, 0], sizes = [8, 1], strides = [1, 1]} : vector<8x2xf32> to vector<8x1xf32>
    %441 = vector.broadcast %440 : vector<8x1xf32> to vector<8x64xf32>
    %442 = arith.addf %438, %441 : vector<8x64xf32>
    %c616 = arith.constant 616 : index
    %c0_195 = arith.constant 0 : index
    %443 = vector.load %arg3[%c616, %c0_195] : memref<696x2xf32, #tpu.memory_space<vmem>>, vector<8x2xf32>
    %444 = vector.extract_strided_slice %443 {offsets = [0, 0], sizes = [8, 1], strides = [1, 1]} : vector<8x2xf32> to vector<8x1xf32>
    %445 = vector.broadcast %444 : vector<8x1xf32> to vector<8x64xf32>
    %446 = arith.mulf %62, %445 : vector<8x64xf32>
    %447 = vector.extract_strided_slice %443 {offsets = [0, 1], sizes = [8, 1], strides = [1, 1]} : vector<8x2xf32> to vector<8x1xf32>
    %448 = vector.broadcast %447 : vector<8x1xf32> to vector<8x64xf32>
    %449 = arith.addf %446, %448 : vector<8x64xf32>
    %cst_196 = arith.constant 0.000000e+00 : f32
    %450 = vector.broadcast %cst_196 : f32 to vector<8x64xf32>
    %451 = arith.maximumf %449, %450 : vector<8x64xf32>
    %c1984 = arith.constant 1984 : index
    %c0_197 = arith.constant 0 : index
    %452 = vector.load %arg2[%c1984, %c0_197] : memref<2112x128xbf16, #tpu.memory_space<vmem>>, vector<8x8xbf16>
    %453 = arith.truncf %451 : vector<8x64xf32> to vector<8x64xbf16>
    %cst_198 = arith.constant dense<0.000000e+00> : vector<8x64xf32>
    %454 = tpu.matmul %452, %453, %cst_198 {dimension_numbers = #tpu.dot_dimension_numbers<[1], [0], [0], [1], [0, 0, 1, 1], [], []>} : vector<8x8xbf16>, vector<8x64xbf16>, vector<8x64xf32> -> vector<8x64xf32>
    %c624_199 = arith.constant 624 : index
    %c0_200 = arith.constant 0 : index
    %455 = vector.load %arg3[%c624_199, %c0_200] : memref<696x2xf32, #tpu.memory_space<vmem>>, vector<8x2xf32>
    %456 = vector.extract_strided_slice %455 {offsets = [0, 0], sizes = [8, 1], strides = [1, 1]} : vector<8x2xf32> to vector<8x1xf32>
    %457 = vector.broadcast %456 : vector<8x1xf32> to vector<8x64xf32>
    %458 = arith.mulf %442, %457 : vector<8x64xf32>
    %459 = vector.extract_strided_slice %455 {offsets = [0, 1], sizes = [8, 1], strides = [1, 1]} : vector<8x2xf32> to vector<8x1xf32>
    %460 = vector.broadcast %459 : vector<8x1xf32> to vector<8x64xf32>
    %461 = arith.addf %458, %460 : vector<8x64xf32>
    %cst_201 = arith.constant 0.000000e+00 : f32
    %462 = vector.broadcast %cst_201 : f32 to vector<8x64xf32>
    %463 = arith.maximumf %461, %462 : vector<8x64xf32>
    %c2000 = arith.constant 2000 : index
    %c0_202 = arith.constant 0 : index
    %464 = vector.load %arg2[%c2000, %c0_202] : memref<2112x128xbf16, #tpu.memory_space<vmem>>, vector<8x8xbf16>
    %465 = arith.truncf %463 : vector<8x64xf32> to vector<8x64xbf16>
    %cst_203 = arith.constant dense<0.000000e+00> : vector<8x64xf32>
    %466 = tpu.matmul %464, %465, %cst_203 {dimension_numbers = #tpu.dot_dimension_numbers<[1], [0], [0], [1], [0, 0, 1, 1], [], []>} : vector<8x8xbf16>, vector<8x64xbf16>, vector<8x64xf32> -> vector<8x64xf32>
    %467 = arith.addf %454, %466 : vector<8x64xf32>
    %c632 = arith.constant 632 : index
    %c0_204 = arith.constant 0 : index
    %468 = vector.load %arg3[%c632, %c0_204] : memref<696x2xf32, #tpu.memory_space<vmem>>, vector<8x2xf32>
    %469 = vector.extract_strided_slice %468 {offsets = [0, 0], sizes = [8, 1], strides = [1, 1]} : vector<8x2xf32> to vector<8x1xf32>
    %470 = vector.broadcast %469 : vector<8x1xf32> to vector<8x64xf32>
    %471 = arith.mulf %467, %470 : vector<8x64xf32>
    %472 = vector.extract_strided_slice %468 {offsets = [0, 1], sizes = [8, 1], strides = [1, 1]} : vector<8x2xf32> to vector<8x1xf32>
    %473 = vector.broadcast %472 : vector<8x1xf32> to vector<8x64xf32>
    %474 = arith.addf %471, %473 : vector<8x64xf32>
    %cst_205 = arith.constant 0.000000e+00 : f32
    %475 = vector.broadcast %cst_205 : f32 to vector<8x64xf32>
    %476 = arith.maximumf %474, %475 : vector<8x64xf32>
    %477 = arith.truncf %476 : vector<8x64xf32> to vector<8x64xbf16>
    %c112_206 = arith.constant 112 : index
    %c0_207 = arith.constant 0 : index
    %478 = vector.load %arg2[%c112_206, %c0_207] : memref<2112x128xbf16, #tpu.memory_space<vmem>>, vector<64x64xbf16>
    %cst_208 = arith.constant dense<0.000000e+00> : vector<8x64xf32>
    %479 = tpu.matmul %477, %478, %cst_208 {dimension_numbers = #tpu.dot_dimension_numbers<[1], [0], [0], [1], [0, 0, 1, 1], [], []>} : vector<8x64xbf16>, vector<64x64xbf16>, vector<8x64xf32> -> vector<8x64xf32>
    %480 = arith.truncf %479 : vector<8x64xf32> to vector<8x64xbf16>
    %c176_209 = arith.constant 176 : index
    %c0_210 = arith.constant 0 : index
    %481 = vector.load %arg2[%c176_209, %c0_210] : memref<2112x128xbf16, #tpu.memory_space<vmem>>, vector<64x64xbf16>
    %cst_211 = arith.constant dense<0.000000e+00> : vector<8x64xf32>
    %482 = tpu.matmul %477, %481, %cst_211 {dimension_numbers = #tpu.dot_dimension_numbers<[1], [0], [0], [1], [0, 0, 1, 1], [], []>} : vector<8x64xbf16>, vector<64x64xbf16>, vector<8x64xf32> -> vector<8x64xf32>
    %483 = arith.truncf %482 : vector<8x64xf32> to vector<8x64xbf16>
    %c2024 = arith.constant 2024 : index
    %c0_212 = arith.constant 0 : index
    %484 = vector.load %arg2[%c2024, %c0_212] : memref<2112x128xbf16, #tpu.memory_space<vmem>>, vector<8x8xbf16>
    %cst_213 = arith.constant dense<0.000000e+00> : vector<8x64xf32>
    %485 = tpu.matmul %484, %477, %cst_213 {dimension_numbers = #tpu.dot_dimension_numbers<[1], [0], [0], [1], [0, 0, 1, 1], [], []>} : vector<8x8xbf16>, vector<8x64xbf16>, vector<8x64xf32> -> vector<8x64xf32>
    %c2016 = arith.constant 2016 : index
    %c0_214 = arith.constant 0 : index
    %486 = vector.load %arg2[%c2016, %c0_214] : memref<2112x128xbf16, #tpu.memory_space<vmem>>, vector<8x8xbf16>
    %cst_215 = arith.constant dense<0.000000e+00> : vector<8x64xf32>
    %487 = tpu.matmul %486, %480, %cst_215 {dimension_numbers = #tpu.dot_dimension_numbers<[1], [0], [0], [1], [0, 0, 1, 1], [], []>} : vector<8x8xbf16>, vector<8x64xbf16>, vector<8x64xf32> -> vector<8x64xf32>
    %488 = arith.addf %485, %487 : vector<8x64xf32>
    %c2032 = arith.constant 2032 : index
    %c0_216 = arith.constant 0 : index
    %489 = vector.load %arg2[%c2032, %c0_216] : memref<2112x128xbf16, #tpu.memory_space<vmem>>, vector<8x8xbf16>
    %cst_217 = arith.constant dense<0.000000e+00> : vector<8x64xf32>
    %490 = tpu.matmul %489, %483, %cst_217 {dimension_numbers = #tpu.dot_dimension_numbers<[1], [0], [0], [1], [0, 0, 1, 1], [], []>} : vector<8x8xbf16>, vector<8x64xbf16>, vector<8x64xf32> -> vector<8x64xf32>
    %491 = arith.addf %488, %490 : vector<8x64xf32>
    %c640 = arith.constant 640 : index
    %c0_218 = arith.constant 0 : index
    %492 = vector.load %arg3[%c640, %c0_218] : memref<696x2xf32, #tpu.memory_space<vmem>>, vector<8x2xf32>
    %493 = vector.extract_strided_slice %492 {offsets = [0, 0], sizes = [8, 1], strides = [1, 1]} : vector<8x2xf32> to vector<8x1xf32>
    %494 = vector.broadcast %493 : vector<8x1xf32> to vector<8x64xf32>
    %495 = arith.mulf %491, %494 : vector<8x64xf32>
    %496 = vector.extract_strided_slice %492 {offsets = [0, 1], sizes = [8, 1], strides = [1, 1]} : vector<8x2xf32> to vector<8x1xf32>
    %497 = vector.broadcast %496 : vector<8x1xf32> to vector<8x64xf32>
    %498 = arith.addf %495, %497 : vector<8x64xf32>
    %cst_219 = arith.constant 0.000000e+00 : f32
    %499 = vector.broadcast %cst_219 : f32 to vector<8x64xf32>
    %500 = arith.maximumf %498, %499 : vector<8x64xf32>
    %c2040 = arith.constant 2040 : index
    %c0_220 = arith.constant 0 : index
    %501 = vector.load %arg2[%c2040, %c0_220] : memref<2112x128xbf16, #tpu.memory_space<vmem>>, vector<8x8xbf16>
    %502 = arith.truncf %500 : vector<8x64xf32> to vector<8x64xbf16>
    %cst_221 = arith.constant dense<0.000000e+00> : vector<8x64xf32>
    %503 = tpu.matmul %501, %502, %cst_221 {dimension_numbers = #tpu.dot_dimension_numbers<[1], [0], [0], [1], [0, 0, 1, 1], [], []>} : vector<8x8xbf16>, vector<8x64xbf16>, vector<8x64xf32> -> vector<8x64xf32>
    %c1992 = arith.constant 1992 : index
    %c0_222 = arith.constant 0 : index
    %504 = vector.load %arg2[%c1992, %c0_222] : memref<2112x128xbf16, #tpu.memory_space<vmem>>, vector<8x8xbf16>
    %505 = arith.truncf %62 : vector<8x64xf32> to vector<8x64xbf16>
    %cst_223 = arith.constant dense<0.000000e+00> : vector<8x64xf32>
    %506 = tpu.matmul %504, %505, %cst_223 {dimension_numbers = #tpu.dot_dimension_numbers<[1], [0], [0], [1], [0, 0, 1, 1], [], []>} : vector<8x8xbf16>, vector<8x64xbf16>, vector<8x64xf32> -> vector<8x64xf32>
    %507 = arith.addf %503, %506 : vector<8x64xf32>
    %c2008 = arith.constant 2008 : index
    %c0_224 = arith.constant 0 : index
    %508 = vector.load %arg2[%c2008, %c0_224] : memref<2112x128xbf16, #tpu.memory_space<vmem>>, vector<8x8xbf16>
    %509 = arith.truncf %442 : vector<8x64xf32> to vector<8x64xbf16>
    %cst_225 = arith.constant dense<0.000000e+00> : vector<8x64xf32>
    %510 = tpu.matmul %508, %509, %cst_225 {dimension_numbers = #tpu.dot_dimension_numbers<[1], [0], [0], [1], [0, 0, 1, 1], [], []>} : vector<8x8xbf16>, vector<8x64xbf16>, vector<8x64xf32> -> vector<8x64xf32>
    %511 = arith.addf %507, %510 : vector<8x64xf32>
    %c648 = arith.constant 648 : index
    %c0_226 = arith.constant 0 : index
    %512 = vector.load %arg3[%c648, %c0_226] : memref<696x2xf32, #tpu.memory_space<vmem>>, vector<8x2xf32>
    %513 = vector.extract_strided_slice %512 {offsets = [0, 0], sizes = [8, 1], strides = [1, 1]} : vector<8x2xf32> to vector<8x1xf32>
    %514 = vector.broadcast %513 : vector<8x1xf32> to vector<8x64xf32>
    %515 = arith.addf %511, %514 : vector<8x64xf32>
    %516 = arith.truncf %515 : vector<8x64xf32> to vector<8x64xbf16>
    %c1456 = arith.constant 1456 : index
    %c0_227 = arith.constant 0 : index
    %517 = vector.load %arg2[%c1456, %c0_227] : memref<2112x128xbf16, #tpu.memory_space<vmem>>, vector<4x8xbf16>
    %cst_228 = arith.constant dense<0.000000e+00> : vector<4x64xf32>
    %518 = tpu.matmul %517, %516, %cst_228 {dimension_numbers = #tpu.dot_dimension_numbers<[1], [0], [0], [1], [0, 0, 1, 1], [], []>} : vector<4x8xbf16>, vector<8x64xbf16>, vector<4x64xf32> -> vector<4x64xf32>
    %519 = arith.truncf %518 : vector<4x64xf32> to vector<4x64xbf16>
    %c1464 = arith.constant 1464 : index
    %c0_229 = arith.constant 0 : index
    %520 = vector.load %arg2[%c1464, %c0_229] : memref<2112x128xbf16, #tpu.memory_space<vmem>>, vector<4x8xbf16>
    %cst_230 = arith.constant dense<0.000000e+00> : vector<4x64xf32>
    %521 = tpu.matmul %520, %516, %cst_230 {dimension_numbers = #tpu.dot_dimension_numbers<[1], [0], [0], [1], [0, 0, 1, 1], [], []>} : vector<4x8xbf16>, vector<8x64xbf16>, vector<4x64xf32> -> vector<4x64xf32>
    %522 = arith.truncf %521 : vector<4x64xf32> to vector<4x64xbf16>
    %c1472 = arith.constant 1472 : index
    %c0_231 = arith.constant 0 : index
    %523 = vector.load %arg2[%c1472, %c0_231] : memref<2112x128xbf16, #tpu.memory_space<vmem>>, vector<64x128xbf16>
    %cst_232 = arith.constant dense<0.000000e+00> : vector<4x128xf32>
    %524 = tpu.matmul %519, %523, %cst_232 {dimension_numbers = #tpu.dot_dimension_numbers<[1], [0], [0], [1], [0, 0, 1, 1], [], []>} : vector<4x64xbf16>, vector<64x128xbf16>, vector<4x128xf32> -> vector<4x128xf32>
    %c1536 = arith.constant 1536 : index
    %c0_233 = arith.constant 0 : index
    %525 = vector.load %arg2[%c1536, %c0_233] : memref<2112x128xbf16, #tpu.memory_space<vmem>>, vector<64x128xbf16>
    %cst_234 = arith.constant dense<0.000000e+00> : vector<4x128xf32>
    %526 = tpu.matmul %522, %525, %cst_234 {dimension_numbers = #tpu.dot_dimension_numbers<[1], [0], [0], [1], [0, 0, 1, 1], [], []>} : vector<4x64xbf16>, vector<64x128xbf16>, vector<4x128xf32> -> vector<4x128xf32>
    %527 = arith.addf %524, %526 : vector<4x128xf32>
    %c368 = arith.constant 368 : index
    %c0_235 = arith.constant 0 : index
    %528 = vector.load %arg3[%c368, %c0_235] : memref<696x2xf32, #tpu.memory_space<vmem>>, vector<4x2xf32>
    %529 = vector.extract_strided_slice %528 {offsets = [0, 0], sizes = [4, 1], strides = [1, 1]} : vector<4x2xf32> to vector<4x1xf32>
    %530 = vector.broadcast %529 : vector<4x1xf32> to vector<4x128xf32>
    %531 = arith.addf %527, %530 : vector<4x128xf32>
    %c656 = arith.constant 656 : index
    %c0_236 = arith.constant 0 : index
    %532 = vector.load %arg3[%c656, %c0_236] : memref<696x2xf32, #tpu.memory_space<vmem>>, vector<4x2xf32>
    %533 = vector.extract_strided_slice %532 {offsets = [0, 0], sizes = [4, 1], strides = [1, 1]} : vector<4x2xf32> to vector<4x1xf32>
    %534 = vector.broadcast %533 : vector<4x1xf32> to vector<4x128xf32>
    %535 = arith.mulf %0, %534 : vector<4x128xf32>
    %536 = vector.extract_strided_slice %532 {offsets = [0, 1], sizes = [4, 1], strides = [1, 1]} : vector<4x2xf32> to vector<4x1xf32>
    %537 = vector.broadcast %536 : vector<4x1xf32> to vector<4x128xf32>
    %538 = arith.addf %535, %537 : vector<4x128xf32>
    %cst_237 = arith.constant 0.000000e+00 : f32
    %539 = vector.broadcast %cst_237 : f32 to vector<4x128xf32>
    %540 = arith.maximumf %538, %539 : vector<4x128xf32>
    %c2048 = arith.constant 2048 : index
    %c0_238 = arith.constant 0 : index
    %541 = vector.load %arg2[%c2048, %c0_238] : memref<2112x128xbf16, #tpu.memory_space<vmem>>, vector<4x4xbf16>
    %542 = arith.truncf %540 : vector<4x128xf32> to vector<4x128xbf16>
    %cst_239 = arith.constant dense<0.000000e+00> : vector<4x128xf32>
    %543 = tpu.matmul %541, %542, %cst_239 {dimension_numbers = #tpu.dot_dimension_numbers<[1], [0], [0], [1], [0, 0, 1, 1], [], []>} : vector<4x4xbf16>, vector<4x128xbf16>, vector<4x128xf32> -> vector<4x128xf32>
    %c664 = arith.constant 664 : index
    %c0_240 = arith.constant 0 : index
    %544 = vector.load %arg3[%c664, %c0_240] : memref<696x2xf32, #tpu.memory_space<vmem>>, vector<4x2xf32>
    %545 = vector.extract_strided_slice %544 {offsets = [0, 0], sizes = [4, 1], strides = [1, 1]} : vector<4x2xf32> to vector<4x1xf32>
    %546 = vector.broadcast %545 : vector<4x1xf32> to vector<4x128xf32>
    %547 = arith.mulf %531, %546 : vector<4x128xf32>
    %548 = vector.extract_strided_slice %544 {offsets = [0, 1], sizes = [4, 1], strides = [1, 1]} : vector<4x2xf32> to vector<4x1xf32>
    %549 = vector.broadcast %548 : vector<4x1xf32> to vector<4x128xf32>
    %550 = arith.addf %547, %549 : vector<4x128xf32>
    %cst_241 = arith.constant 0.000000e+00 : f32
    %551 = vector.broadcast %cst_241 : f32 to vector<4x128xf32>
    %552 = arith.maximumf %550, %551 : vector<4x128xf32>
    %c2064 = arith.constant 2064 : index
    %c0_242 = arith.constant 0 : index
    %553 = vector.load %arg2[%c2064, %c0_242] : memref<2112x128xbf16, #tpu.memory_space<vmem>>, vector<4x4xbf16>
    %554 = arith.truncf %552 : vector<4x128xf32> to vector<4x128xbf16>
    %cst_243 = arith.constant dense<0.000000e+00> : vector<4x128xf32>
    %555 = tpu.matmul %553, %554, %cst_243 {dimension_numbers = #tpu.dot_dimension_numbers<[1], [0], [0], [1], [0, 0, 1, 1], [], []>} : vector<4x4xbf16>, vector<4x128xbf16>, vector<4x128xf32> -> vector<4x128xf32>
    %556 = arith.addf %543, %555 : vector<4x128xf32>
    %c672 = arith.constant 672 : index
    %c0_244 = arith.constant 0 : index
    %557 = vector.load %arg3[%c672, %c0_244] : memref<696x2xf32, #tpu.memory_space<vmem>>, vector<4x2xf32>
    %558 = vector.extract_strided_slice %557 {offsets = [0, 0], sizes = [4, 1], strides = [1, 1]} : vector<4x2xf32> to vector<4x1xf32>
    %559 = vector.broadcast %558 : vector<4x1xf32> to vector<4x128xf32>
    %560 = arith.mulf %556, %559 : vector<4x128xf32>
    %561 = vector.extract_strided_slice %557 {offsets = [0, 1], sizes = [4, 1], strides = [1, 1]} : vector<4x2xf32> to vector<4x1xf32>
    %562 = vector.broadcast %561 : vector<4x1xf32> to vector<4x128xf32>
    %563 = arith.addf %560, %562 : vector<4x128xf32>
    %cst_245 = arith.constant 0.000000e+00 : f32
    %564 = vector.broadcast %cst_245 : f32 to vector<4x128xf32>
    %565 = arith.maximumf %563, %564 : vector<4x128xf32>
    %566 = arith.truncf %565 : vector<4x128xf32> to vector<4x128xbf16>
    %c240 = arith.constant 240 : index
    %c0_246 = arith.constant 0 : index
    %567 = vector.load %arg2[%c240, %c0_246] : memref<2112x128xbf16, #tpu.memory_space<vmem>>, vector<128x128xbf16>
    %cst_247 = arith.constant dense<0.000000e+00> : vector<4x128xf32>
    %568 = tpu.matmul %566, %567, %cst_247 {dimension_numbers = #tpu.dot_dimension_numbers<[1], [0], [0], [1], [0, 0, 1, 1], [], []>} : vector<4x128xbf16>, vector<128x128xbf16>, vector<4x128xf32> -> vector<4x128xf32>
    %569 = arith.truncf %568 : vector<4x128xf32> to vector<4x128xbf16>
    %c368_248 = arith.constant 368 : index
    %c0_249 = arith.constant 0 : index
    %570 = vector.load %arg2[%c368_248, %c0_249] : memref<2112x128xbf16, #tpu.memory_space<vmem>>, vector<128x128xbf16>
    %cst_250 = arith.constant dense<0.000000e+00> : vector<4x128xf32>
    %571 = tpu.matmul %566, %570, %cst_250 {dimension_numbers = #tpu.dot_dimension_numbers<[1], [0], [0], [1], [0, 0, 1, 1], [], []>} : vector<4x128xbf16>, vector<128x128xbf16>, vector<4x128xf32> -> vector<4x128xf32>
    %572 = arith.truncf %571 : vector<4x128xf32> to vector<4x128xbf16>
    %c2088 = arith.constant 2088 : index
    %c0_251 = arith.constant 0 : index
    %573 = vector.load %arg2[%c2088, %c0_251] : memref<2112x128xbf16, #tpu.memory_space<vmem>>, vector<4x4xbf16>
    %cst_252 = arith.constant dense<0.000000e+00> : vector<4x128xf32>
    %574 = tpu.matmul %573, %566, %cst_252 {dimension_numbers = #tpu.dot_dimension_numbers<[1], [0], [0], [1], [0, 0, 1, 1], [], []>} : vector<4x4xbf16>, vector<4x128xbf16>, vector<4x128xf32> -> vector<4x128xf32>
    %c2080 = arith.constant 2080 : index
    %c0_253 = arith.constant 0 : index
    %575 = vector.load %arg2[%c2080, %c0_253] : memref<2112x128xbf16, #tpu.memory_space<vmem>>, vector<4x4xbf16>
    %cst_254 = arith.constant dense<0.000000e+00> : vector<4x128xf32>
    %576 = tpu.matmul %575, %569, %cst_254 {dimension_numbers = #tpu.dot_dimension_numbers<[1], [0], [0], [1], [0, 0, 1, 1], [], []>} : vector<4x4xbf16>, vector<4x128xbf16>, vector<4x128xf32> -> vector<4x128xf32>
    %577 = arith.addf %574, %576 : vector<4x128xf32>
    %c2096 = arith.constant 2096 : index
    %c0_255 = arith.constant 0 : index
    %578 = vector.load %arg2[%c2096, %c0_255] : memref<2112x128xbf16, #tpu.memory_space<vmem>>, vector<4x4xbf16>
    %cst_256 = arith.constant dense<0.000000e+00> : vector<4x128xf32>
    %579 = tpu.matmul %578, %572, %cst_256 {dimension_numbers = #tpu.dot_dimension_numbers<[1], [0], [0], [1], [0, 0, 1, 1], [], []>} : vector<4x4xbf16>, vector<4x128xbf16>, vector<4x128xf32> -> vector<4x128xf32>
    %580 = arith.addf %577, %579 : vector<4x128xf32>
    %c680 = arith.constant 680 : index
    %c0_257 = arith.constant 0 : index
    %581 = vector.load %arg3[%c680, %c0_257] : memref<696x2xf32, #tpu.memory_space<vmem>>, vector<4x2xf32>
    %582 = vector.extract_strided_slice %581 {offsets = [0, 0], sizes = [4, 1], strides = [1, 1]} : vector<4x2xf32> to vector<4x1xf32>
    %583 = vector.broadcast %582 : vector<4x1xf32> to vector<4x128xf32>
    %584 = arith.mulf %580, %583 : vector<4x128xf32>
    %585 = vector.extract_strided_slice %581 {offsets = [0, 1], sizes = [4, 1], strides = [1, 1]} : vector<4x2xf32> to vector<4x1xf32>
    %586 = vector.broadcast %585 : vector<4x1xf32> to vector<4x128xf32>
    %587 = arith.addf %584, %586 : vector<4x128xf32>
    %cst_258 = arith.constant 0.000000e+00 : f32
    %588 = vector.broadcast %cst_258 : f32 to vector<4x128xf32>
    %589 = arith.maximumf %587, %588 : vector<4x128xf32>
    %c2104 = arith.constant 2104 : index
    %c0_259 = arith.constant 0 : index
    %590 = vector.load %arg2[%c2104, %c0_259] : memref<2112x128xbf16, #tpu.memory_space<vmem>>, vector<4x4xbf16>
    %591 = arith.truncf %589 : vector<4x128xf32> to vector<4x128xbf16>
    %cst_260 = arith.constant dense<0.000000e+00> : vector<4x128xf32>
    %592 = tpu.matmul %590, %591, %cst_260 {dimension_numbers = #tpu.dot_dimension_numbers<[1], [0], [0], [1], [0, 0, 1, 1], [], []>} : vector<4x4xbf16>, vector<4x128xbf16>, vector<4x128xf32> -> vector<4x128xf32>
    %c2056 = arith.constant 2056 : index
    %c0_261 = arith.constant 0 : index
    %593 = vector.load %arg2[%c2056, %c0_261] : memref<2112x128xbf16, #tpu.memory_space<vmem>>, vector<4x4xbf16>
    %594 = arith.truncf %0 : vector<4x128xf32> to vector<4x128xbf16>
    %cst_262 = arith.constant dense<0.000000e+00> : vector<4x128xf32>
    %595 = tpu.matmul %593, %594, %cst_262 {dimension_numbers = #tpu.dot_dimension_numbers<[1], [0], [0], [1], [0, 0, 1, 1], [], []>} : vector<4x4xbf16>, vector<4x128xbf16>, vector<4x128xf32> -> vector<4x128xf32>
    %596 = arith.addf %592, %595 : vector<4x128xf32>
    %c2072 = arith.constant 2072 : index
    %c0_263 = arith.constant 0 : index
    %597 = vector.load %arg2[%c2072, %c0_263] : memref<2112x128xbf16, #tpu.memory_space<vmem>>, vector<4x4xbf16>
    %598 = arith.truncf %531 : vector<4x128xf32> to vector<4x128xbf16>
    %cst_264 = arith.constant dense<0.000000e+00> : vector<4x128xf32>
    %599 = tpu.matmul %597, %598, %cst_264 {dimension_numbers = #tpu.dot_dimension_numbers<[1], [0], [0], [1], [0, 0, 1, 1], [], []>} : vector<4x4xbf16>, vector<4x128xbf16>, vector<4x128xf32> -> vector<4x128xf32>
    %600 = arith.addf %596, %599 : vector<4x128xf32>
    %c688_265 = arith.constant 688 : index
    %c0_266 = arith.constant 0 : index
    %601 = vector.load %arg3[%c688_265, %c0_266] : memref<696x2xf32, #tpu.memory_space<vmem>>, vector<4x2xf32>
    %602 = vector.extract_strided_slice %601 {offsets = [0, 0], sizes = [4, 1], strides = [1, 1]} : vector<4x2xf32> to vector<4x1xf32>
    %603 = vector.broadcast %602 : vector<4x1xf32> to vector<4x128xf32>
    %604 = arith.addf %600, %603 : vector<4x128xf32>
    %c0_267 = arith.constant 0 : index
    %c0_268 = arith.constant 0 : index
    %605 = vector.load %arg4[%c0_267, %c0_268] : memref<4x128xf32, #tpu.memory_space<vmem>>, vector<4x128xf32>
    tpu.vector_store %arg4[%c0_267, %c0_268], %604 {strides = array<i32>} : memref<4x128xf32, #tpu.memory_space<vmem>>, vector<4x128xf32>,
    return
  }
  func.func @transform_0(%arg0: i32) -> (i32, i32) {
    %c0_i32 = arith.constant 0 : i32
    %c0_i32_0 = arith.constant 0 : i32
    return %c0_i32, %arg0 : i32, i32
  }
  func.func @transform_1(%arg0: i32) -> (i32, i32) {
    %c0_i32 = arith.constant 0 : i32
    %c0_i32_0 = arith.constant 0 : i32
    %c0_i32_1 = arith.constant 0 : i32
    return %c0_i32, %c0_i32_0 : i32, i32
  }
  func.func @transform_2(%arg0: i32) -> (i32, i32) {
    %c0_i32 = arith.constant 0 : i32
    %c0_i32_0 = arith.constant 0 : i32
    %c0_i32_1 = arith.constant 0 : i32
    return %c0_i32, %c0_i32_0 : i32, i32
  }
  func.func @transform_3(%arg0: i32) -> (i32, i32) {
    %c0_i32 = arith.constant 0 : i32
    %c0_i32_0 = arith.constant 0 : i32
    return %c0_i32, %arg0 : i32, i32
  }
}

</mosaic_0001>

<llo_original>
// kernel: tpu_custom_call.1
$region0: #{tpu_custom_call.1}
  #allocation0 [shape = 'u32[]', space=smem, size = 0x4, offset = 0x4, fixed_abs, tag = 'smem constant byte address 0x4 - core index']
  #allocation1 [shape = 'u32[144,128]{1,0:T(1,128)}', space=vmem, size = 0x12000, scoped, tag = 'internal scratch']
  %s0 = inlined_call_operand.vmem [shape: f32[4,128], index: 0, kind: input, shape index: {}]
  %s1 = inlined_call_operand.hbm [shape: bf16[2112,128], index: 1, kind: input, shape index: {}]
  %s2 = inlined_call_operand.vmem [shape: f32[696,2], index: 2, kind: input, shape index: {}]
  %s3 = inlined_call_operand.hbm [shape: f32[4,128], index: 3, kind: output, shape index: {}]
  %s4 = sld [smem:[#allocation0]]
  $region26: #{tpu_custom_call.1} parent=0
    _
  %s6 = ssub.s32 1, %s4
  %s7 = scalar_select 0, %s6, %s4
  $region1: #{tpu_custom_call.1} parent=0
    #allocation2 [shape = 'u8[540672]{0}', space=vmem, size = 0x84000, scoped, tag = 'input window, operand 1, single buffered']
    #allocation3 [shape = 's32[1]{0}', space=sflag, size = 0x4, scoped, tag = 'scoped memory for tpu_custom_call.1']
    #allocation4 [shape = 's32[1]{0}', space=sflag, size = 0x4, scoped, tag = 'scoped memory for tpu_custom_call.1']
    #allocation5 [shape = 'u8[2048]{0}', space=vmem, size = 0x800, scoped, tag = 'output window, operand 0, single buffered']
    %8 = vsyncpa [#allocation3], 0
    %9 = vsyncpa [#allocation4], 0
    // Predicated region
    $region2: #{tpu_custom_call.1} parent=1 // pred_check
      _
    $region3: #{tpu_custom_call.1} parent=1 // pred_check_branch
      %11 = sbr.rel (0) target = $region5
    $region4: #{tpu_custom_call.1} parent=1 // pred_region
      _
    $region5: #{tpu_custom_call.1} parent=1 // pred_fallthru
      _
    // Predicated region
    $region6: #{tpu_custom_call.1} parent=1 // pred_check
      _
    $region7: #{tpu_custom_call.1} parent=1 // pred_check_branch
      %13 = sbr.rel (0) target = $region9
    $region8: #{tpu_custom_call.1} parent=1 // pred_region
      %s15 = ssub.s32 16896, 16896
      %16 = vsyncadd [#allocation3], %s15
      %s17 = sshll.u32 [#allocation2], 4
      %s18 = int_to_ptr.vmem [resolvable:$true] %s17
      %23 = dma.hbm_to_vmem [thread:$0]  %s1, 16896, %s18, [#allocation3], 64, 64, 4
    $region9: #{tpu_custom_call.1} parent=1 // pred_fallthru
      _
    // Predicated region
    $region10: #{tpu_custom_call.1} parent=1 // pred_check
      _
    $region11: #{tpu_custom_call.1} parent=1 // pred_check_branch
      %25 = sbr.rel (0) target = $region13
    $region12: #{tpu_custom_call.1} parent=1 // pred_region
      _
    $region13: #{tpu_custom_call.1} parent=1 // pred_fallthru
      _
    // Predicated region
    $region14: #{tpu_custom_call.1} parent=1 // pred_check
      _
    $region15: #{tpu_custom_call.1} parent=1 // pred_check_branch
      %27 = sbr.rel (0) target = $region17
    $region16: #{tpu_custom_call.1} parent=1 // pred_region
      %28 = dma.done [#allocation3], 16896
    $region17: #{tpu_custom_call.1} parent=1 // pred_fallthru
      _
    %v30 = vld [vmem:[%s0] sm:$0xf]
    %v31 = vld [vmem:[#allocation2 + $0xf8] sm:$0xf]
    %v32 = vld [vmem:[#allocation2 + $0xfc] sm:$0xf]
    %v33 = vld [vmem:[#allocation2 + $0x100] sm:$0xf]
    %v34 = vld [vmem:[#allocation2 + $0x104] sm:$0xf]
    %v35 = vld [vmem:[#allocation2 + $0x108] sm:$0xf]
    %v36 = vld [vmem:[#allocation2 + $0x10c] sm:$0xf]
    %v37 = vld [vmem:[#allocation2 + $0x110] sm:$0xf]
    %v38 = vld [vmem:[#allocation2 + $0x114] sm:$0xf]
    %v39 = vld [vmem:[#allocation2 + $0x118] sm:$0xf]
    %v40 = vld [vmem:[#allocation2 + $0x11c] sm:$0xf]
    %v41 = vld [vmem:[#allocation2 + $0x120] sm:$0xf]
    %v42 = vld [vmem:[#allocation2 + $0x124] sm:$0xf]
    %v43 = vld [vmem:[#allocation2 + $0x128] sm:$0xf]
    %v44 = vld [vmem:[#allocation2 + $0x12c] sm:$0xf]
    %v45 = vld [vmem:[#allocation2 + $0x130] sm:$0xf]
    %v46 = vld [vmem:[#allocation2 + $0x134] sm:$0xf]
    %v47 = vpack.c.bf16 %v30, %v30
    %v64 = vunpack.c.l.b16 %v31
    %v65 = vunpack.c.l.b16 %v32
    %v66 = vunpack.c.l.b16 %v33
    %v67 = vunpack.c.l.b16 %v34
    %v68 = vunpack.c.l.b16 %v35
    %v69 = vunpack.c.l.b16 %v36
    %v70 = vunpack.c.l.b16 %v37
    %v71 = vunpack.c.l.b16 %v38
    %v72 = vunpack.c.l.b16 %v39
    %v73 = vunpack.c.l.b16 %v40
    %v74 = vunpack.c.l.b16 %v41
    %v75 = vunpack.c.l.b16 %v42
    %v76 = vunpack.c.l.b16 %v43
    %v77 = vunpack.c.l.b16 %v44
    %v78 = vunpack.c.l.b16 %v45
    %v79 = vunpack.c.l.b16 %v46
    %v80 = vpack.c.b16 %v65, %v64
    %v81 = vpack.c.b16 %v67, %v66
    %v82 = vpack.c.b16 %v69, %v68
    %v83 = vpack.c.b16 %v71, %v70
    %v84 = vpack.c.b16 %v73, %v72
    %v85 = vpack.c.b16 %v75, %v74
    %v86 = vpack.c.b16 %v77, %v76
    %v87 = vpack.c.b16 %v79, %v78
    %96 = vmatprep.subr.bf16.mxu0 0
    %97 = vmatpush1.bf16.msra.mxu0 %v80
    %98 = vmatprep.subr.bf16.mxu0 0
    %99 = vmatpush1.bf16.msra.mxu0 %v81
    %100 = vmatprep.subr.bf16.mxu0 0
    %101 = vmatpush1.bf16.msra.mxu0 %v82
    %102 = vmatprep.subr.bf16.mxu0 0
    %103 = vmatpush1.bf16.msra.mxu0 %v83
    %104 = vmatprep.subr.bf16.mxu0 0
    %105 = vmatpush1.bf16.msra.mxu0 %v84
    %106 = vmatprep.subr.bf16.mxu0 0
    %107 = vmatpush1.bf16.msra.mxu0 %v85
    %108 = vmatprep.subr.bf16.mxu0 0
    %109 = vmatpush1.bf16.msra.mxu0 %v86
    %110 = vmatprep.subr.bf16.mxu0 0
    %111 = vmatpush1.bf16.msra.mxu0 %v87
    %112 = vmatprep.subr.bf16.mxu0 0
    %113 = vmatpush1.bf16.msra.mxu0 0
    %114 = vmatprep.subr.bf16.mxu0 0
    %115 = vmatpush1.bf16.msra.mxu0 0
    %116 = vmatprep.subr.bf16.mxu0 0
    %117 = vmatpush1.bf16.msra.mxu0 0
    %118 = vmatprep.subr.bf16.mxu0 0
    %119 = vmatpush1.bf16.msra.mxu0 0
    %120 = vmatprep.subr.bf16.mxu0 0
    %121 = vmatpush1.bf16.msra.mxu0 0
    %122 = vmatprep.subr.bf16.mxu0 0
    %123 = vmatpush1.bf16.msra.mxu0 0
    %124 = vmatprep.subr.bf16.mxu0 0
    %125 = vmatpush1.bf16.msra.mxu0 0
    %126 = vmatprep.subr.bf16.mxu0 0
    %127 = vmatpush1.bf16.msra.mxu0 0
    %128 = vmatprep.mubr.bf16.mxu0 0
    %129 = vmatmul.mubr.bf16.gmra.mrb[0].mxu0 %v47
    %v130 = vpop.f32.mrb[0].mxu0
    %v131 = vadd.f32 0.0, %v130
    %v132 = vpop.f32.mrb[0].mxu0
    %v133 = vpop.f32.mrb[0].mxu0
    %v134 = vpop.f32.mrb[0].mxu0
    %135 = vdwg.mxu0
    %137 = vrot.lane.b32.xlu0 %v131, 64
    %v138 = vpop.permute.xlu0 %137
    %v140 = vmax.f32 %v131, %v138
    %v141 = vld [vmem:[%s2] sm:$0xf]
    %143 = vset.pattern.permute.xlu0 0
    %144 = vperm.xlu0 %143, %v141
    %v145 = vpop.permute.xlu0 %144
    %v147 = vmul.f32 %v140, %v145
    %148 = vset.pattern.permute.xlu0 1
    %149 = vperm.xlu0 %148, %v141
    %v150 = vpop.permute.xlu0 %149
    %v152 = vadd.f32 %v147, %v150
    %v153 = vmax.f32 %v152, 0.0
    %v154 = vld [vmem:[#allocation2 + $0x170] sm:$0x3]
    %v155 = vpack.c.bf16 %v153, %v153
    %vm156 = vcmask 31744
    %v158 = vsel %vm156, %v154, 0
    %vm160 = vcmask 1041408
    %v162 = vsel %vm160, %v155, 0
    %164 = vmatprep.subr.bf16.mxu0 0
    %165 = vmatpush1.bf16.msra.mxu0 %v162
    %166 = vmatprep.subr.bf16.mxu0 0
    %167 = vmatpush1.bf16.msra.mxu0 0
    %168 = vmatprep.subr.bf16.mxu0 0
    %169 = vmatpush1.bf16.msra.mxu0 0
    %170 = vmatprep.subr.bf16.mxu0 0
    %171 = vmatpush1.bf16.msra.mxu0 0
    %172 = vmatprep.subr.bf16.mxu0 0
    %173 = vmatpush1.bf16.msra.mxu0 0
    %174 = vmatprep.subr.bf16.mxu0 0
    %175 = vmatpush1.bf16.msra.mxu0 0
    %176 = vmatprep.subr.bf16.mxu0 0
    %177 = vmatpush1.bf16.msra.mxu0 0
    %178 = vmatprep.subr.bf16.mxu0 0
    %179 = vmatpush1.bf16.msra.mxu0 0
    %180 = vmatprep.subr.bf16.mxu0 0
    %181 = vmatpush1.bf16.msra.mxu0 0
    %182 = vmatprep.subr.bf16.mxu0 0
    %183 = vmatpush1.bf16.msra.mxu0 0
    %184 = vmatprep.subr.bf16.mxu0 0
    %185 = vmatpush1.bf16.msra.mxu0 0
    %186 = vmatprep.subr.bf16.mxu0 0
    %187 = vmatpush1.bf16.msra.mxu0 0
    %188 = vmatprep.subr.bf16.mxu0 0
    %189 = vmatpush1.bf16.msra.mxu0 0
    %190 = vmatprep.subr.bf16.mxu0 0
    %191 = vmatpush1.bf16.msra.mxu0 0
    %192 = vmatprep.subr.bf16.mxu0 0
    %193 = vmatpush1.bf16.msra.mxu0 0
    %194 = vmatprep.subr.bf16.mxu0 0
    %195 = vmatpush1.bf16.msra.mxu0 0
    %196 = vmatprep.mubr.bf16.mxu0 0
    %197 = vmatmul.mubr.bf16.gmra.mrb[0].mxu0 %v158
    %v198 = vpop.f32.mrb[0].mxu0
    %v199 = vadd.f32 0.0, %v198
    %v200 = vpop.f32.mrb[0].mxu0
    %v201 = vpop.f32.mrb[0].mxu0
    %v202 = vpop.f32.mrb[0].mxu0
    %203 = vdwg.mxu0
    %v204 = vld [vmem:[%s2 + $0x8] sm:$0xf]
    %206 = vset.pattern.permute.xlu0 0
    %207 = vperm.xlu0 %206, %v204
    %v208 = vpop.permute.xlu0 %207
    %v210 = vmul.f32 %v199, %v208
    %211 = vset.pattern.permute.xlu0 1
    %212 = vperm.xlu0 %211, %v204
    %v213 = vpop.permute.xlu0 %212
    %v215 = vadd.f32 %v210, %v213
    %v216 = vmax.f32 %v215, 0.0
    %v217 = vpack.c.bf16 %v216, %v216
    %v218 = vld [vmem:[#allocation2 + $0x38] sm:$0xf]
    %v219 = vld [vmem:[#allocation2 + $0x3c] sm:$0xf]
    %v220 = vld [vmem:[#allocation2 + $0x40] sm:$0xf]
    %v221 = vld [vmem:[#allocation2 + $0x44] sm:$0xf]
    %v222 = vld [vmem:[#allocation2 + $0x48] sm:$0xf]
    %v223 = vld [vmem:[#allocation2 + $0x4c] sm:$0xf]
    %v224 = vld [vmem:[#allocation2 + $0x50] sm:$0xf]
    %v225 = vld [vmem:[#allocation2 + $0x54] sm:$0xf]
    %v234 = vunpack.c.l.b16 %v218
    %v235 = vunpack.c.l.b16 %v219
    %v236 = vunpack.c.l.b16 %v220
    %v237 = vunpack.c.l.b16 %v221
    %v238 = vunpack.c.l.b16 %v222
    %v239 = vunpack.c.l.b16 %v223
    %v240 = vunpack.c.l.b16 %v224
    %v241 = vunpack.c.l.b16 %v225
    %v242 = vpack.c.b16 %v235, %v234
    %v243 = vpack.c.b16 %v237, %v236
    %v244 = vpack.c.b16 %v239, %v238
    %v245 = vpack.c.b16 %v241, %v240
    %vm250 = vcmask 523264
    %v252 = vsel %vm250, %v217, 0
    %254 = vmatprep.subr.bf16.mxu0 0
    %255 = vmatpush1.bf16.msra.mxu0 %v242
    %256 = vmatprep.subr.bf16.mxu0 0
    %257 = vmatpush1.bf16.msra.mxu0 %v243
    %258 = vmatprep.subr.bf16.mxu0 0
    %259 = vmatpush1.bf16.msra.mxu0 %v244
    %260 = vmatprep.subr.bf16.mxu0 0
    %261 = vmatpush1.bf16.msra.mxu0 %v245
    %262 = vmatprep.subr.bf16.mxu0 0
    %263 = vmatpush1.bf16.msra.mxu0 0
    %264 = vmatprep.subr.bf16.mxu0 0
    %265 = vmatpush1.bf16.msra.mxu0 0
    %266 = vmatprep.subr.bf16.mxu0 0
    %267 = vmatpush1.bf16.msra.mxu0 0
    %268 = vmatprep.subr.bf16.mxu0 0
    %269 = vmatpush1.bf16.msra.mxu0 0
    %270 = vmatprep.subr.bf16.mxu0 0
    %271 = vmatpush1.bf16.msra.mxu0 0
    %272 = vmatprep.subr.bf16.mxu0 0
    %273 = vmatpush1.bf16.msra.mxu0 0
    %274 = vmatprep.subr.bf16.mxu0 0
    %275 = vmatpush1.bf16.msra.mxu0 0
    %276 = vmatprep.subr.bf16.mxu0 0
    %277 = vmatpush1.bf16.msra.mxu0 0
    %278 = vmatprep.subr.bf16.mxu0 0
    %279 = vmatpush1.bf16.msra.mxu0 0
    %280 = vmatprep.subr.bf16.mxu0 0
    %281 = vmatpush1.bf16.msra.mxu0 0
    %282 = vmatprep.subr.bf16.mxu0 0
    %283 = vmatpush1.bf16.msra.mxu0 0
    %284 = vmatprep.subr.bf16.mxu0 0
    %285 = vmatpush1.bf16.msra.mxu0 0
    %286 = vmatprep.mubr.bf16.mxu0 0
    %287 = vmatmul.mubr.bf16.gmra.mrb[0].mxu0 %v252
    %v288 = vpop.f32.mrb[0].mxu0
    %v289 = vadd.f32 0.0, %v288
    %v290 = vpop.f32.mrb[0].mxu0
    %v291 = vpop.f32.mrb[0].mxu0
    %v292 = vpop.f32.mrb[0].mxu0
    %293 = vdwg.mxu0
    %v294 = vpack.c.bf16 %v289, %v289
    %v295 = vld [vmem:[#allocation2 + $0x58] sm:$0xf]
    %v296 = vld [vmem:[#allocation2 + $0x5c] sm:$0xf]
    %v297 = vld [vmem:[#allocation2 + $0x60] sm:$0xf]
    %v298 = vld [vmem:[#allocation2 + $0x64] sm:$0xf]
    %v299 = vld [vmem:[#allocation2 + $0x68] sm:$0xf]
    %v300 = vld [vmem:[#allocation2 + $0x6c] sm:$0xf]
    %v301 = vld [vmem:[#allocation2 + $0x70] sm:$0xf]
    %v302 = vld [vmem:[#allocation2 + $0x74] sm:$0xf]
    %v311 = vunpack.c.l.b16 %v295
    %v312 = vunpack.c.l.b16 %v296
    %v313 = vunpack.c.l.b16 %v297
    %v314 = vunpack.c.l.b16 %v298
    %v315 = vunpack.c.l.b16 %v299
    %v316 = vunpack.c.l.b16 %v300
    %v317 = vunpack.c.l.b16 %v301
    %v318 = vunpack.c.l.b16 %v302
    %v319 = vpack.c.b16 %v312, %v311
    %v320 = vpack.c.b16 %v314, %v313
    %v321 = vpack.c.b16 %v316, %v315
    %v322 = vpack.c.b16 %v318, %v317
    %327 = vmatprep.subr.bf16.mxu0 0
    %328 = vmatpush1.bf16.msra.mxu0 %v319
    %329 = vmatprep.subr.bf16.mxu0 0
    %330 = vmatpush1.bf16.msra.mxu0 %v320
    %331 = vmatprep.subr.bf16.mxu0 0
    %332 = vmatpush1.bf16.msra.mxu0 %v321
    %333 = vmatprep.subr.bf16.mxu0 0
    %334 = vmatpush1.bf16.msra.mxu0 %v322
    %335 = vmatprep.subr.bf16.mxu0 0
    %336 = vmatpush1.bf16.msra.mxu0 0
    %337 = vmatprep.subr.bf16.mxu0 0
    %338 = vmatpush1.bf16.msra.mxu0 0
    %339 = vmatprep.subr.bf16.mxu0 0
    %340 = vmatpush1.bf16.msra.mxu0 0
    %341 = vmatprep.subr.bf16.mxu0 0
    %342 = vmatpush1.bf16.msra.mxu0 0
    %343 = vmatprep.subr.bf16.mxu0 0
    %344 = vmatpush1.bf16.msra.mxu0 0
    %345 = vmatprep.subr.bf16.mxu0 0
    %346 = vmatpush1.bf16.msra.mxu0 0
    %347 = vmatprep.subr.bf16.mxu0 0
    %348 = vmatpush1.bf16.msra.mxu0 0
    %349 = vmatprep.subr.bf16.mxu0 0
    %350 = vmatpush1.bf16.msra.mxu0 0
    %351 = vmatprep.subr.bf16.mxu0 0
    %352 = vmatpush1.bf16.msra.mxu0 0
    %353 = vmatprep.subr.bf16.mxu0 0
    %354 = vmatpush1.bf16.msra.mxu0 0
    %355 = vmatprep.subr.bf16.mxu0 0
    %356 = vmatpush1.bf16.msra.mxu0 0
    %357 = vmatprep.subr.bf16.mxu0 0
    %358 = vmatpush1.bf16.msra.mxu0 0
    %359 = vmatprep.mubr.bf16.mxu0 0
    %360 = vmatmul.mubr.bf16.gmra.mrb[0].mxu0 %v252
    %v361 = vpop.f32.mrb[0].mxu0
    %v362 = vadd.f32 0.0, %v361
    %v363 = vpop.f32.mrb[0].mxu0
    %v364 = vpop.f32.mrb[0].mxu0
    %v365 = vpop.f32.mrb[0].mxu0
    %366 = vdwg.mxu0
    %v367 = vpack.c.bf16 %v362, %v362
    %v368 = vld [vmem:[#allocation2 + $0x17c] sm:$0x3]
    %v369 = vld [vmem:[#allocation2 + $0x178] sm:$0x3]
    %v371 = vsel %vm156, %v369, 0
    %v374 = vsel %vm160, %v294, 0
    %376 = vmatprep.subr.bf16.mxu0 0
    %377 = vmatpush1.bf16.msra.mxu0 %v374
    %378 = vmatprep.subr.bf16.mxu0 0
    %379 = vmatpush1.bf16.msra.mxu0 0
    %380 = vmatprep.subr.bf16.mxu0 0
    %381 = vmatpush1.bf16.msra.mxu0 0
    %382 = vmatprep.subr.bf16.mxu0 0
    %383 = vmatpush1.bf16.msra.mxu0 0
    %384 = vmatprep.subr.bf16.mxu0 0
    %385 = vmatpush1.bf16.msra.mxu0 0
    %386 = vmatprep.subr.bf16.mxu0 0
    %387 = vmatpush1.bf16.msra.mxu0 0
    %388 = vmatprep.subr.bf16.mxu0 0
    %389 = vmatpush1.bf16.msra.mxu0 0
    %390 = vmatprep.subr.bf16.mxu0 0
    %391 = vmatpush1.bf16.msra.mxu0 0
    %392 = vmatprep.subr.bf16.mxu0 0
    %393 = vmatpush1.bf16.msra.mxu0 0
    %394 = vmatprep.subr.bf16.mxu0 0
    %395 = vmatpush1.bf16.msra.mxu0 0
    %396 = vmatprep.subr.bf16.mxu0 0
    %397 = vmatpush1.bf16.msra.mxu0 0
    %398 = vmatprep.subr.bf16.mxu0 0
    %399 = vmatpush1.bf16.msra.mxu0 0
    %400 = vmatprep.subr.bf16.mxu0 0
    %401 = vmatpush1.bf16.msra.mxu0 0
    %402 = vmatprep.subr.bf16.mxu0 0
    %403 = vmatpush1.bf16.msra.mxu0 0
    %404 = vmatprep.subr.bf16.mxu0 0
    %405 = vmatpush1.bf16.msra.mxu0 0
    %406 = vmatprep.subr.bf16.mxu0 0
    %407 = vmatpush1.bf16.msra.mxu0 0
    %408 = vmatprep.mubr.bf16.mxu0 0
    %409 = vmatmul.mubr.bf16.gmra.mrb[0].mxu0 %v371
    %v410 = vpop.f32.mrb[0].mxu0
    %v411 = vadd.f32 0.0, %v410
    %v412 = vpop.f32.mrb[0].mxu0
    %v413 = vpop.f32.mrb[0].mxu0
    %v414 = vpop.f32.mrb[0].mxu0
    %415 = vdwg.mxu0
    %v417 = vsel %vm156, %v368, 0
    %v419 = vsel %vm160, %v217, 0
    %421 = vmatprep.subr.bf16.mxu0 0
    %422 = vmatpush1.bf16.msra.mxu0 %v419
    %423 = vmatprep.subr.bf16.mxu0 0
    %424 = vmatpush1.bf16.msra.mxu0 0
    %425 = vmatprep.subr.bf16.mxu0 0
    %426 = vmatpush1.bf16.msra.mxu0 0
    %427 = vmatprep.subr.bf16.mxu0 0
    %428 = vmatpush1.bf16.msra.mxu0 0
    %429 = vmatprep.subr.bf16.mxu0 0
    %430 = vmatpush1.bf16.msra.mxu0 0
    %431 = vmatprep.subr.bf16.mxu0 0
    %432 = vmatpush1.bf16.msra.mxu0 0
    %433 = vmatprep.subr.bf16.mxu0 0
    %434 = vmatpush1.bf16.msra.mxu0 0
    %435 = vmatprep.subr.bf16.mxu0 0
    %436 = vmatpush1.bf16.msra.mxu0 0
    %437 = vmatprep.subr.bf16.mxu0 0
    %438 = vmatpush1.bf16.msra.mxu0 0
    %439 = vmatprep.subr.bf16.mxu0 0
    %440 = vmatpush1.bf16.msra.mxu0 0
    %441 = vmatprep.subr.bf16.mxu0 0
    %442 = vmatpush1.bf16.msra.mxu0 0
    %443 = vmatprep.subr.bf16.mxu0 0
    %444 = vmatpush1.bf16.msra.mxu0 0
    %445 = vmatprep.subr.bf16.mxu0 0
    %446 = vmatpush1.bf16.msra.mxu0 0
    %447 = vmatprep.subr.bf16.mxu0 0
    %448 = vmatpush1.bf16.msra.mxu0 0
    %449 = vmatprep.subr.bf16.mxu0 0
    %450 = vmatpush1.bf16.msra.mxu0 0
    %451 = vmatprep.subr.bf16.mxu0 0
    %452 = vmatpush1.bf16.msra.mxu0 0
    %453 = vmatprep.mubr.bf16.mxu0 0
    %454 = vmatmul.mubr.bf16.gmra.mrb[0].mxu0 %v417
    %v455 = vpop.f32.mrb[0].mxu0
    %v456 = vadd.f32 %v411, %v455
    %v457 = vpop.f32.mrb[0].mxu0
    %v458 = vpop.f32.mrb[0].mxu0
    %v459 = vpop.f32.mrb[0].mxu0
    %460 = vdwg.mxu0
    %v461 = vld [vmem:[#allocation2 + $0x180] sm:$0x3]
    %v463 = vsel %vm156, %v461, 0
    %v466 = vsel %vm160, %v367, 0
    %468 = vmatprep.subr.bf16.mxu0 0
    %469 = vmatpush1.bf16.msra.mxu0 %v466
    %470 = vmatprep.subr.bf16.mxu0 0
    %471 = vmatpush1.bf16.msra.mxu0 0
    %472 = vmatprep.subr.bf16.mxu0 0
    %473 = vmatpush1.bf16.msra.mxu0 0
    %474 = vmatprep.subr.bf16.mxu0 0
    %475 = vmatpush1.bf16.msra.mxu0 0
    %476 = vmatprep.subr.bf16.mxu0 0
    %477 = vmatpush1.bf16.msra.mxu0 0
    %478 = vmatprep.subr.bf16.mxu0 0
    %479 = vmatpush1.bf16.msra.mxu0 0
    %480 = vmatprep.subr.bf16.mxu0 0
    %481 = vmatpush1.bf16.msra.mxu0 0
    %482 = vmatprep.subr.bf16.mxu0 0
    %483 = vmatpush1.bf16.msra.mxu0 0
    %484 = vmatprep.subr.bf16.mxu0 0
    %485 = vmatpush1.bf16.msra.mxu0 0
    %486 = vmatprep.subr.bf16.mxu0 0
    %487 = vmatpush1.bf16.msra.mxu0 0
    %488 = vmatprep.subr.bf16.mxu0 0
    %489 = vmatpush1.bf16.msra.mxu0 0
    %490 = vmatprep.subr.bf16.mxu0 0
    %491 = vmatpush1.bf16.msra.mxu0 0
    %492 = vmatprep.subr.bf16.mxu0 0
    %493 = vmatpush1.bf16.msra.mxu0 0
    %494 = vmatprep.subr.bf16.mxu0 0
    %495 = vmatpush1.bf16.msra.mxu0 0
    %496 = vmatprep.subr.bf16.mxu0 0
    %497 = vmatpush1.bf16.msra.mxu0 0
    %498 = vmatprep.subr.bf16.mxu0 0
    %499 = vmatpush1.bf16.msra.mxu0 0
    %500 = vmatprep.mubr.bf16.mxu0 0
    %501 = vmatmul.mubr.bf16.gmra.mrb[0].mxu0 %v463
    %v502 = vpop.f32.mrb[0].mxu0
    %v503 = vadd.f32 0.0, %v502
    %v504 = vpop.f32.mrb[0].mxu0
    %v505 = vpop.f32.mrb[0].mxu0
    %v506 = vpop.f32.mrb[0].mxu0
    %507 = vdwg.mxu0
    %v508 = vadd.f32 %v456, %v503
    %v509 = vld [vmem:[%s2 + $0x10] sm:$0xf]
    %511 = vset.pattern.permute.xlu0 0
    %512 = vperm.xlu0 %511, %v509
    %v513 = vpop.permute.xlu0 %512
    %v515 = vmul.f32 %v508, %v513
    %516 = vset.pattern.permute.xlu0 1
    %517 = vperm.xlu0 %516, %v509
    %v518 = vpop.permute.xlu0 %517
    %v520 = vadd.f32 %v515, %v518
    %v521 = vmax.f32 %v520, 0.0
    %v522 = vld [vmem:[#allocation2 + $0x184] sm:$0xf]
    %v523 = vpack.c.bf16 %v521, %v521
    %v524 = vld [vmem:[#allocation2 + $0x174] sm:$0xf]
    %v525 = vpack.c.bf16 %v140, %v140
    %v527 = vsel %vm156, %v524, 0
    %v530 = vsel %vm160, %v525, 0
    %532 = vmatprep.subr.bf16.mxu0 0
    %533 = vmatpush1.bf16.msra.mxu0 %v530
    %534 = vmatprep.subr.bf16.mxu0 0
    %535 = vmatpush1.bf16.msra.mxu0 0
    %536 = vmatprep.subr.bf16.mxu0 0
    %537 = vmatpush1.bf16.msra.mxu0 0
    %538 = vmatprep.subr.bf16.mxu0 0
    %539 = vmatpush1.bf16.msra.mxu0 0
    %540 = vmatprep.subr.bf16.mxu0 0
    %541 = vmatpush1.bf16.msra.mxu0 0
    %542 = vmatprep.subr.bf16.mxu0 0
    %543 = vmatpush1.bf16.msra.mxu0 0
    %544 = vmatprep.subr.bf16.mxu0 0
    %545 = vmatpush1.bf16.msra.mxu0 0
    %546 = vmatprep.subr.bf16.mxu0 0
    %547 = vmatpush1.bf16.msra.mxu0 0
    %548 = vmatprep.subr.bf16.mxu0 0
    %549 = vmatpush1.bf16.msra.mxu0 0
    %550 = vmatprep.subr.bf16.mxu0 0
    %551 = vmatpush1.bf16.msra.mxu0 0
    %552 = vmatprep.subr.bf16.mxu0 0
    %553 = vmatpush1.bf16.msra.mxu0 0
    %554 = vmatprep.subr.bf16.mxu0 0
    %555 = vmatpush1.bf16.msra.mxu0 0
    %556 = vmatprep.subr.bf16.mxu0 0
    %557 = vmatpush1.bf16.msra.mxu0 0
    %558 = vmatprep.subr.bf16.mxu0 0
    %559 = vmatpush1.bf16.msra.mxu0 0
    %560 = vmatprep.subr.bf16.mxu0 0
    %561 = vmatpush1.bf16.msra.mxu0 0
    %562 = vmatprep.subr.bf16.mxu0 0
    %563 = vmatpush1.bf16.msra.mxu0 0
    %564 = vmatprep.mubr.bf16.mxu0 0
    %565 = vmatmul.mubr.bf16.gmra.mrb[0].mxu0 %v527
    %v566 = vpop.f32.mrb[0].mxu0
    %v567 = vadd.f32 0.0, %v566
    %v568 = vpop.f32.mrb[0].mxu0
    %v569 = vpop.f32.mrb[0].mxu0
    %v570 = vpop.f32.mrb[0].mxu0
    %571 = vdwg.mxu0
    %v573 = vsel %vm156, %v522, 0
    %v576 = vsel %vm160, %v523, 0
    %578 = vmatprep.subr.bf16.mxu0 0
    %579 = vmatpush1.bf16.msra.mxu0 %v576
    %580 = vmatprep.subr.bf16.mxu0 0
    %581 = vmatpush1.bf16.msra.mxu0 0
    %582 = vmatprep.subr.bf16.mxu0 0
    %583 = vmatpush1.bf16.msra.mxu0 0
    %584 = vmatprep.subr.bf16.mxu0 0
    %585 = vmatpush1.bf16.msra.mxu0 0
    %586 = vmatprep.subr.bf16.mxu0 0
    %587 = vmatpush1.bf16.msra.mxu0 0
    %588 = vmatprep.subr.bf16.mxu0 0
    %589 = vmatpush1.bf16.msra.mxu0 0
    %590 = vmatprep.subr.bf16.mxu0 0
    %591 = vmatpush1.bf16.msra.mxu0 0
    %592 = vmatprep.subr.bf16.mxu0 0
    %593 = vmatpush1.bf16.msra.mxu0 0
    %594 = vmatprep.subr.bf16.mxu0 0
    %595 = vmatpush1.bf16.msra.mxu0 0
    %596 = vmatprep.subr.bf16.mxu0 0
    %597 = vmatpush1.bf16.msra.mxu0 0
    %598 = vmatprep.subr.bf16.mxu0 0
    %599 = vmatpush1.bf16.msra.mxu0 0
    %600 = vmatprep.subr.bf16.mxu0 0
    %601 = vmatpush1.bf16.msra.mxu0 0
    %602 = vmatprep.subr.bf16.mxu0 0
    %603 = vmatpush1.bf16.msra.mxu0 0
    %604 = vmatprep.subr.bf16.mxu0 0
    %605 = vmatpush1.bf16.msra.mxu0 0
    %606 = vmatprep.subr.bf16.mxu0 0
    %607 = vmatpush1.bf16.msra.mxu0 0
    %608 = vmatprep.subr.bf16.mxu0 0
    %609 = vmatpush1.bf16.msra.mxu0 0
    %610 = vmatprep.mubr.bf16.mxu0 0
    %611 = vmatmul.mubr.bf16.gmra.mrb[0].mxu0 %v573
    %v612 = vpop.f32.mrb[0].mxu0
    %v613 = vadd.f32 %v567, %v612
    %v614 = vpop.f32.mrb[0].mxu0
    %v615 = vpop.f32.mrb[0].mxu0
    %v616 = vpop.f32.mrb[0].mxu0
    %617 = vdwg.mxu0
    %v618 = vld [vmem:[%s2 + $0x18] sm:$0xff]
    %620 = vset.pattern.permute.xlu0 0
    %621 = vperm.xlu0 %620, %v618
    %v622 = vpop.permute.xlu0 %621
    %v624 = vadd.f32 %v613, %v622
    %v625 = vld [vmem:[#allocation2 + $0x138] sm:$0xf]
    %v626 = vld [vmem:[#allocation2 + $0x13c] sm:$0xf]
    %v627 = vld [vmem:[#allocation2 + $0x140] sm:$0xf]
    %v628 = vld [vmem:[#allocation2 + $0x144] sm:$0xf]
    %v629 = vld [vmem:[#allocation2 + $0x148] sm:$0xf]
    %v630 = vld [vmem:[#allocation2 + $0x14c] sm:$0xf]
    %v631 = vld [vmem:[#allocation2 + $0x150] sm:$0xf]
    %v632 = vld [vmem:[#allocation2 + $0x154] sm:$0xf]
    %v633 = vpack.c.bf16 %v624, %v624
    %v642 = vunpack.c.l.b16 %v625
    %v643 = vunpack.c.l.b16 %v626
    %v644 = vunpack.c.l.b16 %v627
    %v645 = vunpack.c.l.b16 %v628
    %v646 = vunpack.c.l.b16 %v629
    %v647 = vunpack.c.l.b16 %v630
    %v648 = vunpack.c.l.b16 %v631
    %v649 = vunpack.c.l.b16 %v632
    %v650 = vpack.c.b16 %v643, %v642
    %v651 = vpack.c.b16 %v645, %v644
    %v652 = vpack.c.b16 %v647, %v646
    %v653 = vpack.c.b16 %v649, %v648
    %v659 = vsel %vm250, %v633, 0
    %661 = vmatprep.subr.bf16.mxu0 0
    %662 = vmatpush1.bf16.msra.mxu0 %v650
    %663 = vmatprep.subr.bf16.mxu0 0
    %664 = vmatpush1.bf16.msra.mxu0 %v651
    %665 = vmatprep.subr.bf16.mxu0 0
    %666 = vmatpush1.bf16.msra.mxu0 %v652
    %667 = vmatprep.subr.bf16.mxu0 0
    %668 = vmatpush1.bf16.msra.mxu0 %v653
    %669 = vmatprep.subr.bf16.mxu0 0
    %670 = vmatpush1.bf16.msra.mxu0 0
    %671 = vmatprep.subr.bf16.mxu0 0
    %672 = vmatpush1.bf16.msra.mxu0 0
    %673 = vmatprep.subr.bf16.mxu0 0
    %674 = vmatpush1.bf16.msra.mxu0 0
    %675 = vmatprep.subr.bf16.mxu0 0
    %676 = vmatpush1.bf16.msra.mxu0 0
    %677 = vmatprep.subr.bf16.mxu0 0
    %678 = vmatpush1.bf16.msra.mxu0 0
    %679 = vmatprep.subr.bf16.mxu0 0
    %680 = vmatpush1.bf16.msra.mxu0 0
    %681 = vmatprep.subr.bf16.mxu0 0
    %682 = vmatpush1.bf16.msra.mxu0 0
    %683 = vmatprep.subr.bf16.mxu0 0
    %684 = vmatpush1.bf16.msra.mxu0 0
    %685 = vmatprep.subr.bf16.mxu0 0
    %686 = vmatpush1.bf16.msra.mxu0 0
    %687 = vmatprep.subr.bf16.mxu0 0
    %688 = vmatpush1.bf16.msra.mxu0 0
    %689 = vmatprep.subr.bf16.mxu0 0
    %690 = vmatpush1.bf16.msra.mxu0 0
    %691 = vmatprep.subr.bf16.mxu0 0
    %692 = vmatpush1.bf16.msra.mxu0 0
    %693 = vmatprep.mubr.bf16.mxu0 0
    %694 = vmatmul.mubr.bf16.gmra.mrb[0].mxu0 %v659
    %v695 = vpop.f32.mrb[0].mxu0
    %v696 = vadd.f32 0.0, %v695
    %v697 = vpop.f32.mrb[0].mxu0
    %v698 = vpop.f32.mrb[0].mxu0
    %v699 = vpop.f32.mrb[0].mxu0
    %700 = vdwg.mxu0
    %702 = vrot.lane.b32.xlu0 %v696, 96
    %v703 = vpop.permute.xlu0 %702
    %v705 = vmax.f32 %v696, %v703
    %v706 = vld [vmem:[%s2 + $0x20] sm:$0xff]
    %708 = vset.pattern.permute.xlu0 0
    %709 = vperm.xlu0 %708, %v706
    %v710 = vpop.permute.xlu0 %709
    %v712 = vmul.f32 %v705, %v710
    %713 = vset.pattern.permute.xlu0 1
    %714 = vperm.xlu0 %713, %v706
    %v715 = vpop.permute.xlu0 %714
    %v717 = vadd.f32 %v712, %v715
    %v718 = vmax.f32 %v717, 0.0
    %v719 = vld [vmem:[#allocation2 + $0x188] sm:$0xf]
    %v720 = vpack.c.bf16 %v718, %v718
    %vm721 = vcmask 64512
    %v723 = vsel %vm721, %v719, 0
    %vm725 = vcmask 1043456
    %v727 = vsel %vm725, %v720, 0
    %729 = vmatprep.subr.bf16.mxu0 0
    %730 = vmatpush1.bf16.msra.mxu0 %v727
    %731 = vmatprep.subr.bf16.mxu0 0
    %732 = vmatpush1.bf16.msra.mxu0 0
    %733 = vmatprep.subr.bf16.mxu0 0
    %734 = vmatpush1.bf16.msra.mxu0 0
    %735 = vmatprep.subr.bf16.mxu0 0
    %736 = vmatpush1.bf16.msra.mxu0 0
    %737 = vmatprep.subr.bf16.mxu0 0
    %738 = vmatpush1.bf16.msra.mxu0 0
    %739 = vmatprep.subr.bf16.mxu0 0
    %740 = vmatpush1.bf16.msra.mxu0 0
    %741 = vmatprep.subr.bf16.mxu0 0
    %742 = vmatpush1.bf16.msra.mxu0 0
    %743 = vmatprep.subr.bf16.mxu0 0
    %744 = vmatpush1.bf16.msra.mxu0 0
    %745 = vmatprep.subr.bf16.mxu0 0
    %746 = vmatpush1.bf16.msra.mxu0 0
    %747 = vmatprep.subr.bf16.mxu0 0
    %748 = vmatpush1.bf16.msra.mxu0 0
    %749 = vmatprep.subr.bf16.mxu0 0
    %750 = vmatpush1.bf16.msra.mxu0 0
    %751 = vmatprep.subr.bf16.mxu0 0
    %752 = vmatpush1.bf16.msra.mxu0 0
    %753 = vmatprep.subr.bf16.mxu0 0
    %754 = vmatpush1.bf16.msra.mxu0 0
    %755 = vmatprep.subr.bf16.mxu0 0
    %756 = vmatpush1.bf16.msra.mxu0 0
    %757 = vmatprep.subr.bf16.mxu0 0
    %758 = vmatpush1.bf16.msra.mxu0 0
    %759 = vmatprep.subr.bf16.mxu0 0
    %760 = vmatpush1.bf16.msra.mxu0 0
    %761 = vmatprep.mubr.bf16.mxu0 0
    %762 = vmatmul.mubr.bf16.gmra.mrb[0].mxu0 %v723
    %v763 = vpop.f32.mrb[0].mxu0
    %v764 = vadd.f32 0.0, %v763
    %v765 = vpop.f32.mrb[0].mxu0
    %v766 = vpop.f32.mrb[0].mxu0
    %v767 = vpop.f32.mrb[0].mxu0
    %768 = vdwg.mxu0
    %v769 = vld [vmem:[%s2 + $0x28] sm:$0xff]
    %771 = vset.pattern.permute.xlu0 0
    %772 = vperm.xlu0 %771, %v769
    %v773 = vpop.permute.xlu0 %772
    %v775 = vmul.f32 %v764, %v773
    %776 = vset.pattern.permute.xlu0 1
    %777 = vperm.xlu0 %776, %v769
    %v778 = vpop.permute.xlu0 %777
    %v780 = vadd.f32 %v775, %v778
    %v781 = vmax.f32 %v780, 0.0
    %v782 = vpack.c.bf16 %v781, %v781
    %v783 = vld [vmem:[#allocation2 + $0x18] sm:$0xf]
    %v784 = vld [vmem:[#allocation2 + $0x1c] sm:$0xf]
    %v785 = vld [vmem:[#allocation2 + $0x20] sm:$0xf]
    %v786 = vld [vmem:[#allocation2 + $0x24] sm:$0xf]
    %v791 = vunpack.c.l.b16 %v783
    %v792 = vunpack.c.l.b16 %v784
    %v793 = vunpack.c.l.b16 %v785
    %v794 = vunpack.c.l.b16 %v786
    %v795 = vpack.c.b16 %v792, %v791
    %v796 = vpack.c.b16 %v794, %v793
    %vm799 = vcmask 261120
    %v801 = vsel %vm799, %v782, 0
    %803 = vmatprep.subr.bf16.mxu0 0
    %804 = vmatpush1.bf16.msra.mxu0 %v795
    %805 = vmatprep.subr.bf16.mxu0 0
    %806 = vmatpush1.bf16.msra.mxu0 %v796
    %807 = vmatprep.subr.bf16.mxu0 0
    %808 = vmatpush1.bf16.msra.mxu0 0
    %809 = vmatprep.subr.bf16.mxu0 0
    %810 = vmatpush1.bf16.msra.mxu0 0
    %811 = vmatprep.subr.bf16.mxu0 0
    %812 = vmatpush1.bf16.msra.mxu0 0
    %813 = vmatprep.subr.bf16.mxu0 0
    %814 = vmatpush1.bf16.msra.mxu0 0
    %815 = vmatprep.subr.bf16.mxu0 0
    %816 = vmatpush1.bf16.msra.mxu0 0
    %817 = vmatprep.subr.bf16.mxu0 0
    %818 = vmatpush1.bf16.msra.mxu0 0
    %819 = vmatprep.subr.bf16.mxu0 0
    %820 = vmatpush1.bf16.msra.mxu0 0
    %821 = vmatprep.subr.bf16.mxu0 0
    %822 = vmatpush1.bf16.msra.mxu0 0
    %823 = vmatprep.subr.bf16.mxu0 0
    %824 = vmatpush1.bf16.msra.mxu0 0
    %825 = vmatprep.subr.bf16.mxu0 0
    %826 = vmatpush1.bf16.msra.mxu0 0
    %827 = vmatprep.subr.bf16.mxu0 0
    %828 = vmatpush1.bf16.msra.mxu0 0
    %829 = vmatprep.subr.bf16.mxu0 0
    %830 = vmatpush1.bf16.msra.mxu0 0
    %831 = vmatprep.subr.bf16.mxu0 0
    %832 = vmatpush1.bf16.msra.mxu0 0
    %833 = vmatprep.subr.bf16.mxu0 0
    %834 = vmatpush1.bf16.msra.mxu0 0
    %835 = vmatprep.mubr.bf16.mxu0 0
    %836 = vmatmul.mubr.bf16.gmra.mrb[0].mxu0 %v801
    %v837 = vpop.f32.mrb[0].mxu0
    %v838 = vadd.f32 0.0, %v837
    %v839 = vpop.f32.mrb[0].mxu0
    %v840 = vpop.f32.mrb[0].mxu0
    %v841 = vpop.f32.mrb[0].mxu0
    %842 = vdwg.mxu0
    %v843 = vpack.c.bf16 %v838, %v838
    %v844 = vld [vmem:[#allocation2 + $0x28] sm:$0xf]
    %v845 = vld [vmem:[#allocation2 + $0x2c] sm:$0xf]
    %v846 = vld [vmem:[#allocation2 + $0x30] sm:$0xf]
    %v847 = vld [vmem:[#allocation2 + $0x34] sm:$0xf]
    %v852 = vunpack.c.l.b16 %v844
    %v853 = vunpack.c.l.b16 %v845
    %v854 = vunpack.c.l.b16 %v846
    %v855 = vunpack.c.l.b16 %v847
    %v856 = vpack.c.b16 %v853, %v852
    %v857 = vpack.c.b16 %v855, %v854
    %860 = vmatprep.subr.bf16.mxu0 0
    %861 = vmatpush1.bf16.msra.mxu0 %v856
    %862 = vmatprep.subr.bf16.mxu0 0
    %863 = vmatpush1.bf16.msra.mxu0 %v857
    %864 = vmatprep.subr.bf16.mxu0 0
    %865 = vmatpush1.bf16.msra.mxu0 0
    %866 = vmatprep.subr.bf16.mxu0 0
    %867 = vmatpush1.bf16.msra.mxu0 0
    %868 = vmatprep.subr.bf16.mxu0 0
    %869 = vmatpush1.bf16.msra.mxu0 0
    %870 = vmatprep.subr.bf16.mxu0 0
    %871 = vmatpush1.bf16.msra.mxu0 0
    %872 = vmatprep.subr.bf16.mxu0 0
    %873 = vmatpush1.bf16.msra.mxu0 0
    %874 = vmatprep.subr.bf16.mxu0 0
    %875 = vmatpush1.bf16.msra.mxu0 0
    %876 = vmatprep.subr.bf16.mxu0 0
    %877 = vmatpush1.bf16.msra.mxu0 0
    %878 = vmatprep.subr.bf16.mxu0 0
    %879 = vmatpush1.bf16.msra.mxu0 0
    %880 = vmatprep.subr.bf16.mxu0 0
    %881 = vmatpush1.bf16.msra.mxu0 0
    %882 = vmatprep.subr.bf16.mxu0 0
    %883 = vmatpush1.bf16.msra.mxu0 0
    %884 = vmatprep.subr.bf16.mxu0 0
    %885 = vmatpush1.bf16.msra.mxu0 0
    %886 = vmatprep.subr.bf16.mxu0 0
    %887 = vmatpush1.bf16.msra.mxu0 0
    %888 = vmatprep.subr.bf16.mxu0 0
    %889 = vmatpush1.bf16.msra.mxu0 0
    %890 = vmatprep.subr.bf16.mxu0 0
    %891 = vmatpush1.bf16.msra.mxu0 0
    %892 = vmatprep.mubr.bf16.mxu0 0
    %893 = vmatmul.mubr.bf16.gmra.mrb[0].mxu0 %v801
    %v894 = vpop.f32.mrb[0].mxu0
    %v895 = vadd.f32 0.0, %v894
    %v896 = vpop.f32.mrb[0].mxu0
    %v897 = vpop.f32.mrb[0].mxu0
    %v898 = vpop.f32.mrb[0].mxu0
    %899 = vdwg.mxu0
    %v900 = vpack.c.bf16 %v895, %v895
    %v901 = vld [vmem:[#allocation2 + $0x198] sm:$0xf]
    %v902 = vld [vmem:[#allocation2 + $0x194] sm:$0xf]
    %v904 = vsel %vm721, %v902, 0
    %v907 = vsel %vm725, %v843, 0
    %909 = vmatprep.subr.bf16.mxu0 0
    %910 = vmatpush1.bf16.msra.mxu0 %v907
    %911 = vmatprep.subr.bf16.mxu0 0
    %912 = vmatpush1.bf16.msra.mxu0 0
    %913 = vmatprep.subr.bf16.mxu0 0
    %914 = vmatpush1.bf16.msra.mxu0 0
    %915 = vmatprep.subr.bf16.mxu0 0
    %916 = vmatpush1.bf16.msra.mxu0 0
    %917 = vmatprep.subr.bf16.mxu0 0
    %918 = vmatpush1.bf16.msra.mxu0 0
    %919 = vmatprep.subr.bf16.mxu0 0
    %920 = vmatpush1.bf16.msra.mxu0 0
    %921 = vmatprep.subr.bf16.mxu0 0
    %922 = vmatpush1.bf16.msra.mxu0 0
    %923 = vmatprep.subr.bf16.mxu0 0
    %924 = vmatpush1.bf16.msra.mxu0 0
    %925 = vmatprep.subr.bf16.mxu0 0
    %926 = vmatpush1.bf16.msra.mxu0 0
    %927 = vmatprep.subr.bf16.mxu0 0
    %928 = vmatpush1.bf16.msra.mxu0 0
    %929 = vmatprep.subr.bf16.mxu0 0
    %930 = vmatpush1.bf16.msra.mxu0 0
    %931 = vmatprep.subr.bf16.mxu0 0
    %932 = vmatpush1.bf16.msra.mxu0 0
    %933 = vmatprep.subr.bf16.mxu0 0
    %934 = vmatpush1.bf16.msra.mxu0 0
    %935 = vmatprep.subr.bf16.mxu0 0
    %936 = vmatpush1.bf16.msra.mxu0 0
    %937 = vmatprep.subr.bf16.mxu0 0
    %938 = vmatpush1.bf16.msra.mxu0 0
    %939 = vmatprep.subr.bf16.mxu0 0
    %940 = vmatpush1.bf16.msra.mxu0 0
    %941 = vmatprep.mubr.bf16.mxu0 0
    %942 = vmatmul.mubr.bf16.gmra.mrb[0].mxu0 %v904
    %v943 = vpop.f32.mrb[0].mxu0
    %v944 = vadd.f32 0.0, %v943
    %v945 = vpop.f32.mrb[0].mxu0
    %v946 = vpop.f32.mrb[0].mxu0
    %v947 = vpop.f32.mrb[0].mxu0
    %948 = vdwg.mxu0
    %v950 = vsel %vm721, %v901, 0
    %v952 = vsel %vm725, %v782, 0
    %954 = vmatprep.subr.bf16.mxu0 0
    %955 = vmatpush1.bf16.msra.mxu0 %v952
    %956 = vmatprep.subr.bf16.mxu0 0
    %957 = vmatpush1.bf16.msra.mxu0 0
    %958 = vmatprep.subr.bf16.mxu0 0
    %959 = vmatpush1.bf16.msra.mxu0 0
    %960 = vmatprep.subr.bf16.mxu0 0
    %961 = vmatpush1.bf16.msra.mxu0 0
    %962 = vmatprep.subr.bf16.mxu0 0
    %963 = vmatpush1.bf16.msra.mxu0 0
    %964 = vmatprep.subr.bf16.mxu0 0
    %965 = vmatpush1.bf16.msra.mxu0 0
    %966 = vmatprep.subr.bf16.mxu0 0
    %967 = vmatpush1.bf16.msra.mxu0 0
    %968 = vmatprep.subr.bf16.mxu0 0
    %969 = vmatpush1.bf16.msra.mxu0 0
    %970 = vmatprep.subr.bf16.mxu0 0
    %971 = vmatpush1.bf16.msra.mxu0 0
    %972 = vmatprep.subr.bf16.mxu0 0
    %973 = vmatpush1.bf16.msra.mxu0 0
    %974 = vmatprep.subr.bf16.mxu0 0
    %975 = vmatpush1.bf16.msra.mxu0 0
    %976 = vmatprep.subr.bf16.mxu0 0
    %977 = vmatpush1.bf16.msra.mxu0 0
    %978 = vmatprep.subr.bf16.mxu0 0
    %979 = vmatpush1.bf16.msra.mxu0 0
    %980 = vmatprep.subr.bf16.mxu0 0
    %981 = vmatpush1.bf16.msra.mxu0 0
    %982 = vmatprep.subr.bf16.mxu0 0
    %983 = vmatpush1.bf16.msra.mxu0 0
    %984 = vmatprep.subr.bf16.mxu0 0
    %985 = vmatpush1.bf16.msra.mxu0 0
    %986 = vmatprep.mubr.bf16.mxu0 0
    %987 = vmatmul.mubr.bf16.gmra.mrb[0].mxu0 %v950
    %v988 = vpop.f32.mrb[0].mxu0
    %v989 = vadd.f32 %v944, %v988
    %v990 = vpop.f32.mrb[0].mxu0
    %v991 = vpop.f32.mrb[0].mxu0
    %v992 = vpop.f32.mrb[0].mxu0
    %993 = vdwg.mxu0
    %v994 = vld [vmem:[#allocation2 + $0x19c] sm:$0xf]
    %v996 = vsel %vm721, %v994, 0
    %v999 = vsel %vm725, %v900, 0
    %1001 = vmatprep.subr.bf16.mxu0 0
    %1002 = vmatpush1.bf16.msra.mxu0 %v999
    %1003 = vmatprep.subr.bf16.mxu0 0
    %1004 = vmatpush1.bf16.msra.mxu0 0
    %1005 = vmatprep.subr.bf16.mxu0 0
    %1006 = vmatpush1.bf16.msra.mxu0 0
    %1007 = vmatprep.subr.bf16.mxu0 0
    %1008 = vmatpush1.bf16.msra.mxu0 0
    %1009 = vmatprep.subr.bf16.mxu0 0
    %1010 = vmatpush1.bf16.msra.mxu0 0
    %1011 = vmatprep.subr.bf16.mxu0 0
    %1012 = vmatpush1.bf16.msra.mxu0 0
    %1013 = vmatprep.subr.bf16.mxu0 0
    %1014 = vmatpush1.bf16.msra.mxu0 0
    %1015 = vmatprep.subr.bf16.mxu0 0
    %1016 = vmatpush1.bf16.msra.mxu0 0
    %1017 = vmatprep.subr.bf16.mxu0 0
    %1018 = vmatpush1.bf16.msra.mxu0 0
    %1019 = vmatprep.subr.bf16.mxu0 0
    %1020 = vmatpush1.bf16.msra.mxu0 0
    %1021 = vmatprep.subr.bf16.mxu0 0
    %1022 = vmatpush1.bf16.msra.mxu0 0
    %1023 = vmatprep.subr.bf16.mxu0 0
    %1024 = vmatpush1.bf16.msra.mxu0 0
    %1025 = vmatprep.subr.bf16.mxu0 0
    %1026 = vmatpush1.bf16.msra.mxu0 0
    %1027 = vmatprep.subr.bf16.mxu0 0
    %1028 = vmatpush1.bf16.msra.mxu0 0
    %1029 = vmatprep.subr.bf16.mxu0 0
    %1030 = vmatpush1.bf16.msra.mxu0 0
    %1031 = vmatprep.subr.bf16.mxu0 0
    %1032 = vmatpush1.bf16.msra.mxu0 0
    %1033 = vmatprep.mubr.bf16.mxu0 0
    %1034 = vmatmul.mubr.bf16.gmra.mrb[0].mxu0 %v996
    %v1035 = vpop.f32.mrb[0].mxu0
    %v1036 = vadd.f32 0.0, %v1035
    %v1037 = vpop.f32.mrb[0].mxu0
    %v1038 = vpop.f32.mrb[0].mxu0
    %v1039 = vpop.f32.mrb[0].mxu0
    %1040 = vdwg.mxu0
    %v1041 = vadd.f32 %v989, %v1036
    %v1042 = vld [vmem:[%s2 + $0x30] sm:$0xff]
    %1044 = vset.pattern.permute.xlu0 0
    %1045 = vperm.xlu0 %1044, %v1042
    %v1046 = vpop.permute.xlu0 %1045
    %v1048 = vmul.f32 %v1041, %v1046
    %1049 = vset.pattern.permute.xlu0 1
    %1050 = vperm.xlu0 %1049, %v1042
    %v1051 = vpop.permute.xlu0 %1050
    %v1053 = vadd.f32 %v1048, %v1051
    %v1054 = vmax.f32 %v1053, 0.0
    %v1055 = vld [vmem:[#allocation2 + $0x1a0] sm:$0xf]
    %v1056 = vld [vmem:[#allocation2 + $0x1a4] sm:$0xf]
    %v1057 = vpack.c.bf16 %v1054, %v1054
    %v1058 = vld [vmem:[#allocation2 + $0x18c] sm:$0xf]
    %v1059 = vld [vmem:[#allocation2 + $0x190] sm:$0xf]
    %v1060 = vpack.c.bf16 %v705, %v705
    %v1063 = vunpack.c.l.b16 %v1058
    %v1064 = vunpack.c.l.b16 %v1059
    %v1065 = vpack.c.b16 %v1064, %v1063
    %v1067 = vsel %vm721, %v1065, 0
    %v1070 = vsel %vm725, %v1060, 0
    %1072 = vmatprep.subr.bf16.mxu0 0
    %1073 = vmatpush1.bf16.msra.mxu0 %v1070
    %1074 = vmatprep.subr.bf16.mxu0 0
    %1075 = vmatpush1.bf16.msra.mxu0 0
    %1076 = vmatprep.subr.bf16.mxu0 0
    %1077 = vmatpush1.bf16.msra.mxu0 0
    %1078 = vmatprep.subr.bf16.mxu0 0
    %1079 = vmatpush1.bf16.msra.mxu0 0
    %1080 = vmatprep.subr.bf16.mxu0 0
    %1081 = vmatpush1.bf16.msra.mxu0 0
    %1082 = vmatprep.subr.bf16.mxu0 0
    %1083 = vmatpush1.bf16.msra.mxu0 0
    %1084 = vmatprep.subr.bf16.mxu0 0
    %1085 = vmatpush1.bf16.msra.mxu0 0
    %1086 = vmatprep.subr.bf16.mxu0 0
    %1087 = vmatpush1.bf16.msra.mxu0 0
    %1088 = vmatprep.subr.bf16.mxu0 0
    %1089 = vmatpush1.bf16.msra.mxu0 0
    %1090 = vmatprep.subr.bf16.mxu0 0
    %1091 = vmatpush1.bf16.msra.mxu0 0
    %1092 = vmatprep.subr.bf16.mxu0 0
    %1093 = vmatpush1.bf16.msra.mxu0 0
    %1094 = vmatprep.subr.bf16.mxu0 0
    %1095 = vmatpush1.bf16.msra.mxu0 0
    %1096 = vmatprep.subr.bf16.mxu0 0
    %1097 = vmatpush1.bf16.msra.mxu0 0
    %1098 = vmatprep.subr.bf16.mxu0 0
    %1099 = vmatpush1.bf16.msra.mxu0 0
    %1100 = vmatprep.subr.bf16.mxu0 0
    %1101 = vmatpush1.bf16.msra.mxu0 0
    %1102 = vmatprep.subr.bf16.mxu0 0
    %1103 = vmatpush1.bf16.msra.mxu0 0
    %1104 = vmatprep.mubr.bf16.mxu0 0
    %1105 = vmatmul.mubr.bf16.gmra.mrb[0].mxu0 %v1067
    %v1106 = vpop.f32.mrb[0].mxu0
    %v1107 = vadd.f32 0.0, %v1106
    %v1108 = vpop.f32.mrb[0].mxu0
    %v1109 = vpop.f32.mrb[0].mxu0
    %v1110 = vadd.f32 0.0, %v1109
    %v1111 = vpop.f32.mrb[0].mxu0
    %1112 = vdwg.mxu0
    %v1115 = vunpack.c.l.b16 %v1055
    %v1116 = vunpack.c.l.b16 %v1056
    %v1117 = vpack.c.b16 %v1116, %v1115
    %v1119 = vsel %vm721, %v1117, 0
    %v1122 = vsel %vm725, %v1057, 0
    %1124 = vmatprep.subr.bf16.mxu0 0
    %1125 = vmatpush1.bf16.msra.mxu0 %v1122
    %1126 = vmatprep.subr.bf16.mxu0 0
    %1127 = vmatpush1.bf16.msra.mxu0 0
    %1128 = vmatprep.subr.bf16.mxu0 0
    %1129 = vmatpush1.bf16.msra.mxu0 0
    %1130 = vmatprep.subr.bf16.mxu0 0
    %1131 = vmatpush1.bf16.msra.mxu0 0
    %1132 = vmatprep.subr.bf16.mxu0 0
    %1133 = vmatpush1.bf16.msra.mxu0 0
    %1134 = vmatprep.subr.bf16.mxu0 0
    %1135 = vmatpush1.bf16.msra.mxu0 0
    %1136 = vmatprep.subr.bf16.mxu0 0
    %1137 = vmatpush1.bf16.msra.mxu0 0
    %1138 = vmatprep.subr.bf16.mxu0 0
    %1139 = vmatpush1.bf16.msra.mxu0 0
    %1140 = vmatprep.subr.bf16.mxu0 0
    %1141 = vmatpush1.bf16.msra.mxu0 0
    %1142 = vmatprep.subr.bf16.mxu0 0
    %1143 = vmatpush1.bf16.msra.mxu0 0
    %1144 = vmatprep.subr.bf16.mxu0 0
    %1145 = vmatpush1.bf16.msra.mxu0 0
    %1146 = vmatprep.subr.bf16.mxu0 0
    %1147 = vmatpush1.bf16.msra.mxu0 0
    %1148 = vmatprep.subr.bf16.mxu0 0
    %1149 = vmatpush1.bf16.msra.mxu0 0
    %1150 = vmatprep.subr.bf16.mxu0 0
    %1151 = vmatpush1.bf16.msra.mxu0 0
    %1152 = vmatprep.subr.bf16.mxu0 0
    %1153 = vmatpush1.bf16.msra.mxu0 0
    %1154 = vmatprep.subr.bf16.mxu0 0
    %1155 = vmatpush1.bf16.msra.mxu0 0
    %1156 = vmatprep.mubr.bf16.mxu0 0
    %1157 = vmatmul.mubr.bf16.gmra.mrb[0].mxu0 %v1119
    %v1158 = vpop.f32.mrb[0].mxu0
    %v1159 = vadd.f32 %v1107, %v1158
    %v1160 = vpop.f32.mrb[0].mxu0
    %v1161 = vpop.f32.mrb[0].mxu0
    %v1162 = vadd.f32 %v1110, %v1161
    %v1163 = vpop.f32.mrb[0].mxu0
    %1164 = vdwg.mxu0
    %v1165 = vld [vmem:[%s2 + $0x38] sm:$0xff]
    %v1166 = vld [vmem:[%s2 + $0x40] sm:$0xff]
    %1168 = vset.pattern.permute.xlu0 0
    %1169 = vperm.xlu0 %1168, %v1165
    %v1170 = vpop.permute.xlu0 %1169
    %1173 = vset.pattern.permute.xlu0 0
    %1174 = vperm.xlu0 %1173, %v1166
    %v1175 = vpop.permute.xlu0 %1174
    %v1177 = vadd.f32 %v1159, %v1170
    %v1178 = vadd.f32 %v1162, %v1175
    %v1179 = vld [vmem:[#allocation2 + $0x158] sm:$0xf]
    %v1180 = vld [vmem:[#allocation2 + $0x15c] sm:$0xf]
    %v1181 = vld [vmem:[#allocation2 + $0x160] sm:$0xf]
    %v1182 = vld [vmem:[#allocation2 + $0x164] sm:$0xf]
    %v1183 = vpack.c.bf16 %v1178, %v1177
    %v1188 = vunpack.c.l.b16 %v1179
    %v1189 = vunpack.c.l.b16 %v1180
    %v1190 = vunpack.c.l.b16 %v1181
    %v1191 = vunpack.c.l.b16 %v1182
    %v1192 = vpack.c.b16 %v1189, %v1188
    %v1193 = vpack.c.b16 %v1191, %v1190
    %v1197 = vsel %vm799, %v1183, 0
    %1199 = vmatprep.subr.bf16.mxu0 0
    %1200 = vmatpush1.bf16.msra.mxu0 %v1192
    %1201 = vmatprep.subr.bf16.mxu0 0
    %1202 = vmatpush1.bf16.msra.mxu0 %v1193
    %1203 = vmatprep.subr.bf16.mxu0 0
    %1204 = vmatpush1.bf16.msra.mxu0 0
    %1205 = vmatprep.subr.bf16.mxu0 0
    %1206 = vmatpush1.bf16.msra.mxu0 0
    %1207 = vmatprep.subr.bf16.mxu0 0
    %1208 = vmatpush1.bf16.msra.mxu0 0
    %1209 = vmatprep.subr.bf16.mxu0 0
    %1210 = vmatpush1.bf16.msra.mxu0 0
    %1211 = vmatprep.subr.bf16.mxu0 0
    %1212 = vmatpush1.bf16.msra.mxu0 0
    %1213 = vmatprep.subr.bf16.mxu0 0
    %1214 = vmatpush1.bf16.msra.mxu0 0
    %1215 = vmatprep.subr.bf16.mxu0 0
    %1216 = vmatpush1.bf16.msra.mxu0 0
    %1217 = vmatprep.subr.bf16.mxu0 0
    %1218 = vmatpush1.bf16.msra.mxu0 0
    %1219 = vmatprep.subr.bf16.mxu0 0
    %1220 = vmatpush1.bf16.msra.mxu0 0
    %1221 = vmatprep.subr.bf16.mxu0 0
    %1222 = vmatpush1.bf16.msra.mxu0 0
    %1223 = vmatprep.subr.bf16.mxu0 0
    %1224 = vmatpush1.bf16.msra.mxu0 0
    %1225 = vmatprep.subr.bf16.mxu0 0
    %1226 = vmatpush1.bf16.msra.mxu0 0
    %1227 = vmatprep.subr.bf16.mxu0 0
    %1228 = vmatpush1.bf16.msra.mxu0 0
    %1229 = vmatprep.subr.bf16.mxu0 0
    %1230 = vmatpush1.bf16.msra.mxu0 0
    %1231 = vmatprep.mubr.bf16.mxu0 0
    %1232 = vmatmul.mubr.bf16.gmra.mrb[0].mxu0 %v1197
    %v1233 = vpop.f32.mrb[0].mxu0
    %v1234 = vadd.f32 0.0, %v1233
    %v1235 = vpop.f32.mrb[0].mxu0
    %v1236 = vpop.f32.mrb[0].mxu0
    %v1237 = vadd.f32 0.0, %v1236
    %v1238 = vpop.f32.mrb[0].mxu0
    %1239 = vdwg.mxu0
    %1242 = vrot.lane.b32.xlu0 %v1234, 112
    %v1243 = vpop.permute.xlu0 %1242
    %1244 = vrot.lane.b32.xlu0 %v1237, 112
    %v1245 = vpop.permute.xlu0 %1244
    %v1248 = vmax.f32 %v1234, %v1243
    %v1249 = vmax.f32 %v1237, %v1245
    %v1250 = vld [vmem:[%s2 + $0x48] sm:$0xff]
    %v1251 = vld [vmem:[%s2 + $0x50] sm:$0xff]
    %1253 = vset.pattern.permute.xlu0 0
    %1254 = vperm.xlu0 %1253, %v1250
    %v1255 = vpop.permute.xlu0 %1254
    %1258 = vset.pattern.permute.xlu0 0
    %1259 = vperm.xlu0 %1258, %v1251
    %v1260 = vpop.permute.xlu0 %1259
    %v1262 = vmul.f32 %v1248, %v1255
    %v1263 = vmul.f32 %v1249, %v1260
    %1264 = vset.pattern.permute.xlu0 1
    %1265 = vperm.xlu0 %1264, %v1250
    %v1266 = vpop.permute.xlu0 %1265
    %1268 = vset.pattern.permute.xlu0 1
    %1269 = vperm.xlu0 %1268, %v1251
    %v1270 = vpop.permute.xlu0 %1269
    %v1272 = vadd.f32 %v1262, %v1266
    %v1273 = vadd.f32 %v1263, %v1270
    %v1274 = vmax.f32 %v1272, 0.0
    %v1275 = vmax.f32 %v1273, 0.0
    %v1276 = vld [vmem:[#allocation2 + $0x1a8] sm:$0xf]
    %v1277 = vld [vmem:[#allocation2 + $0x1ac] sm:$0xf]
    %v1278 = vpack.c.bf16 %v1275, %v1274
    %v1281 = vunpack.c.l.b16 %v1276
    %v1282 = vunpack.c.l.b16 %v1277
    %v1283 = vpack.c.b16 %v1282, %v1281
    %vm1284 = vcmask 130048
    %v1286 = vsel %vm1284, %v1283, 0
    %1288 = vmatprep.subr.bf16.mxu0 0
    %1289 = vmatpush1.bf16.msra.mxu0 %v1278
    %1290 = vmatprep.subr.bf16.mxu0 0
    %1291 = vmatpush1.bf16.msra.mxu0 0
    %1292 = vmatprep.subr.bf16.mxu0 0
    %1293 = vmatpush1.bf16.msra.mxu0 0
    %1294 = vmatprep.subr.bf16.mxu0 0
    %1295 = vmatpush1.bf16.msra.mxu0 0
    %1296 = vmatprep.subr.bf16.mxu0 0
    %1297 = vmatpush1.bf16.msra.mxu0 0
    %1298 = vmatprep.subr.bf16.mxu0 0
    %1299 = vmatpush1.bf16.msra.mxu0 0
    %1300 = vmatprep.subr.bf16.mxu0 0
    %1301 = vmatpush1.bf16.msra.mxu0 0
    %1302 = vmatprep.subr.bf16.mxu0 0
    %1303 = vmatpush1.bf16.msra.mxu0 0
    %1304 = vmatprep.subr.bf16.mxu0 0
    %1305 = vmatpush1.bf16.msra.mxu0 0
    %1306 = vmatprep.subr.bf16.mxu0 0
    %1307 = vmatpush1.bf16.msra.mxu0 0
    %1308 = vmatprep.subr.bf16.mxu0 0
    %1309 = vmatpush1.bf16.msra.mxu0 0
    %1310 = vmatprep.subr.bf16.mxu0 0
    %1311 = vmatpush1.bf16.msra.mxu0 0
    %1312 = vmatprep.subr.bf16.mxu0 0
    %1313 = vmatpush1.bf16.msra.mxu0 0
    %1314 = vmatprep.subr.bf16.mxu0 0
    %1315 = vmatpush1.bf16.msra.mxu0 0
    %1316 = vmatprep.subr.bf16.mxu0 0
    %1317 = vmatpush1.bf16.msra.mxu0 0
    %1318 = vmatprep.subr.bf16.mxu0 0
    %1319 = vmatpush1.bf16.msra.mxu0 0
    %1320 = vmatprep.mubr.bf16.mxu0 0
    %1321 = vmatmul.mubr.bf16.gmra.mrb[0].mxu0 %v1286
    %v1322 = vpop.f32.mrb[0].mxu0
    %v1323 = vadd.f32 0.0, %v1322
    %v1324 = vpop.f32.mrb[0].mxu0
    %v1325 = vpop.f32.mrb[0].mxu0
    %v1326 = vadd.f32 0.0, %v1325
    %v1327 = vpop.f32.mrb[0].mxu0
    %1328 = vdwg.mxu0
    %v1329 = vld [vmem:[%s2 + $0x58] sm:$0xff]
    %v1330 = vld [vmem:[%s2 + $0x60] sm:$0xff]
    %1332 = vset.pattern.permute.xlu0 0
    %1333 = vperm.xlu0 %1332, %v1329
    %v1334 = vpop.permute.xlu0 %1333
    %1337 = vset.pattern.permute.xlu0 0
    %1338 = vperm.xlu0 %1337, %v1330
    %v1339 = vpop.permute.xlu0 %1338
    %v1341 = vmul.f32 %v1323, %v1334
    %v1342 = vmul.f32 %v1326, %v1339
    %1343 = vset.pattern.permute.xlu0 1
    %1344 = vperm.xlu0 %1343, %v1329
    %v1345 = vpop.permute.xlu0 %1344
    %1347 = vset.pattern.permute.xlu0 1
    %1348 = vperm.xlu0 %1347, %v1330
    %v1349 = vpop.permute.xlu0 %1348
    %v1351 = vadd.f32 %v1341, %v1345
    %v1352 = vadd.f32 %v1342, %v1349
    %v1353 = vmax.f32 %v1351, 0.0
    %v1354 = vmax.f32 %v1352, 0.0
    %v1355 = vpack.c.bf16 %v1354, %v1353
    %v1356 = vld [vmem:[#allocation2 + $0x8] sm:$0xf]
    %v1357 = vld [vmem:[#allocation2 + $0xc] sm:$0xf]
    %v1360 = vunpack.c.l.b16 %v1356
    %v1361 = vunpack.c.l.b16 %v1357
    %v1362 = vpack.c.b16 %v1361, %v1360
    %v1365 = vsel %vm1284, %v1355, 0
    %1367 = vmatprep.subr.bf16.mxu0 0
    %1368 = vmatpush1.bf16.msra.mxu0 %v1362
    %1369 = vmatprep.subr.bf16.mxu0 0
    %1370 = vmatpush1.bf16.msra.mxu0 0
    %1371 = vmatprep.subr.bf16.mxu0 0
    %1372 = vmatpush1.bf16.msra.mxu0 0
    %1373 = vmatprep.subr.bf16.mxu0 0
    %1374 = vmatpush1.bf16.msra.mxu0 0
    %1375 = vmatprep.subr.bf16.mxu0 0
    %1376 = vmatpush1.bf16.msra.mxu0 0
    %1377 = vmatprep.subr.bf16.mxu0 0
    %1378 = vmatpush1.bf16.msra.mxu0 0
    %1379 = vmatprep.subr.bf16.mxu0 0
    %1380 = vmatpush1.bf16.msra.mxu0 0
    %1381 = vmatprep.subr.bf16.mxu0 0
    %1382 = vmatpush1.bf16.msra.mxu0 0
    %1383 = vmatprep.subr.bf16.mxu0 0
    %1384 = vmatpush1.bf16.msra.mxu0 0
    %1385 = vmatprep.subr.bf16.mxu0 0
    %1386 = vmatpush1.bf16.msra.mxu0 0
    %1387 = vmatprep.subr.bf16.mxu0 0
    %1388 = vmatpush1.bf16.msra.mxu0 0
    %1389 = vmatprep.subr.bf16.mxu0 0
    %1390 = vmatpush1.bf16.msra.mxu0 0
    %1391 = vmatprep.subr.bf16.mxu0 0
    %1392 = vmatpush1.bf16.msra.mxu0 0
    %1393 = vmatprep.subr.bf16.mxu0 0
    %1394 = vmatpush1.bf16.msra.mxu0 0
    %1395 = vmatprep.subr.bf16.mxu0 0
    %1396 = vmatpush1.bf16.msra.mxu0 0
    %1397 = vmatprep.subr.bf16.mxu0 0
    %1398 = vmatpush1.bf16.msra.mxu0 0
    %1399 = vmatprep.mubr.bf16.mxu0 0
    %1400 = vmatmul.mubr.bf16.gmra.mrb[0].mxu0 %v1365
    %v1401 = vpop.f32.mrb[0].mxu0
    %v1402 = vadd.f32 0.0, %v1401
    %v1403 = vpop.f32.mrb[0].mxu0
    %v1404 = vpop.f32.mrb[0].mxu0
    %v1405 = vadd.f32 0.0, %v1404
    %v1406 = vpop.f32.mrb[0].mxu0
    %1407 = vdwg.mxu0
    %v1408 = vpack.c.bf16 %v1405, %v1402
    %v1409 = vld [vmem:[#allocation2 + $0x10] sm:$0xf]
    %v1410 = vld [vmem:[#allocation2 + $0x14] sm:$0xf]
    %v1413 = vunpack.c.l.b16 %v1409
    %v1414 = vunpack.c.l.b16 %v1410
    %v1415 = vpack.c.b16 %v1414, %v1413
    %1417 = vmatprep.subr.bf16.mxu0 0
    %1418 = vmatpush1.bf16.msra.mxu0 %v1415
    %1419 = vmatprep.subr.bf16.mxu0 0
    %1420 = vmatpush1.bf16.msra.mxu0 0
    %1421 = vmatprep.subr.bf16.mxu0 0
    %1422 = vmatpush1.bf16.msra.mxu0 0
    %1423 = vmatprep.subr.bf16.mxu0 0
    %1424 = vmatpush1.bf16.msra.mxu0 0
    %1425 = vmatprep.subr.bf16.mxu0 0
    %1426 = vmatpush1.bf16.msra.mxu0 0
    %1427 = vmatprep.subr.bf16.mxu0 0
    %1428 = vmatpush1.bf16.msra.mxu0 0
    %1429 = vmatprep.subr.bf16.mxu0 0
    %1430 = vmatpush1.bf16.msra.mxu0 0
    %1431 = vmatprep.subr.bf16.mxu0 0
    %1432 = vmatpush1.bf16.msra.mxu0 0
    %1433 = vmatprep.subr.bf16.mxu0 0
    %1434 = vmatpush1.bf16.msra.mxu0 0
    %1435 = vmatprep.subr.bf16.mxu0 0
    %1436 = vmatpush1.bf16.msra.mxu0 0
    %1437 = vmatprep.subr.bf16.mxu0 0
    %1438 = vmatpush1.bf16.msra.mxu0 0
    %1439 = vmatprep.subr.bf16.mxu0 0
    %1440 = vmatpush1.bf16.msra.mxu0 0
    %1441 = vmatprep.subr.bf16.mxu0 0
    %1442 = vmatpush1.bf16.msra.mxu0 0
    %1443 = vmatprep.subr.bf16.mxu0 0
    %1444 = vmatpush1.bf16.msra.mxu0 0
    %1445 = vmatprep.subr.bf16.mxu0 0
    %1446 = vmatpush1.bf16.msra.mxu0 0
    %1447 = vmatprep.subr.bf16.mxu0 0
    %1448 = vmatpush1.bf16.msra.mxu0 0
    %1449 = vmatprep.mubr.bf16.mxu0 0
    %1450 = vmatmul.mubr.bf16.gmra.mrb[0].mxu0 %v1365
    %v1451 = vpop.f32.mrb[0].mxu0
    %v1452 = vadd.f32 0.0, %v1451
    %v1453 = vpop.f32.mrb[0].mxu0
    %v1454 = vpop.f32.mrb[0].mxu0
    %v1455 = vadd.f32 0.0, %v1454
    %v1456 = vpop.f32.mrb[0].mxu0
    %1457 = vdwg.mxu0
    %v1458 = vpack.c.bf16 %v1455, %v1452
    %v1459 = vld [vmem:[#allocation2 + $0x1c8] sm:$0xf]
    %v1460 = vld [vmem:[#allocation2 + $0x1cc] sm:$0xf]
    %v1461 = vld [vmem:[#allocation2 + $0x1c0] sm:$0xf]
    %v1462 = vld [vmem:[#allocation2 + $0x1c4] sm:$0xf]
    %v1465 = vunpack.c.l.b16 %v1461
    %v1466 = vunpack.c.l.b16 %v1462
    %v1467 = vpack.c.b16 %v1466, %v1465
    %v1469 = vsel %vm1284, %v1467, 0
    %1471 = vmatprep.subr.bf16.mxu0 0
    %1472 = vmatpush1.bf16.msra.mxu0 %v1408
    %1473 = vmatprep.subr.bf16.mxu0 0
    %1474 = vmatpush1.bf16.msra.mxu0 0
    %1475 = vmatprep.subr.bf16.mxu0 0
    %1476 = vmatpush1.bf16.msra.mxu0 0
    %1477 = vmatprep.subr.bf16.mxu0 0
    %1478 = vmatpush1.bf16.msra.mxu0 0
    %1479 = vmatprep.subr.bf16.mxu0 0
    %1480 = vmatpush1.bf16.msra.mxu0 0
    %1481 = vmatprep.subr.bf16.mxu0 0
    %1482 = vmatpush1.bf16.msra.mxu0 0
    %1483 = vmatprep.subr.bf16.mxu0 0
    %1484 = vmatpush1.bf16.msra.mxu0 0
    %1485 = vmatprep.subr.bf16.mxu0 0
    %1486 = vmatpush1.bf16.msra.mxu0 0
    %1487 = vmatprep.subr.bf16.mxu0 0
    %1488 = vmatpush1.bf16.msra.mxu0 0
    %1489 = vmatprep.subr.bf16.mxu0 0
    %1490 = vmatpush1.bf16.msra.mxu0 0
    %1491 = vmatprep.subr.bf16.mxu0 0
    %1492 = vmatpush1.bf16.msra.mxu0 0
    %1493 = vmatprep.subr.bf16.mxu0 0
    %1494 = vmatpush1.bf16.msra.mxu0 0
    %1495 = vmatprep.subr.bf16.mxu0 0
    %1496 = vmatpush1.bf16.msra.mxu0 0
    %1497 = vmatprep.subr.bf16.mxu0 0
    %1498 = vmatpush1.bf16.msra.mxu0 0
    %1499 = vmatprep.subr.bf16.mxu0 0
    %1500 = vmatpush1.bf16.msra.mxu0 0
    %1501 = vmatprep.subr.bf16.mxu0 0
    %1502 = vmatpush1.bf16.msra.mxu0 0
    %1503 = vmatprep.mubr.bf16.mxu0 0
    %1504 = vmatmul.mubr.bf16.gmra.mrb[0].mxu0 %v1469
    %v1505 = vpop.f32.mrb[0].mxu0
    %v1506 = vadd.f32 0.0, %v1505
    %v1507 = vpop.f32.mrb[0].mxu0
    %v1508 = vpop.f32.mrb[0].mxu0
    %v1509 = vadd.f32 0.0, %v1508
    %v1510 = vpop.f32.mrb[0].mxu0
    %1511 = vdwg.mxu0
    %v1514 = vunpack.c.l.b16 %v1459
    %v1515 = vunpack.c.l.b16 %v1460
    %v1516 = vpack.c.b16 %v1515, %v1514
    %v1518 = vsel %vm1284, %v1516, 0
    %1520 = vmatprep.subr.bf16.mxu0 0
    %1521 = vmatpush1.bf16.msra.mxu0 %v1355
    %1522 = vmatprep.subr.bf16.mxu0 0
    %1523 = vmatpush1.bf16.msra.mxu0 0
    %1524 = vmatprep.subr.bf16.mxu0 0
    %1525 = vmatpush1.bf16.msra.mxu0 0
    %1526 = vmatprep.subr.bf16.mxu0 0
    %1527 = vmatpush1.bf16.msra.mxu0 0
    %1528 = vmatprep.subr.bf16.mxu0 0
    %1529 = vmatpush1.bf16.msra.mxu0 0
    %1530 = vmatprep.subr.bf16.mxu0 0
    %1531 = vmatpush1.bf16.msra.mxu0 0
    %1532 = vmatprep.subr.bf16.mxu0 0
    %1533 = vmatpush1.bf16.msra.mxu0 0
    %1534 = vmatprep.subr.bf16.mxu0 0
    %1535 = vmatpush1.bf16.msra.mxu0 0
    %1536 = vmatprep.subr.bf16.mxu0 0
    %1537 = vmatpush1.bf16.msra.mxu0 0
    %1538 = vmatprep.subr.bf16.mxu0 0
    %1539 = vmatpush1.bf16.msra.mxu0 0
    %1540 = vmatprep.subr.bf16.mxu0 0
    %1541 = vmatpush1.bf16.msra.mxu0 0
    %1542 = vmatprep.subr.bf16.mxu0 0
    %1543 = vmatpush1.bf16.msra.mxu0 0
    %1544 = vmatprep.subr.bf16.mxu0 0
    %1545 = vmatpush1.bf16.msra.mxu0 0
    %1546 = vmatprep.subr.bf16.mxu0 0
    %1547 = vmatpush1.bf16.msra.mxu0 0
    %1548 = vmatprep.subr.bf16.mxu0 0
    %1549 = vmatpush1.bf16.msra.mxu0 0
    %1550 = vmatprep.subr.bf16.mxu0 0
    %1551 = vmatpush1.bf16.msra.mxu0 0
    %1552 = vmatprep.mubr.bf16.mxu0 0
    %1553 = vmatmul.mubr.bf16.gmra.mrb[0].mxu0 %v1518
    %v1554 = vpop.f32.mrb[0].mxu0
    %v1555 = vadd.f32 %v1506, %v1554
    %v1556 = vpop.f32.mrb[0].mxu0
    %v1557 = vpop.f32.mrb[0].mxu0
    %v1558 = vadd.f32 %v1509, %v1557
    %v1559 = vpop.f32.mrb[0].mxu0
    %1560 = vdwg.mxu0
    %v1561 = vld [vmem:[#allocation2 + $0x1d0] sm:$0xf]
    %v1562 = vld [vmem:[#allocation2 + $0x1d4] sm:$0xf]
    %v1565 = vunpack.c.l.b16 %v1561
    %v1566 = vunpack.c.l.b16 %v1562
    %v1567 = vpack.c.b16 %v1566, %v1565
    %v1569 = vsel %vm1284, %v1567, 0
    %1571 = vmatprep.subr.bf16.mxu0 0
    %1572 = vmatpush1.bf16.msra.mxu0 %v1458
    %1573 = vmatprep.subr.bf16.mxu0 0
    %1574 = vmatpush1.bf16.msra.mxu0 0
    %1575 = vmatprep.subr.bf16.mxu0 0
    %1576 = vmatpush1.bf16.msra.mxu0 0
    %1577 = vmatprep.subr.bf16.mxu0 0
    %1578 = vmatpush1.bf16.msra.mxu0 0
    %1579 = vmatprep.subr.bf16.mxu0 0
    %1580 = vmatpush1.bf16.msra.mxu0 0
    %1581 = vmatprep.subr.bf16.mxu0 0
    %1582 = vmatpush1.bf16.msra.mxu0 0
    %1583 = vmatprep.subr.bf16.mxu0 0
    %1584 = vmatpush1.bf16.msra.mxu0 0
    %1585 = vmatprep.subr.bf16.mxu0 0
    %1586 = vmatpush1.bf16.msra.mxu0 0
    %1587 = vmatprep.subr.bf16.mxu0 0
    %1588 = vmatpush1.bf16.msra.mxu0 0
    %1589 = vmatprep.subr.bf16.mxu0 0
    %1590 = vmatpush1.bf16.msra.mxu0 0
    %1591 = vmatprep.subr.bf16.mxu0 0
    %1592 = vmatpush1.bf16.msra.mxu0 0
    %1593 = vmatprep.subr.bf16.mxu0 0
    %1594 = vmatpush1.bf16.msra.mxu0 0
    %1595 = vmatprep.subr.bf16.mxu0 0
    %1596 = vmatpush1.bf16.msra.mxu0 0
    %1597 = vmatprep.subr.bf16.mxu0 0
    %1598 = vmatpush1.bf16.msra.mxu0 0
    %1599 = vmatprep.subr.bf16.mxu0 0
    %1600 = vmatpush1.bf16.msra.mxu0 0
    %1601 = vmatprep.subr.bf16.mxu0 0
    %1602 = vmatpush1.bf16.msra.mxu0 0
    %1603 = vmatprep.mubr.bf16.mxu0 0
    %1604 = vmatmul.mubr.bf16.gmra.mrb[0].mxu0 %v1569
    %v1605 = vpop.f32.mrb[0].mxu0
    %v1606 = vadd.f32 0.0, %v1605
    %v1607 = vpop.f32.mrb[0].mxu0
    %v1608 = vpop.f32.mrb[0].mxu0
    %v1609 = vadd.f32 0.0, %v1608
    %v1610 = vpop.f32.mrb[0].mxu0
    %1611 = vdwg.mxu0
    %v1612 = vadd.f32 %v1555, %v1606
    %v1613 = vadd.f32 %v1558, %v1609
    %v1614 = vld [vmem:[%s2 + $0x68] sm:$0xff]
    %v1615 = vld [vmem:[%s2 + $0x70] sm:$0xff]
    %1617 = vset.pattern.permute.xlu0 0
    %1618 = vperm.xlu0 %1617, %v1614
    %v1619 = vpop.permute.xlu0 %1618
    %1622 = vset.pattern.permute.xlu0 0
    %1623 = vperm.xlu0 %1622, %v1615
    %v1624 = vpop.permute.xlu0 %1623
    %v1626 = vmul.f32 %v1612, %v1619
    %v1627 = vmul.f32 %v1613, %v1624
    %1628 = vset.pattern.permute.xlu0 1
    %1629 = vperm.xlu0 %1628, %v1614
    %v1630 = vpop.permute.xlu0 %1629
    %1632 = vset.pattern.permute.xlu0 1
    %1633 = vperm.xlu0 %1632, %v1615
    %v1634 = vpop.permute.xlu0 %1633
    %v1636 = vadd.f32 %v1626, %v1630
    %v1637 = vadd.f32 %v1627, %v1634
    %v1638 = vmax.f32 %v1636, 0.0
    %v1639 = vmax.f32 %v1637, 0.0
    %v1640 = vld [vmem:[#allocation2 + $0x1d8] sm:$0xf]
    %v1641 = vld [vmem:[#allocation2 + $0x1dc] sm:$0xf]
    %v1642 = vld [vmem:[#allocation2 + $0x1e0] sm:$0xf]
    %v1643 = vld [vmem:[#allocation2 + $0x1e4] sm:$0xf]
    %v1644 = vpack.c.bf16 %v1639, %v1638
    %v1645 = vld [vmem:[#allocation2 + $0x1b0] sm:$0xf]
    %v1646 = vld [vmem:[#allocation2 + $0x1b4] sm:$0xf]
    %v1647 = vld [vmem:[#allocation2 + $0x1b8] sm:$0xf]
    %v1648 = vld [vmem:[#allocation2 + $0x1bc] sm:$0xf]
    %v1649 = vpack.c.bf16 %v1249, %v1248
    %v1654 = vunpack.c.l.b16 %v1645
    %v1655 = vunpack.c.l.b16 %v1646
    %v1656 = vunpack.c.l.b16 %v1647
    %v1657 = vunpack.c.l.b16 %v1648
    %v1658 = vpack.c.b16 %v1655, %v1654
    %v1659 = vpack.c.b16 %v1657, %v1656
    %v1661 = vsel %vm1284, %v1658, 0
    %v1664 = vsel %vm1284, %v1659, 0
    %1666 = vmatprep.subr.bf16.mxu0 0
    %1667 = vmatpush1.bf16.msra.mxu0 %v1649
    %1668 = vmatprep.subr.bf16.mxu0 0
    %1669 = vmatpush1.bf16.msra.mxu0 0
    %1670 = vmatprep.subr.bf16.mxu0 0
    %1671 = vmatpush1.bf16.msra.mxu0 0
    %1672 = vmatprep.subr.bf16.mxu0 0
    %1673 = vmatpush1.bf16.msra.mxu0 0
    %1674 = vmatprep.subr.bf16.mxu0 0
    %1675 = vmatpush1.bf16.msra.mxu0 0
    %1676 = vmatprep.subr.bf16.mxu0 0
    %1677 = vmatpush1.bf16.msra.mxu0 0
    %1678 = vmatprep.subr.bf16.mxu0 0
    %1679 = vmatpush1.bf16.msra.mxu0 0
    %1680 = vmatprep.subr.bf16.mxu0 0
    %1681 = vmatpush1.bf16.msra.mxu0 0
    %1682 = vmatprep.subr.bf16.mxu0 0
    %1683 = vmatpush1.bf16.msra.mxu0 0
    %1684 = vmatprep.subr.bf16.mxu0 0
    %1685 = vmatpush1.bf16.msra.mxu0 0
    %1686 = vmatprep.subr.bf16.mxu0 0
    %1687 = vmatpush1.bf16.msra.mxu0 0
    %1688 = vmatprep.subr.bf16.mxu0 0
    %1689 = vmatpush1.bf16.msra.mxu0 0
    %1690 = vmatprep.subr.bf16.mxu0 0
    %1691 = vmatpush1.bf16.msra.mxu0 0
    %1692 = vmatprep.subr.bf16.mxu0 0
    %1693 = vmatpush1.bf16.msra.mxu0 0
    %1694 = vmatprep.subr.bf16.mxu0 0
    %1695 = vmatpush1.bf16.msra.mxu0 0
    %1696 = vmatprep.subr.bf16.mxu0 0
    %1697 = vmatpush1.bf16.msra.mxu0 0
    %1698 = vmatprep.mubr.bf16.mxu0 0
    %1699 = vmatmul.mubr.bf16.gmra.mrb[0].mxu0 %v1661
    %v1700 = vpop.f32.mrb[0].mxu0
    %v1701 = vadd.f32 0.0, %v1700
    %v1702 = vpop.f32.mrb[0].mxu0
    %v1703 = vpop.f32.mrb[0].mxu0
    %v1704 = vadd.f32 0.0, %v1703
    %v1705 = vpop.f32.mrb[0].mxu0
    %1706 = vmatprep.mubr.bf16.mxu0 0
    %1707 = vmatmul.mubr.bf16.gmra.mrb[0].mxu0 %v1664
    %v1708 = vpop.f32.mrb[0].mxu0
    %v1709 = vadd.f32 0.0, %v1708
    %v1710 = vpop.f32.mrb[0].mxu0
    %v1711 = vpop.f32.mrb[0].mxu0
    %v1712 = vadd.f32 0.0, %v1711
    %v1713 = vpop.f32.mrb[0].mxu0
    %1714 = vdwg.mxu0
    %v1719 = vunpack.c.l.b16 %v1640
    %v1720 = vunpack.c.l.b16 %v1641
    %v1721 = vunpack.c.l.b16 %v1642
    %v1722 = vunpack.c.l.b16 %v1643
    %v1723 = vpack.c.b16 %v1720, %v1719
    %v1724 = vpack.c.b16 %v1722, %v1721
    %v1726 = vsel %vm1284, %v1723, 0
    %v1729 = vsel %vm1284, %v1724, 0
    %1731 = vmatprep.subr.bf16.mxu0 0
    %1732 = vmatpush1.bf16.msra.mxu0 %v1644
    %1733 = vmatprep.subr.bf16.mxu0 0
    %1734 = vmatpush1.bf16.msra.mxu0 0
    %1735 = vmatprep.subr.bf16.mxu0 0
    %1736 = vmatpush1.bf16.msra.mxu0 0
    %1737 = vmatprep.subr.bf16.mxu0 0
    %1738 = vmatpush1.bf16.msra.mxu0 0
    %1739 = vmatprep.subr.bf16.mxu0 0
    %1740 = vmatpush1.bf16.msra.mxu0 0
    %1741 = vmatprep.subr.bf16.mxu0 0
    %1742 = vmatpush1.bf16.msra.mxu0 0
    %1743 = vmatprep.subr.bf16.mxu0 0
    %1744 = vmatpush1.bf16.msra.mxu0 0
    %1745 = vmatprep.subr.bf16.mxu0 0
    %1746 = vmatpush1.bf16.msra.mxu0 0
    %1747 = vmatprep.subr.bf16.mxu0 0
    %1748 = vmatpush1.bf16.msra.mxu0 0
    %1749 = vmatprep.subr.bf16.mxu0 0
    %1750 = vmatpush1.bf16.msra.mxu0 0
    %1751 = vmatprep.subr.bf16.mxu0 0
    %1752 = vmatpush1.bf16.msra.mxu0 0
    %1753 = vmatprep.subr.bf16.mxu0 0
    %1754 = vmatpush1.bf16.msra.mxu0 0
    %1755 = vmatprep.subr.bf16.mxu0 0
    %1756 = vmatpush1.bf16.msra.mxu0 0
    %1757 = vmatprep.subr.bf16.mxu0 0
    %1758 = vmatpush1.bf16.msra.mxu0 0
    %1759 = vmatprep.subr.bf16.mxu0 0
    %1760 = vmatpush1.bf16.msra.mxu0 0
    %1761 = vmatprep.subr.bf16.mxu0 0
    %1762 = vmatpush1.bf16.msra.mxu0 0
    %1763 = vmatprep.mubr.bf16.mxu0 0
    %1764 = vmatmul.mubr.bf16.gmra.mrb[0].mxu0 %v1726
    %v1765 = vpop.f32.mrb[0].mxu0
    %v1766 = vadd.f32 %v1701, %v1765
    %v1767 = vpop.f32.mrb[0].mxu0
    %v1768 = vpop.f32.mrb[0].mxu0
    %v1769 = vadd.f32 %v1704, %v1768
    %v1770 = vpop.f32.mrb[0].mxu0
    %1771 = vmatprep.mubr.bf16.mxu0 0
    %1772 = vmatmul.mubr.bf16.gmra.mrb[0].mxu0 %v1729
    %v1773 = vpop.f32.mrb[0].mxu0
    %v1774 = vadd.f32 %v1709, %v1773
    %v1775 = vpop.f32.mrb[0].mxu0
    %v1776 = vpop.f32.mrb[0].mxu0
    %v1777 = vadd.f32 %v1712, %v1776
    %v1778 = vpop.f32.mrb[0].mxu0
    %1779 = vdwg.mxu0
    %v1780 = vld [vmem:[%s2 + $0x78] sm:$0xff]
    %v1781 = vld [vmem:[%s2 + $0x80] sm:$0xff]
    %v1782 = vld [vmem:[%s2 + $0x88] sm:$0xff]
    %v1783 = vld [vmem:[%s2 + $0x90] sm:$0xff]
    %1785 = vset.pattern.permute.xlu0 0
    %1786 = vperm.xlu0 %1785, %v1780
    %v1787 = vpop.permute.xlu0 %1786
    %1790 = vset.pattern.permute.xlu0 0
    %1791 = vperm.xlu0 %1790, %v1781
    %v1792 = vpop.permute.xlu0 %1791
    %1795 = vset.pattern.permute.xlu0 0
    %1796 = vperm.xlu0 %1795, %v1782
    %v1797 = vpop.permute.xlu0 %1796
    %1800 = vset.pattern.permute.xlu0 0
    %1801 = vperm.xlu0 %1800, %v1783
    %v1802 = vpop.permute.xlu0 %1801
    %v1804 = vadd.f32 %v1766, %v1787
    %v1805 = vadd.f32 %v1769, %v1792
    %v1806 = vadd.f32 %v1774, %v1797
    %v1807 = vadd.f32 %v1777, %v1802
    %v1808 = vld [vmem:[#allocation2 + $0x168] sm:$0xf]
    %v1809 = vld [vmem:[#allocation2 + $0x16c] sm:$0xf]
    %v1810 = vpack.c.bf16 %v1805, %v1804
    %v1811 = vpack.c.bf16 %v1807, %v1806
    %v1814 = vunpack.c.l.b16 %v1808
    %v1815 = vunpack.c.l.b16 %v1809
    %v1816 = vpack.c.b16 %v1815, %v1814
    %v1819 = vsel %vm1284, %v1810, 0
    %v1822 = vsel %vm1284, %v1811, 0
    %1824 = vmatprep.subr.bf16.mxu0 0
    %1825 = vmatpush1.bf16.msra.mxu0 %v1816
    %1826 = vmatprep.subr.bf16.mxu0 0
    %1827 = vmatpush1.bf16.msra.mxu0 0
    %1828 = vmatprep.subr.bf16.mxu0 0
    %1829 = vmatpush1.bf16.msra.mxu0 0
    %1830 = vmatprep.subr.bf16.mxu0 0
    %1831 = vmatpush1.bf16.msra.mxu0 0
    %1832 = vmatprep.subr.bf16.mxu0 0
    %1833 = vmatpush1.bf16.msra.mxu0 0
    %1834 = vmatprep.subr.bf16.mxu0 0
    %1835 = vmatpush1.bf16.msra.mxu0 0
    %1836 = vmatprep.subr.bf16.mxu0 0
    %1837 = vmatpush1.bf16.msra.mxu0 0
    %1838 = vmatprep.subr.bf16.mxu0 0
    %1839 = vmatpush1.bf16.msra.mxu0 0
    %1840 = vmatprep.subr.bf16.mxu0 0
    %1841 = vmatpush1.bf16.msra.mxu0 0
    %1842 = vmatprep.subr.bf16.mxu0 0
    %1843 = vmatpush1.bf16.msra.mxu0 0
    %1844 = vmatprep.subr.bf16.mxu0 0
    %1845 = vmatpush1.bf16.msra.mxu0 0
    %1846 = vmatprep.subr.bf16.mxu0 0
    %1847 = vmatpush1.bf16.msra.mxu0 0
    %1848 = vmatprep.subr.bf16.mxu0 0
    %1849 = vmatpush1.bf16.msra.mxu0 0
    %1850 = vmatprep.subr.bf16.mxu0 0
    %1851 = vmatpush1.bf16.msra.mxu0 0
    %1852 = vmatprep.subr.bf16.mxu0 0
    %1853 = vmatpush1.bf16.msra.mxu0 0
    %1854 = vmatprep.subr.bf16.mxu0 0
    %1855 = vmatpush1.bf16.msra.mxu0 0
    %1856 = vmatprep.mubr.bf16.mxu0 0
    %1857 = vmatmul.mubr.bf16.gmra.mrb[0].mxu0 %v1819
    %v1858 = vpop.f32.mrb[0].mxu0
    %v1859 = vadd.f32 0.0, %v1858
    %v1860 = vpop.f32.mrb[0].mxu0
    %v1861 = vpop.f32.mrb[0].mxu0
    %v1862 = vadd.f32 0.0, %v1861
    %v1863 = vpop.f32.mrb[0].mxu0
    %1864 = vmatprep.mubr.bf16.mxu0 0
    %1865 = vmatmul.mubr.bf16.gmra.mrb[0].mxu0 %v1822
    %v1866 = vpop.f32.mrb[0].mxu0
    %v1867 = vadd.f32 0.0, %v1866
    %v1868 = vpop.f32.mrb[0].mxu0
    %v1869 = vpop.f32.mrb[0].mxu0
    %v1870 = vadd.f32 0.0, %v1869
    %v1871 = vpop.f32.mrb[0].mxu0
    %1872 = vdwg.mxu0
    %1877 = vrot.lane.b32.xlu0 %v1859, 120
    %v1878 = vpop.permute.xlu0 %1877
    %1879 = vrot.lane.b32.xlu0 %v1862, 120
    %v1880 = vpop.permute.xlu0 %1879
    %1881 = vrot.lane.b32.xlu0 %v1867, 120
    %v1882 = vpop.permute.xlu0 %1881
    %1883 = vrot.lane.b32.xlu0 %v1870, 120
    %v1884 = vpop.permute.xlu0 %1883
    %v1889 = vmax.f32 %v1859, %v1878
    %v1890 = vmax.f32 %v1862, %v1880
    %v1891 = vmax.f32 %v1867, %v1882
    %v1892 = vmax.f32 %v1870, %v1884
    %v1893 = vld [vmem:[%s2 + $0x98] sm:$0xff]
    %v1894 = vld [vmem:[%s2 + $0xa0] sm:$0xff]
    %v1895 = vld [vmem:[%s2 + $0xa8] sm:$0xff]
    %v1896 = vld [vmem:[%s2 + $0xb0] sm:$0xff]
    %1898 = vset.pattern.permute.xlu0 0
    %1899 = vperm.xlu0 %1898, %v1893
    %v1900 = vpop.permute.xlu0 %1899
    %1903 = vset.pattern.permute.xlu0 0
    %1904 = vperm.xlu0 %1903, %v1894
    %v1905 = vpop.permute.xlu0 %1904
    %1908 = vset.pattern.permute.xlu0 0
    %1909 = vperm.xlu0 %1908, %v1895
    %v1910 = vpop.permute.xlu0 %1909
    %1913 = vset.pattern.permute.xlu0 0
    %1914 = vperm.xlu0 %1913, %v1896
    %v1915 = vpop.permute.xlu0 %1914
    %v1917 = vmul.f32 %v1889, %v1900
    %v1918 = vmul.f32 %v1890, %v1905
    %v1919 = vmul.f32 %v1891, %v1910
    %v1920 = vmul.f32 %v1892, %v1915
    %1921 = vset.pattern.permute.xlu0 1
    %1922 = vperm.xlu0 %1921, %v1893
    %v1923 = vpop.permute.xlu0 %1922
    %1925 = vset.pattern.permute.xlu0 1
    %1926 = vperm.xlu0 %1925, %v1894
    %v1927 = vpop.permute.xlu0 %1926
    %1929 = vset.pattern.permute.xlu0 1
    %1930 = vperm.xlu0 %1929, %v1895
    %v1931 = vpop.permute.xlu0 %1930
    %1933 = vset.pattern.permute.xlu0 1
    %1934 = vperm.xlu0 %1933, %v1896
    %v1935 = vpop.permute.xlu0 %1934
    %v1937 = vadd.f32 %v1917, %v1923
    %v1938 = vadd.f32 %v1918, %v1927
    %v1939 = vadd.f32 %v1919, %v1931
    %v1940 = vadd.f32 %v1920, %v1935
    %v1941 = vmax.f32 %v1937, 0.0
    %v1942 = vmax.f32 %v1938, 0.0
    %v1943 = vmax.f32 %v1939, 0.0
    %v1944 = vmax.f32 %v1940, 0.0
    %v1945 = vld [vmem:[#allocation2 + $0x1e8] sm:$0xf]
    %v1946 = vld [vmem:[#allocation2 + $0x1ec] sm:$0xf]
    %v1947 = vld [vmem:[#allocation2 + $0x1f0] sm:$0xf]
    %v1948 = vld [vmem:[#allocation2 + $0x1f4] sm:$0xf]
    %v1949 = vpack.c.bf16 %v1942, %v1941
    %v1950 = vpack.c.bf16 %v1944, %v1943
    %v1955 = vunpack.c.l.b16 %v1945
    %v1956 = vunpack.c.l.b16 %v1946
    %v1957 = vunpack.c.l.b16 %v1947
    %v1958 = vunpack.c.l.b16 %v1948
    %v1959 = vpack.c.b16 %v1956, %v1955
    %v1960 = vpack.c.b16 %v1958, %v1957
    %v1962 = vsel %vm799, %v1959, 0
    %v1965 = vsel %vm799, %v1960, 0
    %1967 = vmatprep.subr.bf16.mxu0 0
    %1968 = vmatpush1.bf16.msra.mxu0 %v1949
    %1969 = vmatprep.subr.bf16.mxu0 0
    %1970 = vmatpush1.bf16.msra.mxu0 %v1950
    %1971 = vmatprep.subr.bf16.mxu0 0
    %1972 = vmatpush1.bf16.msra.mxu0 0
    %1973 = vmatprep.subr.bf16.mxu0 0
    %1974 = vmatpush1.bf16.msra.mxu0 0
    %1975 = vmatprep.subr.bf16.mxu0 0
    %1976 = vmatpush1.bf16.msra.mxu0 0
    %1977 = vmatprep.subr.bf16.mxu0 0
    %1978 = vmatpush1.bf16.msra.mxu0 0
    %1979 = vmatprep.subr.bf16.mxu0 0
    %1980 = vmatpush1.bf16.msra.mxu0 0
    %1981 = vmatprep.subr.bf16.mxu0 0
    %1982 = vmatpush1.bf16.msra.mxu0 0
    %1983 = vmatprep.subr.bf16.mxu0 0
    %1984 = vmatpush1.bf16.msra.mxu0 0
    %1985 = vmatprep.subr.bf16.mxu0 0
    %1986 = vmatpush1.bf16.msra.mxu0 0
    %1987 = vmatprep.subr.bf16.mxu0 0
    %1988 = vmatpush1.bf16.msra.mxu0 0
    %1989 = vmatprep.subr.bf16.mxu0 0
    %1990 = vmatpush1.bf16.msra.mxu0 0
    %1991 = vmatprep.subr.bf16.mxu0 0
    %1992 = vmatpush1.bf16.msra.mxu0 0
    %1993 = vmatprep.subr.bf16.mxu0 0
    %1994 = vmatpush1.bf16.msra.mxu0 0
    %1995 = vmatprep.subr.bf16.mxu0 0
    %1996 = vmatpush1.bf16.msra.mxu0 0
    %1997 = vmatprep.subr.bf16.mxu0 0
    %1998 = vmatpush1.bf16.msra.mxu0 0
    %1999 = vmatprep.mubr.bf16.mxu0 0
    %2000 = vmatmul.mubr.bf16.gmra.mrb[0].mxu0 %v1962
    %v2001 = vpop.f32.mrb[0].mxu0
    %v2002 = vadd.f32 0.0, %v2001
    %v2003 = vpop.f32.mrb[0].mxu0
    %v2004 = vpop.f32.mrb[0].mxu0
    %v2005 = vadd.f32 0.0, %v2004
    %v2006 = vpop.f32.mrb[0].mxu0
    %2007 = vmatprep.mubr.bf16.mxu0 0
    %2008 = vmatmul.mubr.bf16.gmra.mrb[0].mxu0 %v1965
    %v2009 = vpop.f32.mrb[0].mxu0
    %v2010 = vadd.f32 0.0, %v2009
    %v2011 = vpop.f32.mrb[0].mxu0
    %v2012 = vpop.f32.mrb[0].mxu0
    %v2013 = vadd.f32 0.0, %v2012
    %v2014 = vpop.f32.mrb[0].mxu0
    %2015 = vdwg.mxu0
    %v2016 = vld [vmem:[%s2 + $0xb8] sm:$0xff]
    %v2017 = vld [vmem:[%s2 + $0xc0] sm:$0xff]
    %v2018 = vld [vmem:[%s2 + $0xc8] sm:$0xff]
    %v2019 = vld [vmem:[%s2 + $0xd0] sm:$0xff]
    %2021 = vset.pattern.permute.xlu0 0
    %2022 = vperm.xlu0 %2021, %v2016
    %v2023 = vpop.permute.xlu0 %2022
    %2026 = vset.pattern.permute.xlu0 0
    %2027 = vperm.xlu0 %2026, %v2017
    %v2028 = vpop.permute.xlu0 %2027
    %2031 = vset.pattern.permute.xlu0 0
    %2032 = vperm.xlu0 %2031, %v2018
    %v2033 = vpop.permute.xlu0 %2032
    %2036 = vset.pattern.permute.xlu0 0
    %2037 = vperm.xlu0 %2036, %v2019
    %v2038 = vpop.permute.xlu0 %2037
    %v2040 = vmul.f32 %v2002, %v2023
    %v2041 = vmul.f32 %v2005, %v2028
    %v2042 = vmul.f32 %v2010, %v2033
    %v2043 = vmul.f32 %v2013, %v2038
    %2044 = vset.pattern.permute.xlu0 1
    %2045 = vperm.xlu0 %2044, %v2016
    %v2046 = vpop.permute.xlu0 %2045
    %2048 = vset.pattern.permute.xlu0 1
    %2049 = vperm.xlu0 %2048, %v2017
    %v2050 = vpop.permute.xlu0 %2049
    %2052 = vset.pattern.permute.xlu0 1
    %2053 = vperm.xlu0 %2052, %v2018
    %v2054 = vpop.permute.xlu0 %2053
    %2056 = vset.pattern.permute.xlu0 1
    %2057 = vperm.xlu0 %2056, %v2019
    %v2058 = vpop.permute.xlu0 %2057
    %v2060 = vadd.f32 %v2040, %v2046
    %v2061 = vadd.f32 %v2041, %v2050
    %v2062 = vadd.f32 %v2042, %v2054
    %v2063 = vadd.f32 %v2043, %v2058
    %v2064 = vmax.f32 %v2060, 0.0
    %v2065 = vmax.f32 %v2061, 0.0
    %v2066 = vmax.f32 %v2062, 0.0
    %v2067 = vmax.f32 %v2063, 0.0
    %v2068 = vpack.c.bf16 %v2065, %v2064
    %v2069 = vpack.c.bf16 %v2067, %v2066
    %v2070 = vld [vmem:[#allocation2] sm:$0xf]
    %v2072 = vsel %vm721, %v2068, 0
    %v2075 = vsel %vm721, %v2069, 0
    %v2078 = vsel %vm725, %v2070, 0
    %2080 = vmatprep.subr.bf16.mxu0 0
    %2081 = vmatpush1.bf16.msra.mxu0 %v2078
    %2082 = vmatprep.subr.bf16.mxu0 0
    %2083 = vmatpush1.bf16.msra.mxu0 0
    %2084 = vmatprep.subr.bf16.mxu0 0
    %2085 = vmatpush1.bf16.msra.mxu0 0
    %2086 = vmatprep.subr.bf16.mxu0 0
    %2087 = vmatpush1.bf16.msra.mxu0 0
    %2088 = vmatprep.subr.bf16.mxu0 0
    %2089 = vmatpush1.bf16.msra.mxu0 0
    %2090 = vmatprep.subr.bf16.mxu0 0
    %2091 = vmatpush1.bf16.msra.mxu0 0
    %2092 = vmatprep.subr.bf16.mxu0 0
    %2093 = vmatpush1.bf16.msra.mxu0 0
    %2094 = vmatprep.subr.bf16.mxu0 0
    %2095 = vmatpush1.bf16.msra.mxu0 0
    %2096 = vmatprep.subr.bf16.mxu0 0
    %2097 = vmatpush1.bf16.msra.mxu0 0
    %2098 = vmatprep.subr.bf16.mxu0 0
    %2099 = vmatpush1.bf16.msra.mxu0 0
    %2100 = vmatprep.subr.bf16.mxu0 0
    %2101 = vmatpush1.bf16.msra.mxu0 0
    %2102 = vmatprep.subr.bf16.mxu0 0
    %2103 = vmatpush1.bf16.msra.mxu0 0
    %2104 = vmatprep.subr.bf16.mxu0 0
    %2105 = vmatpush1.bf16.msra.mxu0 0
    %2106 = vmatprep.subr.bf16.mxu0 0
    %2107 = vmatpush1.bf16.msra.mxu0 0
    %2108 = vmatprep.subr.bf16.mxu0 0
    %2109 = vmatpush1.bf16.msra.mxu0 0
    %2110 = vmatprep.subr.bf16.mxu0 0
    %2111 = vmatpush1.bf16.msra.mxu0 0
    %2112 = vmatprep.mubr.bf16.mxu0 0
    %2113 = vmatmul.mubr.bf16.gmra.mrb[0].mxu0 %v2072
    %v2114 = vpop.f32.mrb[0].mxu0
    %v2115 = vadd.f32 0.0, %v2114
    %v2116 = vpop.f32.mrb[0].mxu0
    %v2117 = vpop.f32.mrb[0].mxu0
    %v2118 = vadd.f32 0.0, %v2117
    %v2119 = vpop.f32.mrb[0].mxu0
    %2120 = vmatprep.mubr.bf16.mxu0 0
    %2121 = vmatmul.mubr.bf16.gmra.mrb[0].mxu0 %v2075
    %v2122 = vpop.f32.mrb[0].mxu0
    %v2123 = vadd.f32 0.0, %v2122
    %v2124 = vpop.f32.mrb[0].mxu0
    %v2125 = vpop.f32.mrb[0].mxu0
    %v2126 = vadd.f32 0.0, %v2125
    %v2127 = vpop.f32.mrb[0].mxu0
    %2128 = vdwg.mxu0
    %v2129 = vpack.c.bf16 %v2118, %v2115
    %v2130 = vpack.c.bf16 %v2126, %v2123
    %v2131 = vld [vmem:[#allocation2 + $0x4] sm:$0xf]
    %v2133 = vsel %vm725, %v2131, 0
    %2135 = vmatprep.subr.bf16.mxu0 0
    %2136 = vmatpush1.bf16.msra.mxu0 %v2133
    %2137 = vmatprep.subr.bf16.mxu0 0
    %2138 = vmatpush1.bf16.msra.mxu0 0
    %2139 = vmatprep.subr.bf16.mxu0 0
    %2140 = vmatpush1.bf16.msra.mxu0 0
    %2141 = vmatprep.subr.bf16.mxu0 0
    %2142 = vmatpush1.bf16.msra.mxu0 0
    %2143 = vmatprep.subr.bf16.mxu0 0
    %2144 = vmatpush1.bf16.msra.mxu0 0
    %2145 = vmatprep.subr.bf16.mxu0 0
    %2146 = vmatpush1.bf16.msra.mxu0 0
    %2147 = vmatprep.subr.bf16.mxu0 0
    %2148 = vmatpush1.bf16.msra.mxu0 0
    %2149 = vmatprep.subr.bf16.mxu0 0
    %2150 = vmatpush1.bf16.msra.mxu0 0
    %2151 = vmatprep.subr.bf16.mxu0 0
    %2152 = vmatpush1.bf16.msra.mxu0 0
    %2153 = vmatprep.subr.bf16.mxu0 0
    %2154 = vmatpush1.bf16.msra.mxu0 0
    %2155 = vmatprep.subr.bf16.mxu0 0
    %2156 = vmatpush1.bf16.msra.mxu0 0
    %2157 = vmatprep.subr.bf16.mxu0 0
    %2158 = vmatpush1.bf16.msra.mxu0 0
    %2159 = vmatprep.subr.bf16.mxu0 0
    %2160 = vmatpush1.bf16.msra.mxu0 0
    %2161 = vmatprep.subr.bf16.mxu0 0
    %2162 = vmatpush1.bf16.msra.mxu0 0
    %2163 = vmatprep.subr.bf16.mxu0 0
    %2164 = vmatpush1.bf16.msra.mxu0 0
    %2165 = vmatprep.subr.bf16.mxu0 0
    %2166 = vmatpush1.bf16.msra.mxu0 0
    %2167 = vmatprep.mubr.bf16.mxu0 0
    %2168 = vmatmul.mubr.bf16.gmra.mrb[0].mxu0 %v2072
    %v2169 = vpop.f32.mrb[0].mxu0
    %v2170 = vadd.f32 0.0, %v2169
    %v2171 = vpop.f32.mrb[0].mxu0
    %v2172 = vpop.f32.mrb[0].mxu0
    %v2173 = vadd.f32 0.0, %v2172
    %v2174 = vpop.f32.mrb[0].mxu0
    %2175 = vmatprep.mubr.bf16.mxu0 0
    %2176 = vmatmul.mubr.bf16.gmra.mrb[0].mxu0 %v2075
    %v2177 = vpop.f32.mrb[0].mxu0
    %v2178 = vadd.f32 0.0, %v2177
    %v2179 = vpop.f32.mrb[0].mxu0
    %v2180 = vpop.f32.mrb[0].mxu0
    %v2181 = vadd.f32 0.0, %v2180
    %v2182 = vpop.f32.mrb[0].mxu0
    %2183 = vdwg.mxu0
    %v2184 = vpack.c.bf16 %v2173, %v2170
    %v2185 = vpack.c.bf16 %v2181, %v2178
    %v2186 = vld [vmem:[#allocation2 + $0x228] sm:$0xf]
    %v2187 = vld [vmem:[#allocation2 + $0x22c] sm:$0xf]
    %v2188 = vld [vmem:[#allocation2 + $0x230] sm:$0xf]
    %v2189 = vld [vmem:[#allocation2 + $0x234] sm:$0xf]
    %v2190 = vld [vmem:[#allocation2 + $0x218] sm:$0xf]
    %v2191 = vld [vmem:[#allocation2 + $0x21c] sm:$0xf]
    %v2192 = vld [vmem:[#allocation2 + $0x220] sm:$0xf]
    %v2193 = vld [vmem:[#allocation2 + $0x224] sm:$0xf]
    %v2198 = vunpack.c.l.b16 %v2190
    %v2199 = vunpack.c.l.b16 %v2191
    %v2200 = vunpack.c.l.b16 %v2192
    %v2201 = vunpack.c.l.b16 %v2193
    %v2202 = vpack.c.b16 %v2199, %v2198
    %v2203 = vpack.c.b16 %v2201, %v2200
    %v2205 = vsel %vm799, %v2202, 0
    %v2208 = vsel %vm799, %v2203, 0
    %2210 = vmatprep.subr.bf16.mxu0 0
    %2211 = vmatpush1.bf16.msra.mxu0 %v2129
    %2212 = vmatprep.subr.bf16.mxu0 0
    %2213 = vmatpush1.bf16.msra.mxu0 %v2130
    %2214 = vmatprep.subr.bf16.mxu0 0
    %2215 = vmatpush1.bf16.msra.mxu0 0
    %2216 = vmatprep.subr.bf16.mxu0 0
    %2217 = vmatpush1.bf16.msra.mxu0 0
    %2218 = vmatprep.subr.bf16.mxu0 0
    %2219 = vmatpush1.bf16.msra.mxu0 0
    %2220 = vmatprep.subr.bf16.mxu0 0
    %2221 = vmatpush1.bf16.msra.mxu0 0
    %2222 = vmatprep.subr.bf16.mxu0 0
    %2223 = vmatpush1.bf16.msra.mxu0 0
    %2224 = vmatprep.subr.bf16.mxu0 0
    %2225 = vmatpush1.bf16.msra.mxu0 0
    %2226 = vmatprep.subr.bf16.mxu0 0
    %2227 = vmatpush1.bf16.msra.mxu0 0
    %2228 = vmatprep.subr.bf16.mxu0 0
    %2229 = vmatpush1.bf16.msra.mxu0 0
    %2230 = vmatprep.subr.bf16.mxu0 0
    %2231 = vmatpush1.bf16.msra.mxu0 0
    %2232 = vmatprep.subr.bf16.mxu0 0
    %2233 = vmatpush1.bf16.msra.mxu0 0
    %2234 = vmatprep.subr.bf16.mxu0 0
    %2235 = vmatpush1.bf16.msra.mxu0 0
    %2236 = vmatprep.subr.bf16.mxu0 0
    %2237 = vmatpush1.bf16.msra.mxu0 0
    %2238 = vmatprep.subr.bf16.mxu0 0
    %2239 = vmatpush1.bf16.msra.mxu0 0
    %2240 = vmatprep.subr.bf16.mxu0 0
    %2241 = vmatpush1.bf16.msra.mxu0 0
    %2242 = vmatprep.mubr.bf16.mxu0 0
    %2243 = vmatmul.mubr.bf16.gmra.mrb[0].mxu0 %v2205
    %v2244 = vpop.f32.mrb[0].mxu0
    %v2245 = vadd.f32 0.0, %v2244
    %v2246 = vpop.f32.mrb[0].mxu0
    %v2247 = vpop.f32.mrb[0].mxu0
    %v2248 = vadd.f32 0.0, %v2247
    %v2249 = vpop.f32.mrb[0].mxu0
    %2250 = vmatprep.mubr.bf16.mxu0 0
    %2251 = vmatmul.mubr.bf16.gmra.mrb[0].mxu0 %v2208
    %v2252 = vpop.f32.mrb[0].mxu0
    %v2253 = vadd.f32 0.0, %v2252
    %v2254 = vpop.f32.mrb[0].mxu0
    %v2255 = vpop.f32.mrb[0].mxu0
    %v2256 = vadd.f32 0.0, %v2255
    %v2257 = vpop.f32.mrb[0].mxu0
    %2258 = vdwg.mxu0
    %v2263 = vunpack.c.l.b16 %v2186
    %v2264 = vunpack.c.l.b16 %v2187
    %v2265 = vunpack.c.l.b16 %v2188
    %v2266 = vunpack.c.l.b16 %v2189
    %v2267 = vpack.c.b16 %v2264, %v2263
    %v2268 = vpack.c.b16 %v2266, %v2265
    %v2270 = vsel %vm799, %v2267, 0
    %v2273 = vsel %vm799, %v2268, 0
    %2275 = vmatprep.subr.bf16.mxu0 0
    %2276 = vmatpush1.bf16.msra.mxu0 %v2068
    %2277 = vmatprep.subr.bf16.mxu0 0
    %2278 = vmatpush1.bf16.msra.mxu0 %v2069
    %2279 = vmatprep.subr.bf16.mxu0 0
    %2280 = vmatpush1.bf16.msra.mxu0 0
    %2281 = vmatprep.subr.bf16.mxu0 0
    %2282 = vmatpush1.bf16.msra.mxu0 0
    %2283 = vmatprep.subr.bf16.mxu0 0
    %2284 = vmatpush1.bf16.msra.mxu0 0
    %2285 = vmatprep.subr.bf16.mxu0 0
    %2286 = vmatpush1.bf16.msra.mxu0 0
    %2287 = vmatprep.subr.bf16.mxu0 0
    %2288 = vmatpush1.bf16.msra.mxu0 0
    %2289 = vmatprep.subr.bf16.mxu0 0
    %2290 = vmatpush1.bf16.msra.mxu0 0
    %2291 = vmatprep.subr.bf16.mxu0 0
    %2292 = vmatpush1.bf16.msra.mxu0 0
    %2293 = vmatprep.subr.bf16.mxu0 0
    %2294 = vmatpush1.bf16.msra.mxu0 0
    %2295 = vmatprep.subr.bf16.mxu0 0
    %2296 = vmatpush1.bf16.msra.mxu0 0
    %2297 = vmatprep.subr.bf16.mxu0 0
    %2298 = vmatpush1.bf16.msra.mxu0 0
    %2299 = vmatprep.subr.bf16.mxu0 0
    %2300 = vmatpush1.bf16.msra.mxu0 0
    %2301 = vmatprep.subr.bf16.mxu0 0
    %2302 = vmatpush1.bf16.msra.mxu0 0
    %2303 = vmatprep.subr.bf16.mxu0 0
    %2304 = vmatpush1.bf16.msra.mxu0 0
    %2305 = vmatprep.subr.bf16.mxu0 0
    %2306 = vmatpush1.bf16.msra.mxu0 0
    %2307 = vmatprep.mubr.bf16.mxu0 0
    %2308 = vmatmul.mubr.bf16.gmra.mrb[0].mxu0 %v2270
    %v2309 = vpop.f32.mrb[0].mxu0
    %v2310 = vadd.f32 %v2245, %v2309
    %v2311 = vpop.f32.mrb[0].mxu0
    %v2312 = vpop.f32.mrb[0].mxu0
    %v2313 = vadd.f32 %v2248, %v2312
    %v2314 = vpop.f32.mrb[0].mxu0
    %2315 = vmatprep.mubr.bf16.mxu0 0
    %2316 = vmatmul.mubr.bf16.gmra.mrb[0].mxu0 %v2273
    %v2317 = vpop.f32.mrb[0].mxu0
    %v2318 = vadd.f32 %v2253, %v2317
    %v2319 = vpop.f32.mrb[0].mxu0
    %v2320 = vpop.f32.mrb[0].mxu0
    %v2321 = vadd.f32 %v2256, %v2320
    %v2322 = vpop.f32.mrb[0].mxu0
    %2323 = vdwg.mxu0
    %v2324 = vld [vmem:[#allocation2 + $0x238] sm:$0xf]
    %v2325 = vld [vmem:[#allocation2 + $0x23c] sm:$0xf]
    %v2326 = vld [vmem:[#allocation2 + $0x240] sm:$0xf]
    %v2327 = vld [vmem:[#allocation2 + $0x244] sm:$0xf]
    %v2332 = vunpack.c.l.b16 %v2324
    %v2333 = vunpack.c.l.b16 %v2325
    %v2334 = vunpack.c.l.b16 %v2326
    %v2335 = vunpack.c.l.b16 %v2327
    %v2336 = vpack.c.b16 %v2333, %v2332
    %v2337 = vpack.c.b16 %v2335, %v2334
    %v2339 = vsel %vm799, %v2336, 0
    %v2342 = vsel %vm799, %v2337, 0
    %2344 = vmatprep.subr.bf16.mxu0 0
    %2345 = vmatpush1.bf16.msra.mxu0 %v2184
    %2346 = vmatprep.subr.bf16.mxu0 0
    %2347 = vmatpush1.bf16.msra.mxu0 %v2185
    %2348 = vmatprep.subr.bf16.mxu0 0
    %2349 = vmatpush1.bf16.msra.mxu0 0
    %2350 = vmatprep.subr.bf16.mxu0 0
    %2351 = vmatpush1.bf16.msra.mxu0 0
    %2352 = vmatprep.subr.bf16.mxu0 0
    %2353 = vmatpush1.bf16.msra.mxu0 0
    %2354 = vmatprep.subr.bf16.mxu0 0
    %2355 = vmatpush1.bf16.msra.mxu0 0
    %2356 = vmatprep.subr.bf16.mxu0 0
    %2357 = vmatpush1.bf16.msra.mxu0 0
    %2358 = vmatprep.subr.bf16.mxu0 0
    %2359 = vmatpush1.bf16.msra.mxu0 0
    %2360 = vmatprep.subr.bf16.mxu0 0
    %2361 = vmatpush1.bf16.msra.mxu0 0
    %2362 = vmatprep.subr.bf16.mxu0 0
    %2363 = vmatpush1.bf16.msra.mxu0 0
    %2364 = vmatprep.subr.bf16.mxu0 0
    %2365 = vmatpush1.bf16.msra.mxu0 0
    %2366 = vmatprep.subr.bf16.mxu0 0
    %2367 = vmatpush1.bf16.msra.mxu0 0
    %2368 = vmatprep.subr.bf16.mxu0 0
    %2369 = vmatpush1.bf16.msra.mxu0 0
    %2370 = vmatprep.subr.bf16.mxu0 0
    %2371 = vmatpush1.bf16.msra.mxu0 0
    %2372 = vmatprep.subr.bf16.mxu0 0
    %2373 = vmatpush1.bf16.msra.mxu0 0
    %2374 = vmatprep.subr.bf16.mxu0 0
    %2375 = vmatpush1.bf16.msra.mxu0 0
    %2376 = vmatprep.mubr.bf16.mxu0 0
    %2377 = vmatmul.mubr.bf16.gmra.mrb[0].mxu0 %v2339
    %v2378 = vpop.f32.mrb[0].mxu0
    %v2379 = vadd.f32 0.0, %v2378
    %v2380 = vpop.f32.mrb[0].mxu0
    %v2381 = vpop.f32.mrb[0].mxu0
    %v2382 = vadd.f32 0.0, %v2381
    %v2383 = vpop.f32.mrb[0].mxu0
    %2384 = vmatprep.mubr.bf16.mxu0 0
    %2385 = vmatmul.mubr.bf16.gmra.mrb[0].mxu0 %v2342
    %v2386 = vpop.f32.mrb[0].mxu0
    %v2387 = vadd.f32 0.0, %v2386
    %v2388 = vpop.f32.mrb[0].mxu0
    %v2389 = vpop.f32.mrb[0].mxu0
    %v2390 = vadd.f32 0.0, %v2389
    %v2391 = vpop.f32.mrb[0].mxu0
    %2392 = vdwg.mxu0
    %v2393 = vadd.f32 %v2310, %v2379
    %v2394 = vadd.f32 %v2313, %v2382
    %v2395 = vadd.f32 %v2318, %v2387
    %v2396 = vadd.f32 %v2321, %v2390
    %v2397 = vld [vmem:[%s2 + $0xd8] sm:$0xff]
    %v2398 = vld [vmem:[%s2 + $0xe0] sm:$0xff]
    %v2399 = vld [vmem:[%s2 + $0xe8] sm:$0xff]
    %v2400 = vld [vmem:[%s2 + $0xf0] sm:$0xff]
    %2402 = vset.pattern.permute.xlu0 0
    %2403 = vperm.xlu0 %2402, %v2397
    %v2404 = vpop.permute.xlu0 %2403
    %2407 = vset.pattern.permute.xlu0 0
    %2408 = vperm.xlu0 %2407, %v2398
    %v2409 = vpop.permute.xlu0 %2408
    %2412 = vset.pattern.permute.xlu0 0
    %2413 = vperm.xlu0 %2412, %v2399
    %v2414 = vpop.permute.xlu0 %2413
    %2417 = vset.pattern.permute.xlu0 0
    %2418 = vperm.xlu0 %2417, %v2400
    %v2419 = vpop.permute.xlu0 %2418
    %v2421 = vmul.f32 %v2393, %v2404
    %v2422 = vmul.f32 %v2394, %v2409
    %v2423 = vmul.f32 %v2395, %v2414
    %v2424 = vmul.f32 %v2396, %v2419
    %2425 = vset.pattern.permute.xlu0 1
    %2426 = vperm.xlu0 %2425, %v2397
    %v2427 = vpop.permute.xlu0 %2426
    %2429 = vset.pattern.permute.xlu0 1
    %2430 = vperm.xlu0 %2429, %v2398
    %v2431 = vpop.permute.xlu0 %2430
    %2433 = vset.pattern.permute.xlu0 1
    %2434 = vperm.xlu0 %2433, %v2399
    %v2435 = vpop.permute.xlu0 %2434
    %2437 = vset.pattern.permute.xlu0 1
    %2438 = vperm.xlu0 %2437, %v2400
    %v2439 = vpop.permute.xlu0 %2438
    %v2441 = vadd.f32 %v2421, %v2427
    %v2442 = vadd.f32 %v2422, %v2431
    %v2443 = vadd.f32 %v2423, %v2435
    %v2444 = vadd.f32 %v2424, %v2439
    %v2445 = vmax.f32 %v2441, 0.0
    %v2446 = vmax.f32 %v2442, 0.0
    %v2447 = vmax.f32 %v2443, 0.0
    %v2448 = vmax.f32 %v2444, 0.0
    %v2449 = vld [vmem:[#allocation2 + $0x248] sm:$0xf]
    %v2450 = vld [vmem:[#allocation2 + $0x24c] sm:$0xf]
    %v2451 = vld [vmem:[#allocation2 + $0x250] sm:$0xf]
    %v2452 = vld [vmem:[#allocation2 + $0x254] sm:$0xf]
    %v2453 = vld [vmem:[#allocation2 + $0x258] sm:$0xf]
    %v2454 = vld [vmem:[#allocation2 + $0x25c] sm:$0xf]
    %v2455 = vld [vmem:[#allocation2 + $0x260] sm:$0xf]
    %v2456 = vld [vmem:[#allocation2 + $0x264] sm:$0xf]
    %v2457 = vpack.c.bf16 %v2446, %v2445
    %v2458 = vpack.c.bf16 %v2448, %v2447
    %v2459 = vld [vmem:[#allocation2 + $0x1f8] sm:$0xf]
    %v2460 = vld [vmem:[#allocation2 + $0x1fc] sm:$0xf]
    %v2461 = vld [vmem:[#allocation2 + $0x200] sm:$0xf]
    %v2462 = vld [vmem:[#allocation2 + $0x204] sm:$0xf]
    %v2463 = vld [vmem:[#allocation2 + $0x208] sm:$0xf]
    %v2464 = vld [vmem:[#allocation2 + $0x20c] sm:$0xf]
    %v2465 = vld [vmem:[#allocation2 + $0x210] sm:$0xf]
    %v2466 = vld [vmem:[#allocation2 + $0x214] sm:$0xf]
    %v2467 = vpack.c.bf16 %v1890, %v1889
    %v2468 = vpack.c.bf16 %v1892, %v1891
    %v2477 = vunpack.c.l.b16 %v2459
    %v2478 = vunpack.c.l.b16 %v2460
    %v2479 = vunpack.c.l.b16 %v2461
    %v2480 = vunpack.c.l.b16 %v2462
    %v2481 = vunpack.c.l.b16 %v2463
    %v2482 = vunpack.c.l.b16 %v2464
    %v2483 = vunpack.c.l.b16 %v2465
    %v2484 = vunpack.c.l.b16 %v2466
    %v2485 = vpack.c.b16 %v2478, %v2477
    %v2486 = vpack.c.b16 %v2480, %v2479
    %v2487 = vpack.c.b16 %v2482, %v2481
    %v2488 = vpack.c.b16 %v2484, %v2483
    %v2490 = vsel %vm799, %v2485, 0
    %v2493 = vsel %vm799, %v2486, 0
    %v2496 = vsel %vm799, %v2487, 0
    %v2499 = vsel %vm799, %v2488, 0
    %2501 = vmatprep.subr.bf16.mxu0 0
    %2502 = vmatpush1.bf16.msra.mxu0 %v2467
    %2503 = vmatprep.subr.bf16.mxu0 0
    %2504 = vmatpush1.bf16.msra.mxu0 %v2468
    %2505 = vmatprep.subr.bf16.mxu0 0
    %2506 = vmatpush1.bf16.msra.mxu0 0
    %2507 = vmatprep.subr.bf16.mxu0 0
    %2508 = vmatpush1.bf16.msra.mxu0 0
    %2509 = vmatprep.subr.bf16.mxu0 0
    %2510 = vmatpush1.bf16.msra.mxu0 0
    %2511 = vmatprep.subr.bf16.mxu0 0
    %2512 = vmatpush1.bf16.msra.mxu0 0
    %2513 = vmatprep.subr.bf16.mxu0 0
    %2514 = vmatpush1.bf16.msra.mxu0 0
    %2515 = vmatprep.subr.bf16.mxu0 0
    %2516 = vmatpush1.bf16.msra.mxu0 0
    %2517 = vmatprep.subr.bf16.mxu0 0
    %2518 = vmatpush1.bf16.msra.mxu0 0
    %2519 = vmatprep.subr.bf16.mxu0 0
    %2520 = vmatpush1.bf16.msra.mxu0 0
    %2521 = vmatprep.subr.bf16.mxu0 0
    %2522 = vmatpush1.bf16.msra.mxu0 0
    %2523 = vmatprep.subr.bf16.mxu0 0
    %2524 = vmatpush1.bf16.msra.mxu0 0
    %2525 = vmatprep.subr.bf16.mxu0 0
    %2526 = vmatpush1.bf16.msra.mxu0 0
    %2527 = vmatprep.subr.bf16.mxu0 0
    %2528 = vmatpush1.bf16.msra.mxu0 0
    %2529 = vmatprep.subr.bf16.mxu0 0
    %2530 = vmatpush1.bf16.msra.mxu0 0
    %2531 = vmatprep.subr.bf16.mxu0 0
    %2532 = vmatpush1.bf16.msra.mxu0 0
    %2533 = vmatprep.mubr.bf16.mxu0 0
    %2534 = vmatmul.mubr.bf16.gmra.mrb[0].mxu0 %v2490
    %v2535 = vpop.f32.mrb[0].mxu0
    %v2536 = vadd.f32 0.0, %v2535
    %v2537 = vpop.f32.mrb[0].mxu0
    %v2538 = vpop.f32.mrb[0].mxu0
    %v2539 = vadd.f32 0.0, %v2538
    %v2540 = vpop.f32.mrb[0].mxu0
    %2541 = vmatprep.mubr.bf16.mxu0 0
    %2542 = vmatmul.mubr.bf16.gmra.mrb[0].mxu0 %v2493
    %v2543 = vpop.f32.mrb[0].mxu0
    %v2544 = vadd.f32 0.0, %v2543
    %v2545 = vpop.f32.mrb[0].mxu0
    %v2546 = vpop.f32.mrb[0].mxu0
    %v2547 = vadd.f32 0.0, %v2546
    %v2548 = vpop.f32.mrb[0].mxu0
    %2549 = vmatprep.mubr.bf16.mxu0 0
    %2550 = vmatmul.mubr.bf16.gmra.mrb[0].mxu0 %v2496
    %v2551 = vpop.f32.mrb[0].mxu0
    %v2552 = vadd.f32 0.0, %v2551
    %v2553 = vpop.f32.mrb[0].mxu0
    %v2554 = vpop.f32.mrb[0].mxu0
    %v2555 = vadd.f32 0.0, %v2554
    %v2556 = vpop.f32.mrb[0].mxu0
    %2557 = vmatprep.mubr.bf16.mxu0 0
    %2558 = vmatmul.mubr.bf16.gmra.mrb[0].mxu0 %v2499
    %v2559 = vpop.f32.mrb[0].mxu0
    %v2560 = vadd.f32 0.0, %v2559
    %v2561 = vpop.f32.mrb[0].mxu0
    %v2562 = vpop.f32.mrb[0].mxu0
    %v2563 = vadd.f32 0.0, %v2562
    %v2564 = vpop.f32.mrb[0].mxu0
    %2565 = vdwg.mxu0
    %v2574 = vunpack.c.l.b16 %v2449
    %v2575 = vunpack.c.l.b16 %v2450
    %v2576 = vunpack.c.l.b16 %v2451
    %v2577 = vunpack.c.l.b16 %v2452
    %v2578 = vunpack.c.l.b16 %v2453
    %v2579 = vunpack.c.l.b16 %v2454
    %v2580 = vunpack.c.l.b16 %v2455
    %v2581 = vunpack.c.l.b16 %v2456
    %v2582 = vpack.c.b16 %v2575, %v2574
    %v2583 = vpack.c.b16 %v2577, %v2576
    %v2584 = vpack.c.b16 %v2579, %v2578
    %v2585 = vpack.c.b16 %v2581, %v2580
    %v2587 = vsel %vm799, %v2582, 0
    %v2590 = vsel %vm799, %v2583, 0
    %v2593 = vsel %vm799, %v2584, 0
    %v2596 = vsel %vm799, %v2585, 0
    %2598 = vmatprep.subr.bf16.mxu0 0
    %2599 = vmatpush1.bf16.msra.mxu0 %v2457
    %2600 = vmatprep.subr.bf16.mxu0 0
    %2601 = vmatpush1.bf16.msra.mxu0 %v2458
    %2602 = vmatprep.subr.bf16.mxu0 0
    %2603 = vmatpush1.bf16.msra.mxu0 0
    %2604 = vmatprep.subr.bf16.mxu0 0
    %2605 = vmatpush1.bf16.msra.mxu0 0
    %2606 = vmatprep.subr.bf16.mxu0 0
    %2607 = vmatpush1.bf16.msra.mxu0 0
    %2608 = vmatprep.subr.bf16.mxu0 0
    %2609 = vmatpush1.bf16.msra.mxu0 0
    %2610 = vmatprep.subr.bf16.mxu0 0
    %2611 = vmatpush1.bf16.msra.mxu0 0
    %2612 = vmatprep.subr.bf16.mxu0 0
    %2613 = vmatpush1.bf16.msra.mxu0 0
    %2614 = vmatprep.subr.bf16.mxu0 0
    %2615 = vmatpush1.bf16.msra.mxu0 0
    %2616 = vmatprep.subr.bf16.mxu0 0
    %2617 = vmatpush1.bf16.msra.mxu0 0
    %2618 = vmatprep.subr.bf16.mxu0 0
    %2619 = vmatpush1.bf16.msra.mxu0 0
    %2620 = vmatprep.subr.bf16.mxu0 0
    %2621 = vmatpush1.bf16.msra.mxu0 0
    %2622 = vmatprep.subr.bf16.mxu0 0
    %2623 = vmatpush1.bf16.msra.mxu0 0
    %2624 = vmatprep.subr.bf16.mxu0 0
    %2625 = vmatpush1.bf16.msra.mxu0 0
    %2626 = vmatprep.subr.bf16.mxu0 0
    %2627 = vmatpush1.bf16.msra.mxu0 0
    %2628 = vmatprep.subr.bf16.mxu0 0
    %2629 = vmatpush1.bf16.msra.mxu0 0
    %2630 = vmatprep.mubr.bf16.mxu0 0
    %2631 = vmatmul.mubr.bf16.gmra.mrb[0].mxu0 %v2587
    %v2632 = vpop.f32.mrb[0].mxu0
    %v2633 = vadd.f32 %v2536, %v2632
    %v2634 = vpop.f32.mrb[0].mxu0
    %v2635 = vpop.f32.mrb[0].mxu0
    %v2636 = vadd.f32 %v2539, %v2635
    %v2637 = vpop.f32.mrb[0].mxu0
    %2638 = vmatprep.mubr.bf16.mxu0 0
    %2639 = vmatmul.mubr.bf16.gmra.mrb[0].mxu0 %v2590
    %v2640 = vpop.f32.mrb[0].mxu0
    %v2641 = vadd.f32 %v2544, %v2640
    %v2642 = vpop.f32.mrb[0].mxu0
    %v2643 = vpop.f32.mrb[0].mxu0
    %v2644 = vadd.f32 %v2547, %v2643
    %v2645 = vpop.f32.mrb[0].mxu0
    %2646 = vmatprep.mubr.bf16.mxu0 0
    %2647 = vmatmul.mubr.bf16.gmra.mrb[0].mxu0 %v2593
    %v2648 = vpop.f32.mrb[0].mxu0
    %v2649 = vadd.f32 %v2552, %v2648
    %v2650 = vpop.f32.mrb[0].mxu0
    %v2651 = vpop.f32.mrb[0].mxu0
    %v2652 = vadd.f32 %v2555, %v2651
    %v2653 = vpop.f32.mrb[0].mxu0
    %2654 = vmatprep.mubr.bf16.mxu0 0
    %2655 = vmatmul.mubr.bf16.gmra.mrb[0].mxu0 %v2596
    %v2656 = vpop.f32.mrb[0].mxu0
    %v2657 = vadd.f32 %v2560, %v2656
    %v2658 = vpop.f32.mrb[0].mxu0
    %v2659 = vpop.f32.mrb[0].mxu0
    %v2660 = vadd.f32 %v2563, %v2659
    %v2661 = vpop.f32.mrb[0].mxu0
    %2662 = vdwg.mxu0
    %v2663 = vld [vmem:[%s2 + $0xf8] sm:$0xff]
    %v2664 = vld [vmem:[%s2 + $0x100] sm:$0xff]
    %v2665 = vld [vmem:[%s2 + $0x108] sm:$0xff]
    %v2666 = vld [vmem:[%s2 + $0x110] sm:$0xff]
    %v2667 = vld [vmem:[%s2 + $0x118] sm:$0xff]
    %v2668 = vld [vmem:[%s2 + $0x120] sm:$0xff]
    %v2669 = vld [vmem:[%s2 + $0x128] sm:$0xff]
    %v2670 = vld [vmem:[%s2 + $0x130] sm:$0xff]
    %2672 = vset.pattern.permute.xlu0 0
    %2673 = vperm.xlu0 %2672, %v2663
    %v2674 = vpop.permute.xlu0 %2673
    %2677 = vset.pattern.permute.xlu0 0
    %2678 = vperm.xlu0 %2677, %v2664
    %v2679 = vpop.permute.xlu0 %2678
    %2682 = vset.pattern.permute.xlu0 0
    %2683 = vperm.xlu0 %2682, %v2665
    %v2684 = vpop.permute.xlu0 %2683
    %2687 = vset.pattern.permute.xlu0 0
    %2688 = vperm.xlu0 %2687, %v2666
    %v2689 = vpop.permute.xlu0 %2688
    %2692 = vset.pattern.permute.xlu0 0
    %2693 = vperm.xlu0 %2692, %v2667
    %v2694 = vpop.permute.xlu0 %2693
    %2697 = vset.pattern.permute.xlu0 0
    %2698 = vperm.xlu0 %2697, %v2668
    %v2699 = vpop.permute.xlu0 %2698
    %2702 = vset.pattern.permute.xlu0 0
    %2703 = vperm.xlu0 %2702, %v2669
    %v2704 = vpop.permute.xlu0 %2703
    %2707 = vset.pattern.permute.xlu0 0
    %2708 = vperm.xlu0 %2707, %v2670
    %v2709 = vpop.permute.xlu0 %2708
    %v2711 = vadd.f32 %v2633, %v2674
    %v2712 = vadd.f32 %v2636, %v2679
    %v2713 = vadd.f32 %v2641, %v2684
    %v2714 = vadd.f32 %v2644, %v2689
    %v2715 = vadd.f32 %v2649, %v2694
    %v2716 = vadd.f32 %v2652, %v2699
    %v2717 = vadd.f32 %v2657, %v2704
    %v2718 = vadd.f32 %v2660, %v2709
    %v2719 = vpack.c.bf16 %v2712, %v2711
    %v2720 = vpack.c.bf16 %v2714, %v2713
    %v2721 = vpack.c.bf16 %v2716, %v2715
    %v2722 = vpack.c.bf16 %v2718, %v2717
    %v2723 = vld [vmem:[#allocation2 + $0x268] sm:$0xf]
    %v2724 = vld [vmem:[#allocation2 + $0x26c] sm:$0xf]
    %v2725 = vld [vmem:[#allocation2 + $0x270] sm:$0xf]
    %v2726 = vld [vmem:[#allocation2 + $0x274] sm:$0xf]
    %v2731 = vunpack.c.l.b16 %v2723
    %v2732 = vunpack.c.l.b16 %v2724
    %v2733 = vunpack.c.l.b16 %v2725
    %v2734 = vunpack.c.l.b16 %v2726
    %v2735 = vpack.c.b16 %v2732, %v2731
    %v2736 = vpack.c.b16 %v2734, %v2733
    %v2738 = vsel %vm250, %v2735, 0
    %v2741 = vsel %vm250, %v2736, 0
    %2743 = vmatprep.subr.bf16.mxu0 0
    %2744 = vmatpush1.bf16.msra.mxu0 %v2719
    %2745 = vmatprep.subr.bf16.mxu0 0
    %2746 = vmatpush1.bf16.msra.mxu0 %v2720
    %2747 = vmatprep.subr.bf16.mxu0 0
    %2748 = vmatpush1.bf16.msra.mxu0 %v2721
    %2749 = vmatprep.subr.bf16.mxu0 0
    %2750 = vmatpush1.bf16.msra.mxu0 %v2722
    %2751 = vmatprep.subr.bf16.mxu0 0
    %2752 = vmatpush1.bf16.msra.mxu0 0
    %2753 = vmatprep.subr.bf16.mxu0 0
    %2754 = vmatpush1.bf16.msra.mxu0 0
    %2755 = vmatprep.subr.bf16.mxu0 0
    %2756 = vmatpush1.bf16.msra.mxu0 0
    %2757 = vmatprep.subr.bf16.mxu0 0
    %2758 = vmatpush1.bf16.msra.mxu0 0
    %2759 = vmatprep.subr.bf16.mxu0 0
    %2760 = vmatpush1.bf16.msra.mxu0 0
    %2761 = vmatprep.subr.bf16.mxu0 0
    %2762 = vmatpush1.bf16.msra.mxu0 0
    %2763 = vmatprep.subr.bf16.mxu0 0
    %2764 = vmatpush1.bf16.msra.mxu0 0
    %2765 = vmatprep.subr.bf16.mxu0 0
    %2766 = vmatpush1.bf16.msra.mxu0 0
    %2767 = vmatprep.subr.bf16.mxu0 0
    %2768 = vmatpush1.bf16.msra.mxu0 0
    %2769 = vmatprep.subr.bf16.mxu0 0
    %2770 = vmatpush1.bf16.msra.mxu0 0
    %2771 = vmatprep.subr.bf16.mxu0 0
    %2772 = vmatpush1.bf16.msra.mxu0 0
    %2773 = vmatprep.subr.bf16.mxu0 0
    %2774 = vmatpush1.bf16.msra.mxu0 0
    %2775 = vmatprep.mubr.bf16.mxu0 0
    %2776 = vmatmul.mubr.bf16.gmra.mrb[0].mxu0 %v2738
    %v2777 = vpop.f32.mrb[0].mxu0
    %v2778 = vadd.f32 0.0, %v2777
    %v2779 = vpop.f32.mrb[0].mxu0
    %v2780 = vpop.f32.mrb[0].mxu0
    %v2781 = vadd.f32 0.0, %v2780
    %v2782 = vpop.f32.mrb[0].mxu0
    %2783 = vmatprep.mubr.bf16.mxu0 0
    %2784 = vmatmul.mubr.bf16.gmra.mrb[0].mxu0 %v2741
    %v2785 = vpop.f32.mrb[0].mxu0
    %v2786 = vadd.f32 0.0, %v2785
    %v2787 = vpop.f32.mrb[0].mxu0
    %v2788 = vpop.f32.mrb[0].mxu0
    %v2789 = vadd.f32 0.0, %v2788
    %v2790 = vpop.f32.mrb[0].mxu0
    %2791 = vdwg.mxu0
    %v2792 = vpack.c.bf16 %v2781, %v2778
    %v2793 = vpack.c.bf16 %v2789, %v2786
    %v2794 = vld [vmem:[#allocation2 + $0x278] sm:$0xf]
    %v2795 = vld [vmem:[#allocation2 + $0x27c] sm:$0xf]
    %v2796 = vld [vmem:[#allocation2 + $0x280] sm:$0xf]
    %v2797 = vld [vmem:[#allocation2 + $0x284] sm:$0xf]
    %v2802 = vunpack.c.l.b16 %v2794
    %v2803 = vunpack.c.l.b16 %v2795
    %v2804 = vunpack.c.l.b16 %v2796
    %v2805 = vunpack.c.l.b16 %v2797
    %v2806 = vpack.c.b16 %v2803, %v2802
    %v2807 = vpack.c.b16 %v2805, %v2804
    %v2809 = vsel %vm250, %v2806, 0
    %v2812 = vsel %vm250, %v2807, 0
    %2814 = vmatprep.subr.bf16.mxu0 0
    %2815 = vmatpush1.bf16.msra.mxu0 %v2719
    %2816 = vmatprep.subr.bf16.mxu0 0
    %2817 = vmatpush1.bf16.msra.mxu0 %v2720
    %2818 = vmatprep.subr.bf16.mxu0 0
    %2819 = vmatpush1.bf16.msra.mxu0 %v2721
    %2820 = vmatprep.subr.bf16.mxu0 0
    %2821 = vmatpush1.bf16.msra.mxu0 %v2722
    %2822 = vmatprep.subr.bf16.mxu0 0
    %2823 = vmatpush1.bf16.msra.mxu0 0
    %2824 = vmatprep.subr.bf16.mxu0 0
    %2825 = vmatpush1.bf16.msra.mxu0 0
    %2826 = vmatprep.subr.bf16.mxu0 0
    %2827 = vmatpush1.bf16.msra.mxu0 0
    %2828 = vmatprep.subr.bf16.mxu0 0
    %2829 = vmatpush1.bf16.msra.mxu0 0
    %2830 = vmatprep.subr.bf16.mxu0 0
    %2831 = vmatpush1.bf16.msra.mxu0 0
    %2832 = vmatprep.subr.bf16.mxu0 0
    %2833 = vmatpush1.bf16.msra.mxu0 0
    %2834 = vmatprep.subr.bf16.mxu0 0
    %2835 = vmatpush1.bf16.msra.mxu0 0
    %2836 = vmatprep.subr.bf16.mxu0 0
    %2837 = vmatpush1.bf16.msra.mxu0 0
    %2838 = vmatprep.subr.bf16.mxu0 0
    %2839 = vmatpush1.bf16.msra.mxu0 0
    %2840 = vmatprep.subr.bf16.mxu0 0
    %2841 = vmatpush1.bf16.msra.mxu0 0
    %2842 = vmatprep.subr.bf16.mxu0 0
    %2843 = vmatpush1.bf16.msra.mxu0 0
    %2844 = vmatprep.subr.bf16.mxu0 0
    %2845 = vmatpush1.bf16.msra.mxu0 0
    %2846 = vmatprep.mubr.bf16.mxu0 0
    %2847 = vmatmul.mubr.bf16.gmra.mrb[0].mxu0 %v2809
    %v2848 = vpop.f32.mrb[0].mxu0
    %v2849 = vadd.f32 0.0, %v2848
    %v2850 = vpop.f32.mrb[0].mxu0
    %v2851 = vpop.f32.mrb[0].mxu0
    %v2852 = vadd.f32 0.0, %v2851
    %v2853 = vpop.f32.mrb[0].mxu0
    %2854 = vmatprep.mubr.bf16.mxu0 0
    %2855 = vmatmul.mubr.bf16.gmra.mrb[0].mxu0 %v2812
    %v2856 = vpop.f32.mrb[0].mxu0
    %v2857 = vadd.f32 0.0, %v2856
    %v2858 = vpop.f32.mrb[0].mxu0
    %v2859 = vpop.f32.mrb[0].mxu0
    %v2860 = vadd.f32 0.0, %v2859
    %v2861 = vpop.f32.mrb[0].mxu0
    %2862 = vdwg.mxu0
    %v2863 = vpack.c.bf16 %v2852, %v2849
    %v2864 = vpack.c.bf16 %v2860, %v2857
    %v2865 = vld [vmem:[#allocation2 + $0x288] sm:$0xf]
    %v2866 = vld [vmem:[#allocation2 + $0x28c] sm:$0xf]
    %v2868 = vsel %vm721, %v2863, 0
    %v2871 = vsel %vm721, %v2864, 0
    %v2874 = vsel %vm725, %v2866, 0
    %2876 = vmatprep.subr.bf16.mxu0 0
    %2877 = vmatpush1.bf16.msra.mxu0 %v2874
    %2878 = vmatprep.subr.bf16.mxu0 0
    %2879 = vmatpush1.bf16.msra.mxu0 0
    %2880 = vmatprep.subr.bf16.mxu0 0
    %2881 = vmatpush1.bf16.msra.mxu0 0
    %2882 = vmatprep.subr.bf16.mxu0 0
    %2883 = vmatpush1.bf16.msra.mxu0 0
    %2884 = vmatprep.subr.bf16.mxu0 0
    %2885 = vmatpush1.bf16.msra.mxu0 0
    %2886 = vmatprep.subr.bf16.mxu0 0
    %2887 = vmatpush1.bf16.msra.mxu0 0
    %2888 = vmatprep.subr.bf16.mxu0 0
    %2889 = vmatpush1.bf16.msra.mxu0 0
    %2890 = vmatprep.subr.bf16.mxu0 0
    %2891 = vmatpush1.bf16.msra.mxu0 0
    %2892 = vmatprep.subr.bf16.mxu0 0
    %2893 = vmatpush1.bf16.msra.mxu0 0
    %2894 = vmatprep.subr.bf16.mxu0 0
    %2895 = vmatpush1.bf16.msra.mxu0 0
    %2896 = vmatprep.subr.bf16.mxu0 0
    %2897 = vmatpush1.bf16.msra.mxu0 0
    %2898 = vmatprep.subr.bf16.mxu0 0
    %2899 = vmatpush1.bf16.msra.mxu0 0
    %2900 = vmatprep.subr.bf16.mxu0 0
    %2901 = vmatpush1.bf16.msra.mxu0 0
    %2902 = vmatprep.subr.bf16.mxu0 0
    %2903 = vmatpush1.bf16.msra.mxu0 0
    %2904 = vmatprep.subr.bf16.mxu0 0
    %2905 = vmatpush1.bf16.msra.mxu0 0
    %2906 = vmatprep.subr.bf16.mxu0 0
    %2907 = vmatpush1.bf16.msra.mxu0 0
    %2908 = vmatprep.mubr.bf16.mxu0 0
    %2909 = vmatmul.mubr.bf16.gmra.mrb[0].mxu0 %v2868
    %v2910 = vpop.f32.mrb[0].mxu0
    %v2911 = vadd.f32 0.0, %v2910
    %v2912 = vpop.f32.mrb[0].mxu0
    %v2913 = vpop.f32.mrb[0].mxu0
    %v2914 = vadd.f32 0.0, %v2913
    %v2915 = vpop.f32.mrb[0].mxu0
    %2916 = vmatprep.mubr.bf16.mxu0 0
    %2917 = vmatmul.mubr.bf16.gmra.mrb[0].mxu0 %v2871
    %v2918 = vpop.f32.mrb[0].mxu0
    %v2919 = vadd.f32 0.0, %v2918
    %v2920 = vpop.f32.mrb[0].mxu0
    %v2921 = vpop.f32.mrb[0].mxu0
    %v2922 = vadd.f32 0.0, %v2921
    %v2923 = vpop.f32.mrb[0].mxu0
    %2924 = vdwg.mxu0
    %v2926 = vsel %vm721, %v2792, 0
    %v2929 = vsel %vm721, %v2793, 0
    %v2932 = vsel %vm725, %v2865, 0
    %2934 = vmatprep.subr.bf16.mxu0 0
    %2935 = vmatpush1.bf16.msra.mxu0 %v2932
    %2936 = vmatprep.subr.bf16.mxu0 0
    %2937 = vmatpush1.bf16.msra.mxu0 0
    %2938 = vmatprep.subr.bf16.mxu0 0
    %2939 = vmatpush1.bf16.msra.mxu0 0
    %2940 = vmatprep.subr.bf16.mxu0 0
    %2941 = vmatpush1.bf16.msra.mxu0 0
    %2942 = vmatprep.subr.bf16.mxu0 0
    %2943 = vmatpush1.bf16.msra.mxu0 0
    %2944 = vmatprep.subr.bf16.mxu0 0
    %2945 = vmatpush1.bf16.msra.mxu0 0
    %2946 = vmatprep.subr.bf16.mxu0 0
    %2947 = vmatpush1.bf16.msra.mxu0 0
    %2948 = vmatprep.subr.bf16.mxu0 0
    %2949 = vmatpush1.bf16.msra.mxu0 0
    %2950 = vmatprep.subr.bf16.mxu0 0
    %2951 = vmatpush1.bf16.msra.mxu0 0
    %2952 = vmatprep.subr.bf16.mxu0 0
    %2953 = vmatpush1.bf16.msra.mxu0 0
    %2954 = vmatprep.subr.bf16.mxu0 0
    %2955 = vmatpush1.bf16.msra.mxu0 0
    %2956 = vmatprep.subr.bf16.mxu0 0
    %2957 = vmatpush1.bf16.msra.mxu0 0
    %2958 = vmatprep.subr.bf16.mxu0 0
    %2959 = vmatpush1.bf16.msra.mxu0 0
    %2960 = vmatprep.subr.bf16.mxu0 0
    %2961 = vmatpush1.bf16.msra.mxu0 0
    %2962 = vmatprep.subr.bf16.mxu0 0
    %2963 = vmatpush1.bf16.msra.mxu0 0
    %2964 = vmatprep.subr.bf16.mxu0 0
    %2965 = vmatpush1.bf16.msra.mxu0 0
    %2966 = vmatprep.mubr.bf16.mxu0 0
    %2967 = vmatmul.mubr.bf16.gmra.mrb[0].mxu0 %v2926
    %v2968 = vpop.f32.mrb[0].mxu0
    %v2969 = vadd.f32 %v2911, %v2968
    %v2970 = vpop.f32.mrb[0].mxu0
    %v2971 = vpop.f32.mrb[0].mxu0
    %v2972 = vadd.f32 %v2914, %v2971
    %v2973 = vpop.f32.mrb[0].mxu0
    %2974 = vmatprep.mubr.bf16.mxu0 0
    %2975 = vmatmul.mubr.bf16.gmra.mrb[0].mxu0 %v2929
    %v2976 = vpop.f32.mrb[0].mxu0
    %v2977 = vadd.f32 %v2919, %v2976
    %v2978 = vpop.f32.mrb[0].mxu0
    %v2979 = vpop.f32.mrb[0].mxu0
    %v2980 = vadd.f32 %v2922, %v2979
    %v2981 = vpop.f32.mrb[0].mxu0
    %2982 = vdwg.mxu0
    %v2983 = vld [vmem:[%s2 + $0x138] sm:$0xff]
    %v2984 = vld [vmem:[%s2 + $0x140] sm:$0xff]
    %v2985 = vld [vmem:[%s2 + $0x148] sm:$0xff]
    %v2986 = vld [vmem:[%s2 + $0x150] sm:$0xff]
    %2988 = vset.pattern.permute.xlu0 0
    %2989 = vperm.xlu0 %2988, %v2983
    %v2990 = vpop.permute.xlu0 %2989
    %2993 = vset.pattern.permute.xlu0 0
    %2994 = vperm.xlu0 %2993, %v2984
    %v2995 = vpop.permute.xlu0 %2994
    %2998 = vset.pattern.permute.xlu0 0
    %2999 = vperm.xlu0 %2998, %v2985
    %v3000 = vpop.permute.xlu0 %2999
    %3003 = vset.pattern.permute.xlu0 0
    %3004 = vperm.xlu0 %3003, %v2986
    %v3005 = vpop.permute.xlu0 %3004
    %v3007 = vadd.f32 %v2969, %v2990
    %v3008 = vadd.f32 %v2972, %v2995
    %v3009 = vadd.f32 %v2977, %v3000
    %v3010 = vadd.f32 %v2980, %v3005
    %v3011 = vld [vmem:[%s2 + $0x178] sm:$0xff]
    %v3012 = vld [vmem:[%s2 + $0x180] sm:$0xff]
    %v3013 = vld [vmem:[%s2 + $0x188] sm:$0xff]
    %v3014 = vld [vmem:[%s2 + $0x190] sm:$0xff]
    %3016 = vset.pattern.permute.xlu0 0
    %3017 = vperm.xlu0 %3016, %v3011
    %v3018 = vpop.permute.xlu0 %3017
    %3021 = vset.pattern.permute.xlu0 0
    %3022 = vperm.xlu0 %3021, %v3012
    %v3023 = vpop.permute.xlu0 %3022
    %3026 = vset.pattern.permute.xlu0 0
    %3027 = vperm.xlu0 %3026, %v3013
    %v3028 = vpop.permute.xlu0 %3027
    %3031 = vset.pattern.permute.xlu0 0
    %3032 = vperm.xlu0 %3031, %v3014
    %v3033 = vpop.permute.xlu0 %3032
    %v3035 = vmul.f32 %v1804, %v3018
    %v3036 = vmul.f32 %v1805, %v3023
    %v3037 = vmul.f32 %v1806, %v3028
    %v3038 = vmul.f32 %v1807, %v3033
    %3039 = vset.pattern.permute.xlu0 1
    %3040 = vperm.xlu0 %3039, %v3011
    %v3041 = vpop.permute.xlu0 %3040
    %3043 = vset.pattern.permute.xlu0 1
    %3044 = vperm.xlu0 %3043, %v3012
    %v3045 = vpop.permute.xlu0 %3044
    %3047 = vset.pattern.permute.xlu0 1
    %3048 = vperm.xlu0 %3047, %v3013
    %v3049 = vpop.permute.xlu0 %3048
    %3051 = vset.pattern.permute.xlu0 1
    %3052 = vperm.xlu0 %3051, %v3014
    %v3053 = vpop.permute.xlu0 %3052
    %v3055 = vadd.f32 %v3035, %v3041
    %v3056 = vadd.f32 %v3036, %v3045
    %v3057 = vadd.f32 %v3037, %v3049
    %v3058 = vadd.f32 %v3038, %v3053
    %v3059 = vmax.f32 %v3055, 0.0
    %v3060 = vmax.f32 %v3056, 0.0
    %v3061 = vmax.f32 %v3057, 0.0
    %v3062 = vmax.f32 %v3058, 0.0
    %v3063 = vld [vmem:[#allocation2 + $0x320] sm:$0xf]
    %v3064 = vld [vmem:[#allocation2 + $0x324] sm:$0xf]
    %v3065 = vld [vmem:[#allocation2 + $0x328] sm:$0xf]
    %v3066 = vld [vmem:[#allocation2 + $0x32c] sm:$0xf]
    %v3067 = vpack.c.bf16 %v3060, %v3059
    %v3068 = vpack.c.bf16 %v3062, %v3061
    %v3069 = vld [vmem:[%s2 + $0x198] sm:$0xff]
    %v3070 = vld [vmem:[%s2 + $0x1a0] sm:$0xff]
    %v3071 = vld [vmem:[%s2 + $0x1a8] sm:$0xff]
    %v3072 = vld [vmem:[%s2 + $0x1b0] sm:$0xff]
    %3074 = vset.pattern.permute.xlu0 0
    %3075 = vperm.xlu0 %3074, %v3069
    %v3076 = vpop.permute.xlu0 %3075
    %3079 = vset.pattern.permute.xlu0 0
    %3080 = vperm.xlu0 %3079, %v3070
    %v3081 = vpop.permute.xlu0 %3080
    %3084 = vset.pattern.permute.xlu0 0
    %3085 = vperm.xlu0 %3084, %v3071
    %v3086 = vpop.permute.xlu0 %3085
    %3089 = vset.pattern.permute.xlu0 0
    %3090 = vperm.xlu0 %3089, %v3072
    %v3091 = vpop.permute.xlu0 %3090
    %v3093 = vmul.f32 %v3007, %v3076
    %v3094 = vmul.f32 %v3008, %v3081
    %v3095 = vmul.f32 %v3009, %v3086
    %v3096 = vmul.f32 %v3010, %v3091
    %3097 = vset.pattern.permute.xlu0 1
    %3098 = vperm.xlu0 %3097, %v3069
    %v3099 = vpop.permute.xlu0 %3098
    %3101 = vset.pattern.permute.xlu0 1
    %3102 = vperm.xlu0 %3101, %v3070
    %v3103 = vpop.permute.xlu0 %3102
    %3105 = vset.pattern.permute.xlu0 1
    %3106 = vperm.xlu0 %3105, %v3071
    %v3107 = vpop.permute.xlu0 %3106
    %3109 = vset.pattern.permute.xlu0 1
    %3110 = vperm.xlu0 %3109, %v3072
    %v3111 = vpop.permute.xlu0 %3110
    %v3113 = vadd.f32 %v3093, %v3099
    %v3114 = vadd.f32 %v3094, %v3103
    %v3115 = vadd.f32 %v3095, %v3107
    %v3116 = vadd.f32 %v3096, %v3111
    %v3117 = vmax.f32 %v3113, 0.0
    %v3118 = vmax.f32 %v3114, 0.0
    %v3119 = vmax.f32 %v3115, 0.0
    %v3120 = vmax.f32 %v3116, 0.0
    %v3121 = vld [vmem:[#allocation2 + $0x340] sm:$0xf]
    %v3122 = vld [vmem:[#allocation2 + $0x344] sm:$0xf]
    %v3123 = vld [vmem:[#allocation2 + $0x348] sm:$0xf]
    %v3124 = vld [vmem:[#allocation2 + $0x34c] sm:$0xf]
    %v3125 = vpack.c.bf16 %v3118, %v3117
    %v3126 = vpack.c.bf16 %v3120, %v3119
    %v3131 = vunpack.c.l.b16 %v3121
    %v3132 = vunpack.c.l.b16 %v3122
    %v3133 = vunpack.c.l.b16 %v3123
    %v3134 = vunpack.c.l.b16 %v3124
    %v3135 = vpack.c.b16 %v3132, %v3131
    %v3136 = vpack.c.b16 %v3134, %v3133
    %v3138 = vsel %vm799, %v3135, 0
    %v3141 = vsel %vm799, %v3136, 0
    %3143 = vmatprep.subr.bf16.mxu0 0
    %3144 = vmatpush1.bf16.msra.mxu0 %v3125
    %3145 = vmatprep.subr.bf16.mxu0 0
    %3146 = vmatpush1.bf16.msra.mxu0 %v3126
    %3147 = vmatprep.subr.bf16.mxu0 0
    %3148 = vmatpush1.bf16.msra.mxu0 0
    %3149 = vmatprep.subr.bf16.mxu0 0
    %3150 = vmatpush1.bf16.msra.mxu0 0
    %3151 = vmatprep.subr.bf16.mxu0 0
    %3152 = vmatpush1.bf16.msra.mxu0 0
    %3153 = vmatprep.subr.bf16.mxu0 0
    %3154 = vmatpush1.bf16.msra.mxu0 0
    %3155 = vmatprep.subr.bf16.mxu0 0
    %3156 = vmatpush1.bf16.msra.mxu0 0
    %3157 = vmatprep.subr.bf16.mxu0 0
    %3158 = vmatpush1.bf16.msra.mxu0 0
    %3159 = vmatprep.subr.bf16.mxu0 0
    %3160 = vmatpush1.bf16.msra.mxu0 0
    %3161 = vmatprep.subr.bf16.mxu0 0
    %3162 = vmatpush1.bf16.msra.mxu0 0
    %3163 = vmatprep.subr.bf16.mxu0 0
    %3164 = vmatpush1.bf16.msra.mxu0 0
    %3165 = vmatprep.subr.bf16.mxu0 0
    %3166 = vmatpush1.bf16.msra.mxu0 0
    %3167 = vmatprep.subr.bf16.mxu0 0
    %3168 = vmatpush1.bf16.msra.mxu0 0
    %3169 = vmatprep.subr.bf16.mxu0 0
    %3170 = vmatpush1.bf16.msra.mxu0 0
    %3171 = vmatprep.subr.bf16.mxu0 0
    %3172 = vmatpush1.bf16.msra.mxu0 0
    %3173 = vmatprep.subr.bf16.mxu0 0
    %3174 = vmatpush1.bf16.msra.mxu0 0
    %3175 = vmatprep.mubr.bf16.mxu0 0
    %3176 = vmatmul.mubr.bf16.gmra.mrb[0].mxu0 %v3138
    %v3177 = vpop.f32.mrb[0].mxu0
    %v3178 = vadd.f32 0.0, %v3177
    %v3179 = vpop.f32.mrb[0].mxu0
    %v3180 = vpop.f32.mrb[0].mxu0
    %v3181 = vadd.f32 0.0, %v3180
    %v3182 = vpop.f32.mrb[0].mxu0
    %3183 = vmatprep.mubr.bf16.mxu0 0
    %3184 = vmatmul.mubr.bf16.gmra.mrb[0].mxu0 %v3141
    %v3185 = vpop.f32.mrb[0].mxu0
    %v3186 = vadd.f32 0.0, %v3185
    %v3187 = vpop.f32.mrb[0].mxu0
    %v3188 = vpop.f32.mrb[0].mxu0
    %v3189 = vadd.f32 0.0, %v3188
    %v3190 = vpop.f32.mrb[0].mxu0
    %3191 = vdwg.mxu0
    %v3196 = vunpack.c.l.b16 %v3063
    %v3197 = vunpack.c.l.b16 %v3064
    %v3198 = vunpack.c.l.b16 %v3065
    %v3199 = vunpack.c.l.b16 %v3066
    %v3200 = vpack.c.b16 %v3197, %v3196
    %v3201 = vpack.c.b16 %v3199, %v3198
    %v3203 = vsel %vm799, %v3200, 0
    %v3206 = vsel %vm799, %v3201, 0
    %3208 = vmatprep.subr.bf16.mxu0 0
    %3209 = vmatpush1.bf16.msra.mxu0 %v3067
    %3210 = vmatprep.subr.bf16.mxu0 0
    %3211 = vmatpush1.bf16.msra.mxu0 %v3068
    %3212 = vmatprep.subr.bf16.mxu0 0
    %3213 = vmatpush1.bf16.msra.mxu0 0
    %3214 = vmatprep.subr.bf16.mxu0 0
    %3215 = vmatpush1.bf16.msra.mxu0 0
    %3216 = vmatprep.subr.bf16.mxu0 0
    %3217 = vmatpush1.bf16.msra.mxu0 0
    %3218 = vmatprep.subr.bf16.mxu0 0
    %3219 = vmatpush1.bf16.msra.mxu0 0
    %3220 = vmatprep.subr.bf16.mxu0 0
    %3221 = vmatpush1.bf16.msra.mxu0 0
    %3222 = vmatprep.subr.bf16.mxu0 0
    %3223 = vmatpush1.bf16.msra.mxu0 0
    %3224 = vmatprep.subr.bf16.mxu0 0
    %3225 = vmatpush1.bf16.msra.mxu0 0
    %3226 = vmatprep.subr.bf16.mxu0 0
    %3227 = vmatpush1.bf16.msra.mxu0 0
    %3228 = vmatprep.subr.bf16.mxu0 0
    %3229 = vmatpush1.bf16.msra.mxu0 0
    %3230 = vmatprep.subr.bf16.mxu0 0
    %3231 = vmatpush1.bf16.msra.mxu0 0
    %3232 = vmatprep.subr.bf16.mxu0 0
    %3233 = vmatpush1.bf16.msra.mxu0 0
    %3234 = vmatprep.subr.bf16.mxu0 0
    %3235 = vmatpush1.bf16.msra.mxu0 0
    %3236 = vmatprep.subr.bf16.mxu0 0
    %3237 = vmatpush1.bf16.msra.mxu0 0
    %3238 = vmatprep.subr.bf16.mxu0 0
    %3239 = vmatpush1.bf16.msra.mxu0 0
    %3240 = vmatprep.mubr.bf16.mxu0 0
    %3241 = vmatmul.mubr.bf16.gmra.mrb[0].mxu0 %v3203
    %v3242 = vpop.f32.mrb[0].mxu0
    %v3243 = vadd.f32 %v3178, %v3242
    %v3244 = vpop.f32.mrb[0].mxu0
    %v3245 = vpop.f32.mrb[0].mxu0
    %v3246 = vadd.f32 %v3181, %v3245
    %v3247 = vpop.f32.mrb[0].mxu0
    %3248 = vmatprep.mubr.bf16.mxu0 0
    %3249 = vmatmul.mubr.bf16.gmra.mrb[0].mxu0 %v3206
    %v3250 = vpop.f32.mrb[0].mxu0
    %v3251 = vadd.f32 %v3186, %v3250
    %v3252 = vpop.f32.mrb[0].mxu0
    %v3253 = vpop.f32.mrb[0].mxu0
    %v3254 = vadd.f32 %v3189, %v3253
    %v3255 = vpop.f32.mrb[0].mxu0
    %3256 = vdwg.mxu0
    %v3257 = vld [vmem:[%s2 + $0x1b8] sm:$0xff]
    %v3258 = vld [vmem:[%s2 + $0x1c0] sm:$0xff]
    %v3259 = vld [vmem:[%s2 + $0x1c8] sm:$0xff]
    %v3260 = vld [vmem:[%s2 + $0x1d0] sm:$0xff]
    %3262 = vset.pattern.permute.xlu0 0
    %3263 = vperm.xlu0 %3262, %v3257
    %v3264 = vpop.permute.xlu0 %3263
    %3267 = vset.pattern.permute.xlu0 0
    %3268 = vperm.xlu0 %3267, %v3258
    %v3269 = vpop.permute.xlu0 %3268
    %3272 = vset.pattern.permute.xlu0 0
    %3273 = vperm.xlu0 %3272, %v3259
    %v3274 = vpop.permute.xlu0 %3273
    %3277 = vset.pattern.permute.xlu0 0
    %3278 = vperm.xlu0 %3277, %v3260
    %v3279 = vpop.permute.xlu0 %3278
    %v3281 = vmul.f32 %v3243, %v3264
    %v3282 = vmul.f32 %v3246, %v3269
    %v3283 = vmul.f32 %v3251, %v3274
    %v3284 = vmul.f32 %v3254, %v3279
    %3285 = vset.pattern.permute.xlu0 1
    %3286 = vperm.xlu0 %3285, %v3257
    %v3287 = vpop.permute.xlu0 %3286
    %3289 = vset.pattern.permute.xlu0 1
    %3290 = vperm.xlu0 %3289, %v3258
    %v3291 = vpop.permute.xlu0 %3290
    %3293 = vset.pattern.permute.xlu0 1
    %3294 = vperm.xlu0 %3293, %v3259
    %v3295 = vpop.permute.xlu0 %3294
    %3297 = vset.pattern.permute.xlu0 1
    %3298 = vperm.xlu0 %3297, %v3260
    %v3299 = vpop.permute.xlu0 %3298
    %v3301 = vadd.f32 %v3281, %v3287
    %v3302 = vadd.f32 %v3282, %v3291
    %v3303 = vadd.f32 %v3283, %v3295
    %v3304 = vadd.f32 %v3284, %v3299
    %v3305 = vmax.f32 %v3301, 0.0
    %v3306 = vmax.f32 %v3302, 0.0
    %v3307 = vmax.f32 %v3303, 0.0
    %v3308 = vmax.f32 %v3304, 0.0
    %v3309 = vpack.c.bf16 %v3306, %v3305
    %v3310 = vpack.c.bf16 %v3308, %v3307
    %v3312 = vsel %vm1284, %v3309, 0
    %v3315 = vsel %vm1284, %v3310, 0
    %3317 = vmatprep.subr.bf16.mxu0 0
    %3318 = vmatpush1.bf16.msra.mxu0 %v1362
    %3319 = vmatprep.subr.bf16.mxu0 0
    %3320 = vmatpush1.bf16.msra.mxu0 0
    %3321 = vmatprep.subr.bf16.mxu0 0
    %3322 = vmatpush1.bf16.msra.mxu0 0
    %3323 = vmatprep.subr.bf16.mxu0 0
    %3324 = vmatpush1.bf16.msra.mxu0 0
    %3325 = vmatprep.subr.bf16.mxu0 0
    %3326 = vmatpush1.bf16.msra.mxu0 0
    %3327 = vmatprep.subr.bf16.mxu0 0
    %3328 = vmatpush1.bf16.msra.mxu0 0
    %3329 = vmatprep.subr.bf16.mxu0 0
    %3330 = vmatpush1.bf16.msra.mxu0 0
    %3331 = vmatprep.subr.bf16.mxu0 0
    %3332 = vmatpush1.bf16.msra.mxu0 0
    %3333 = vmatprep.subr.bf16.mxu0 0
    %3334 = vmatpush1.bf16.msra.mxu0 0
    %3335 = vmatprep.subr.bf16.mxu0 0
    %3336 = vmatpush1.bf16.msra.mxu0 0
    %3337 = vmatprep.subr.bf16.mxu0 0
    %3338 = vmatpush1.bf16.msra.mxu0 0
    %3339 = vmatprep.subr.bf16.mxu0 0
    %3340 = vmatpush1.bf16.msra.mxu0 0
    %3341 = vmatprep.subr.bf16.mxu0 0
    %3342 = vmatpush1.bf16.msra.mxu0 0
    %3343 = vmatprep.subr.bf16.mxu0 0
    %3344 = vmatpush1.bf16.msra.mxu0 0
    %3345 = vmatprep.subr.bf16.mxu0 0
    %3346 = vmatpush1.bf16.msra.mxu0 0
    %3347 = vmatprep.subr.bf16.mxu0 0
    %3348 = vmatpush1.bf16.msra.mxu0 0
    %3349 = vmatprep.mubr.bf16.mxu0 0
    %3350 = vmatmul.mubr.bf16.gmra.mrb[0].mxu0 %v3312
    %v3351 = vpop.f32.mrb[0].mxu0
    %v3352 = vadd.f32 0.0, %v3351
    %v3353 = vpop.f32.mrb[0].mxu0
    %v3354 = vpop.f32.mrb[0].mxu0
    %v3355 = vadd.f32 0.0, %v3354
    %v3356 = vpop.f32.mrb[0].mxu0
    %3357 = vmatprep.mubr.bf16.mxu0 0
    %3358 = vmatmul.mubr.bf16.gmra.mrb[0].mxu0 %v3315
    %v3359 = vpop.f32.mrb[0].mxu0
    %v3360 = vadd.f32 0.0, %v3359
    %v3361 = vpop.f32.mrb[0].mxu0
    %v3362 = vpop.f32.mrb[0].mxu0
    %v3363 = vadd.f32 0.0, %v3362
    %v3364 = vpop.f32.mrb[0].mxu0
    %3365 = vdwg.mxu0
    %v3366 = vpack.c.bf16 %v3355, %v3352
    %v3367 = vpack.c.bf16 %v3363, %v3360
    %3368 = vmatprep.subr.bf16.mxu0 0
    %3369 = vmatpush1.bf16.msra.mxu0 %v1415
    %3370 = vmatprep.subr.bf16.mxu0 0
    %3371 = vmatpush1.bf16.msra.mxu0 0
    %3372 = vmatprep.subr.bf16.mxu0 0
    %3373 = vmatpush1.bf16.msra.mxu0 0
    %3374 = vmatprep.subr.bf16.mxu0 0
    %3375 = vmatpush1.bf16.msra.mxu0 0
    %3376 = vmatprep.subr.bf16.mxu0 0
    %3377 = vmatpush1.bf16.msra.mxu0 0
    %3378 = vmatprep.subr.bf16.mxu0 0
    %3379 = vmatpush1.bf16.msra.mxu0 0
    %3380 = vmatprep.subr.bf16.mxu0 0
    %3381 = vmatpush1.bf16.msra.mxu0 0
    %3382 = vmatprep.subr.bf16.mxu0 0
    %3383 = vmatpush1.bf16.msra.mxu0 0
    %3384 = vmatprep.subr.bf16.mxu0 0
    %3385 = vmatpush1.bf16.msra.mxu0 0
    %3386 = vmatprep.subr.bf16.mxu0 0
    %3387 = vmatpush1.bf16.msra.mxu0 0
    %3388 = vmatprep.subr.bf16.mxu0 0
    %3389 = vmatpush1.bf16.msra.mxu0 0
    %3390 = vmatprep.subr.bf16.mxu0 0
    %3391 = vmatpush1.bf16.msra.mxu0 0
    %3392 = vmatprep.subr.bf16.mxu0 0
    %3393 = vmatpush1.bf16.msra.mxu0 0
    %3394 = vmatprep.subr.bf16.mxu0 0
    %3395 = vmatpush1.bf16.msra.mxu0 0
    %3396 = vmatprep.subr.bf16.mxu0 0
    %3397 = vmatpush1.bf16.msra.mxu0 0
    %3398 = vmatprep.subr.bf16.mxu0 0
    %3399 = vmatpush1.bf16.msra.mxu0 0
    %3400 = vmatprep.mubr.bf16.mxu0 0
    %3401 = vmatmul.mubr.bf16.gmra.mrb[0].mxu0 %v3312
    %v3402 = vpop.f32.mrb[0].mxu0
    %v3403 = vadd.f32 0.0, %v3402
    %v3404 = vpop.f32.mrb[0].mxu0
    %v3405 = vpop.f32.mrb[0].mxu0
    %v3406 = vadd.f32 0.0, %v3405
    %v3407 = vpop.f32.mrb[0].mxu0
    %3408 = vmatprep.mubr.bf16.mxu0 0
    %3409 = vmatmul.mubr.bf16.gmra.mrb[0].mxu0 %v3315
    %v3410 = vpop.f32.mrb[0].mxu0
    %v3411 = vadd.f32 0.0, %v3410
    %v3412 = vpop.f32.mrb[0].mxu0
    %v3413 = vpop.f32.mrb[0].mxu0
    %v3414 = vadd.f32 0.0, %v3413
    %v3415 = vpop.f32.mrb[0].mxu0
    %3416 = vdwg.mxu0
    %v3417 = vpack.c.bf16 %v3406, %v3403
    %v3418 = vpack.c.bf16 %v3414, %v3411
    %v3419 = vld [vmem:[#allocation2 + $0x370] sm:$0xf]
    %v3420 = vld [vmem:[#allocation2 + $0x374] sm:$0xf]
    %v3421 = vld [vmem:[#allocation2 + $0x378] sm:$0xf]
    %v3422 = vld [vmem:[#allocation2 + $0x37c] sm:$0xf]
    %v3423 = vld [vmem:[#allocation2 + $0x360] sm:$0xf]
    %v3424 = vld [vmem:[#allocation2 + $0x364] sm:$0xf]
    %v3425 = vld [vmem:[#allocation2 + $0x368] sm:$0xf]
    %v3426 = vld [vmem:[#allocation2 + $0x36c] sm:$0xf]
    %v3431 = vunpack.c.l.b16 %v3423
    %v3432 = vunpack.c.l.b16 %v3424
    %v3433 = vunpack.c.l.b16 %v3425
    %v3434 = vunpack.c.l.b16 %v3426
    %v3435 = vpack.c.b16 %v3432, %v3431
    %v3436 = vpack.c.b16 %v3434, %v3433
    %v3438 = vsel %vm799, %v3435, 0
    %v3441 = vsel %vm799, %v3436, 0
    %3443 = vmatprep.subr.bf16.mxu0 0
    %3444 = vmatpush1.bf16.msra.mxu0 %v3366
    %3445 = vmatprep.subr.bf16.mxu0 0
    %3446 = vmatpush1.bf16.msra.mxu0 %v3367
    %3447 = vmatprep.subr.bf16.mxu0 0
    %3448 = vmatpush1.bf16.msra.mxu0 0
    %3449 = vmatprep.subr.bf16.mxu0 0
    %3450 = vmatpush1.bf16.msra.mxu0 0
    %3451 = vmatprep.subr.bf16.mxu0 0
    %3452 = vmatpush1.bf16.msra.mxu0 0
    %3453 = vmatprep.subr.bf16.mxu0 0
    %3454 = vmatpush1.bf16.msra.mxu0 0
    %3455 = vmatprep.subr.bf16.mxu0 0
    %3456 = vmatpush1.bf16.msra.mxu0 0
    %3457 = vmatprep.subr.bf16.mxu0 0
    %3458 = vmatpush1.bf16.msra.mxu0 0
    %3459 = vmatprep.subr.bf16.mxu0 0
    %3460 = vmatpush1.bf16.msra.mxu0 0
    %3461 = vmatprep.subr.bf16.mxu0 0
    %3462 = vmatpush1.bf16.msra.mxu0 0
    %3463 = vmatprep.subr.bf16.mxu0 0
    %3464 = vmatpush1.bf16.msra.mxu0 0
    %3465 = vmatprep.subr.bf16.mxu0 0
    %3466 = vmatpush1.bf16.msra.mxu0 0
    %3467 = vmatprep.subr.bf16.mxu0 0
    %3468 = vmatpush1.bf16.msra.mxu0 0
    %3469 = vmatprep.subr.bf16.mxu0 0
    %3470 = vmatpush1.bf16.msra.mxu0 0
    %3471 = vmatprep.subr.bf16.mxu0 0
    %3472 = vmatpush1.bf16.msra.mxu0 0
    %3473 = vmatprep.subr.bf16.mxu0 0
    %3474 = vmatpush1.bf16.msra.mxu0 0
    %3475 = vmatprep.mubr.bf16.mxu0 0
    %3476 = vmatmul.mubr.bf16.gmra.mrb[0].mxu0 %v3438
    %v3477 = vpop.f32.mrb[0].mxu0
    %v3478 = vadd.f32 0.0, %v3477
    %v3479 = vpop.f32.mrb[0].mxu0
    %v3480 = vpop.f32.mrb[0].mxu0
    %v3481 = vadd.f32 0.0, %v3480
    %v3482 = vpop.f32.mrb[0].mxu0
    %3483 = vmatprep.mubr.bf16.mxu0 0
    %3484 = vmatmul.mubr.bf16.gmra.mrb[0].mxu0 %v3441
    %v3485 = vpop.f32.mrb[0].mxu0
    %v3486 = vadd.f32 0.0, %v3485
    %v3487 = vpop.f32.mrb[0].mxu0
    %v3488 = vpop.f32.mrb[0].mxu0
    %v3489 = vadd.f32 0.0, %v3488
    %v3490 = vpop.f32.mrb[0].mxu0
    %3491 = vdwg.mxu0
    %v3496 = vunpack.c.l.b16 %v3419
    %v3497 = vunpack.c.l.b16 %v3420
    %v3498 = vunpack.c.l.b16 %v3421
    %v3499 = vunpack.c.l.b16 %v3422
    %v3500 = vpack.c.b16 %v3497, %v3496
    %v3501 = vpack.c.b16 %v3499, %v3498
    %v3503 = vsel %vm799, %v3500, 0
    %v3506 = vsel %vm799, %v3501, 0
    %3508 = vmatprep.subr.bf16.mxu0 0
    %3509 = vmatpush1.bf16.msra.mxu0 %v3309
    %3510 = vmatprep.subr.bf16.mxu0 0
    %3511 = vmatpush1.bf16.msra.mxu0 %v3310
    %3512 = vmatprep.subr.bf16.mxu0 0
    %3513 = vmatpush1.bf16.msra.mxu0 0
    %3514 = vmatprep.subr.bf16.mxu0 0
    %3515 = vmatpush1.bf16.msra.mxu0 0
    %3516 = vmatprep.subr.bf16.mxu0 0
    %3517 = vmatpush1.bf16.msra.mxu0 0
    %3518 = vmatprep.subr.bf16.mxu0 0
    %3519 = vmatpush1.bf16.msra.mxu0 0
    %3520 = vmatprep.subr.bf16.mxu0 0
    %3521 = vmatpush1.bf16.msra.mxu0 0
    %3522 = vmatprep.subr.bf16.mxu0 0
    %3523 = vmatpush1.bf16.msra.mxu0 0
    %3524 = vmatprep.subr.bf16.mxu0 0
    %3525 = vmatpush1.bf16.msra.mxu0 0
    %3526 = vmatprep.subr.bf16.mxu0 0
    %3527 = vmatpush1.bf16.msra.mxu0 0
    %3528 = vmatprep.subr.bf16.mxu0 0
    %3529 = vmatpush1.bf16.msra.mxu0 0
    %3530 = vmatprep.subr.bf16.mxu0 0
    %3531 = vmatpush1.bf16.msra.mxu0 0
    %3532 = vmatprep.subr.bf16.mxu0 0
    %3533 = vmatpush1.bf16.msra.mxu0 0
    %3534 = vmatprep.subr.bf16.mxu0 0
    %3535 = vmatpush1.bf16.msra.mxu0 0
    %3536 = vmatprep.subr.bf16.mxu0 0
    %3537 = vmatpush1.bf16.msra.mxu0 0
    %3538 = vmatprep.subr.bf16.mxu0 0
    %3539 = vmatpush1.bf16.msra.mxu0 0
    %3540 = vmatprep.mubr.bf16.mxu0 0
    %3541 = vmatmul.mubr.bf16.gmra.mrb[0].mxu0 %v3503
    %v3542 = vpop.f32.mrb[0].mxu0
    %v3543 = vadd.f32 %v3478, %v3542
    %v3544 = vpop.f32.mrb[0].mxu0
    %v3545 = vpop.f32.mrb[0].mxu0
    %v3546 = vadd.f32 %v3481, %v3545
    %v3547 = vpop.f32.mrb[0].mxu0
    %3548 = vmatprep.mubr.bf16.mxu0 0
    %3549 = vmatmul.mubr.bf16.gmra.mrb[0].mxu0 %v3506
    %v3550 = vpop.f32.mrb[0].mxu0
    %v3551 = vadd.f32 %v3486, %v3550
    %v3552 = vpop.f32.mrb[0].mxu0
    %v3553 = vpop.f32.mrb[0].mxu0
    %v3554 = vadd.f32 %v3489, %v3553
    %v3555 = vpop.f32.mrb[0].mxu0
    %3556 = vdwg.mxu0
    %v3557 = vld [vmem:[#allocation2 + $0x380] sm:$0xf]
    %v3558 = vld [vmem:[#allocation2 + $0x384] sm:$0xf]
    %v3559 = vld [vmem:[#allocation2 + $0x388] sm:$0xf]
    %v3560 = vld [vmem:[#allocation2 + $0x38c] sm:$0xf]
    %v3565 = vunpack.c.l.b16 %v3557
    %v3566 = vunpack.c.l.b16 %v3558
    %v3567 = vunpack.c.l.b16 %v3559
    %v3568 = vunpack.c.l.b16 %v3560
    %v3569 = vpack.c.b16 %v3566, %v3565
    %v3570 = vpack.c.b16 %v3568, %v3567
    %v3572 = vsel %vm799, %v3569, 0
    %v3575 = vsel %vm799, %v3570, 0
    %3577 = vmatprep.subr.bf16.mxu0 0
    %3578 = vmatpush1.bf16.msra.mxu0 %v3417
    %3579 = vmatprep.subr.bf16.mxu0 0
    %3580 = vmatpush1.bf16.msra.mxu0 %v3418
    %3581 = vmatprep.subr.bf16.mxu0 0
    %3582 = vmatpush1.bf16.msra.mxu0 0
    %3583 = vmatprep.subr.bf16.mxu0 0
    %3584 = vmatpush1.bf16.msra.mxu0 0
    %3585 = vmatprep.subr.bf16.mxu0 0
    %3586 = vmatpush1.bf16.msra.mxu0 0
    %3587 = vmatprep.subr.bf16.mxu0 0
    %3588 = vmatpush1.bf16.msra.mxu0 0
    %3589 = vmatprep.subr.bf16.mxu0 0
    %3590 = vmatpush1.bf16.msra.mxu0 0
    %3591 = vmatprep.subr.bf16.mxu0 0
    %3592 = vmatpush1.bf16.msra.mxu0 0
    %3593 = vmatprep.subr.bf16.mxu0 0
    %3594 = vmatpush1.bf16.msra.mxu0 0
    %3595 = vmatprep.subr.bf16.mxu0 0
    %3596 = vmatpush1.bf16.msra.mxu0 0
    %3597 = vmatprep.subr.bf16.mxu0 0
    %3598 = vmatpush1.bf16.msra.mxu0 0
    %3599 = vmatprep.subr.bf16.mxu0 0
    %3600 = vmatpush1.bf16.msra.mxu0 0
    %3601 = vmatprep.subr.bf16.mxu0 0
    %3602 = vmatpush1.bf16.msra.mxu0 0
    %3603 = vmatprep.subr.bf16.mxu0 0
    %3604 = vmatpush1.bf16.msra.mxu0 0
    %3605 = vmatprep.subr.bf16.mxu0 0
    %3606 = vmatpush1.bf16.msra.mxu0 0
    %3607 = vmatprep.subr.bf16.mxu0 0
    %3608 = vmatpush1.bf16.msra.mxu0 0
    %3609 = vmatprep.mubr.bf16.mxu0 0
    %3610 = vmatmul.mubr.bf16.gmra.mrb[0].mxu0 %v3572
    %v3611 = vpop.f32.mrb[0].mxu0
    %v3612 = vadd.f32 0.0, %v3611
    %v3613 = vpop.f32.mrb[0].mxu0
    %v3614 = vpop.f32.mrb[0].mxu0
    %v3615 = vadd.f32 0.0, %v3614
    %v3616 = vpop.f32.mrb[0].mxu0
    %3617 = vmatprep.mubr.bf16.mxu0 0
    %3618 = vmatmul.mubr.bf16.gmra.mrb[0].mxu0 %v3575
    %v3619 = vpop.f32.mrb[0].mxu0
    %v3620 = vadd.f32 0.0, %v3619
    %v3621 = vpop.f32.mrb[0].mxu0
    %v3622 = vpop.f32.mrb[0].mxu0
    %v3623 = vadd.f32 0.0, %v3622
    %v3624 = vpop.f32.mrb[0].mxu0
    %3625 = vdwg.mxu0
    %v3626 = vadd.f32 %v3543, %v3612
    %v3627 = vadd.f32 %v3546, %v3615
    %v3628 = vadd.f32 %v3551, %v3620
    %v3629 = vadd.f32 %v3554, %v3623
    %v3630 = vld [vmem:[%s2 + $0x1d8] sm:$0xff]
    %v3631 = vld [vmem:[%s2 + $0x1e0] sm:$0xff]
    %v3632 = vld [vmem:[%s2 + $0x1e8] sm:$0xff]
    %v3633 = vld [vmem:[%s2 + $0x1f0] sm:$0xff]
    %3635 = vset.pattern.permute.xlu0 0
    %3636 = vperm.xlu0 %3635, %v3630
    %v3637 = vpop.permute.xlu0 %3636
    %3640 = vset.pattern.permute.xlu0 0
    %3641 = vperm.xlu0 %3640, %v3631
    %v3642 = vpop.permute.xlu0 %3641
    %3645 = vset.pattern.permute.xlu0 0
    %3646 = vperm.xlu0 %3645, %v3632
    %v3647 = vpop.permute.xlu0 %3646
    %3650 = vset.pattern.permute.xlu0 0
    %3651 = vperm.xlu0 %3650, %v3633
    %v3652 = vpop.permute.xlu0 %3651
    %v3654 = vmul.f32 %v3626, %v3637
    %v3655 = vmul.f32 %v3627, %v3642
    %v3656 = vmul.f32 %v3628, %v3647
    %v3657 = vmul.f32 %v3629, %v3652
    %3658 = vset.pattern.permute.xlu0 1
    %3659 = vperm.xlu0 %3658, %v3630
    %v3660 = vpop.permute.xlu0 %3659
    %3662 = vset.pattern.permute.xlu0 1
    %3663 = vperm.xlu0 %3662, %v3631
    %v3664 = vpop.permute.xlu0 %3663
    %3666 = vset.pattern.permute.xlu0 1
    %3667 = vperm.xlu0 %3666, %v3632
    %v3668 = vpop.permute.xlu0 %3667
    %3670 = vset.pattern.permute.xlu0 1
    %3671 = vperm.xlu0 %3670, %v3633
    %v3672 = vpop.permute.xlu0 %3671
    %v3674 = vadd.f32 %v3654, %v3660
    %v3675 = vadd.f32 %v3655, %v3664
    %v3676 = vadd.f32 %v3656, %v3668
    %v3677 = vadd.f32 %v3657, %v3672
    %v3678 = vmax.f32 %v3674, 0.0
    %v3679 = vmax.f32 %v3675, 0.0
    %v3680 = vmax.f32 %v3676, 0.0
    %v3681 = vmax.f32 %v3677, 0.0
    %v3682 = vld [vmem:[#allocation2 + $0x390] sm:$0xf]
    %v3683 = vld [vmem:[#allocation2 + $0x394] sm:$0xf]
    %v3684 = vld [vmem:[#allocation2 + $0x398] sm:$0xf]
    %v3685 = vld [vmem:[#allocation2 + $0x39c] sm:$0xf]
    %v3686 = vpack.c.bf16 %v3679, %v3678
    %v3687 = vpack.c.bf16 %v3681, %v3680
    %v3688 = vld [vmem:[#allocation2 + $0x330] sm:$0xf]
    %v3689 = vld [vmem:[#allocation2 + $0x334] sm:$0xf]
    %v3690 = vld [vmem:[#allocation2 + $0x338] sm:$0xf]
    %v3691 = vld [vmem:[#allocation2 + $0x33c] sm:$0xf]
    %v3696 = vunpack.c.l.b16 %v3688
    %v3697 = vunpack.c.l.b16 %v3689
    %v3698 = vunpack.c.l.b16 %v3690
    %v3699 = vunpack.c.l.b16 %v3691
    %v3700 = vpack.c.b16 %v3697, %v3696
    %v3701 = vpack.c.b16 %v3699, %v3698
    %v3703 = vsel %vm799, %v3700, 0
    %v3706 = vsel %vm799, %v3701, 0
    %3708 = vmatprep.subr.bf16.mxu0 0
    %3709 = vmatpush1.bf16.msra.mxu0 %v1810
    %3710 = vmatprep.subr.bf16.mxu0 0
    %3711 = vmatpush1.bf16.msra.mxu0 %v1811
    %3712 = vmatprep.subr.bf16.mxu0 0
    %3713 = vmatpush1.bf16.msra.mxu0 0
    %3714 = vmatprep.subr.bf16.mxu0 0
    %3715 = vmatpush1.bf16.msra.mxu0 0
    %3716 = vmatprep.subr.bf16.mxu0 0
    %3717 = vmatpush1.bf16.msra.mxu0 0
    %3718 = vmatprep.subr.bf16.mxu0 0
    %3719 = vmatpush1.bf16.msra.mxu0 0
    %3720 = vmatprep.subr.bf16.mxu0 0
    %3721 = vmatpush1.bf16.msra.mxu0 0
    %3722 = vmatprep.subr.bf16.mxu0 0
    %3723 = vmatpush1.bf16.msra.mxu0 0
    %3724 = vmatprep.subr.bf16.mxu0 0
    %3725 = vmatpush1.bf16.msra.mxu0 0
    %3726 = vmatprep.subr.bf16.mxu0 0
    %3727 = vmatpush1.bf16.msra.mxu0 0
    %3728 = vmatprep.subr.bf16.mxu0 0
    %3729 = vmatpush1.bf16.msra.mxu0 0
    %3730 = vmatprep.subr.bf16.mxu0 0
    %3731 = vmatpush1.bf16.msra.mxu0 0
    %3732 = vmatprep.subr.bf16.mxu0 0
    %3733 = vmatpush1.bf16.msra.mxu0 0
    %3734 = vmatprep.subr.bf16.mxu0 0
    %3735 = vmatpush1.bf16.msra.mxu0 0
    %3736 = vmatprep.subr.bf16.mxu0 0
    %3737 = vmatpush1.bf16.msra.mxu0 0
    %3738 = vmatprep.subr.bf16.mxu0 0
    %3739 = vmatpush1.bf16.msra.mxu0 0
    %3740 = vmatprep.mubr.bf16.mxu0 0
    %3741 = vmatmul.mubr.bf16.gmra.mrb[0].mxu0 %v3703
    %v3742 = vpop.f32.mrb[0].mxu0
    %v3743 = vadd.f32 0.0, %v3742
    %v3744 = vpop.f32.mrb[0].mxu0
    %v3745 = vpop.f32.mrb[0].mxu0
    %v3746 = vadd.f32 0.0, %v3745
    %v3747 = vpop.f32.mrb[0].mxu0
    %3748 = vmatprep.mubr.bf16.mxu0 0
    %3749 = vmatmul.mubr.bf16.gmra.mrb[0].mxu0 %v3706
    %v3750 = vpop.f32.mrb[0].mxu0
    %v3751 = vadd.f32 0.0, %v3750
    %v3752 = vpop.f32.mrb[0].mxu0
    %v3753 = vpop.f32.mrb[0].mxu0
    %v3754 = vadd.f32 0.0, %v3753
    %v3755 = vpop.f32.mrb[0].mxu0
    %3756 = vdwg.mxu0
    %v3761 = vunpack.c.l.b16 %v3682
    %v3762 = vunpack.c.l.b16 %v3683
    %v3763 = vunpack.c.l.b16 %v3684
    %v3764 = vunpack.c.l.b16 %v3685
    %v3765 = vpack.c.b16 %v3762, %v3761
    %v3766 = vpack.c.b16 %v3764, %v3763
    %v3768 = vsel %vm799, %v3765, 0
    %v3771 = vsel %vm799, %v3766, 0
    %3773 = vmatprep.subr.bf16.mxu0 0
    %3774 = vmatpush1.bf16.msra.mxu0 %v3686
    %3775 = vmatprep.subr.bf16.mxu0 0
    %3776 = vmatpush1.bf16.msra.mxu0 %v3687
    %3777 = vmatprep.subr.bf16.mxu0 0
    %3778 = vmatpush1.bf16.msra.mxu0 0
    %3779 = vmatprep.subr.bf16.mxu0 0
    %3780 = vmatpush1.bf16.msra.mxu0 0
    %3781 = vmatprep.subr.bf16.mxu0 0
    %3782 = vmatpush1.bf16.msra.mxu0 0
    %3783 = vmatprep.subr.bf16.mxu0 0
    %3784 = vmatpush1.bf16.msra.mxu0 0
    %3785 = vmatprep.subr.bf16.mxu0 0
    %3786 = vmatpush1.bf16.msra.mxu0 0
    %3787 = vmatprep.subr.bf16.mxu0 0
    %3788 = vmatpush1.bf16.msra.mxu0 0
    %3789 = vmatprep.subr.bf16.mxu0 0
    %3790 = vmatpush1.bf16.msra.mxu0 0
    %3791 = vmatprep.subr.bf16.mxu0 0
    %3792 = vmatpush1.bf16.msra.mxu0 0
    %3793 = vmatprep.subr.bf16.mxu0 0
    %3794 = vmatpush1.bf16.msra.mxu0 0
    %3795 = vmatprep.subr.bf16.mxu0 0
    %3796 = vmatpush1.bf16.msra.mxu0 0
    %3797 = vmatprep.subr.bf16.mxu0 0
    %3798 = vmatpush1.bf16.msra.mxu0 0
    %3799 = vmatprep.subr.bf16.mxu0 0
    %3800 = vmatpush1.bf16.msra.mxu0 0
    %3801 = vmatprep.subr.bf16.mxu0 0
    %3802 = vmatpush1.bf16.msra.mxu0 0
    %3803 = vmatprep.subr.bf16.mxu0 0
    %3804 = vmatpush1.bf16.msra.mxu0 0
    %3805 = vmatprep.mubr.bf16.mxu0 0
    %3806 = vmatmul.mubr.bf16.gmra.mrb[0].mxu0 %v3768
    %v3807 = vpop.f32.mrb[0].mxu0
    %v3808 = vadd.f32 %v3743, %v3807
    %v3809 = vpop.f32.mrb[0].mxu0
    %v3810 = vpop.f32.mrb[0].mxu0
    %v3811 = vadd.f32 %v3746, %v3810
    %v3812 = vpop.f32.mrb[0].mxu0
    %3813 = vmatprep.mubr.bf16.mxu0 0
    %3814 = vmatmul.mubr.bf16.gmra.mrb[0].mxu0 %v3771
    %v3815 = vpop.f32.mrb[0].mxu0
    %v3816 = vadd.f32 %v3751, %v3815
    %v3817 = vpop.f32.mrb[0].mxu0
    %v3818 = vpop.f32.mrb[0].mxu0
    %v3819 = vadd.f32 %v3754, %v3818
    %v3820 = vpop.f32.mrb[0].mxu0
    %3821 = vdwg.mxu0
    %v3822 = vld [vmem:[#allocation2 + $0x350] sm:$0xf]
    %v3823 = vld [vmem:[#allocation2 + $0x354] sm:$0xf]
    %v3824 = vld [vmem:[#allocation2 + $0x358] sm:$0xf]
    %v3825 = vld [vmem:[#allocation2 + $0x35c] sm:$0xf]
    %v3826 = vpack.c.bf16 %v3008, %v3007
    %v3827 = vpack.c.bf16 %v3010, %v3009
    %v3832 = vunpack.c.l.b16 %v3822
    %v3833 = vunpack.c.l.b16 %v3823
    %v3834 = vunpack.c.l.b16 %v3824
    %v3835 = vunpack.c.l.b16 %v3825
    %v3836 = vpack.c.b16 %v3833, %v3832
    %v3837 = vpack.c.b16 %v3835, %v3834
    %v3839 = vsel %vm799, %v3836, 0
    %v3842 = vsel %vm799, %v3837, 0
    %3844 = vmatprep.subr.bf16.mxu0 0
    %3845 = vmatpush1.bf16.msra.mxu0 %v3826
    %3846 = vmatprep.subr.bf16.mxu0 0
    %3847 = vmatpush1.bf16.msra.mxu0 %v3827
    %3848 = vmatprep.subr.bf16.mxu0 0
    %3849 = vmatpush1.bf16.msra.mxu0 0
    %3850 = vmatprep.subr.bf16.mxu0 0
    %3851 = vmatpush1.bf16.msra.mxu0 0
    %3852 = vmatprep.subr.bf16.mxu0 0
    %3853 = vmatpush1.bf16.msra.mxu0 0
    %3854 = vmatprep.subr.bf16.mxu0 0
    %3855 = vmatpush1.bf16.msra.mxu0 0
    %3856 = vmatprep.subr.bf16.mxu0 0
    %3857 = vmatpush1.bf16.msra.mxu0 0
    %3858 = vmatprep.subr.bf16.mxu0 0
    %3859 = vmatpush1.bf16.msra.mxu0 0
    %3860 = vmatprep.subr.bf16.mxu0 0
    %3861 = vmatpush1.bf16.msra.mxu0 0
    %3862 = vmatprep.subr.bf16.mxu0 0
    %3863 = vmatpush1.bf16.msra.mxu0 0
    %3864 = vmatprep.subr.bf16.mxu0 0
    %3865 = vmatpush1.bf16.msra.mxu0 0
    %3866 = vmatprep.subr.bf16.mxu0 0
    %3867 = vmatpush1.bf16.msra.mxu0 0
    %3868 = vmatprep.subr.bf16.mxu0 0
    %3869 = vmatpush1.bf16.msra.mxu0 0
    %3870 = vmatprep.subr.bf16.mxu0 0
    %3871 = vmatpush1.bf16.msra.mxu0 0
    %3872 = vmatprep.subr.bf16.mxu0 0
    %3873 = vmatpush1.bf16.msra.mxu0 0
    %3874 = vmatprep.subr.bf16.mxu0 0
    %3875 = vmatpush1.bf16.msra.mxu0 0
    %3876 = vmatprep.mubr.bf16.mxu0 0
    %3877 = vmatmul.mubr.bf16.gmra.mrb[0].mxu0 %v3839
    %v3878 = vpop.f32.mrb[0].mxu0
    %v3879 = vadd.f32 0.0, %v3878
    %v3880 = vpop.f32.mrb[0].mxu0
    %v3881 = vpop.f32.mrb[0].mxu0
    %v3882 = vadd.f32 0.0, %v3881
    %v3883 = vpop.f32.mrb[0].mxu0
    %3884 = vmatprep.mubr.bf16.mxu0 0
    %3885 = vmatmul.mubr.bf16.gmra.mrb[0].mxu0 %v3842
    %v3886 = vpop.f32.mrb[0].mxu0
    %v3887 = vadd.f32 0.0, %v3886
    %v3888 = vpop.f32.mrb[0].mxu0
    %v3889 = vpop.f32.mrb[0].mxu0
    %v3890 = vadd.f32 0.0, %v3889
    %v3891 = vpop.f32.mrb[0].mxu0
    %3892 = vdwg.mxu0
    %v3893 = vadd.f32 %v3808, %v3879
    %v3894 = vadd.f32 %v3811, %v3882
    %v3895 = vadd.f32 %v3816, %v3887
    %v3896 = vadd.f32 %v3819, %v3890
    %v3897 = vld [vmem:[%s2 + $0x1f8] sm:$0xff]
    %v3898 = vld [vmem:[%s2 + $0x200] sm:$0xff]
    %v3899 = vld [vmem:[%s2 + $0x208] sm:$0xff]
    %v3900 = vld [vmem:[%s2 + $0x210] sm:$0xff]
    %3902 = vset.pattern.permute.xlu0 0
    %3903 = vperm.xlu0 %3902, %v3897
    %v3904 = vpop.permute.xlu0 %3903
    %3907 = vset.pattern.permute.xlu0 0
    %3908 = vperm.xlu0 %3907, %v3898
    %v3909 = vpop.permute.xlu0 %3908
    %3912 = vset.pattern.permute.xlu0 0
    %3913 = vperm.xlu0 %3912, %v3899
    %v3914 = vpop.permute.xlu0 %3913
    %3917 = vset.pattern.permute.xlu0 0
    %3918 = vperm.xlu0 %3917, %v3900
    %v3919 = vpop.permute.xlu0 %3918
    %v3921 = vadd.f32 %v3893, %v3904
    %v3922 = vadd.f32 %v3894, %v3909
    %v3923 = vadd.f32 %v3895, %v3914
    %v3924 = vadd.f32 %v3896, %v3919
    %v3925 = vpack.c.bf16 %v3922, %v3921
    %v3926 = vpack.c.bf16 %v3924, %v3923
    %v3927 = vld [vmem:[#allocation2 + $0x290] sm:$0xf]
    %v3928 = vld [vmem:[#allocation2 + $0x294] sm:$0xf]
    %v3931 = vunpack.c.l.b16 %v3927
    %v3932 = vunpack.c.l.b16 %v3928
    %v3933 = vpack.c.b16 %v3932, %v3931
    %v3935 = vsel %vm799, %v3933, 0
    %3937 = vmatprep.subr.bf16.mxu0 0
    %3938 = vmatpush1.bf16.msra.mxu0 %v3925
    %3939 = vmatprep.subr.bf16.mxu0 0
    %3940 = vmatpush1.bf16.msra.mxu0 %v3926
    %3941 = vmatprep.subr.bf16.mxu0 0
    %3942 = vmatpush1.bf16.msra.mxu0 0
    %3943 = vmatprep.subr.bf16.mxu0 0
    %3944 = vmatpush1.bf16.msra.mxu0 0
    %3945 = vmatprep.subr.bf16.mxu0 0
    %3946 = vmatpush1.bf16.msra.mxu0 0
    %3947 = vmatprep.subr.bf16.mxu0 0
    %3948 = vmatpush1.bf16.msra.mxu0 0
    %3949 = vmatprep.subr.bf16.mxu0 0
    %3950 = vmatpush1.bf16.msra.mxu0 0
    %3951 = vmatprep.subr.bf16.mxu0 0
    %3952 = vmatpush1.bf16.msra.mxu0 0
    %3953 = vmatprep.subr.bf16.mxu0 0
    %3954 = vmatpush1.bf16.msra.mxu0 0
    %3955 = vmatprep.subr.bf16.mxu0 0
    %3956 = vmatpush1.bf16.msra.mxu0 0
    %3957 = vmatprep.subr.bf16.mxu0 0
    %3958 = vmatpush1.bf16.msra.mxu0 0
    %3959 = vmatprep.subr.bf16.mxu0 0
    %3960 = vmatpush1.bf16.msra.mxu0 0
    %3961 = vmatprep.subr.bf16.mxu0 0
    %3962 = vmatpush1.bf16.msra.mxu0 0
    %3963 = vmatprep.subr.bf16.mxu0 0
    %3964 = vmatpush1.bf16.msra.mxu0 0
    %3965 = vmatprep.subr.bf16.mxu0 0
    %3966 = vmatpush1.bf16.msra.mxu0 0
    %3967 = vmatprep.subr.bf16.mxu0 0
    %3968 = vmatpush1.bf16.msra.mxu0 0
    %3969 = vmatprep.mubr.bf16.mxu0 0
    %3970 = vmatmul.mubr.bf16.gmra.mrb[0].mxu0 %v3935
    %v3971 = vpop.f32.mrb[0].mxu0
    %v3972 = vadd.f32 0.0, %v3971
    %v3973 = vpop.f32.mrb[0].mxu0
    %v3974 = vpop.f32.mrb[0].mxu0
    %v3975 = vadd.f32 0.0, %v3974
    %v3976 = vpop.f32.mrb[0].mxu0
    %3977 = vdwg.mxu0
    %v3978 = vpack.c.bf16 %v3975, %v3972
    %v3979 = vld [vmem:[#allocation2 + $0x298] sm:$0xf]
    %v3980 = vld [vmem:[#allocation2 + $0x29c] sm:$0xf]
    %v3983 = vunpack.c.l.b16 %v3979
    %v3984 = vunpack.c.l.b16 %v3980
    %v3985 = vpack.c.b16 %v3984, %v3983
    %v3987 = vsel %vm799, %v3985, 0
    %3989 = vmatprep.subr.bf16.mxu0 0
    %3990 = vmatpush1.bf16.msra.mxu0 %v3925
    %3991 = vmatprep.subr.bf16.mxu0 0
    %3992 = vmatpush1.bf16.msra.mxu0 %v3926
    %3993 = vmatprep.subr.bf16.mxu0 0
    %3994 = vmatpush1.bf16.msra.mxu0 0
    %3995 = vmatprep.subr.bf16.mxu0 0
    %3996 = vmatpush1.bf16.msra.mxu0 0
    %3997 = vmatprep.subr.bf16.mxu0 0
    %3998 = vmatpush1.bf16.msra.mxu0 0
    %3999 = vmatprep.subr.bf16.mxu0 0
    %4000 = vmatpush1.bf16.msra.mxu0 0
    %4001 = vmatprep.subr.bf16.mxu0 0
    %4002 = vmatpush1.bf16.msra.mxu0 0
    %4003 = vmatprep.subr.bf16.mxu0 0
    %4004 = vmatpush1.bf16.msra.mxu0 0
    %4005 = vmatprep.subr.bf16.mxu0 0
    %4006 = vmatpush1.bf16.msra.mxu0 0
    %4007 = vmatprep.subr.bf16.mxu0 0
    %4008 = vmatpush1.bf16.msra.mxu0 0
    %4009 = vmatprep.subr.bf16.mxu0 0
    %4010 = vmatpush1.bf16.msra.mxu0 0
    %4011 = vmatprep.subr.bf16.mxu0 0
    %4012 = vmatpush1.bf16.msra.mxu0 0
    %4013 = vmatprep.subr.bf16.mxu0 0
    %4014 = vmatpush1.bf16.msra.mxu0 0
    %4015 = vmatprep.subr.bf16.mxu0 0
    %4016 = vmatpush1.bf16.msra.mxu0 0
    %4017 = vmatprep.subr.bf16.mxu0 0
    %4018 = vmatpush1.bf16.msra.mxu0 0
    %4019 = vmatprep.subr.bf16.mxu0 0
    %4020 = vmatpush1.bf16.msra.mxu0 0
    %4021 = vmatprep.mubr.bf16.mxu0 0
    %4022 = vmatmul.mubr.bf16.gmra.mrb[0].mxu0 %v3987
    %v4023 = vpop.f32.mrb[0].mxu0
    %v4024 = vadd.f32 0.0, %v4023
    %v4025 = vpop.f32.mrb[0].mxu0
    %v4026 = vpop.f32.mrb[0].mxu0
    %v4027 = vadd.f32 0.0, %v4026
    %v4028 = vpop.f32.mrb[0].mxu0
    %4029 = vdwg.mxu0
    %v4030 = vpack.c.bf16 %v4027, %v4024
    %v4031 = vld [vmem:[#allocation2 + $0x2a0] sm:$0xf]
    %v4032 = vld [vmem:[#allocation2 + $0x2a4] sm:$0xf]
    %v4033 = vld [vmem:[#allocation2 + $0x2a8] sm:$0xf]
    %v4034 = vld [vmem:[#allocation2 + $0x2ac] sm:$0xf]
    %v4037 = vunpack.c.l.b16 %v4033
    %v4038 = vunpack.c.l.b16 %v4034
    %v4039 = vpack.c.b16 %v4038, %v4037
    %v4042 = vsel %vm1284, %v4030, 0
    %4044 = vmatprep.subr.bf16.mxu0 0
    %4045 = vmatpush1.bf16.msra.mxu0 %v4039
    %4046 = vmatprep.subr.bf16.mxu0 0
    %4047 = vmatpush1.bf16.msra.mxu0 0
    %4048 = vmatprep.subr.bf16.mxu0 0
    %4049 = vmatpush1.bf16.msra.mxu0 0
    %4050 = vmatprep.subr.bf16.mxu0 0
    %4051 = vmatpush1.bf16.msra.mxu0 0
    %4052 = vmatprep.subr.bf16.mxu0 0
    %4053 = vmatpush1.bf16.msra.mxu0 0
    %4054 = vmatprep.subr.bf16.mxu0 0
    %4055 = vmatpush1.bf16.msra.mxu0 0
    %4056 = vmatprep.subr.bf16.mxu0 0
    %4057 = vmatpush1.bf16.msra.mxu0 0
    %4058 = vmatprep.subr.bf16.mxu0 0
    %4059 = vmatpush1.bf16.msra.mxu0 0
    %4060 = vmatprep.subr.bf16.mxu0 0
    %4061 = vmatpush1.bf16.msra.mxu0 0
    %4062 = vmatprep.subr.bf16.mxu0 0
    %4063 = vmatpush1.bf16.msra.mxu0 0
    %4064 = vmatprep.subr.bf16.mxu0 0
    %4065 = vmatpush1.bf16.msra.mxu0 0
    %4066 = vmatprep.subr.bf16.mxu0 0
    %4067 = vmatpush1.bf16.msra.mxu0 0
    %4068 = vmatprep.subr.bf16.mxu0 0
    %4069 = vmatpush1.bf16.msra.mxu0 0
    %4070 = vmatprep.subr.bf16.mxu0 0
    %4071 = vmatpush1.bf16.msra.mxu0 0
    %4072 = vmatprep.subr.bf16.mxu0 0
    %4073 = vmatpush1.bf16.msra.mxu0 0
    %4074 = vmatprep.subr.bf16.mxu0 0
    %4075 = vmatpush1.bf16.msra.mxu0 0
    %4076 = vmatprep.mubr.bf16.mxu0 0
    %4077 = vmatmul.mubr.bf16.gmra.mrb[0].mxu0 %v4042
    %v4078 = vpop.f32.mrb[0].mxu0
    %v4079 = vadd.f32 0.0, %v4078
    %v4080 = vpop.f32.mrb[0].mxu0
    %v4081 = vpop.f32.mrb[0].mxu0
    %v4082 = vadd.f32 0.0, %v4081
    %v4083 = vpop.f32.mrb[0].mxu0
    %4084 = vdwg.mxu0
    %v4087 = vunpack.c.l.b16 %v4031
    %v4088 = vunpack.c.l.b16 %v4032
    %v4089 = vpack.c.b16 %v4088, %v4087
    %v4092 = vsel %vm1284, %v3978, 0
    %4094 = vmatprep.subr.bf16.mxu0 0
    %4095 = vmatpush1.bf16.msra.mxu0 %v4089
    %4096 = vmatprep.subr.bf16.mxu0 0
    %4097 = vmatpush1.bf16.msra.mxu0 0
    %4098 = vmatprep.subr.bf16.mxu0 0
    %4099 = vmatpush1.bf16.msra.mxu0 0
    %4100 = vmatprep.subr.bf16.mxu0 0
    %4101 = vmatpush1.bf16.msra.mxu0 0
    %4102 = vmatprep.subr.bf16.mxu0 0
    %4103 = vmatpush1.bf16.msra.mxu0 0
    %4104 = vmatprep.subr.bf16.mxu0 0
    %4105 = vmatpush1.bf16.msra.mxu0 0
    %4106 = vmatprep.subr.bf16.mxu0 0
    %4107 = vmatpush1.bf16.msra.mxu0 0
    %4108 = vmatprep.subr.bf16.mxu0 0
    %4109 = vmatpush1.bf16.msra.mxu0 0
    %4110 = vmatprep.subr.bf16.mxu0 0
    %4111 = vmatpush1.bf16.msra.mxu0 0
    %4112 = vmatprep.subr.bf16.mxu0 0
    %4113 = vmatpush1.bf16.msra.mxu0 0
    %4114 = vmatprep.subr.bf16.mxu0 0
    %4115 = vmatpush1.bf16.msra.mxu0 0
    %4116 = vmatprep.subr.bf16.mxu0 0
    %4117 = vmatpush1.bf16.msra.mxu0 0
    %4118 = vmatprep.subr.bf16.mxu0 0
    %4119 = vmatpush1.bf16.msra.mxu0 0
    %4120 = vmatprep.subr.bf16.mxu0 0
    %4121 = vmatpush1.bf16.msra.mxu0 0
    %4122 = vmatprep.subr.bf16.mxu0 0
    %4123 = vmatpush1.bf16.msra.mxu0 0
    %4124 = vmatprep.subr.bf16.mxu0 0
    %4125 = vmatpush1.bf16.msra.mxu0 0
    %4126 = vmatprep.mubr.bf16.mxu0 0
    %4127 = vmatmul.mubr.bf16.gmra.mrb[0].mxu0 %v4092
    %v4128 = vpop.f32.mrb[0].mxu0
    %v4129 = vadd.f32 %v4079, %v4128
    %v4130 = vpop.f32.mrb[0].mxu0
    %v4131 = vpop.f32.mrb[0].mxu0
    %v4132 = vadd.f32 %v4082, %v4131
    %v4133 = vpop.f32.mrb[0].mxu0
    %4134 = vdwg.mxu0
    %v4135 = vld [vmem:[%s2 + $0x158] sm:$0xff]
    %v4136 = vld [vmem:[%s2 + $0x160] sm:$0xff]
    %4138 = vset.pattern.permute.xlu0 0
    %4139 = vperm.xlu0 %4138, %v4135
    %v4140 = vpop.permute.xlu0 %4139
    %4143 = vset.pattern.permute.xlu0 0
    %4144 = vperm.xlu0 %4143, %v4136
    %v4145 = vpop.permute.xlu0 %4144
    %v4147 = vadd.f32 %v4129, %v4140
    %v4148 = vadd.f32 %v4132, %v4145
    %v4149 = vld [vmem:[%s2 + $0x218] sm:$0xff]
    %v4150 = vld [vmem:[%s2 + $0x220] sm:$0xff]
    %4152 = vset.pattern.permute.xlu0 0
    %4153 = vperm.xlu0 %4152, %v4149
    %v4154 = vpop.permute.xlu0 %4153
    %4157 = vset.pattern.permute.xlu0 0
    %4158 = vperm.xlu0 %4157, %v4150
    %v4159 = vpop.permute.xlu0 %4158
    %v4161 = vmul.f32 %v1177, %v4154
    %v4162 = vmul.f32 %v1178, %v4159
    %4163 = vset.pattern.permute.xlu0 1
    %4164 = vperm.xlu0 %4163, %v4149
    %v4165 = vpop.permute.xlu0 %4164
    %4167 = vset.pattern.permute.xlu0 1
    %4168 = vperm.xlu0 %4167, %v4150
    %v4169 = vpop.permute.xlu0 %4168
    %v4171 = vadd.f32 %v4161, %v4165
    %v4172 = vadd.f32 %v4162, %v4169
    %v4173 = vmax.f32 %v4171, 0.0
    %v4174 = vmax.f32 %v4172, 0.0
    %v4175 = vld [vmem:[#allocation2 + $0x3a0] sm:$0xf]
    %v4176 = vld [vmem:[#allocation2 + $0x3a4] sm:$0xf]
    %v4177 = vpack.c.bf16 %v4174, %v4173
    %v4178 = vld [vmem:[%s2 + $0x228] sm:$0xff]
    %v4179 = vld [vmem:[%s2 + $0x230] sm:$0xff]
    %4181 = vset.pattern.permute.xlu0 0
    %4182 = vperm.xlu0 %4181, %v4178
    %v4183 = vpop.permute.xlu0 %4182
    %4186 = vset.pattern.permute.xlu0 0
    %4187 = vperm.xlu0 %4186, %v4179
    %v4188 = vpop.permute.xlu0 %4187
    %v4190 = vmul.f32 %v4147, %v4183
    %v4191 = vmul.f32 %v4148, %v4188
    %4192 = vset.pattern.permute.xlu0 1
    %4193 = vperm.xlu0 %4192, %v4178
    %v4194 = vpop.permute.xlu0 %4193
    %4196 = vset.pattern.permute.xlu0 1
    %4197 = vperm.xlu0 %4196, %v4179
    %v4198 = vpop.permute.xlu0 %4197
    %v4200 = vadd.f32 %v4190, %v4194
    %v4201 = vadd.f32 %v4191, %v4198
    %v4202 = vmax.f32 %v4200, 0.0
    %v4203 = vmax.f32 %v4201, 0.0
    %v4204 = vld [vmem:[#allocation2 + $0x3b0] sm:$0xf]
    %v4205 = vld [vmem:[#allocation2 + $0x3b4] sm:$0xf]
    %v4206 = vpack.c.bf16 %v4203, %v4202
    %v4209 = vunpack.c.l.b16 %v4204
    %v4210 = vunpack.c.l.b16 %v4205
    %v4211 = vpack.c.b16 %v4210, %v4209
    %v4213 = vsel %vm1284, %v4211, 0
    %4215 = vmatprep.subr.bf16.mxu0 0
    %4216 = vmatpush1.bf16.msra.mxu0 %v4206
    %4217 = vmatprep.subr.bf16.mxu0 0
    %4218 = vmatpush1.bf16.msra.mxu0 0
    %4219 = vmatprep.subr.bf16.mxu0 0
    %4220 = vmatpush1.bf16.msra.mxu0 0
    %4221 = vmatprep.subr.bf16.mxu0 0
    %4222 = vmatpush1.bf16.msra.mxu0 0
    %4223 = vmatprep.subr.bf16.mxu0 0
    %4224 = vmatpush1.bf16.msra.mxu0 0
    %4225 = vmatprep.subr.bf16.mxu0 0
    %4226 = vmatpush1.bf16.msra.mxu0 0
    %4227 = vmatprep.subr.bf16.mxu0 0
    %4228 = vmatpush1.bf16.msra.mxu0 0
    %4229 = vmatprep.subr.bf16.mxu0 0
    %4230 = vmatpush1.bf16.msra.mxu0 0
    %4231 = vmatprep.subr.bf16.mxu0 0
    %4232 = vmatpush1.bf16.msra.mxu0 0
    %4233 = vmatprep.subr.bf16.mxu0 0
    %4234 = vmatpush1.bf16.msra.mxu0 0
    %4235 = vmatprep.subr.bf16.mxu0 0
    %4236 = vmatpush1.bf16.msra.mxu0 0
    %4237 = vmatprep.subr.bf16.mxu0 0
    %4238 = vmatpush1.bf16.msra.mxu0 0
    %4239 = vmatprep.subr.bf16.mxu0 0
    %4240 = vmatpush1.bf16.msra.mxu0 0
    %4241 = vmatprep.subr.bf16.mxu0 0
    %4242 = vmatpush1.bf16.msra.mxu0 0
    %4243 = vmatprep.subr.bf16.mxu0 0
    %4244 = vmatpush1.bf16.msra.mxu0 0
    %4245 = vmatprep.subr.bf16.mxu0 0
    %4246 = vmatpush1.bf16.msra.mxu0 0
    %4247 = vmatprep.mubr.bf16.mxu0 0
    %4248 = vmatmul.mubr.bf16.gmra.mrb[0].mxu0 %v4213
    %v4249 = vpop.f32.mrb[0].mxu0
    %v4250 = vadd.f32 0.0, %v4249
    %v4251 = vpop.f32.mrb[0].mxu0
    %v4252 = vpop.f32.mrb[0].mxu0
    %v4253 = vadd.f32 0.0, %v4252
    %v4254 = vpop.f32.mrb[0].mxu0
    %4255 = vdwg.mxu0
    %v4258 = vunpack.c.l.b16 %v4175
    %v4259 = vunpack.c.l.b16 %v4176
    %v4260 = vpack.c.b16 %v4259, %v4258
    %v4262 = vsel %vm1284, %v4260, 0
    %4264 = vmatprep.subr.bf16.mxu0 0
    %4265 = vmatpush1.bf16.msra.mxu0 %v4177
    %4266 = vmatprep.subr.bf16.mxu0 0
    %4267 = vmatpush1.bf16.msra.mxu0 0
    %4268 = vmatprep.subr.bf16.mxu0 0
    %4269 = vmatpush1.bf16.msra.mxu0 0
    %4270 = vmatprep.subr.bf16.mxu0 0
    %4271 = vmatpush1.bf16.msra.mxu0 0
    %4272 = vmatprep.subr.bf16.mxu0 0
    %4273 = vmatpush1.bf16.msra.mxu0 0
    %4274 = vmatprep.subr.bf16.mxu0 0
    %4275 = vmatpush1.bf16.msra.mxu0 0
    %4276 = vmatprep.subr.bf16.mxu0 0
    %4277 = vmatpush1.bf16.msra.mxu0 0
    %4278 = vmatprep.subr.bf16.mxu0 0
    %4279 = vmatpush1.bf16.msra.mxu0 0
    %4280 = vmatprep.subr.bf16.mxu0 0
    %4281 = vmatpush1.bf16.msra.mxu0 0
    %4282 = vmatprep.subr.bf16.mxu0 0
    %4283 = vmatpush1.bf16.msra.mxu0 0
    %4284 = vmatprep.subr.bf16.mxu0 0
    %4285 = vmatpush1.bf16.msra.mxu0 0
    %4286 = vmatprep.subr.bf16.mxu0 0
    %4287 = vmatpush1.bf16.msra.mxu0 0
    %4288 = vmatprep.subr.bf16.mxu0 0
    %4289 = vmatpush1.bf16.msra.mxu0 0
    %4290 = vmatprep.subr.bf16.mxu0 0
    %4291 = vmatpush1.bf16.msra.mxu0 0
    %4292 = vmatprep.subr.bf16.mxu0 0
    %4293 = vmatpush1.bf16.msra.mxu0 0
    %4294 = vmatprep.subr.bf16.mxu0 0
    %4295 = vmatpush1.bf16.msra.mxu0 0
    %4296 = vmatprep.mubr.bf16.mxu0 0
    %4297 = vmatmul.mubr.bf16.gmra.mrb[0].mxu0 %v4262
    %v4298 = vpop.f32.mrb[0].mxu0
    %v4299 = vadd.f32 %v4250, %v4298
    %v4300 = vpop.f32.mrb[0].mxu0
    %v4301 = vpop.f32.mrb[0].mxu0
    %v4302 = vadd.f32 %v4253, %v4301
    %v4303 = vpop.f32.mrb[0].mxu0
    %4304 = vdwg.mxu0
    %v4305 = vld [vmem:[%s2 + $0x238] sm:$0xff]
    %v4306 = vld [vmem:[%s2 + $0x240] sm:$0xff]
    %4308 = vset.pattern.permute.xlu0 0
    %4309 = vperm.xlu0 %4308, %v4305
    %v4310 = vpop.permute.xlu0 %4309
    %4313 = vset.pattern.permute.xlu0 0
    %4314 = vperm.xlu0 %4313, %v4306
    %v4315 = vpop.permute.xlu0 %4314
    %v4317 = vmul.f32 %v4299, %v4310
    %v4318 = vmul.f32 %v4302, %v4315
    %4319 = vset.pattern.permute.xlu0 1
    %4320 = vperm.xlu0 %4319, %v4305
    %v4321 = vpop.permute.xlu0 %4320
    %4323 = vset.pattern.permute.xlu0 1
    %4324 = vperm.xlu0 %4323, %v4306
    %v4325 = vpop.permute.xlu0 %4324
    %v4327 = vadd.f32 %v4317, %v4321
    %v4328 = vadd.f32 %v4318, %v4325
    %v4329 = vmax.f32 %v4327, 0.0
    %v4330 = vmax.f32 %v4328, 0.0
    %v4331 = vpack.c.bf16 %v4330, %v4329
    %v4333 = vsel %vm799, %v4331, 0
    %4335 = vmatprep.subr.bf16.mxu0 0
    %4336 = vmatpush1.bf16.msra.mxu0 %v795
    %4337 = vmatprep.subr.bf16.mxu0 0
    %4338 = vmatpush1.bf16.msra.mxu0 %v796
    %4339 = vmatprep.subr.bf16.mxu0 0
    %4340 = vmatpush1.bf16.msra.mxu0 0
    %4341 = vmatprep.subr.bf16.mxu0 0
    %4342 = vmatpush1.bf16.msra.mxu0 0
    %4343 = vmatprep.subr.bf16.mxu0 0
    %4344 = vmatpush1.bf16.msra.mxu0 0
    %4345 = vmatprep.subr.bf16.mxu0 0
    %4346 = vmatpush1.bf16.msra.mxu0 0
    %4347 = vmatprep.subr.bf16.mxu0 0
    %4348 = vmatpush1.bf16.msra.mxu0 0
    %4349 = vmatprep.subr.bf16.mxu0 0
    %4350 = vmatpush1.bf16.msra.mxu0 0
    %4351 = vmatprep.subr.bf16.mxu0 0
    %4352 = vmatpush1.bf16.msra.mxu0 0
    %4353 = vmatprep.subr.bf16.mxu0 0
    %4354 = vmatpush1.bf16.msra.mxu0 0
    %4355 = vmatprep.subr.bf16.mxu0 0
    %4356 = vmatpush1.bf16.msra.mxu0 0
    %4357 = vmatprep.subr.bf16.mxu0 0
    %4358 = vmatpush1.bf16.msra.mxu0 0
    %4359 = vmatprep.subr.bf16.mxu0 0
    %4360 = vmatpush1.bf16.msra.mxu0 0
    %4361 = vmatprep.subr.bf16.mxu0 0
    %4362 = vmatpush1.bf16.msra.mxu0 0
    %4363 = vmatprep.subr.bf16.mxu0 0
    %4364 = vmatpush1.bf16.msra.mxu0 0
    %4365 = vmatprep.subr.bf16.mxu0 0
    %4366 = vmatpush1.bf16.msra.mxu0 0
    %4367 = vmatprep.mubr.bf16.mxu0 0
    %4368 = vmatmul.mubr.bf16.gmra.mrb[0].mxu0 %v4333
    %v4369 = vpop.f32.mrb[0].mxu0
    %v4370 = vadd.f32 0.0, %v4369
    %v4371 = vpop.f32.mrb[0].mxu0
    %v4372 = vpop.f32.mrb[0].mxu0
    %v4373 = vadd.f32 0.0, %v4372
    %v4374 = vpop.f32.mrb[0].mxu0
    %4375 = vdwg.mxu0
    %v4376 = vpack.c.bf16 %v4373, %v4370
    %4377 = vmatprep.subr.bf16.mxu0 0
    %4378 = vmatpush1.bf16.msra.mxu0 %v856
    %4379 = vmatprep.subr.bf16.mxu0 0
    %4380 = vmatpush1.bf16.msra.mxu0 %v857
    %4381 = vmatprep.subr.bf16.mxu0 0
    %4382 = vmatpush1.bf16.msra.mxu0 0
    %4383 = vmatprep.subr.bf16.mxu0 0
    %4384 = vmatpush1.bf16.msra.mxu0 0
    %4385 = vmatprep.subr.bf16.mxu0 0
    %4386 = vmatpush1.bf16.msra.mxu0 0
    %4387 = vmatprep.subr.bf16.mxu0 0
    %4388 = vmatpush1.bf16.msra.mxu0 0
    %4389 = vmatprep.subr.bf16.mxu0 0
    %4390 = vmatpush1.bf16.msra.mxu0 0
    %4391 = vmatprep.subr.bf16.mxu0 0
    %4392 = vmatpush1.bf16.msra.mxu0 0
    %4393 = vmatprep.subr.bf16.mxu0 0
    %4394 = vmatpush1.bf16.msra.mxu0 0
    %4395 = vmatprep.subr.bf16.mxu0 0
    %4396 = vmatpush1.bf16.msra.mxu0 0
    %4397 = vmatprep.subr.bf16.mxu0 0
    %4398 = vmatpush1.bf16.msra.mxu0 0
    %4399 = vmatprep.subr.bf16.mxu0 0
    %4400 = vmatpush1.bf16.msra.mxu0 0
    %4401 = vmatprep.subr.bf16.mxu0 0
    %4402 = vmatpush1.bf16.msra.mxu0 0
    %4403 = vmatprep.subr.bf16.mxu0 0
    %4404 = vmatpush1.bf16.msra.mxu0 0
    %4405 = vmatprep.subr.bf16.mxu0 0
    %4406 = vmatpush1.bf16.msra.mxu0 0
    %4407 = vmatprep.subr.bf16.mxu0 0
    %4408 = vmatpush1.bf16.msra.mxu0 0
    %4409 = vmatprep.mubr.bf16.mxu0 0
    %4410 = vmatmul.mubr.bf16.gmra.mrb[0].mxu0 %v4333
    %v4411 = vpop.f32.mrb[0].mxu0
    %v4412 = vadd.f32 0.0, %v4411
    %v4413 = vpop.f32.mrb[0].mxu0
    %v4414 = vpop.f32.mrb[0].mxu0
    %v4415 = vadd.f32 0.0, %v4414
    %v4416 = vpop.f32.mrb[0].mxu0
    %4417 = vdwg.mxu0
    %v4418 = vpack.c.bf16 %v4415, %v4412
    %v4419 = vld [vmem:[#allocation2 + $0x3c8] sm:$0xf]
    %v4420 = vld [vmem:[#allocation2 + $0x3cc] sm:$0xf]
    %v4421 = vld [vmem:[#allocation2 + $0x3c0] sm:$0xf]
    %v4422 = vld [vmem:[#allocation2 + $0x3c4] sm:$0xf]
    %v4425 = vunpack.c.l.b16 %v4421
    %v4426 = vunpack.c.l.b16 %v4422
    %v4427 = vpack.c.b16 %v4426, %v4425
    %v4429 = vsel %vm1284, %v4427, 0
    %4431 = vmatprep.subr.bf16.mxu0 0
    %4432 = vmatpush1.bf16.msra.mxu0 %v4376
    %4433 = vmatprep.subr.bf16.mxu0 0
    %4434 = vmatpush1.bf16.msra.mxu0 0
    %4435 = vmatprep.subr.bf16.mxu0 0
    %4436 = vmatpush1.bf16.msra.mxu0 0
    %4437 = vmatprep.subr.bf16.mxu0 0
    %4438 = vmatpush1.bf16.msra.mxu0 0
    %4439 = vmatprep.subr.bf16.mxu0 0
    %4440 = vmatpush1.bf16.msra.mxu0 0
    %4441 = vmatprep.subr.bf16.mxu0 0
    %4442 = vmatpush1.bf16.msra.mxu0 0
    %4443 = vmatprep.subr.bf16.mxu0 0
    %4444 = vmatpush1.bf16.msra.mxu0 0
    %4445 = vmatprep.subr.bf16.mxu0 0
    %4446 = vmatpush1.bf16.msra.mxu0 0
    %4447 = vmatprep.subr.bf16.mxu0 0
    %4448 = vmatpush1.bf16.msra.mxu0 0
    %4449 = vmatprep.subr.bf16.mxu0 0
    %4450 = vmatpush1.bf16.msra.mxu0 0
    %4451 = vmatprep.subr.bf16.mxu0 0
    %4452 = vmatpush1.bf16.msra.mxu0 0
    %4453 = vmatprep.subr.bf16.mxu0 0
    %4454 = vmatpush1.bf16.msra.mxu0 0
    %4455 = vmatprep.subr.bf16.mxu0 0
    %4456 = vmatpush1.bf16.msra.mxu0 0
    %4457 = vmatprep.subr.bf16.mxu0 0
    %4458 = vmatpush1.bf16.msra.mxu0 0
    %4459 = vmatprep.subr.bf16.mxu0 0
    %4460 = vmatpush1.bf16.msra.mxu0 0
    %4461 = vmatprep.subr.bf16.mxu0 0
    %4462 = vmatpush1.bf16.msra.mxu0 0
    %4463 = vmatprep.mubr.bf16.mxu0 0
    %4464 = vmatmul.mubr.bf16.gmra.mrb[0].mxu0 %v4429
    %v4465 = vpop.f32.mrb[0].mxu0
    %v4466 = vadd.f32 0.0, %v4465
    %v4467 = vpop.f32.mrb[0].mxu0
    %v4468 = vpop.f32.mrb[0].mxu0
    %v4469 = vadd.f32 0.0, %v4468
    %v4470 = vpop.f32.mrb[0].mxu0
    %4471 = vdwg.mxu0
    %v4474 = vunpack.c.l.b16 %v4419
    %v4475 = vunpack.c.l.b16 %v4420
    %v4476 = vpack.c.b16 %v4475, %v4474
    %v4478 = vsel %vm1284, %v4476, 0
    %4480 = vmatprep.subr.bf16.mxu0 0
    %4481 = vmatpush1.bf16.msra.mxu0 %v4331
    %4482 = vmatprep.subr.bf16.mxu0 0
    %4483 = vmatpush1.bf16.msra.mxu0 0
    %4484 = vmatprep.subr.bf16.mxu0 0
    %4485 = vmatpush1.bf16.msra.mxu0 0
    %4486 = vmatprep.subr.bf16.mxu0 0
    %4487 = vmatpush1.bf16.msra.mxu0 0
    %4488 = vmatprep.subr.bf16.mxu0 0
    %4489 = vmatpush1.bf16.msra.mxu0 0
    %4490 = vmatprep.subr.bf16.mxu0 0
    %4491 = vmatpush1.bf16.msra.mxu0 0
    %4492 = vmatprep.subr.bf16.mxu0 0
    %4493 = vmatpush1.bf16.msra.mxu0 0
    %4494 = vmatprep.subr.bf16.mxu0 0
    %4495 = vmatpush1.bf16.msra.mxu0 0
    %4496 = vmatprep.subr.bf16.mxu0 0
    %4497 = vmatpush1.bf16.msra.mxu0 0
    %4498 = vmatprep.subr.bf16.mxu0 0
    %4499 = vmatpush1.bf16.msra.mxu0 0
    %4500 = vmatprep.subr.bf16.mxu0 0
    %4501 = vmatpush1.bf16.msra.mxu0 0
    %4502 = vmatprep.subr.bf16.mxu0 0
    %4503 = vmatpush1.bf16.msra.mxu0 0
    %4504 = vmatprep.subr.bf16.mxu0 0
    %4505 = vmatpush1.bf16.msra.mxu0 0
    %4506 = vmatprep.subr.bf16.mxu0 0
    %4507 = vmatpush1.bf16.msra.mxu0 0
    %4508 = vmatprep.subr.bf16.mxu0 0
    %4509 = vmatpush1.bf16.msra.mxu0 0
    %4510 = vmatprep.subr.bf16.mxu0 0
    %4511 = vmatpush1.bf16.msra.mxu0 0
    %4512 = vmatprep.mubr.bf16.mxu0 0
    %4513 = vmatmul.mubr.bf16.gmra.mrb[0].mxu0 %v4478
    %v4514 = vpop.f32.mrb[0].mxu0
    %v4515 = vadd.f32 %v4466, %v4514
    %v4516 = vpop.f32.mrb[0].mxu0
    %v4517 = vpop.f32.mrb[0].mxu0
    %v4518 = vadd.f32 %v4469, %v4517
    %v4519 = vpop.f32.mrb[0].mxu0
    %4520 = vdwg.mxu0
    %v4521 = vld [vmem:[#allocation2 + $0x3d0] sm:$0xf]
    %v4522 = vld [vmem:[#allocation2 + $0x3d4] sm:$0xf]
    %v4525 = vunpack.c.l.b16 %v4521
    %v4526 = vunpack.c.l.b16 %v4522
    %v4527 = vpack.c.b16 %v4526, %v4525
    %v4529 = vsel %vm1284, %v4527, 0
    %4531 = vmatprep.subr.bf16.mxu0 0
    %4532 = vmatpush1.bf16.msra.mxu0 %v4418
    %4533 = vmatprep.subr.bf16.mxu0 0
    %4534 = vmatpush1.bf16.msra.mxu0 0
    %4535 = vmatprep.subr.bf16.mxu0 0
    %4536 = vmatpush1.bf16.msra.mxu0 0
    %4537 = vmatprep.subr.bf16.mxu0 0
    %4538 = vmatpush1.bf16.msra.mxu0 0
    %4539 = vmatprep.subr.bf16.mxu0 0
    %4540 = vmatpush1.bf16.msra.mxu0 0
    %4541 = vmatprep.subr.bf16.mxu0 0
    %4542 = vmatpush1.bf16.msra.mxu0 0
    %4543 = vmatprep.subr.bf16.mxu0 0
    %4544 = vmatpush1.bf16.msra.mxu0 0
    %4545 = vmatprep.subr.bf16.mxu0 0
    %4546 = vmatpush1.bf16.msra.mxu0 0
    %4547 = vmatprep.subr.bf16.mxu0 0
    %4548 = vmatpush1.bf16.msra.mxu0 0
    %4549 = vmatprep.subr.bf16.mxu0 0
    %4550 = vmatpush1.bf16.msra.mxu0 0
    %4551 = vmatprep.subr.bf16.mxu0 0
    %4552 = vmatpush1.bf16.msra.mxu0 0
    %4553 = vmatprep.subr.bf16.mxu0 0
    %4554 = vmatpush1.bf16.msra.mxu0 0
    %4555 = vmatprep.subr.bf16.mxu0 0
    %4556 = vmatpush1.bf16.msra.mxu0 0
    %4557 = vmatprep.subr.bf16.mxu0 0
    %4558 = vmatpush1.bf16.msra.mxu0 0
    %4559 = vmatprep.subr.bf16.mxu0 0
    %4560 = vmatpush1.bf16.msra.mxu0 0
    %4561 = vmatprep.subr.bf16.mxu0 0
    %4562 = vmatpush1.bf16.msra.mxu0 0
    %4563 = vmatprep.mubr.bf16.mxu0 0
    %4564 = vmatmul.mubr.bf16.gmra.mrb[0].mxu0 %v4529
    %v4565 = vpop.f32.mrb[0].mxu0
    %v4566 = vadd.f32 0.0, %v4565
    %v4567 = vpop.f32.mrb[0].mxu0
    %v4568 = vpop.f32.mrb[0].mxu0
    %v4569 = vadd.f32 0.0, %v4568
    %v4570 = vpop.f32.mrb[0].mxu0
    %4571 = vdwg.mxu0
    %v4572 = vadd.f32 %v4515, %v4566
    %v4573 = vadd.f32 %v4518, %v4569
    %v4574 = vld [vmem:[%s2 + $0x248] sm:$0xff]
    %v4575 = vld [vmem:[%s2 + $0x250] sm:$0xff]
    %4577 = vset.pattern.permute.xlu0 0
    %4578 = vperm.xlu0 %4577, %v4574
    %v4579 = vpop.permute.xlu0 %4578
    %4582 = vset.pattern.permute.xlu0 0
    %4583 = vperm.xlu0 %4582, %v4575
    %v4584 = vpop.permute.xlu0 %4583
    %v4586 = vmul.f32 %v4572, %v4579
    %v4587 = vmul.f32 %v4573, %v4584
    %4588 = vset.pattern.permute.xlu0 1
    %4589 = vperm.xlu0 %4588, %v4574
    %v4590 = vpop.permute.xlu0 %4589
    %4592 = vset.pattern.permute.xlu0 1
    %4593 = vperm.xlu0 %4592, %v4575
    %v4594 = vpop.permute.xlu0 %4593
    %v4596 = vadd.f32 %v4586, %v4590
    %v4597 = vadd.f32 %v4587, %v4594
    %v4598 = vmax.f32 %v4596, 0.0
    %v4599 = vmax.f32 %v4597, 0.0
    %v4600 = vld [vmem:[#allocation2 + $0x3d8] sm:$0xf]
    %v4601 = vld [vmem:[#allocation2 + $0x3dc] sm:$0xf]
    %v4602 = vpack.c.bf16 %v4599, %v4598
    %v4603 = vld [vmem:[#allocation2 + $0x3a8] sm:$0xf]
    %v4604 = vld [vmem:[#allocation2 + $0x3ac] sm:$0xf]
    %v4607 = vunpack.c.l.b16 %v4603
    %v4608 = vunpack.c.l.b16 %v4604
    %v4609 = vpack.c.b16 %v4608, %v4607
    %v4611 = vsel %vm1284, %v4609, 0
    %4613 = vmatprep.subr.bf16.mxu0 0
    %4614 = vmatpush1.bf16.msra.mxu0 %v1183
    %4615 = vmatprep.subr.bf16.mxu0 0
    %4616 = vmatpush1.bf16.msra.mxu0 0
    %4617 = vmatprep.subr.bf16.mxu0 0
    %4618 = vmatpush1.bf16.msra.mxu0 0
    %4619 = vmatprep.subr.bf16.mxu0 0
    %4620 = vmatpush1.bf16.msra.mxu0 0
    %4621 = vmatprep.subr.bf16.mxu0 0
    %4622 = vmatpush1.bf16.msra.mxu0 0
    %4623 = vmatprep.subr.bf16.mxu0 0
    %4624 = vmatpush1.bf16.msra.mxu0 0
    %4625 = vmatprep.subr.bf16.mxu0 0
    %4626 = vmatpush1.bf16.msra.mxu0 0
    %4627 = vmatprep.subr.bf16.mxu0 0
    %4628 = vmatpush1.bf16.msra.mxu0 0
    %4629 = vmatprep.subr.bf16.mxu0 0
    %4630 = vmatpush1.bf16.msra.mxu0 0
    %4631 = vmatprep.subr.bf16.mxu0 0
    %4632 = vmatpush1.bf16.msra.mxu0 0
    %4633 = vmatprep.subr.bf16.mxu0 0
    %4634 = vmatpush1.bf16.msra.mxu0 0
    %4635 = vmatprep.subr.bf16.mxu0 0
    %4636 = vmatpush1.bf16.msra.mxu0 0
    %4637 = vmatprep.subr.bf16.mxu0 0
    %4638 = vmatpush1.bf16.msra.mxu0 0
    %4639 = vmatprep.subr.bf16.mxu0 0
    %4640 = vmatpush1.bf16.msra.mxu0 0
    %4641 = vmatprep.subr.bf16.mxu0 0
    %4642 = vmatpush1.bf16.msra.mxu0 0
    %4643 = vmatprep.subr.bf16.mxu0 0
    %4644 = vmatpush1.bf16.msra.mxu0 0
    %4645 = vmatprep.mubr.bf16.mxu0 0
    %4646 = vmatmul.mubr.bf16.gmra.mrb[0].mxu0 %v4611
    %v4647 = vpop.f32.mrb[0].mxu0
    %v4648 = vadd.f32 0.0, %v4647
    %v4649 = vpop.f32.mrb[0].mxu0
    %v4650 = vpop.f32.mrb[0].mxu0
    %v4651 = vadd.f32 0.0, %v4650
    %v4652 = vpop.f32.mrb[0].mxu0
    %4653 = vdwg.mxu0
    %v4656 = vunpack.c.l.b16 %v4600
    %v4657 = vunpack.c.l.b16 %v4601
    %v4658 = vpack.c.b16 %v4657, %v4656
    %v4660 = vsel %vm1284, %v4658, 0
    %4662 = vmatprep.subr.bf16.mxu0 0
    %4663 = vmatpush1.bf16.msra.mxu0 %v4602
    %4664 = vmatprep.subr.bf16.mxu0 0
    %4665 = vmatpush1.bf16.msra.mxu0 0
    %4666 = vmatprep.subr.bf16.mxu0 0
    %4667 = vmatpush1.bf16.msra.mxu0 0
    %4668 = vmatprep.subr.bf16.mxu0 0
    %4669 = vmatpush1.bf16.msra.mxu0 0
    %4670 = vmatprep.subr.bf16.mxu0 0
    %4671 = vmatpush1.bf16.msra.mxu0 0
    %4672 = vmatprep.subr.bf16.mxu0 0
    %4673 = vmatpush1.bf16.msra.mxu0 0
    %4674 = vmatprep.subr.bf16.mxu0 0
    %4675 = vmatpush1.bf16.msra.mxu0 0
    %4676 = vmatprep.subr.bf16.mxu0 0
    %4677 = vmatpush1.bf16.msra.mxu0 0
    %4678 = vmatprep.subr.bf16.mxu0 0
    %4679 = vmatpush1.bf16.msra.mxu0 0
    %4680 = vmatprep.subr.bf16.mxu0 0
    %4681 = vmatpush1.bf16.msra.mxu0 0
    %4682 = vmatprep.subr.bf16.mxu0 0
    %4683 = vmatpush1.bf16.msra.mxu0 0
    %4684 = vmatprep.subr.bf16.mxu0 0
    %4685 = vmatpush1.bf16.msra.mxu0 0
    %4686 = vmatprep.subr.bf16.mxu0 0
    %4687 = vmatpush1.bf16.msra.mxu0 0
    %4688 = vmatprep.subr.bf16.mxu0 0
    %4689 = vmatpush1.bf16.msra.mxu0 0
    %4690 = vmatprep.subr.bf16.mxu0 0
    %4691 = vmatpush1.bf16.msra.mxu0 0
    %4692 = vmatprep.subr.bf16.mxu0 0
    %4693 = vmatpush1.bf16.msra.mxu0 0
    %4694 = vmatprep.mubr.bf16.mxu0 0
    %4695 = vmatmul.mubr.bf16.gmra.mrb[0].mxu0 %v4660
    %v4696 = vpop.f32.mrb[0].mxu0
    %v4697 = vadd.f32 %v4648, %v4696
    %v4698 = vpop.f32.mrb[0].mxu0
    %v4699 = vpop.f32.mrb[0].mxu0
    %v4700 = vadd.f32 %v4651, %v4699
    %v4701 = vpop.f32.mrb[0].mxu0
    %4702 = vdwg.mxu0
    %v4703 = vld [vmem:[#allocation2 + $0x3b8] sm:$0xf]
    %v4704 = vld [vmem:[#allocation2 + $0x3bc] sm:$0xf]
    %v4705 = vpack.c.bf16 %v4148, %v4147
    %v4708 = vunpack.c.l.b16 %v4703
    %v4709 = vunpack.c.l.b16 %v4704
    %v4710 = vpack.c.b16 %v4709, %v4708
    %v4712 = vsel %vm1284, %v4710, 0
    %4714 = vmatprep.subr.bf16.mxu0 0
    %4715 = vmatpush1.bf16.msra.mxu0 %v4705
    %4716 = vmatprep.subr.bf16.mxu0 0
    %4717 = vmatpush1.bf16.msra.mxu0 0
    %4718 = vmatprep.subr.bf16.mxu0 0
    %4719 = vmatpush1.bf16.msra.mxu0 0
    %4720 = vmatprep.subr.bf16.mxu0 0
    %4721 = vmatpush1.bf16.msra.mxu0 0
    %4722 = vmatprep.subr.bf16.mxu0 0
    %4723 = vmatpush1.bf16.msra.mxu0 0
    %4724 = vmatprep.subr.bf16.mxu0 0
    %4725 = vmatpush1.bf16.msra.mxu0 0
    %4726 = vmatprep.subr.bf16.mxu0 0
    %4727 = vmatpush1.bf16.msra.mxu0 0
    %4728 = vmatprep.subr.bf16.mxu0 0
    %4729 = vmatpush1.bf16.msra.mxu0 0
    %4730 = vmatprep.subr.bf16.mxu0 0
    %4731 = vmatpush1.bf16.msra.mxu0 0
    %4732 = vmatprep.subr.bf16.mxu0 0
    %4733 = vmatpush1.bf16.msra.mxu0 0
    %4734 = vmatprep.subr.bf16.mxu0 0
    %4735 = vmatpush1.bf16.msra.mxu0 0
    %4736 = vmatprep.subr.bf16.mxu0 0
    %4737 = vmatpush1.bf16.msra.mxu0 0
    %4738 = vmatprep.subr.bf16.mxu0 0
    %4739 = vmatpush1.bf16.msra.mxu0 0
    %4740 = vmatprep.subr.bf16.mxu0 0
    %4741 = vmatpush1.bf16.msra.mxu0 0
    %4742 = vmatprep.subr.bf16.mxu0 0
    %4743 = vmatpush1.bf16.msra.mxu0 0
    %4744 = vmatprep.subr.bf16.mxu0 0
    %4745 = vmatpush1.bf16.msra.mxu0 0
    %4746 = vmatprep.mubr.bf16.mxu0 0
    %4747 = vmatmul.mubr.bf16.gmra.mrb[0].mxu0 %v4712
    %v4748 = vpop.f32.mrb[0].mxu0
    %v4749 = vadd.f32 0.0, %v4748
    %v4750 = vpop.f32.mrb[0].mxu0
    %v4751 = vpop.f32.mrb[0].mxu0
    %v4752 = vadd.f32 0.0, %v4751
    %v4753 = vpop.f32.mrb[0].mxu0
    %4754 = vdwg.mxu0
    %v4755 = vadd.f32 %v4697, %v4749
    %v4756 = vadd.f32 %v4700, %v4752
    %v4757 = vld [vmem:[%s2 + $0x258] sm:$0xff]
    %v4758 = vld [vmem:[%s2 + $0x260] sm:$0xff]
    %4760 = vset.pattern.permute.xlu0 0
    %4761 = vperm.xlu0 %4760, %v4757
    %v4762 = vpop.permute.xlu0 %4761
    %4765 = vset.pattern.permute.xlu0 0
    %4766 = vperm.xlu0 %4765, %v4758
    %v4767 = vpop.permute.xlu0 %4766
    %v4769 = vadd.f32 %v4755, %v4762
    %v4770 = vadd.f32 %v4756, %v4767
    %v4771 = vpack.c.bf16 %v4770, %v4769
    %v4772 = vld [vmem:[#allocation2 + $0x2b0] sm:$0xf]
    %v4774 = vsel %vm1284, %v4772, 0
    %4776 = vmatprep.subr.bf16.mxu0 0
    %4777 = vmatpush1.bf16.msra.mxu0 %v4771
    %4778 = vmatprep.subr.bf16.mxu0 0
    %4779 = vmatpush1.bf16.msra.mxu0 0
    %4780 = vmatprep.subr.bf16.mxu0 0
    %4781 = vmatpush1.bf16.msra.mxu0 0
    %4782 = vmatprep.subr.bf16.mxu0 0
    %4783 = vmatpush1.bf16.msra.mxu0 0
    %4784 = vmatprep.subr.bf16.mxu0 0
    %4785 = vmatpush1.bf16.msra.mxu0 0
    %4786 = vmatprep.subr.bf16.mxu0 0
    %4787 = vmatpush1.bf16.msra.mxu0 0
    %4788 = vmatprep.subr.bf16.mxu0 0
    %4789 = vmatpush1.bf16.msra.mxu0 0
    %4790 = vmatprep.subr.bf16.mxu0 0
    %4791 = vmatpush1.bf16.msra.mxu0 0
    %4792 = vmatprep.subr.bf16.mxu0 0
    %4793 = vmatpush1.bf16.msra.mxu0 0
    %4794 = vmatprep.subr.bf16.mxu0 0
    %4795 = vmatpush1.bf16.msra.mxu0 0
    %4796 = vmatprep.subr.bf16.mxu0 0
    %4797 = vmatpush1.bf16.msra.mxu0 0
    %4798 = vmatprep.subr.bf16.mxu0 0
    %4799 = vmatpush1.bf16.msra.mxu0 0
    %4800 = vmatprep.subr.bf16.mxu0 0
    %4801 = vmatpush1.bf16.msra.mxu0 0
    %4802 = vmatprep.subr.bf16.mxu0 0
    %4803 = vmatpush1.bf16.msra.mxu0 0
    %4804 = vmatprep.subr.bf16.mxu0 0
    %4805 = vmatpush1.bf16.msra.mxu0 0
    %4806 = vmatprep.subr.bf16.mxu0 0
    %4807 = vmatpush1.bf16.msra.mxu0 0
    %4808 = vmatprep.mubr.bf16.mxu0 0
    %4809 = vmatmul.mubr.bf16.gmra.mrb[0].mxu0 %v4774
    %v4810 = vpop.f32.mrb[0].mxu0
    %v4811 = vadd.f32 0.0, %v4810
    %v4812 = vpop.f32.mrb[0].mxu0
    %v4813 = vpop.f32.mrb[0].mxu0
    %v4814 = vpop.f32.mrb[0].mxu0
    %4815 = vdwg.mxu0
    %v4816 = vpack.c.bf16 %v4811, %v4811
    %v4817 = vld [vmem:[#allocation2 + $0x2b4] sm:$0xf]
    %v4819 = vsel %vm1284, %v4817, 0
    %4821 = vmatprep.subr.bf16.mxu0 0
    %4822 = vmatpush1.bf16.msra.mxu0 %v4771
    %4823 = vmatprep.subr.bf16.mxu0 0
    %4824 = vmatpush1.bf16.msra.mxu0 0
    %4825 = vmatprep.subr.bf16.mxu0 0
    %4826 = vmatpush1.bf16.msra.mxu0 0
    %4827 = vmatprep.subr.bf16.mxu0 0
    %4828 = vmatpush1.bf16.msra.mxu0 0
    %4829 = vmatprep.subr.bf16.mxu0 0
    %4830 = vmatpush1.bf16.msra.mxu0 0
    %4831 = vmatprep.subr.bf16.mxu0 0
    %4832 = vmatpush1.bf16.msra.mxu0 0
    %4833 = vmatprep.subr.bf16.mxu0 0
    %4834 = vmatpush1.bf16.msra.mxu0 0
    %4835 = vmatprep.subr.bf16.mxu0 0
    %4836 = vmatpush1.bf16.msra.mxu0 0
    %4837 = vmatprep.subr.bf16.mxu0 0
    %4838 = vmatpush1.bf16.msra.mxu0 0
    %4839 = vmatprep.subr.bf16.mxu0 0
    %4840 = vmatpush1.bf16.msra.mxu0 0
    %4841 = vmatprep.subr.bf16.mxu0 0
    %4842 = vmatpush1.bf16.msra.mxu0 0
    %4843 = vmatprep.subr.bf16.mxu0 0
    %4844 = vmatpush1.bf16.msra.mxu0 0
    %4845 = vmatprep.subr.bf16.mxu0 0
    %4846 = vmatpush1.bf16.msra.mxu0 0
    %4847 = vmatprep.subr.bf16.mxu0 0
    %4848 = vmatpush1.bf16.msra.mxu0 0
    %4849 = vmatprep.subr.bf16.mxu0 0
    %4850 = vmatpush1.bf16.msra.mxu0 0
    %4851 = vmatprep.subr.bf16.mxu0 0
    %4852 = vmatpush1.bf16.msra.mxu0 0
    %4853 = vmatprep.mubr.bf16.mxu0 0
    %4854 = vmatmul.mubr.bf16.gmra.mrb[0].mxu0 %v4819
    %v4855 = vpop.f32.mrb[0].mxu0
    %v4856 = vadd.f32 0.0, %v4855
    %v4857 = vpop.f32.mrb[0].mxu0
    %v4858 = vpop.f32.mrb[0].mxu0
    %v4859 = vpop.f32.mrb[0].mxu0
    %4860 = vdwg.mxu0
    %v4861 = vpack.c.bf16 %v4856, %v4856
    %v4862 = vld [vmem:[#allocation2 + $0x2b8] sm:$0xf]
    %v4863 = vld [vmem:[#allocation2 + $0x2bc] sm:$0xf]
    %v4864 = vld [vmem:[#allocation2 + $0x2c0] sm:$0xf]
    %v4865 = vld [vmem:[#allocation2 + $0x2c4] sm:$0xf]
    %v4866 = vld [vmem:[#allocation2 + $0x2c8] sm:$0xf]
    %v4867 = vld [vmem:[#allocation2 + $0x2cc] sm:$0xf]
    %v4868 = vld [vmem:[#allocation2 + $0x2d0] sm:$0xf]
    %v4869 = vld [vmem:[#allocation2 + $0x2d4] sm:$0xf]
    %v4874 = vunpack.c.l.b16 %v4866
    %v4875 = vunpack.c.l.b16 %v4867
    %v4876 = vunpack.c.l.b16 %v4868
    %v4877 = vunpack.c.l.b16 %v4869
    %v4878 = vpack.c.b16 %v4875, %v4874
    %v4879 = vpack.c.b16 %v4877, %v4876
    %v4883 = vsel %vm799, %v4861, 0
    %4885 = vmatprep.subr.bf16.mxu0 0
    %4886 = vmatpush1.bf16.msra.mxu0 %v4878
    %4887 = vmatprep.subr.bf16.mxu0 0
    %4888 = vmatpush1.bf16.msra.mxu0 %v4879
    %4889 = vmatprep.subr.bf16.mxu0 0
    %4890 = vmatpush1.bf16.msra.mxu0 0
    %4891 = vmatprep.subr.bf16.mxu0 0
    %4892 = vmatpush1.bf16.msra.mxu0 0
    %4893 = vmatprep.subr.bf16.mxu0 0
    %4894 = vmatpush1.bf16.msra.mxu0 0
    %4895 = vmatprep.subr.bf16.mxu0 0
    %4896 = vmatpush1.bf16.msra.mxu0 0
    %4897 = vmatprep.subr.bf16.mxu0 0
    %4898 = vmatpush1.bf16.msra.mxu0 0
    %4899 = vmatprep.subr.bf16.mxu0 0
    %4900 = vmatpush1.bf16.msra.mxu0 0
    %4901 = vmatprep.subr.bf16.mxu0 0
    %4902 = vmatpush1.bf16.msra.mxu0 0
    %4903 = vmatprep.subr.bf16.mxu0 0
    %4904 = vmatpush1.bf16.msra.mxu0 0
    %4905 = vmatprep.subr.bf16.mxu0 0
    %4906 = vmatpush1.bf16.msra.mxu0 0
    %4907 = vmatprep.subr.bf16.mxu0 0
    %4908 = vmatpush1.bf16.msra.mxu0 0
    %4909 = vmatprep.subr.bf16.mxu0 0
    %4910 = vmatpush1.bf16.msra.mxu0 0
    %4911 = vmatprep.subr.bf16.mxu0 0
    %4912 = vmatpush1.bf16.msra.mxu0 0
    %4913 = vmatprep.subr.bf16.mxu0 0
    %4914 = vmatpush1.bf16.msra.mxu0 0
    %4915 = vmatprep.subr.bf16.mxu0 0
    %4916 = vmatpush1.bf16.msra.mxu0 0
    %4917 = vmatprep.mubr.bf16.mxu0 0
    %4918 = vmatmul.mubr.bf16.gmra.mrb[0].mxu0 %v4883
    %v4919 = vpop.f32.mrb[0].mxu0
    %v4920 = vadd.f32 0.0, %v4919
    %v4921 = vpop.f32.mrb[0].mxu0
    %v4922 = vpop.f32.mrb[0].mxu0
    %v4923 = vpop.f32.mrb[0].mxu0
    %4924 = vdwg.mxu0
    %v4929 = vunpack.c.l.b16 %v4862
    %v4930 = vunpack.c.l.b16 %v4863
    %v4931 = vunpack.c.l.b16 %v4864
    %v4932 = vunpack.c.l.b16 %v4865
    %v4933 = vpack.c.b16 %v4930, %v4929
    %v4934 = vpack.c.b16 %v4932, %v4931
    %v4938 = vsel %vm799, %v4816, 0
    %4940 = vmatprep.subr.bf16.mxu0 0
    %4941 = vmatpush1.bf16.msra.mxu0 %v4933
    %4942 = vmatprep.subr.bf16.mxu0 0
    %4943 = vmatpush1.bf16.msra.mxu0 %v4934
    %4944 = vmatprep.subr.bf16.mxu0 0
    %4945 = vmatpush1.bf16.msra.mxu0 0
    %4946 = vmatprep.subr.bf16.mxu0 0
    %4947 = vmatpush1.bf16.msra.mxu0 0
    %4948 = vmatprep.subr.bf16.mxu0 0
    %4949 = vmatpush1.bf16.msra.mxu0 0
    %4950 = vmatprep.subr.bf16.mxu0 0
    %4951 = vmatpush1.bf16.msra.mxu0 0
    %4952 = vmatprep.subr.bf16.mxu0 0
    %4953 = vmatpush1.bf16.msra.mxu0 0
    %4954 = vmatprep.subr.bf16.mxu0 0
    %4955 = vmatpush1.bf16.msra.mxu0 0
    %4956 = vmatprep.subr.bf16.mxu0 0
    %4957 = vmatpush1.bf16.msra.mxu0 0
    %4958 = vmatprep.subr.bf16.mxu0 0
    %4959 = vmatpush1.bf16.msra.mxu0 0
    %4960 = vmatprep.subr.bf16.mxu0 0
    %4961 = vmatpush1.bf16.msra.mxu0 0
    %4962 = vmatprep.subr.bf16.mxu0 0
    %4963 = vmatpush1.bf16.msra.mxu0 0
    %4964 = vmatprep.subr.bf16.mxu0 0
    %4965 = vmatpush1.bf16.msra.mxu0 0
    %4966 = vmatprep.subr.bf16.mxu0 0
    %4967 = vmatpush1.bf16.msra.mxu0 0
    %4968 = vmatprep.subr.bf16.mxu0 0
    %4969 = vmatpush1.bf16.msra.mxu0 0
    %4970 = vmatprep.subr.bf16.mxu0 0
    %4971 = vmatpush1.bf16.msra.mxu0 0
    %4972 = vmatprep.mubr.bf16.mxu0 0
    %4973 = vmatmul.mubr.bf16.gmra.mrb[0].mxu0 %v4938
    %v4974 = vpop.f32.mrb[0].mxu0
    %v4975 = vadd.f32 %v4920, %v4974
    %v4976 = vpop.f32.mrb[0].mxu0
    %v4977 = vpop.f32.mrb[0].mxu0
    %v4978 = vpop.f32.mrb[0].mxu0
    %4979 = vdwg.mxu0
    %v4980 = vld [vmem:[%s2 + $0x168] sm:$0xff]
    %4982 = vset.pattern.permute.xlu0 0
    %4983 = vperm.xlu0 %4982, %v4980
    %v4984 = vpop.permute.xlu0 %4983
    %v4986 = vadd.f32 %v4975, %v4984
    %v4987 = vld [vmem:[%s2 + $0x268] sm:$0xff]
    %4989 = vset.pattern.permute.xlu0 0
    %4990 = vperm.xlu0 %4989, %v4987
    %v4991 = vpop.permute.xlu0 %4990
    %v4993 = vmul.f32 %v624, %v4991
    %4994 = vset.pattern.permute.xlu0 1
    %4995 = vperm.xlu0 %4994, %v4987
    %v4996 = vpop.permute.xlu0 %4995
    %v4998 = vadd.f32 %v4993, %v4996
    %v4999 = vmax.f32 %v4998, 0.0
    %v5000 = vld [vmem:[#allocation2 + $0x3e0] sm:$0xf]
    %v5001 = vpack.c.bf16 %v4999, %v4999
    %v5002 = vld [vmem:[%s2 + $0x270] sm:$0xff]
    %5004 = vset.pattern.permute.xlu0 0
    %5005 = vperm.xlu0 %5004, %v5002
    %v5006 = vpop.permute.xlu0 %5005
    %v5008 = vmul.f32 %v4986, %v5006
    %5009 = vset.pattern.permute.xlu0 1
    %5010 = vperm.xlu0 %5009, %v5002
    %v5011 = vpop.permute.xlu0 %5010
    %v5013 = vadd.f32 %v5008, %v5011
    %v5014 = vmax.f32 %v5013, 0.0
    %v5015 = vld [vmem:[#allocation2 + $0x3e8] sm:$0xf]
    %v5016 = vpack.c.bf16 %v5014, %v5014
    %v5018 = vsel %vm721, %v5015, 0
    %v5021 = vsel %vm725, %v5016, 0
    %5023 = vmatprep.subr.bf16.mxu0 0
    %5024 = vmatpush1.bf16.msra.mxu0 %v5021
    %5025 = vmatprep.subr.bf16.mxu0 0
    %5026 = vmatpush1.bf16.msra.mxu0 0
    %5027 = vmatprep.subr.bf16.mxu0 0
    %5028 = vmatpush1.bf16.msra.mxu0 0
    %5029 = vmatprep.subr.bf16.mxu0 0
    %5030 = vmatpush1.bf16.msra.mxu0 0
    %5031 = vmatprep.subr.bf16.mxu0 0
    %5032 = vmatpush1.bf16.msra.mxu0 0
    %5033 = vmatprep.subr.bf16.mxu0 0
    %5034 = vmatpush1.bf16.msra.mxu0 0
    %5035 = vmatprep.subr.bf16.mxu0 0
    %5036 = vmatpush1.bf16.msra.mxu0 0
    %5037 = vmatprep.subr.bf16.mxu0 0
    %5038 = vmatpush1.bf16.msra.mxu0 0
    %5039 = vmatprep.subr.bf16.mxu0 0
    %5040 = vmatpush1.bf16.msra.mxu0 0
    %5041 = vmatprep.subr.bf16.mxu0 0
    %5042 = vmatpush1.bf16.msra.mxu0 0
    %5043 = vmatprep.subr.bf16.mxu0 0
    %5044 = vmatpush1.bf16.msra.mxu0 0
    %5045 = vmatprep.subr.bf16.mxu0 0
    %5046 = vmatpush1.bf16.msra.mxu0 0
    %5047 = vmatprep.subr.bf16.mxu0 0
    %5048 = vmatpush1.bf16.msra.mxu0 0
    %5049 = vmatprep.subr.bf16.mxu0 0
    %5050 = vmatpush1.bf16.msra.mxu0 0
    %5051 = vmatprep.subr.bf16.mxu0 0
    %5052 = vmatpush1.bf16.msra.mxu0 0
    %5053 = vmatprep.subr.bf16.mxu0 0
    %5054 = vmatpush1.bf16.msra.mxu0 0
    %5055 = vmatprep.mubr.bf16.mxu0 0
    %5056 = vmatmul.mubr.bf16.gmra.mrb[0].mxu0 %v5018
    %v5057 = vpop.f32.mrb[0].mxu0
    %v5058 = vadd.f32 0.0, %v5057
    %v5059 = vpop.f32.mrb[0].mxu0
    %v5060 = vpop.f32.mrb[0].mxu0
    %v5061 = vpop.f32.mrb[0].mxu0
    %5062 = vdwg.mxu0
    %v5064 = vsel %vm721, %v5000, 0
    %v5067 = vsel %vm725, %v5001, 0
    %5069 = vmatprep.subr.bf16.mxu0 0
    %5070 = vmatpush1.bf16.msra.mxu0 %v5067
    %5071 = vmatprep.subr.bf16.mxu0 0
    %5072 = vmatpush1.bf16.msra.mxu0 0
    %5073 = vmatprep.subr.bf16.mxu0 0
    %5074 = vmatpush1.bf16.msra.mxu0 0
    %5075 = vmatprep.subr.bf16.mxu0 0
    %5076 = vmatpush1.bf16.msra.mxu0 0
    %5077 = vmatprep.subr.bf16.mxu0 0
    %5078 = vmatpush1.bf16.msra.mxu0 0
    %5079 = vmatprep.subr.bf16.mxu0 0
    %5080 = vmatpush1.bf16.msra.mxu0 0
    %5081 = vmatprep.subr.bf16.mxu0 0
    %5082 = vmatpush1.bf16.msra.mxu0 0
    %5083 = vmatprep.subr.bf16.mxu0 0
    %5084 = vmatpush1.bf16.msra.mxu0 0
    %5085 = vmatprep.subr.bf16.mxu0 0
    %5086 = vmatpush1.bf16.msra.mxu0 0
    %5087 = vmatprep.subr.bf16.mxu0 0
    %5088 = vmatpush1.bf16.msra.mxu0 0
    %5089 = vmatprep.subr.bf16.mxu0 0
    %5090 = vmatpush1.bf16.msra.mxu0 0
    %5091 = vmatprep.subr.bf16.mxu0 0
    %5092 = vmatpush1.bf16.msra.mxu0 0
    %5093 = vmatprep.subr.bf16.mxu0 0
    %5094 = vmatpush1.bf16.msra.mxu0 0
    %5095 = vmatprep.subr.bf16.mxu0 0
    %5096 = vmatpush1.bf16.msra.mxu0 0
    %5097 = vmatprep.subr.bf16.mxu0 0
    %5098 = vmatpush1.bf16.msra.mxu0 0
    %5099 = vmatprep.subr.bf16.mxu0 0
    %5100 = vmatpush1.bf16.msra.mxu0 0
    %5101 = vmatprep.mubr.bf16.mxu0 0
    %5102 = vmatmul.mubr.bf16.gmra.mrb[0].mxu0 %v5064
    %v5103 = vpop.f32.mrb[0].mxu0
    %v5104 = vadd.f32 %v5058, %v5103
    %v5105 = vpop.f32.mrb[0].mxu0
    %v5106 = vpop.f32.mrb[0].mxu0
    %v5107 = vpop.f32.mrb[0].mxu0
    %5108 = vdwg.mxu0
    %v5109 = vld [vmem:[%s2 + $0x278] sm:$0xff]
    %5111 = vset.pattern.permute.xlu0 0
    %5112 = vperm.xlu0 %5111, %v5109
    %v5113 = vpop.permute.xlu0 %5112
    %v5115 = vmul.f32 %v5104, %v5113
    %5116 = vset.pattern.permute.xlu0 1
    %5117 = vperm.xlu0 %5116, %v5109
    %v5118 = vpop.permute.xlu0 %5117
    %v5120 = vadd.f32 %v5115, %v5118
    %v5121 = vmax.f32 %v5120, 0.0
    %v5122 = vpack.c.bf16 %v5121, %v5121
    %v5124 = vsel %vm250, %v5122, 0
    %5126 = vmatprep.subr.bf16.mxu0 0
    %5127 = vmatpush1.bf16.msra.mxu0 %v242
    %5128 = vmatprep.subr.bf16.mxu0 0
    %5129 = vmatpush1.bf16.msra.mxu0 %v243
    %5130 = vmatprep.subr.bf16.mxu0 0
    %5131 = vmatpush1.bf16.msra.mxu0 %v244
    %5132 = vmatprep.subr.bf16.mxu0 0
    %5133 = vmatpush1.bf16.msra.mxu0 %v245
    %5134 = vmatprep.subr.bf16.mxu0 0
    %5135 = vmatpush1.bf16.msra.mxu0 0
    %5136 = vmatprep.subr.bf16.mxu0 0
    %5137 = vmatpush1.bf16.msra.mxu0 0
    %5138 = vmatprep.subr.bf16.mxu0 0
    %5139 = vmatpush1.bf16.msra.mxu0 0
    %5140 = vmatprep.subr.bf16.mxu0 0
    %5141 = vmatpush1.bf16.msra.mxu0 0
    %5142 = vmatprep.subr.bf16.mxu0 0
    %5143 = vmatpush1.bf16.msra.mxu0 0
    %5144 = vmatprep.subr.bf16.mxu0 0
    %5145 = vmatpush1.bf16.msra.mxu0 0
    %5146 = vmatprep.subr.bf16.mxu0 0
    %5147 = vmatpush1.bf16.msra.mxu0 0
    %5148 = vmatprep.subr.bf16.mxu0 0
    %5149 = vmatpush1.bf16.msra.mxu0 0
    %5150 = vmatprep.subr.bf16.mxu0 0
    %5151 = vmatpush1.bf16.msra.mxu0 0
    %5152 = vmatprep.subr.bf16.mxu0 0
    %5153 = vmatpush1.bf16.msra.mxu0 0
    %5154 = vmatprep.subr.bf16.mxu0 0
    %5155 = vmatpush1.bf16.msra.mxu0 0
    %5156 = vmatprep.subr.bf16.mxu0 0
    %5157 = vmatpush1.bf16.msra.mxu0 0
    %5158 = vmatprep.mubr.bf16.mxu0 0
    %5159 = vmatmul.mubr.bf16.gmra.mrb[0].mxu0 %v5124
    %v5160 = vpop.f32.mrb[0].mxu0
    %v5161 = vadd.f32 0.0, %v5160
    %v5162 = vpop.f32.mrb[0].mxu0
    %v5163 = vpop.f32.mrb[0].mxu0
    %v5164 = vpop.f32.mrb[0].mxu0
    %5165 = vdwg.mxu0
    %v5166 = vpack.c.bf16 %v5161, %v5161
    %5167 = vmatprep.subr.bf16.mxu0 0
    %5168 = vmatpush1.bf16.msra.mxu0 %v319
    %5169 = vmatprep.subr.bf16.mxu0 0
    %5170 = vmatpush1.bf16.msra.mxu0 %v320
    %5171 = vmatprep.subr.bf16.mxu0 0
    %5172 = vmatpush1.bf16.msra.mxu0 %v321
    %5173 = vmatprep.subr.bf16.mxu0 0
    %5174 = vmatpush1.bf16.msra.mxu0 %v322
    %5175 = vmatprep.subr.bf16.mxu0 0
    %5176 = vmatpush1.bf16.msra.mxu0 0
    %5177 = vmatprep.subr.bf16.mxu0 0
    %5178 = vmatpush1.bf16.msra.mxu0 0
    %5179 = vmatprep.subr.bf16.mxu0 0
    %5180 = vmatpush1.bf16.msra.mxu0 0
    %5181 = vmatprep.subr.bf16.mxu0 0
    %5182 = vmatpush1.bf16.msra.mxu0 0
    %5183 = vmatprep.subr.bf16.mxu0 0
    %5184 = vmatpush1.bf16.msra.mxu0 0
    %5185 = vmatprep.subr.bf16.mxu0 0
    %5186 = vmatpush1.bf16.msra.mxu0 0
    %5187 = vmatprep.subr.bf16.mxu0 0
    %5188 = vmatpush1.bf16.msra.mxu0 0
    %5189 = vmatprep.subr.bf16.mxu0 0
    %5190 = vmatpush1.bf16.msra.mxu0 0
    %5191 = vmatprep.subr.bf16.mxu0 0
    %5192 = vmatpush1.bf16.msra.mxu0 0
    %5193 = vmatprep.subr.bf16.mxu0 0
    %5194 = vmatpush1.bf16.msra.mxu0 0
    %5195 = vmatprep.subr.bf16.mxu0 0
    %5196 = vmatpush1.bf16.msra.mxu0 0
    %5197 = vmatprep.subr.bf16.mxu0 0
    %5198 = vmatpush1.bf16.msra.mxu0 0
    %5199 = vmatprep.mubr.bf16.mxu0 0
    %5200 = vmatmul.mubr.bf16.gmra.mrb[0].mxu0 %v5124
    %v5201 = vpop.f32.mrb[0].mxu0
    %v5202 = vadd.f32 0.0, %v5201
    %v5203 = vpop.f32.mrb[0].mxu0
    %v5204 = vpop.f32.mrb[0].mxu0
    %v5205 = vpop.f32.mrb[0].mxu0
    %5206 = vdwg.mxu0
    %v5207 = vpack.c.bf16 %v5202, %v5202
    %v5208 = vld [vmem:[#allocation2 + $0x3f4] sm:$0xf]
    %v5209 = vld [vmem:[#allocation2 + $0x3f0] sm:$0xf]
    %v5211 = vsel %vm721, %v5209, 0
    %v5214 = vsel %vm725, %v5166, 0
    %5216 = vmatprep.subr.bf16.mxu0 0
    %5217 = vmatpush1.bf16.msra.mxu0 %v5214
    %5218 = vmatprep.subr.bf16.mxu0 0
    %5219 = vmatpush1.bf16.msra.mxu0 0
    %5220 = vmatprep.subr.bf16.mxu0 0
    %5221 = vmatpush1.bf16.msra.mxu0 0
    %5222 = vmatprep.subr.bf16.mxu0 0
    %5223 = vmatpush1.bf16.msra.mxu0 0
    %5224 = vmatprep.subr.bf16.mxu0 0
    %5225 = vmatpush1.bf16.msra.mxu0 0
    %5226 = vmatprep.subr.bf16.mxu0 0
    %5227 = vmatpush1.bf16.msra.mxu0 0
    %5228 = vmatprep.subr.bf16.mxu0 0
    %5229 = vmatpush1.bf16.msra.mxu0 0
    %5230 = vmatprep.subr.bf16.mxu0 0
    %5231 = vmatpush1.bf16.msra.mxu0 0
    %5232 = vmatprep.subr.bf16.mxu0 0
    %5233 = vmatpush1.bf16.msra.mxu0 0
    %5234 = vmatprep.subr.bf16.mxu0 0
    %5235 = vmatpush1.bf16.msra.mxu0 0
    %5236 = vmatprep.subr.bf16.mxu0 0
    %5237 = vmatpush1.bf16.msra.mxu0 0
    %5238 = vmatprep.subr.bf16.mxu0 0
    %5239 = vmatpush1.bf16.msra.mxu0 0
    %5240 = vmatprep.subr.bf16.mxu0 0
    %5241 = vmatpush1.bf16.msra.mxu0 0
    %5242 = vmatprep.subr.bf16.mxu0 0
    %5243 = vmatpush1.bf16.msra.mxu0 0
    %5244 = vmatprep.subr.bf16.mxu0 0
    %5245 = vmatpush1.bf16.msra.mxu0 0
    %5246 = vmatprep.subr.bf16.mxu0 0
    %5247 = vmatpush1.bf16.msra.mxu0 0
    %5248 = vmatprep.mubr.bf16.mxu0 0
    %5249 = vmatmul.mubr.bf16.gmra.mrb[0].mxu0 %v5211
    %v5250 = vpop.f32.mrb[0].mxu0
    %v5251 = vadd.f32 0.0, %v5250
    %v5252 = vpop.f32.mrb[0].mxu0
    %v5253 = vpop.f32.mrb[0].mxu0
    %v5254 = vpop.f32.mrb[0].mxu0
    %5255 = vdwg.mxu0
    %v5257 = vsel %vm721, %v5208, 0
    %v5259 = vsel %vm725, %v5122, 0
    %5261 = vmatprep.subr.bf16.mxu0 0
    %5262 = vmatpush1.bf16.msra.mxu0 %v5259
    %5263 = vmatprep.subr.bf16.mxu0 0
    %5264 = vmatpush1.bf16.msra.mxu0 0
    %5265 = vmatprep.subr.bf16.mxu0 0
    %5266 = vmatpush1.bf16.msra.mxu0 0
    %5267 = vmatprep.subr.bf16.mxu0 0
    %5268 = vmatpush1.bf16.msra.mxu0 0
    %5269 = vmatprep.subr.bf16.mxu0 0
    %5270 = vmatpush1.bf16.msra.mxu0 0
    %5271 = vmatprep.subr.bf16.mxu0 0
    %5272 = vmatpush1.bf16.msra.mxu0 0
    %5273 = vmatprep.subr.bf16.mxu0 0
    %5274 = vmatpush1.bf16.msra.mxu0 0
    %5275 = vmatprep.subr.bf16.mxu0 0
    %5276 = vmatpush1.bf16.msra.mxu0 0
    %5277 = vmatprep.subr.bf16.mxu0 0
    %5278 = vmatpush1.bf16.msra.mxu0 0
    %5279 = vmatprep.subr.bf16.mxu0 0
    %5280 = vmatpush1.bf16.msra.mxu0 0
    %5281 = vmatprep.subr.bf16.mxu0 0
    %5282 = vmatpush1.bf16.msra.mxu0 0
    %5283 = vmatprep.subr.bf16.mxu0 0
    %5284 = vmatpush1.bf16.msra.mxu0 0
    %5285 = vmatprep.subr.bf16.mxu0 0
    %5286 = vmatpush1.bf16.msra.mxu0 0
    %5287 = vmatprep.subr.bf16.mxu0 0
    %5288 = vmatpush1.bf16.msra.mxu0 0
    %5289 = vmatprep.subr.bf16.mxu0 0
    %5290 = vmatpush1.bf16.msra.mxu0 0
    %5291 = vmatprep.subr.bf16.mxu0 0
    %5292 = vmatpush1.bf16.msra.mxu0 0
    %5293 = vmatprep.mubr.bf16.mxu0 0
    %5294 = vmatmul.mubr.bf16.gmra.mrb[0].mxu0 %v5257
    %v5295 = vpop.f32.mrb[0].mxu0
    %v5296 = vadd.f32 %v5251, %v5295
    %v5297 = vpop.f32.mrb[0].mxu0
    %v5298 = vpop.f32.mrb[0].mxu0
    %v5299 = vpop.f32.mrb[0].mxu0
    %5300 = vdwg.mxu0
    %v5301 = vld [vmem:[#allocation2 + $0x3f8] sm:$0xf]
    %v5303 = vsel %vm721, %v5301, 0
    %v5306 = vsel %vm725, %v5207, 0
    %5308 = vmatprep.subr.bf16.mxu0 0
    %5309 = vmatpush1.bf16.msra.mxu0 %v5306
    %5310 = vmatprep.subr.bf16.mxu0 0
    %5311 = vmatpush1.bf16.msra.mxu0 0
    %5312 = vmatprep.subr.bf16.mxu0 0
    %5313 = vmatpush1.bf16.msra.mxu0 0
    %5314 = vmatprep.subr.bf16.mxu0 0
    %5315 = vmatpush1.bf16.msra.mxu0 0
    %5316 = vmatprep.subr.bf16.mxu0 0
    %5317 = vmatpush1.bf16.msra.mxu0 0
    %5318 = vmatprep.subr.bf16.mxu0 0
    %5319 = vmatpush1.bf16.msra.mxu0 0
    %5320 = vmatprep.subr.bf16.mxu0 0
    %5321 = vmatpush1.bf16.msra.mxu0 0
    %5322 = vmatprep.subr.bf16.mxu0 0
    %5323 = vmatpush1.bf16.msra.mxu0 0
    %5324 = vmatprep.subr.bf16.mxu0 0
    %5325 = vmatpush1.bf16.msra.mxu0 0
    %5326 = vmatprep.subr.bf16.mxu0 0
    %5327 = vmatpush1.bf16.msra.mxu0 0
    %5328 = vmatprep.subr.bf16.mxu0 0
    %5329 = vmatpush1.bf16.msra.mxu0 0
    %5330 = vmatprep.subr.bf16.mxu0 0
    %5331 = vmatpush1.bf16.msra.mxu0 0
    %5332 = vmatprep.subr.bf16.mxu0 0
    %5333 = vmatpush1.bf16.msra.mxu0 0
    %5334 = vmatprep.subr.bf16.mxu0 0
    %5335 = vmatpush1.bf16.msra.mxu0 0
    %5336 = vmatprep.subr.bf16.mxu0 0
    %5337 = vmatpush1.bf16.msra.mxu0 0
    %5338 = vmatprep.subr.bf16.mxu0 0
    %5339 = vmatpush1.bf16.msra.mxu0 0
    %5340 = vmatprep.mubr.bf16.mxu0 0
    %5341 = vmatmul.mubr.bf16.gmra.mrb[0].mxu0 %v5303
    %v5342 = vpop.f32.mrb[0].mxu0
    %v5343 = vadd.f32 0.0, %v5342
    %v5344 = vpop.f32.mrb[0].mxu0
    %v5345 = vpop.f32.mrb[0].mxu0
    %v5346 = vpop.f32.mrb[0].mxu0
    %5347 = vdwg.mxu0
    %v5348 = vadd.f32 %v5296, %v5343
    %v5349 = vld [vmem:[%s2 + $0x280] sm:$0xff]
    %5351 = vset.pattern.permute.xlu0 0
    %5352 = vperm.xlu0 %5351, %v5349
    %v5353 = vpop.permute.xlu0 %5352
    %v5355 = vmul.f32 %v5348, %v5353
    %5356 = vset.pattern.permute.xlu0 1
    %5357 = vperm.xlu0 %5356, %v5349
    %v5358 = vpop.permute.xlu0 %5357
    %v5360 = vadd.f32 %v5355, %v5358
    %v5361 = vmax.f32 %v5360, 0.0
    %v5362 = vld [vmem:[#allocation2 + $0x3fc] sm:$0xf]
    %v5363 = vpack.c.bf16 %v5361, %v5361
    %v5364 = vld [vmem:[#allocation2 + $0x3e4] sm:$0xf]
    %v5366 = vsel %vm721, %v5364, 0
    %v5368 = vsel %vm725, %v633, 0
    %5370 = vmatprep.subr.bf16.mxu0 0
    %5371 = vmatpush1.bf16.msra.mxu0 %v5368
    %5372 = vmatprep.subr.bf16.mxu0 0
    %5373 = vmatpush1.bf16.msra.mxu0 0
    %5374 = vmatprep.subr.bf16.mxu0 0
    %5375 = vmatpush1.bf16.msra.mxu0 0
    %5376 = vmatprep.subr.bf16.mxu0 0
    %5377 = vmatpush1.bf16.msra.mxu0 0
    %5378 = vmatprep.subr.bf16.mxu0 0
    %5379 = vmatpush1.bf16.msra.mxu0 0
    %5380 = vmatprep.subr.bf16.mxu0 0
    %5381 = vmatpush1.bf16.msra.mxu0 0
    %5382 = vmatprep.subr.bf16.mxu0 0
    %5383 = vmatpush1.bf16.msra.mxu0 0
    %5384 = vmatprep.subr.bf16.mxu0 0
    %5385 = vmatpush1.bf16.msra.mxu0 0
    %5386 = vmatprep.subr.bf16.mxu0 0
    %5387 = vmatpush1.bf16.msra.mxu0 0
    %5388 = vmatprep.subr.bf16.mxu0 0
    %5389 = vmatpush1.bf16.msra.mxu0 0
    %5390 = vmatprep.subr.bf16.mxu0 0
    %5391 = vmatpush1.bf16.msra.mxu0 0
    %5392 = vmatprep.subr.bf16.mxu0 0
    %5393 = vmatpush1.bf16.msra.mxu0 0
    %5394 = vmatprep.subr.bf16.mxu0 0
    %5395 = vmatpush1.bf16.msra.mxu0 0
    %5396 = vmatprep.subr.bf16.mxu0 0
    %5397 = vmatpush1.bf16.msra.mxu0 0
    %5398 = vmatprep.subr.bf16.mxu0 0
    %5399 = vmatpush1.bf16.msra.mxu0 0
    %5400 = vmatprep.subr.bf16.mxu0 0
    %5401 = vmatpush1.bf16.msra.mxu0 0
    %5402 = vmatprep.mubr.bf16.mxu0 0
    %5403 = vmatmul.mubr.bf16.gmra.mrb[0].mxu0 %v5366
    %v5404 = vpop.f32.mrb[0].mxu0
    %v5405 = vadd.f32 0.0, %v5404
    %v5406 = vpop.f32.mrb[0].mxu0
    %v5407 = vpop.f32.mrb[0].mxu0
    %v5408 = vpop.f32.mrb[0].mxu0
    %5409 = vdwg.mxu0
    %v5411 = vsel %vm721, %v5362, 0
    %v5414 = vsel %vm725, %v5363, 0
    %5416 = vmatprep.subr.bf16.mxu0 0
    %5417 = vmatpush1.bf16.msra.mxu0 %v5414
    %5418 = vmatprep.subr.bf16.mxu0 0
    %5419 = vmatpush1.bf16.msra.mxu0 0
    %5420 = vmatprep.subr.bf16.mxu0 0
    %5421 = vmatpush1.bf16.msra.mxu0 0
    %5422 = vmatprep.subr.bf16.mxu0 0
    %5423 = vmatpush1.bf16.msra.mxu0 0
    %5424 = vmatprep.subr.bf16.mxu0 0
    %5425 = vmatpush1.bf16.msra.mxu0 0
    %5426 = vmatprep.subr.bf16.mxu0 0
    %5427 = vmatpush1.bf16.msra.mxu0 0
    %5428 = vmatprep.subr.bf16.mxu0 0
    %5429 = vmatpush1.bf16.msra.mxu0 0
    %5430 = vmatprep.subr.bf16.mxu0 0
    %5431 = vmatpush1.bf16.msra.mxu0 0
    %5432 = vmatprep.subr.bf16.mxu0 0
    %5433 = vmatpush1.bf16.msra.mxu0 0
    %5434 = vmatprep.subr.bf16.mxu0 0
    %5435 = vmatpush1.bf16.msra.mxu0 0
    %5436 = vmatprep.subr.bf16.mxu0 0
    %5437 = vmatpush1.bf16.msra.mxu0 0
    %5438 = vmatprep.subr.bf16.mxu0 0
    %5439 = vmatpush1.bf16.msra.mxu0 0
    %5440 = vmatprep.subr.bf16.mxu0 0
    %5441 = vmatpush1.bf16.msra.mxu0 0
    %5442 = vmatprep.subr.bf16.mxu0 0
    %5443 = vmatpush1.bf16.msra.mxu0 0
    %5444 = vmatprep.subr.bf16.mxu0 0
    %5445 = vmatpush1.bf16.msra.mxu0 0
    %5446 = vmatprep.subr.bf16.mxu0 0
    %5447 = vmatpush1.bf16.msra.mxu0 0
    %5448 = vmatprep.mubr.bf16.mxu0 0
    %5449 = vmatmul.mubr.bf16.gmra.mrb[0].mxu0 %v5411
    %v5450 = vpop.f32.mrb[0].mxu0
    %v5451 = vadd.f32 %v5405, %v5450
    %v5452 = vpop.f32.mrb[0].mxu0
    %v5453 = vpop.f32.mrb[0].mxu0
    %v5454 = vpop.f32.mrb[0].mxu0
    %5455 = vdwg.mxu0
    %v5456 = vld [vmem:[#allocation2 + $0x3ec] sm:$0xf]
    %v5457 = vpack.c.bf16 %v4986, %v4986
    %v5459 = vsel %vm721, %v5456, 0
    %v5462 = vsel %vm725, %v5457, 0
    %5464 = vmatprep.subr.bf16.mxu0 0
    %5465 = vmatpush1.bf16.msra.mxu0 %v5462
    %5466 = vmatprep.subr.bf16.mxu0 0
    %5467 = vmatpush1.bf16.msra.mxu0 0
    %5468 = vmatprep.subr.bf16.mxu0 0
    %5469 = vmatpush1.bf16.msra.mxu0 0
    %5470 = vmatprep.subr.bf16.mxu0 0
    %5471 = vmatpush1.bf16.msra.mxu0 0
    %5472 = vmatprep.subr.bf16.mxu0 0
    %5473 = vmatpush1.bf16.msra.mxu0 0
    %5474 = vmatprep.subr.bf16.mxu0 0
    %5475 = vmatpush1.bf16.msra.mxu0 0
    %5476 = vmatprep.subr.bf16.mxu0 0
    %5477 = vmatpush1.bf16.msra.mxu0 0
    %5478 = vmatprep.subr.bf16.mxu0 0
    %5479 = vmatpush1.bf16.msra.mxu0 0
    %5480 = vmatprep.subr.bf16.mxu0 0
    %5481 = vmatpush1.bf16.msra.mxu0 0
    %5482 = vmatprep.subr.bf16.mxu0 0
    %5483 = vmatpush1.bf16.msra.mxu0 0
    %5484 = vmatprep.subr.bf16.mxu0 0
    %5485 = vmatpush1.bf16.msra.mxu0 0
    %5486 = vmatprep.subr.bf16.mxu0 0
    %5487 = vmatpush1.bf16.msra.mxu0 0
    %5488 = vmatprep.subr.bf16.mxu0 0
    %5489 = vmatpush1.bf16.msra.mxu0 0
    %5490 = vmatprep.subr.bf16.mxu0 0
    %5491 = vmatpush1.bf16.msra.mxu0 0
    %5492 = vmatprep.subr.bf16.mxu0 0
    %5493 = vmatpush1.bf16.msra.mxu0 0
    %5494 = vmatprep.subr.bf16.mxu0 0
    %5495 = vmatpush1.bf16.msra.mxu0 0
    %5496 = vmatprep.mubr.bf16.mxu0 0
    %5497 = vmatmul.mubr.bf16.gmra.mrb[0].mxu0 %v5459
    %v5498 = vpop.f32.mrb[0].mxu0
    %v5499 = vadd.f32 0.0, %v5498
    %v5500 = vpop.f32.mrb[0].mxu0
    %v5501 = vpop.f32.mrb[0].mxu0
    %v5502 = vpop.f32.mrb[0].mxu0
    %5503 = vdwg.mxu0
    %v5504 = vadd.f32 %v5451, %v5499
    %v5505 = vld [vmem:[%s2 + $0x288] sm:$0xff]
    %5507 = vset.pattern.permute.xlu0 0
    %5508 = vperm.xlu0 %5507, %v5505
    %v5509 = vpop.permute.xlu0 %5508
    %v5511 = vadd.f32 %v5504, %v5509
    %v5512 = vpack.c.bf16 %v5511, %v5511
    %v5513 = vld [vmem:[#allocation2 + $0x2d8] sm:$0x3]
    %v5515 = vsel %vm721, %v5513, 0
    %v5518 = vsel %vm725, %v5512, 0
    %5520 = vmatprep.subr.bf16.mxu0 0
    %5521 = vmatpush1.bf16.msra.mxu0 %v5518
    %5522 = vmatprep.subr.bf16.mxu0 0
    %5523 = vmatpush1.bf16.msra.mxu0 0
    %5524 = vmatprep.subr.bf16.mxu0 0
    %5525 = vmatpush1.bf16.msra.mxu0 0
    %5526 = vmatprep.subr.bf16.mxu0 0
    %5527 = vmatpush1.bf16.msra.mxu0 0
    %5528 = vmatprep.subr.bf16.mxu0 0
    %5529 = vmatpush1.bf16.msra.mxu0 0
    %5530 = vmatprep.subr.bf16.mxu0 0
    %5531 = vmatpush1.bf16.msra.mxu0 0
    %5532 = vmatprep.subr.bf16.mxu0 0
    %5533 = vmatpush1.bf16.msra.mxu0 0
    %5534 = vmatprep.subr.bf16.mxu0 0
    %5535 = vmatpush1.bf16.msra.mxu0 0
    %5536 = vmatprep.subr.bf16.mxu0 0
    %5537 = vmatpush1.bf16.msra.mxu0 0
    %5538 = vmatprep.subr.bf16.mxu0 0
    %5539 = vmatpush1.bf16.msra.mxu0 0
    %5540 = vmatprep.subr.bf16.mxu0 0
    %5541 = vmatpush1.bf16.msra.mxu0 0
    %5542 = vmatprep.subr.bf16.mxu0 0
    %5543 = vmatpush1.bf16.msra.mxu0 0
    %5544 = vmatprep.subr.bf16.mxu0 0
    %5545 = vmatpush1.bf16.msra.mxu0 0
    %5546 = vmatprep.subr.bf16.mxu0 0
    %5547 = vmatpush1.bf16.msra.mxu0 0
    %5548 = vmatprep.subr.bf16.mxu0 0
    %5549 = vmatpush1.bf16.msra.mxu0 0
    %5550 = vmatprep.subr.bf16.mxu0 0
    %5551 = vmatpush1.bf16.msra.mxu0 0
    %5552 = vmatprep.mubr.bf16.mxu0 0
    %5553 = vmatmul.mubr.bf16.gmra.mrb[0].mxu0 %v5515
    %v5554 = vpop.f32.mrb[0].mxu0
    %v5555 = vadd.f32 0.0, %v5554
    %v5556 = vpop.f32.mrb[0].mxu0
    %v5557 = vpop.f32.mrb[0].mxu0
    %v5558 = vpop.f32.mrb[0].mxu0
    %5559 = vdwg.mxu0
    %v5560 = vpack.c.bf16 %v5555, %v5555
    %v5561 = vld [vmem:[#allocation2 + $0x2dc] sm:$0x3]
    %v5563 = vsel %vm721, %v5561, 0
    %5565 = vmatprep.subr.bf16.mxu0 0
    %5566 = vmatpush1.bf16.msra.mxu0 %v5518
    %5567 = vmatprep.subr.bf16.mxu0 0
    %5568 = vmatpush1.bf16.msra.mxu0 0
    %5569 = vmatprep.subr.bf16.mxu0 0
    %5570 = vmatpush1.bf16.msra.mxu0 0
    %5571 = vmatprep.subr.bf16.mxu0 0
    %5572 = vmatpush1.bf16.msra.mxu0 0
    %5573 = vmatprep.subr.bf16.mxu0 0
    %5574 = vmatpush1.bf16.msra.mxu0 0
    %5575 = vmatprep.subr.bf16.mxu0 0
    %5576 = vmatpush1.bf16.msra.mxu0 0
    %5577 = vmatprep.subr.bf16.mxu0 0
    %5578 = vmatpush1.bf16.msra.mxu0 0
    %5579 = vmatprep.subr.bf16.mxu0 0
    %5580 = vmatpush1.bf16.msra.mxu0 0
    %5581 = vmatprep.subr.bf16.mxu0 0
    %5582 = vmatpush1.bf16.msra.mxu0 0
    %5583 = vmatprep.subr.bf16.mxu0 0
    %5584 = vmatpush1.bf16.msra.mxu0 0
    %5585 = vmatprep.subr.bf16.mxu0 0
    %5586 = vmatpush1.bf16.msra.mxu0 0
    %5587 = vmatprep.subr.bf16.mxu0 0
    %5588 = vmatpush1.bf16.msra.mxu0 0
    %5589 = vmatprep.subr.bf16.mxu0 0
    %5590 = vmatpush1.bf16.msra.mxu0 0
    %5591 = vmatprep.subr.bf16.mxu0 0
    %5592 = vmatpush1.bf16.msra.mxu0 0
    %5593 = vmatprep.subr.bf16.mxu0 0
    %5594 = vmatpush1.bf16.msra.mxu0 0
    %5595 = vmatprep.subr.bf16.mxu0 0
    %5596 = vmatpush1.bf16.msra.mxu0 0
    %5597 = vmatprep.mubr.bf16.mxu0 0
    %5598 = vmatmul.mubr.bf16.gmra.mrb[0].mxu0 %v5563
    %v5599 = vpop.f32.mrb[0].mxu0
    %v5600 = vadd.f32 0.0, %v5599
    %v5601 = vpop.f32.mrb[0].mxu0
    %v5602 = vpop.f32.mrb[0].mxu0
    %v5603 = vpop.f32.mrb[0].mxu0
    %5604 = vdwg.mxu0
    %v5605 = vpack.c.bf16 %v5600, %v5600
    %v5606 = vld [vmem:[#allocation2 + $0x2e0] sm:$0xf]
    %v5607 = vld [vmem:[#allocation2 + $0x2e4] sm:$0xf]
    %v5608 = vld [vmem:[#allocation2 + $0x2e8] sm:$0xf]
    %v5609 = vld [vmem:[#allocation2 + $0x2ec] sm:$0xf]
    %v5610 = vld [vmem:[#allocation2 + $0x2f0] sm:$0xf]
    %v5611 = vld [vmem:[#allocation2 + $0x2f4] sm:$0xf]
    %v5612 = vld [vmem:[#allocation2 + $0x2f8] sm:$0xf]
    %v5613 = vld [vmem:[#allocation2 + $0x2fc] sm:$0xf]
    %v5614 = vld [vmem:[#allocation2 + $0x300] sm:$0xf]
    %v5615 = vld [vmem:[#allocation2 + $0x304] sm:$0xf]
    %v5616 = vld [vmem:[#allocation2 + $0x308] sm:$0xf]
    %v5617 = vld [vmem:[#allocation2 + $0x30c] sm:$0xf]
    %v5618 = vld [vmem:[#allocation2 + $0x310] sm:$0xf]
    %v5619 = vld [vmem:[#allocation2 + $0x314] sm:$0xf]
    %v5620 = vld [vmem:[#allocation2 + $0x318] sm:$0xf]
    %v5621 = vld [vmem:[#allocation2 + $0x31c] sm:$0xf]
    %v5630 = vunpack.c.l.b16 %v5614
    %v5631 = vunpack.c.l.b16 %v5615
    %v5632 = vunpack.c.l.b16 %v5616
    %v5633 = vunpack.c.l.b16 %v5617
    %v5634 = vunpack.c.l.b16 %v5618
    %v5635 = vunpack.c.l.b16 %v5619
    %v5636 = vunpack.c.l.b16 %v5620
    %v5637 = vunpack.c.l.b16 %v5621
    %v5638 = vpack.c.b16 %v5631, %v5630
    %v5639 = vpack.c.b16 %v5633, %v5632
    %v5640 = vpack.c.b16 %v5635, %v5634
    %v5641 = vpack.c.b16 %v5637, %v5636
    %v5647 = vsel %vm250, %v5605, 0
    %5649 = vmatprep.subr.bf16.mxu0 0
    %5650 = vmatpush1.bf16.msra.mxu0 %v5638
    %5651 = vmatprep.subr.bf16.mxu0 0
    %5652 = vmatpush1.bf16.msra.mxu0 %v5639
    %5653 = vmatprep.subr.bf16.mxu0 0
    %5654 = vmatpush1.bf16.msra.mxu0 %v5640
    %5655 = vmatprep.subr.bf16.mxu0 0
    %5656 = vmatpush1.bf16.msra.mxu0 %v5641
    %5657 = vmatprep.subr.bf16.mxu0 0
    %5658 = vmatpush1.bf16.msra.mxu0 0
    %5659 = vmatprep.subr.bf16.mxu0 0
    %5660 = vmatpush1.bf16.msra.mxu0 0
    %5661 = vmatprep.subr.bf16.mxu0 0
    %5662 = vmatpush1.bf16.msra.mxu0 0
    %5663 = vmatprep.subr.bf16.mxu0 0
    %5664 = vmatpush1.bf16.msra.mxu0 0
    %5665 = vmatprep.subr.bf16.mxu0 0
    %5666 = vmatpush1.bf16.msra.mxu0 0
    %5667 = vmatprep.subr.bf16.mxu0 0
    %5668 = vmatpush1.bf16.msra.mxu0 0
    %5669 = vmatprep.subr.bf16.mxu0 0
    %5670 = vmatpush1.bf16.msra.mxu0 0
    %5671 = vmatprep.subr.bf16.mxu0 0
    %5672 = vmatpush1.bf16.msra.mxu0 0
    %5673 = vmatprep.subr.bf16.mxu0 0
    %5674 = vmatpush1.bf16.msra.mxu0 0
    %5675 = vmatprep.subr.bf16.mxu0 0
    %5676 = vmatpush1.bf16.msra.mxu0 0
    %5677 = vmatprep.subr.bf16.mxu0 0
    %5678 = vmatpush1.bf16.msra.mxu0 0
    %5679 = vmatprep.subr.bf16.mxu0 0
    %5680 = vmatpush1.bf16.msra.mxu0 0
    %5681 = vmatprep.mubr.bf16.mxu0 0
    %5682 = vmatmul.mubr.bf16.gmra.mrb[0].mxu0 %v5647
    %v5683 = vpop.f32.mrb[0].mxu0
    %v5684 = vadd.f32 0.0, %v5683
    %v5685 = vpop.f32.mrb[0].mxu0
    %v5686 = vpop.f32.mrb[0].mxu0
    %v5687 = vpop.f32.mrb[0].mxu0
    %5688 = vdwg.mxu0
    %v5697 = vunpack.c.l.b16 %v5606
    %v5698 = vunpack.c.l.b16 %v5607
    %v5699 = vunpack.c.l.b16 %v5608
    %v5700 = vunpack.c.l.b16 %v5609
    %v5701 = vunpack.c.l.b16 %v5610
    %v5702 = vunpack.c.l.b16 %v5611
    %v5703 = vunpack.c.l.b16 %v5612
    %v5704 = vunpack.c.l.b16 %v5613
    %v5705 = vpack.c.b16 %v5698, %v5697
    %v5706 = vpack.c.b16 %v5700, %v5699
    %v5707 = vpack.c.b16 %v5702, %v5701
    %v5708 = vpack.c.b16 %v5704, %v5703
    %v5714 = vsel %vm250, %v5560, 0
    %5716 = vmatprep.subr.bf16.mxu0 0
    %5717 = vmatpush1.bf16.msra.mxu0 %v5705
    %5718 = vmatprep.subr.bf16.mxu0 0
    %5719 = vmatpush1.bf16.msra.mxu0 %v5706
    %5720 = vmatprep.subr.bf16.mxu0 0
    %5721 = vmatpush1.bf16.msra.mxu0 %v5707
    %5722 = vmatprep.subr.bf16.mxu0 0
    %5723 = vmatpush1.bf16.msra.mxu0 %v5708
    %5724 = vmatprep.subr.bf16.mxu0 0
    %5725 = vmatpush1.bf16.msra.mxu0 0
    %5726 = vmatprep.subr.bf16.mxu0 0
    %5727 = vmatpush1.bf16.msra.mxu0 0
    %5728 = vmatprep.subr.bf16.mxu0 0
    %5729 = vmatpush1.bf16.msra.mxu0 0
    %5730 = vmatprep.subr.bf16.mxu0 0
    %5731 = vmatpush1.bf16.msra.mxu0 0
    %5732 = vmatprep.subr.bf16.mxu0 0
    %5733 = vmatpush1.bf16.msra.mxu0 0
    %5734 = vmatprep.subr.bf16.mxu0 0
    %5735 = vmatpush1.bf16.msra.mxu0 0
    %5736 = vmatprep.subr.bf16.mxu0 0
    %5737 = vmatpush1.bf16.msra.mxu0 0
    %5738 = vmatprep.subr.bf16.mxu0 0
    %5739 = vmatpush1.bf16.msra.mxu0 0
    %5740 = vmatprep.subr.bf16.mxu0 0
    %5741 = vmatpush1.bf16.msra.mxu0 0
    %5742 = vmatprep.subr.bf16.mxu0 0
    %5743 = vmatpush1.bf16.msra.mxu0 0
    %5744 = vmatprep.subr.bf16.mxu0 0
    %5745 = vmatpush1.bf16.msra.mxu0 0
    %5746 = vmatprep.subr.bf16.mxu0 0
    %5747 = vmatpush1.bf16.msra.mxu0 0
    %5748 = vmatprep.mubr.bf16.mxu0 0
    %5749 = vmatmul.mubr.bf16.gmra.mrb[0].mxu0 %v5714
    %v5750 = vpop.f32.mrb[0].mxu0
    %v5751 = vadd.f32 %v5684, %v5750
    %v5752 = vpop.f32.mrb[0].mxu0
    %v5753 = vpop.f32.mrb[0].mxu0
    %v5754 = vpop.f32.mrb[0].mxu0
    %5755 = vdwg.mxu0
    %v5756 = vld [vmem:[%s2 + $0x170] sm:$0xf]
    %5758 = vset.pattern.permute.xlu0 0
    %5759 = vperm.xlu0 %5758, %v5756
    %v5760 = vpop.permute.xlu0 %5759
    %v5762 = vadd.f32 %v5751, %v5760
    %v5763 = vld [vmem:[%s2 + $0x290] sm:$0xf]
    %5765 = vset.pattern.permute.xlu0 0
    %5766 = vperm.xlu0 %5765, %v5763
    %v5767 = vpop.permute.xlu0 %5766
    %v5769 = vmul.f32 %v30, %v5767
    %5770 = vset.pattern.permute.xlu0 1
    %5771 = vperm.xlu0 %5770, %v5763
    %v5772 = vpop.permute.xlu0 %5771
    %v5774 = vadd.f32 %v5769, %v5772
    %v5775 = vmax.f32 %v5774, 0.0
    %v5776 = vld [vmem:[#allocation2 + $0x400] sm:$0x3]
    %v5777 = vpack.c.bf16 %v5775, %v5775
    %v5778 = vld [vmem:[%s2 + $0x298] sm:$0xf]
    %5780 = vset.pattern.permute.xlu0 0
    %5781 = vperm.xlu0 %5780, %v5778
    %v5782 = vpop.permute.xlu0 %5781
    %v5784 = vmul.f32 %v5762, %v5782
    %5785 = vset.pattern.permute.xlu0 1
    %5786 = vperm.xlu0 %5785, %v5778
    %v5787 = vpop.permute.xlu0 %5786
    %v5789 = vadd.f32 %v5784, %v5787
    %v5790 = vmax.f32 %v5789, 0.0
    %v5791 = vld [vmem:[#allocation2 + $0x408] sm:$0x3]
    %v5792 = vpack.c.bf16 %v5790, %v5790
    %v5794 = vsel %vm156, %v5791, 0
    %v5797 = vsel %vm160, %v5792, 0
    %5799 = vmatprep.subr.bf16.mxu0 0
    %5800 = vmatpush1.bf16.msra.mxu0 %v5797
    %5801 = vmatprep.subr.bf16.mxu0 0
    %5802 = vmatpush1.bf16.msra.mxu0 0
    %5803 = vmatprep.subr.bf16.mxu0 0
    %5804 = vmatpush1.bf16.msra.mxu0 0
    %5805 = vmatprep.subr.bf16.mxu0 0
    %5806 = vmatpush1.bf16.msra.mxu0 0
    %5807 = vmatprep.subr.bf16.mxu0 0
    %5808 = vmatpush1.bf16.msra.mxu0 0
    %5809 = vmatprep.subr.bf16.mxu0 0
    %5810 = vmatpush1.bf16.msra.mxu0 0
    %5811 = vmatprep.subr.bf16.mxu0 0
    %5812 = vmatpush1.bf16.msra.mxu0 0
    %5813 = vmatprep.subr.bf16.mxu0 0
    %5814 = vmatpush1.bf16.msra.mxu0 0
    %5815 = vmatprep.subr.bf16.mxu0 0
    %5816 = vmatpush1.bf16.msra.mxu0 0
    %5817 = vmatprep.subr.bf16.mxu0 0
    %5818 = vmatpush1.bf16.msra.mxu0 0
    %5819 = vmatprep.subr.bf16.mxu0 0
    %5820 = vmatpush1.bf16.msra.mxu0 0
    %5821 = vmatprep.subr.bf16.mxu0 0
    %5822 = vmatpush1.bf16.msra.mxu0 0
    %5823 = vmatprep.subr.bf16.mxu0 0
    %5824 = vmatpush1.bf16.msra.mxu0 0
    %5825 = vmatprep.subr.bf16.mxu0 0
    %5826 = vmatpush1.bf16.msra.mxu0 0
    %5827 = vmatprep.subr.bf16.mxu0 0
    %5828 = vmatpush1.bf16.msra.mxu0 0
    %5829 = vmatprep.subr.bf16.mxu0 0
    %5830 = vmatpush1.bf16.msra.mxu0 0
    %5831 = vmatprep.mubr.bf16.mxu0 0
    %5832 = vmatmul.mubr.bf16.gmra.mrb[0].mxu0 %v5794
    %v5833 = vpop.f32.mrb[0].mxu0
    %v5834 = vadd.f32 0.0, %v5833
    %v5835 = vpop.f32.mrb[0].mxu0
    %v5836 = vpop.f32.mrb[0].mxu0
    %v5837 = vpop.f32.mrb[0].mxu0
    %5838 = vdwg.mxu0
    %v5840 = vsel %vm156, %v5776, 0
    %v5843 = vsel %vm160, %v5777, 0
    %5845 = vmatprep.subr.bf16.mxu0 0
    %5846 = vmatpush1.bf16.msra.mxu0 %v5843
    %5847 = vmatprep.subr.bf16.mxu0 0
    %5848 = vmatpush1.bf16.msra.mxu0 0
    %5849 = vmatprep.subr.bf16.mxu0 0
    %5850 = vmatpush1.bf16.msra.mxu0 0
    %5851 = vmatprep.subr.bf16.mxu0 0
    %5852 = vmatpush1.bf16.msra.mxu0 0
    %5853 = vmatprep.subr.bf16.mxu0 0
    %5854 = vmatpush1.bf16.msra.mxu0 0
    %5855 = vmatprep.subr.bf16.mxu0 0
    %5856 = vmatpush1.bf16.msra.mxu0 0
    %5857 = vmatprep.subr.bf16.mxu0 0
    %5858 = vmatpush1.bf16.msra.mxu0 0
    %5859 = vmatprep.subr.bf16.mxu0 0
    %5860 = vmatpush1.bf16.msra.mxu0 0
    %5861 = vmatprep.subr.bf16.mxu0 0
    %5862 = vmatpush1.bf16.msra.mxu0 0
    %5863 = vmatprep.subr.bf16.mxu0 0
    %5864 = vmatpush1.bf16.msra.mxu0 0
    %5865 = vmatprep.subr.bf16.mxu0 0
    %5866 = vmatpush1.bf16.msra.mxu0 0
    %5867 = vmatprep.subr.bf16.mxu0 0
    %5868 = vmatpush1.bf16.msra.mxu0 0
    %5869 = vmatprep.subr.bf16.mxu0 0
    %5870 = vmatpush1.bf16.msra.mxu0 0
    %5871 = vmatprep.subr.bf16.mxu0 0
    %5872 = vmatpush1.bf16.msra.mxu0 0
    %5873 = vmatprep.subr.bf16.mxu0 0
    %5874 = vmatpush1.bf16.msra.mxu0 0
    %5875 = vmatprep.subr.bf16.mxu0 0
    %5876 = vmatpush1.bf16.msra.mxu0 0
    %5877 = vmatprep.mubr.bf16.mxu0 0
    %5878 = vmatmul.mubr.bf16.gmra.mrb[0].mxu0 %v5840
    %v5879 = vpop.f32.mrb[0].mxu0
    %v5880 = vadd.f32 %v5834, %v5879
    %v5881 = vpop.f32.mrb[0].mxu0
    %v5882 = vpop.f32.mrb[0].mxu0
    %v5883 = vpop.f32.mrb[0].mxu0
    %5884 = vdwg.mxu0
    %v5885 = vld [vmem:[%s2 + $0x2a0] sm:$0xf]
    %5887 = vset.pattern.permute.xlu0 0
    %5888 = vperm.xlu0 %5887, %v5885
    %v5889 = vpop.permute.xlu0 %5888
    %v5891 = vmul.f32 %v5880, %v5889
    %5892 = vset.pattern.permute.xlu0 1
    %5893 = vperm.xlu0 %5892, %v5885
    %v5894 = vpop.permute.xlu0 %5893
    %v5896 = vadd.f32 %v5891, %v5894
    %v5897 = vmax.f32 %v5896, 0.0
    %v5898 = vpack.c.bf16 %v5897, %v5897
    %v5899 = vld [vmem:[#allocation2 + $0x78] sm:$0xf]
    %v5900 = vld [vmem:[#allocation2 + $0x7c] sm:$0xf]
    %v5901 = vld [vmem:[#allocation2 + $0x80] sm:$0xf]
    %v5902 = vld [vmem:[#allocation2 + $0x84] sm:$0xf]
    %v5903 = vld [vmem:[#allocation2 + $0x88] sm:$0xf]
    %v5904 = vld [vmem:[#allocation2 + $0x8c] sm:$0xf]
    %v5905 = vld [vmem:[#allocation2 + $0x90] sm:$0xf]
    %v5906 = vld [vmem:[#allocation2 + $0x94] sm:$0xf]
    %v5907 = vld [vmem:[#allocation2 + $0x98] sm:$0xf]
    %v5908 = vld [vmem:[#allocation2 + $0x9c] sm:$0xf]
    %v5909 = vld [vmem:[#allocation2 + $0xa0] sm:$0xf]
    %v5910 = vld [vmem:[#allocation2 + $0xa4] sm:$0xf]
    %v5911 = vld [vmem:[#allocation2 + $0xa8] sm:$0xf]
    %v5912 = vld [vmem:[#allocation2 + $0xac] sm:$0xf]
    %v5913 = vld [vmem:[#allocation2 + $0xb0] sm:$0xf]
    %v5914 = vld [vmem:[#allocation2 + $0xb4] sm:$0xf]
    %v5931 = vunpack.c.l.b16 %v5899
    %v5932 = vunpack.c.l.b16 %v5900
    %v5933 = vunpack.c.l.b16 %v5901
    %v5934 = vunpack.c.l.b16 %v5902
    %v5935 = vunpack.c.l.b16 %v5903
    %v5936 = vunpack.c.l.b16 %v5904
    %v5937 = vunpack.c.l.b16 %v5905
    %v5938 = vunpack.c.l.b16 %v5906
    %v5939 = vunpack.c.l.b16 %v5907
    %v5940 = vunpack.c.l.b16 %v5908
    %v5941 = vunpack.c.l.b16 %v5909
    %v5942 = vunpack.c.l.b16 %v5910
    %v5943 = vunpack.c.l.b16 %v5911
    %v5944 = vunpack.c.l.b16 %v5912
    %v5945 = vunpack.c.l.b16 %v5913
    %v5946 = vunpack.c.l.b16 %v5914
    %v5947 = vpack.c.b16 %v5932, %v5931
    %v5948 = vpack.c.b16 %v5934, %v5933
    %v5949 = vpack.c.b16 %v5936, %v5935
    %v5950 = vpack.c.b16 %v5938, %v5937
    %v5951 = vpack.c.b16 %v5940, %v5939
    %v5952 = vpack.c.b16 %v5942, %v5941
    %v5953 = vpack.c.b16 %v5944, %v5943
    %v5954 = vpack.c.b16 %v5946, %v5945
    %5963 = vmatprep.subr.bf16.mxu0 0
    %5964 = vmatpush1.bf16.msra.mxu0 %v5947
    %5965 = vmatprep.subr.bf16.mxu0 0
    %5966 = vmatpush1.bf16.msra.mxu0 %v5948
    %5967 = vmatprep.subr.bf16.mxu0 0
    %5968 = vmatpush1.bf16.msra.mxu0 %v5949
    %5969 = vmatprep.subr.bf16.mxu0 0
    %5970 = vmatpush1.bf16.msra.mxu0 %v5950
    %5971 = vmatprep.subr.bf16.mxu0 0
    %5972 = vmatpush1.bf16.msra.mxu0 %v5951
    %5973 = vmatprep.subr.bf16.mxu0 0
    %5974 = vmatpush1.bf16.msra.mxu0 %v5952
    %5975 = vmatprep.subr.bf16.mxu0 0
    %5976 = vmatpush1.bf16.msra.mxu0 %v5953
    %5977 = vmatprep.subr.bf16.mxu0 0
    %5978 = vmatpush1.bf16.msra.mxu0 %v5954
    %5979 = vmatprep.subr.bf16.mxu0 0
    %5980 = vmatpush1.bf16.msra.mxu0 0
    %5981 = vmatprep.subr.bf16.mxu0 0
    %5982 = vmatpush1.bf16.msra.mxu0 0
    %5983 = vmatprep.subr.bf16.mxu0 0
    %5984 = vmatpush1.bf16.msra.mxu0 0
    %5985 = vmatprep.subr.bf16.mxu0 0
    %5986 = vmatpush1.bf16.msra.mxu0 0
    %5987 = vmatprep.subr.bf16.mxu0 0
    %5988 = vmatpush1.bf16.msra.mxu0 0
    %5989 = vmatprep.subr.bf16.mxu0 0
    %5990 = vmatpush1.bf16.msra.mxu0 0
    %5991 = vmatprep.subr.bf16.mxu0 0
    %5992 = vmatpush1.bf16.msra.mxu0 0
    %5993 = vmatprep.subr.bf16.mxu0 0
    %5994 = vmatpush1.bf16.msra.mxu0 0
    %5995 = vmatprep.mubr.bf16.mxu0 0
    %5996 = vmatmul.mubr.bf16.gmra.mrb[0].mxu0 %v5898
    %v5997 = vpop.f32.mrb[0].mxu0
    %v5998 = vadd.f32 0.0, %v5997
    %v5999 = vpop.f32.mrb[0].mxu0
    %v6000 = vpop.f32.mrb[0].mxu0
    %v6001 = vpop.f32.mrb[0].mxu0
    %6002 = vdwg.mxu0
    %v6003 = vpack.c.bf16 %v5998, %v5998
    %v6004 = vld [vmem:[#allocation2 + $0xb8] sm:$0xf]
    %v6005 = vld [vmem:[#allocation2 + $0xbc] sm:$0xf]
    %v6006 = vld [vmem:[#allocation2 + $0xc0] sm:$0xf]
    %v6007 = vld [vmem:[#allocation2 + $0xc4] sm:$0xf]
    %v6008 = vld [vmem:[#allocation2 + $0xc8] sm:$0xf]
    %v6009 = vld [vmem:[#allocation2 + $0xcc] sm:$0xf]
    %v6010 = vld [vmem:[#allocation2 + $0xd0] sm:$0xf]
    %v6011 = vld [vmem:[#allocation2 + $0xd4] sm:$0xf]
    %v6012 = vld [vmem:[#allocation2 + $0xd8] sm:$0xf]
    %v6013 = vld [vmem:[#allocation2 + $0xdc] sm:$0xf]
    %v6014 = vld [vmem:[#allocation2 + $0xe0] sm:$0xf]
    %v6015 = vld [vmem:[#allocation2 + $0xe4] sm:$0xf]
    %v6016 = vld [vmem:[#allocation2 + $0xe8] sm:$0xf]
    %v6017 = vld [vmem:[#allocation2 + $0xec] sm:$0xf]
    %v6018 = vld [vmem:[#allocation2 + $0xf0] sm:$0xf]
    %v6019 = vld [vmem:[#allocation2 + $0xf4] sm:$0xf]
    %v6036 = vunpack.c.l.b16 %v6004
    %v6037 = vunpack.c.l.b16 %v6005
    %v6038 = vunpack.c.l.b16 %v6006
    %v6039 = vunpack.c.l.b16 %v6007
    %v6040 = vunpack.c.l.b16 %v6008
    %v6041 = vunpack.c.l.b16 %v6009
    %v6042 = vunpack.c.l.b16 %v6010
    %v6043 = vunpack.c.l.b16 %v6011
    %v6044 = vunpack.c.l.b16 %v6012
    %v6045 = vunpack.c.l.b16 %v6013
    %v6046 = vunpack.c.l.b16 %v6014
    %v6047 = vunpack.c.l.b16 %v6015
    %v6048 = vunpack.c.l.b16 %v6016
    %v6049 = vunpack.c.l.b16 %v6017
    %v6050 = vunpack.c.l.b16 %v6018
    %v6051 = vunpack.c.l.b16 %v6019
    %v6052 = vpack.c.b16 %v6037, %v6036
    %v6053 = vpack.c.b16 %v6039, %v6038
    %v6054 = vpack.c.b16 %v6041, %v6040
    %v6055 = vpack.c.b16 %v6043, %v6042
    %v6056 = vpack.c.b16 %v6045, %v6044
    %v6057 = vpack.c.b16 %v6047, %v6046
    %v6058 = vpack.c.b16 %v6049, %v6048
    %v6059 = vpack.c.b16 %v6051, %v6050
    %6068 = vmatprep.subr.bf16.mxu0 0
    %6069 = vmatpush1.bf16.msra.mxu0 %v6052
    %6070 = vmatprep.subr.bf16.mxu0 0
    %6071 = vmatpush1.bf16.msra.mxu0 %v6053
    %6072 = vmatprep.subr.bf16.mxu0 0
    %6073 = vmatpush1.bf16.msra.mxu0 %v6054
    %6074 = vmatprep.subr.bf16.mxu0 0
    %6075 = vmatpush1.bf16.msra.mxu0 %v6055
    %6076 = vmatprep.subr.bf16.mxu0 0
    %6077 = vmatpush1.bf16.msra.mxu0 %v6056
    %6078 = vmatprep.subr.bf16.mxu0 0
    %6079 = vmatpush1.bf16.msra.mxu0 %v6057
    %6080 = vmatprep.subr.bf16.mxu0 0
    %6081 = vmatpush1.bf16.msra.mxu0 %v6058
    %6082 = vmatprep.subr.bf16.mxu0 0
    %6083 = vmatpush1.bf16.msra.mxu0 %v6059
    %6084 = vmatprep.subr.bf16.mxu0 0
    %6085 = vmatpush1.bf16.msra.mxu0 0
    %6086 = vmatprep.subr.bf16.mxu0 0
    %6087 = vmatpush1.bf16.msra.mxu0 0
    %6088 = vmatprep.subr.bf16.mxu0 0
    %6089 = vmatpush1.bf16.msra.mxu0 0
    %6090 = vmatprep.subr.bf16.mxu0 0
    %6091 = vmatpush1.bf16.msra.mxu0 0
    %6092 = vmatprep.subr.bf16.mxu0 0
    %6093 = vmatpush1.bf16.msra.mxu0 0
    %6094 = vmatprep.subr.bf16.mxu0 0
    %6095 = vmatpush1.bf16.msra.mxu0 0
    %6096 = vmatprep.subr.bf16.mxu0 0
    %6097 = vmatpush1.bf16.msra.mxu0 0
    %6098 = vmatprep.subr.bf16.mxu0 0
    %6099 = vmatpush1.bf16.msra.mxu0 0
    %6100 = vmatprep.mubr.bf16.mxu0 0
    %6101 = vmatmul.mubr.bf16.gmra.mrb[0].mxu0 %v5898
    %v6102 = vpop.f32.mrb[0].mxu0
    %v6103 = vadd.f32 0.0, %v6102
    %v6104 = vpop.f32.mrb[0].mxu0
    %v6105 = vpop.f32.mrb[0].mxu0
    %v6106 = vpop.f32.mrb[0].mxu0
    %6107 = vdwg.mxu0
    %v6108 = vpack.c.bf16 %v6103, %v6103
    %v6109 = vld [vmem:[#allocation2 + $0x414] sm:$0x3]
    %v6110 = vld [vmem:[#allocation2 + $0x410] sm:$0x3]
    %v6112 = vsel %vm156, %v6110, 0
    %v6115 = vsel %vm160, %v6003, 0
    %6117 = vmatprep.subr.bf16.mxu0 0
    %6118 = vmatpush1.bf16.msra.mxu0 %v6115
    %6119 = vmatprep.subr.bf16.mxu0 0
    %6120 = vmatpush1.bf16.msra.mxu0 0
    %6121 = vmatprep.subr.bf16.mxu0 0
    %6122 = vmatpush1.bf16.msra.mxu0 0
    %6123 = vmatprep.subr.bf16.mxu0 0
    %6124 = vmatpush1.bf16.msra.mxu0 0
    %6125 = vmatprep.subr.bf16.mxu0 0
    %6126 = vmatpush1.bf16.msra.mxu0 0
    %6127 = vmatprep.subr.bf16.mxu0 0
    %6128 = vmatpush1.bf16.msra.mxu0 0
    %6129 = vmatprep.subr.bf16.mxu0 0
    %6130 = vmatpush1.bf16.msra.mxu0 0
    %6131 = vmatprep.subr.bf16.mxu0 0
    %6132 = vmatpush1.bf16.msra.mxu0 0
    %6133 = vmatprep.subr.bf16.mxu0 0
    %6134 = vmatpush1.bf16.msra.mxu0 0
    %6135 = vmatprep.subr.bf16.mxu0 0
    %6136 = vmatpush1.bf16.msra.mxu0 0
    %6137 = vmatprep.subr.bf16.mxu0 0
    %6138 = vmatpush1.bf16.msra.mxu0 0
    %6139 = vmatprep.subr.bf16.mxu0 0
    %6140 = vmatpush1.bf16.msra.mxu0 0
    %6141 = vmatprep.subr.bf16.mxu0 0
    %6142 = vmatpush1.bf16.msra.mxu0 0
    %6143 = vmatprep.subr.bf16.mxu0 0
    %6144 = vmatpush1.bf16.msra.mxu0 0
    %6145 = vmatprep.subr.bf16.mxu0 0
    %6146 = vmatpush1.bf16.msra.mxu0 0
    %6147 = vmatprep.subr.bf16.mxu0 0
    %6148 = vmatpush1.bf16.msra.mxu0 0
    %6149 = vmatprep.mubr.bf16.mxu0 0
    %6150 = vmatmul.mubr.bf16.gmra.mrb[0].mxu0 %v6112
    %v6151 = vpop.f32.mrb[0].mxu0
    %v6152 = vadd.f32 0.0, %v6151
    %v6153 = vpop.f32.mrb[0].mxu0
    %v6154 = vpop.f32.mrb[0].mxu0
    %v6155 = vpop.f32.mrb[0].mxu0
    %6156 = vdwg.mxu0
    %v6158 = vsel %vm156, %v6109, 0
    %v6161 = vsel %vm160, %v5898, 0
    %6163 = vmatprep.subr.bf16.mxu0 0
    %6164 = vmatpush1.bf16.msra.mxu0 %v6161
    %6165 = vmatprep.subr.bf16.mxu0 0
    %6166 = vmatpush1.bf16.msra.mxu0 0
    %6167 = vmatprep.subr.bf16.mxu0 0
    %6168 = vmatpush1.bf16.msra.mxu0 0
    %6169 = vmatprep.subr.bf16.mxu0 0
    %6170 = vmatpush1.bf16.msra.mxu0 0
    %6171 = vmatprep.subr.bf16.mxu0 0
    %6172 = vmatpush1.bf16.msra.mxu0 0
    %6173 = vmatprep.subr.bf16.mxu0 0
    %6174 = vmatpush1.bf16.msra.mxu0 0
    %6175 = vmatprep.subr.bf16.mxu0 0
    %6176 = vmatpush1.bf16.msra.mxu0 0
    %6177 = vmatprep.subr.bf16.mxu0 0
    %6178 = vmatpush1.bf16.msra.mxu0 0
    %6179 = vmatprep.subr.bf16.mxu0 0
    %6180 = vmatpush1.bf16.msra.mxu0 0
    %6181 = vmatprep.subr.bf16.mxu0 0
    %6182 = vmatpush1.bf16.msra.mxu0 0
    %6183 = vmatprep.subr.bf16.mxu0 0
    %6184 = vmatpush1.bf16.msra.mxu0 0
    %6185 = vmatprep.subr.bf16.mxu0 0
    %6186 = vmatpush1.bf16.msra.mxu0 0
    %6187 = vmatprep.subr.bf16.mxu0 0
    %6188 = vmatpush1.bf16.msra.mxu0 0
    %6189 = vmatprep.subr.bf16.mxu0 0
    %6190 = vmatpush1.bf16.msra.mxu0 0
    %6191 = vmatprep.subr.bf16.mxu0 0
    %6192 = vmatpush1.bf16.msra.mxu0 0
    %6193 = vmatprep.subr.bf16.mxu0 0
    %6194 = vmatpush1.bf16.msra.mxu0 0
    %6195 = vmatprep.mubr.bf16.mxu0 0
    %6196 = vmatmul.mubr.bf16.gmra.mrb[0].mxu0 %v6158
    %v6197 = vpop.f32.mrb[0].mxu0
    %v6198 = vadd.f32 %v6152, %v6197
    %v6199 = vpop.f32.mrb[0].mxu0
    %v6200 = vpop.f32.mrb[0].mxu0
    %v6201 = vpop.f32.mrb[0].mxu0
    %6202 = vdwg.mxu0
    %v6203 = vld [vmem:[#allocation2 + $0x418] sm:$0x3]
    %v6205 = vsel %vm156, %v6203, 0
    %v6208 = vsel %vm160, %v6108, 0
    %6210 = vmatprep.subr.bf16.mxu0 0
    %6211 = vmatpush1.bf16.msra.mxu0 %v6208
    %6212 = vmatprep.subr.bf16.mxu0 0
    %6213 = vmatpush1.bf16.msra.mxu0 0
    %6214 = vmatprep.subr.bf16.mxu0 0
    %6215 = vmatpush1.bf16.msra.mxu0 0
    %6216 = vmatprep.subr.bf16.mxu0 0
    %6217 = vmatpush1.bf16.msra.mxu0 0
    %6218 = vmatprep.subr.bf16.mxu0 0
    %6219 = vmatpush1.bf16.msra.mxu0 0
    %6220 = vmatprep.subr.bf16.mxu0 0
    %6221 = vmatpush1.bf16.msra.mxu0 0
    %6222 = vmatprep.subr.bf16.mxu0 0
    %6223 = vmatpush1.bf16.msra.mxu0 0
    %6224 = vmatprep.subr.bf16.mxu0 0
    %6225 = vmatpush1.bf16.msra.mxu0 0
    %6226 = vmatprep.subr.bf16.mxu0 0
    %6227 = vmatpush1.bf16.msra.mxu0 0
    %6228 = vmatprep.subr.bf16.mxu0 0
    %6229 = vmatpush1.bf16.msra.mxu0 0
    %6230 = vmatprep.subr.bf16.mxu0 0
    %6231 = vmatpush1.bf16.msra.mxu0 0
    %6232 = vmatprep.subr.bf16.mxu0 0
    %6233 = vmatpush1.bf16.msra.mxu0 0
    %6234 = vmatprep.subr.bf16.mxu0 0
    %6235 = vmatpush1.bf16.msra.mxu0 0
    %6236 = vmatprep.subr.bf16.mxu0 0
    %6237 = vmatpush1.bf16.msra.mxu0 0
    %6238 = vmatprep.subr.bf16.mxu0 0
    %6239 = vmatpush1.bf16.msra.mxu0 0
    %6240 = vmatprep.subr.bf16.mxu0 0
    %6241 = vmatpush1.bf16.msra.mxu0 0
    %6242 = vmatprep.mubr.bf16.mxu0 0
    %6243 = vmatmul.mubr.bf16.gmra.mrb[0].mxu0 %v6205
    %v6244 = vpop.f32.mrb[0].mxu0
    %v6245 = vadd.f32 0.0, %v6244
    %v6246 = vpop.f32.mrb[0].mxu0
    %v6247 = vpop.f32.mrb[0].mxu0
    %v6248 = vpop.f32.mrb[0].mxu0
    %6249 = vdwg.mxu0
    %v6250 = vadd.f32 %v6198, %v6245
    %v6251 = vld [vmem:[%s2 + $0x2a8] sm:$0xf]
    %6253 = vset.pattern.permute.xlu0 0
    %6254 = vperm.xlu0 %6253, %v6251
    %v6255 = vpop.permute.xlu0 %6254
    %v6257 = vmul.f32 %v6250, %v6255
    %6258 = vset.pattern.permute.xlu0 1
    %6259 = vperm.xlu0 %6258, %v6251
    %v6260 = vpop.permute.xlu0 %6259
    %v6262 = vadd.f32 %v6257, %v6260
    %v6263 = vmax.f32 %v6262, 0.0
    %v6264 = vld [vmem:[#allocation2 + $0x41c] sm:$0x3]
    %v6265 = vpack.c.bf16 %v6263, %v6263
    %v6266 = vld [vmem:[#allocation2 + $0x404] sm:$0x3]
    %v6268 = vsel %vm156, %v6266, 0
    %v6271 = vsel %vm160, %v47, 0
    %6273 = vmatprep.subr.bf16.mxu0 0
    %6274 = vmatpush1.bf16.msra.mxu0 %v6271
    %6275 = vmatprep.subr.bf16.mxu0 0
    %6276 = vmatpush1.bf16.msra.mxu0 0
    %6277 = vmatprep.subr.bf16.mxu0 0
    %6278 = vmatpush1.bf16.msra.mxu0 0
    %6279 = vmatprep.subr.bf16.mxu0 0
    %6280 = vmatpush1.bf16.msra.mxu0 0
    %6281 = vmatprep.subr.bf16.mxu0 0
    %6282 = vmatpush1.bf16.msra.mxu0 0
    %6283 = vmatprep.subr.bf16.mxu0 0
    %6284 = vmatpush1.bf16.msra.mxu0 0
    %6285 = vmatprep.subr.bf16.mxu0 0
    %6286 = vmatpush1.bf16.msra.mxu0 0
    %6287 = vmatprep.subr.bf16.mxu0 0
    %6288 = vmatpush1.bf16.msra.mxu0 0
    %6289 = vmatprep.subr.bf16.mxu0 0
    %6290 = vmatpush1.bf16.msra.mxu0 0
    %6291 = vmatprep.subr.bf16.mxu0 0
    %6292 = vmatpush1.bf16.msra.mxu0 0
    %6293 = vmatprep.subr.bf16.mxu0 0
    %6294 = vmatpush1.bf16.msra.mxu0 0
    %6295 = vmatprep.subr.bf16.mxu0 0
    %6296 = vmatpush1.bf16.msra.mxu0 0
    %6297 = vmatprep.subr.bf16.mxu0 0
    %6298 = vmatpush1.bf16.msra.mxu0 0
    %6299 = vmatprep.subr.bf16.mxu0 0
    %6300 = vmatpush1.bf16.msra.mxu0 0
    %6301 = vmatprep.subr.bf16.mxu0 0
    %6302 = vmatpush1.bf16.msra.mxu0 0
    %6303 = vmatprep.subr.bf16.mxu0 0
    %6304 = vmatpush1.bf16.msra.mxu0 0
    %6305 = vmatprep.mubr.bf16.mxu0 0
    %6306 = vmatmul.mubr.bf16.gmra.mrb[0].mxu0 %v6268
    %v6307 = vpop.f32.mrb[0].mxu0
    %v6308 = vadd.f32 0.0, %v6307
    %v6309 = vpop.f32.mrb[0].mxu0
    %v6310 = vpop.f32.mrb[0].mxu0
    %v6311 = vpop.f32.mrb[0].mxu0
    %6312 = vdwg.mxu0
    %v6314 = vsel %vm156, %v6264, 0
    %v6317 = vsel %vm160, %v6265, 0
    %6319 = vmatprep.subr.bf16.mxu0 0
    %6320 = vmatpush1.bf16.msra.mxu0 %v6317
    %6321 = vmatprep.subr.bf16.mxu0 0
    %6322 = vmatpush1.bf16.msra.mxu0 0
    %6323 = vmatprep.subr.bf16.mxu0 0
    %6324 = vmatpush1.bf16.msra.mxu0 0
    %6325 = vmatprep.subr.bf16.mxu0 0
    %6326 = vmatpush1.bf16.msra.mxu0 0
    %6327 = vmatprep.subr.bf16.mxu0 0
    %6328 = vmatpush1.bf16.msra.mxu0 0
    %6329 = vmatprep.subr.bf16.mxu0 0
    %6330 = vmatpush1.bf16.msra.mxu0 0
    %6331 = vmatprep.subr.bf16.mxu0 0
    %6332 = vmatpush1.bf16.msra.mxu0 0
    %6333 = vmatprep.subr.bf16.mxu0 0
    %6334 = vmatpush1.bf16.msra.mxu0 0
    %6335 = vmatprep.subr.bf16.mxu0 0
    %6336 = vmatpush1.bf16.msra.mxu0 0
    %6337 = vmatprep.subr.bf16.mxu0 0
    %6338 = vmatpush1.bf16.msra.mxu0 0
    %6339 = vmatprep.subr.bf16.mxu0 0
    %6340 = vmatpush1.bf16.msra.mxu0 0
    %6341 = vmatprep.subr.bf16.mxu0 0
    %6342 = vmatpush1.bf16.msra.mxu0 0
    %6343 = vmatprep.subr.bf16.mxu0 0
    %6344 = vmatpush1.bf16.msra.mxu0 0
    %6345 = vmatprep.subr.bf16.mxu0 0
    %6346 = vmatpush1.bf16.msra.mxu0 0
    %6347 = vmatprep.subr.bf16.mxu0 0
    %6348 = vmatpush1.bf16.msra.mxu0 0
    %6349 = vmatprep.subr.bf16.mxu0 0
    %6350 = vmatpush1.bf16.msra.mxu0 0
    %6351 = vmatprep.mubr.bf16.mxu0 0
    %6352 = vmatmul.mubr.bf16.gmra.mrb[0].mxu0 %v6314
    %v6353 = vpop.f32.mrb[0].mxu0
    %v6354 = vadd.f32 %v6308, %v6353
    %v6355 = vpop.f32.mrb[0].mxu0
    %v6356 = vpop.f32.mrb[0].mxu0
    %v6357 = vpop.f32.mrb[0].mxu0
    %6358 = vdwg.mxu0
    %v6359 = vld [vmem:[#allocation2 + $0x40c] sm:$0x3]
    %v6360 = vpack.c.bf16 %v5762, %v5762
    %v6362 = vsel %vm156, %v6359, 0
    %v6365 = vsel %vm160, %v6360, 0
    %6367 = vmatprep.subr.bf16.mxu0 0
    %6368 = vmatpush1.bf16.msra.mxu0 %v6365
    %6369 = vmatprep.subr.bf16.mxu0 0
    %6370 = vmatpush1.bf16.msra.mxu0 0
    %6371 = vmatprep.subr.bf16.mxu0 0
    %6372 = vmatpush1.bf16.msra.mxu0 0
    %6373 = vmatprep.subr.bf16.mxu0 0
    %6374 = vmatpush1.bf16.msra.mxu0 0
    %6375 = vmatprep.subr.bf16.mxu0 0
    %6376 = vmatpush1.bf16.msra.mxu0 0
    %6377 = vmatprep.subr.bf16.mxu0 0
    %6378 = vmatpush1.bf16.msra.mxu0 0
    %6379 = vmatprep.subr.bf16.mxu0 0
    %6380 = vmatpush1.bf16.msra.mxu0 0
    %6381 = vmatprep.subr.bf16.mxu0 0
    %6382 = vmatpush1.bf16.msra.mxu0 0
    %6383 = vmatprep.subr.bf16.mxu0 0
    %6384 = vmatpush1.bf16.msra.mxu0 0
    %6385 = vmatprep.subr.bf16.mxu0 0
    %6386 = vmatpush1.bf16.msra.mxu0 0
    %6387 = vmatprep.subr.bf16.mxu0 0
    %6388 = vmatpush1.bf16.msra.mxu0 0
    %6389 = vmatprep.subr.bf16.mxu0 0
    %6390 = vmatpush1.bf16.msra.mxu0 0
    %6391 = vmatprep.subr.bf16.mxu0 0
    %6392 = vmatpush1.bf16.msra.mxu0 0
    %6393 = vmatprep.subr.bf16.mxu0 0
    %6394 = vmatpush1.bf16.msra.mxu0 0
    %6395 = vmatprep.subr.bf16.mxu0 0
    %6396 = vmatpush1.bf16.msra.mxu0 0
    %6397 = vmatprep.subr.bf16.mxu0 0
    %6398 = vmatpush1.bf16.msra.mxu0 0
    %6399 = vmatprep.mubr.bf16.mxu0 0
    %6400 = vmatmul.mubr.bf16.gmra.mrb[0].mxu0 %v6362
    %v6401 = vpop.f32.mrb[0].mxu0
    %v6402 = vadd.f32 0.0, %v6401
    %v6403 = vpop.f32.mrb[0].mxu0
    %v6404 = vpop.f32.mrb[0].mxu0
    %v6405 = vpop.f32.mrb[0].mxu0
    %6406 = vdwg.mxu0
    %v6407 = vadd.f32 %v6354, %v6402
    %v6408 = vld [vmem:[%s2 + $0x2b0] sm:$0xf]
    %6410 = vset.pattern.permute.xlu0 0
    %6411 = vperm.xlu0 %6410, %v6408
    %v6412 = vpop.permute.xlu0 %6411
    %v6414 = vadd.f32 %v6407, %v6412
    %6415 = vst [vmem:[#allocation5] sm:$0xf] %v6414
    // Predicated region
    $region18: #{tpu_custom_call.1} parent=1 // pred_check
      _
    $region19: #{tpu_custom_call.1} parent=1 // pred_check_branch
      %6417 = sbr.rel (0) target = $region21
    $region20: #{tpu_custom_call.1} parent=1 // pred_region
      %s6419 = ssub.s32 64, 64
      %6420 = vsyncadd [#allocation4], %s6419
      %s6422 = sshll.u32 [#allocation5], 4
      %s6423 = int_to_ptr.vmem [resolvable:$true] %s6422
      %6425 = dma.vmem_to_hbm [thread:$0]  %s6423, 64, %s3, [#allocation4]
    $region21: #{tpu_custom_call.1} parent=1 // pred_fallthru
      _
    // Predicated region
    $region22: #{tpu_custom_call.1} parent=1 // pred_check
      _
    $region23: #{tpu_custom_call.1} parent=1 // pred_check_branch
      %6427 = sbr.rel (0) target = $region25
    $region24: #{tpu_custom_call.1} parent=1 // pred_region
      %6428 = dma.done [#allocation4], 64
    $region25: #{tpu_custom_call.1} parent=1 // pred_fallthru
      _
    %6429 = vsyncpa [#allocation3], 1
    %6430 = vsyncpa [#allocation4], 1

</llo_original>
